<compile_context>
chip_gen: v6e
topology: v6e:2x2x1
jax: 0.10.0
libtpu: 0.0.40
codegen_flags: <defaults>
</compile_context>

<pallas_src>
import jax
import jax.numpy as jnp
from jax.experimental import pallas as pl
from jax.experimental.pallas import tpu as pltpu

P_DROP = 0.3

# conv4 padded-grid geometry (conv3 output is 22x22; conv4 pad=1 -> 24x24 grid).
GRID24 = 24                     # padded conv4 input grid side
GRIDSZ = GRID24 * GRID24        # 576 flattened padded positions
OUTW = 640                      # conv4 accumulator / output lane width (mult. of 128)
PADW = 768                      # lane width of the padded slab (>= OUTW + max tap shift 100)


# ----------------------------------------------------------------------------
# Kernel 1: conv1 (1x1) -> dropout -> sigmoid -> conv2 (1x1), channels-major.
# ----------------------------------------------------------------------------
def _head_kernel(x_ref, w1_ref, b1_ref, mask_ref, w2_ref, b2_ref, o_ref):
    h = jnp.dot(w1_ref[...], x_ref[...],
                preferred_element_type=jnp.float32) + b1_ref[...]     # [8, blk]
    h = jax.nn.sigmoid(h * mask_ref[...])                             # dropout + sigmoid
    o_ref[...] = (jnp.dot(w2_ref[...], h,
                          preferred_element_type=jnp.float32)
                  + b2_ref[...]).astype(o_ref.dtype)                  # [16, blk]


def fused_head(x_cm, w1, b1, mask, w2, b2, *, block=2048):
    c_in, m = x_cm.shape
    c_out = w2.shape[0]
    assert m % block == 0
    return pl.pallas_call(
        _head_kernel,
        out_shape=jax.ShapeDtypeStruct((c_out, m), jnp.float32),
        grid=(m // block,),
        in_specs=[
            pl.BlockSpec((c_in, block), lambda i: (0, i)),
            pl.BlockSpec(w1.shape, lambda i: (0, 0)),
            pl.BlockSpec(b1.shape, lambda i: (0, 0)),
            pl.BlockSpec((mask.shape[0], block), lambda i: (0, i)),
            pl.BlockSpec(w2.shape, lambda i: (0, 0)),
            pl.BlockSpec(b2.shape, lambda i: (0, 0)),
        ],
        out_specs=pl.BlockSpec((c_out, block), lambda i: (0, i)),
        compiler_params=pltpu.CompilerParams(dimension_semantics=("parallel",)),
    )(x_cm, w1, b1, mask, w2, b2)


# ----------------------------------------------------------------------------
# Kernel 2: conv3 (im2col matmul) -> sigmoid -> conv4 (25 shifted-tap matmuls)
#           -> sigmoid, all in VMEM, channels-major / lane-dense.
# ----------------------------------------------------------------------------
def _conv34_kernel(p3_ref, w3_ref, b3_ref, mask_ref, w4_ref, b4_ref, o_ref):
    # conv3: lane l of p3 is padded-grid position (hp, wp) = (l//24, l%24).
    v4 = jnp.dot(w3_ref[...], p3_ref[...],
                 preferred_element_type=jnp.float32) + b3_ref[...]    # [8, PADW]
    v5 = jax.nn.sigmoid(v4) * mask_ref[...]          # zero outside the valid 22x22 interior

    # conv4: tap (di, dj) is a constant lane shift of di*24 + dj (always < 128)
    # on the flattened padded grid -> [8,8] @ [8, OUTW] matmul per tap.
    acc = jnp.zeros((8, OUTW), jnp.float32)
    for t in range(25):
        off = (t // 5) * GRID24 + (t % 5)
        acc = acc + jnp.dot(w4_ref[t], v5[:, off:off + OUTW],
                            preferred_element_type=jnp.float32)
    o_ref[...] = jax.nn.sigmoid(acc + b4_ref[...]).astype(o_ref.dtype)


def conv34_fused(p3, w3, b3, mask, w4taps, b4):
    return pl.pallas_call(
        _conv34_kernel,
        out_shape=jax.ShapeDtypeStruct((8, OUTW), jnp.float32),
        grid=(1,),
        in_specs=[
            pl.BlockSpec(p3.shape, lambda i: (0, 0)),
            pl.BlockSpec(w3.shape, lambda i: (0, 0)),
            pl.BlockSpec(b3.shape, lambda i: (0, 0)),
            pl.BlockSpec(mask.shape, lambda i: (0, 0)),
            pl.BlockSpec(w4taps.shape, lambda i: (0, 0, 0)),
            pl.BlockSpec(b4.shape, lambda i: (0, 0)),
        ],
        out_specs=pl.BlockSpec((8, OUTW), lambda i: (0, 0)),
        compiler_params=pltpu.CompilerParams(dimension_semantics=("arbitrary",)),
    )(p3, w3, b3, mask, w4taps, b4)


# ----------------------------------------------------------------------------
# Parameters (PyTorch Conv2d default init semantics) and forward pass.
# ----------------------------------------------------------------------------
def init_params(key):
    keys = jax.random.split(key, 8)

    def conv_w(k, cout, cin, kh, kw):
        bound = 1.0 / jnp.sqrt(cin * kh * kw)
        return jax.random.uniform(k, (cout, cin, kh, kw), jnp.float32, -bound, bound)

    def conv_b(k, cout, fan_in):
        bound = 1.0 / jnp.sqrt(fan_in)
        return jax.random.uniform(k, (cout,), jnp.float32, -bound, bound)

    return {
        "w1": conv_w(keys[0], 8, 3, 1, 1),  "b1": conv_b(keys[1], 8, 3),
        "w2": conv_w(keys[2], 16, 8, 1, 1), "b2": conv_b(keys[3], 16, 8),
        "w3": conv_w(keys[4], 8, 16, 3, 3), "b3": conv_b(keys[5], 8, 16 * 9),
        "w4": conv_w(keys[6], 8, 8, 5, 5),  "b4": conv_b(keys[7], 8, 8 * 25),
    }


def model_forward(x_nchw, params, dropout_key):
    n, c, h, w = x_nchw.shape
    assert (n, c, h, w) == (1, 3, 64, 64)
    m = h * w
    x_cm = x_nchw[0].reshape(c, m)                                    # [3, 4096]

    # --- head: conv1 -> dropout(train mode) -> sigmoid -> conv2 ---------------
    keep = jax.random.uniform(dropout_key, (8, m)) >= P_DROP
    drop_mask = keep.astype(jnp.float32) * (1.0 / (1.0 - P_DROP))     # pre-scaled mask
    w1 = params["w1"].reshape(8, 3)
    w2 = params["w2"].reshape(16, 8)
    v3_cm = fused_head(x_cm, w1, params["b1"].reshape(8, 1),
                       drop_mask, w2, params["b2"].reshape(16, 1))    # [16, 4096]
    v3 = v3_cm.reshape(16, h, w)

    # --- conv3 im2col (k=3, s=3, p=1), channels-major, lane axis = flattened
    #     zero-padded 24x24 conv4 input grid (so kernel 2 can fuse conv4). ------
    # TODO(synk): conv3's stride-3 im2col stays as cheap host-side XLA slicing;
    #             fusing it into the kernel would need in-kernel strided gathers.
    v3p = jnp.pad(v3, ((0, 0), (1, 1), (1, 1)))                       # [16, 66, 66]
    cols = []
    for di in range(3):
        for dj in range(3):
            cols.append(v3p[:, di:di + 64:3, dj:dj + 64:3])           # [16, 22, 22]
    p3 = jnp.concatenate(cols, axis=0)                                # [144, 22, 22]
    p3 = jnp.pad(p3, ((0, 0), (1, 1), (1, 1)))                        # [144, 24, 24]
    p3 = jnp.pad(p3.reshape(144, GRIDSZ), ((0, 0), (0, PADW - GRIDSZ)))   # [144, PADW]

    interior = jnp.pad(jnp.ones((1, 22, 22), jnp.float32), ((0, 0), (1, 1), (1, 1)))
    interior = jnp.pad(interior.reshape(1, GRIDSZ), ((0, 0), (0, PADW - GRIDSZ)))

    # weight layouts matching the kernel's feature / tap ordering
    w3 = jnp.transpose(params["w3"], (0, 2, 3, 1)).reshape(8, 144)    # [co, (di,dj,ci)]
    w4taps = jnp.transpose(params["w4"], (2, 3, 0, 1)).reshape(25, 8, 8)  # [tap, co, ci]

    out_pad = conv34_fused(p3, w3, params["b3"].reshape(8, 1), interior,
                           w4taps, params["b4"].reshape(8, 1))        # [8, 640]
    out = out_pad[:, :GRIDSZ].reshape(8, GRID24, GRID24)[:, :20, :20]  # [8, 20, 20]
    return out[None]                                                  # [1, 8, 20, 20] NCHW


if __name__ == "__main__":
    key = jax.random.PRNGKey(0)
    pkey, xkey, dkey = jax.random.split(key, 3)
    params = init_params(pkey)
    x1 = jax.random.normal(xkey, (1, 3, 64, 64), jnp.float32)

    fwd = jax.jit(model_forward)
    out = jax.block_until_ready(fwd(x1, params, dkey))
    assert out.shape == (1, 8, 20, 20), out.shape
    assert bool(jnp.all(jnp.isfinite(out)))
    print("KERNEL_OK")
</pallas_src>

<mosaic_0001>
module attributes {stable_mosaic.version = 11 : i64} {
  func.func @_head_kernel(%arg0: i32, %arg1: memref<3x2048xf32, #tpu.memory_space<vmem>>, %arg2: memref<8x3xf32, #tpu.memory_space<vmem>>, %arg3: memref<8x1xf32, #tpu.memory_space<vmem>>, %arg4: memref<8x2048xf32, #tpu.memory_space<vmem>>, %arg5: memref<16x8xf32, #tpu.memory_space<vmem>>, %arg6: memref<16x1xf32, #tpu.memory_space<vmem>>, %arg7: memref<16x2048xf32, #tpu.memory_space<vmem>>) attributes {dimension_semantics = [#tpu.dimension_semantics<parallel>], iteration_bounds = array<i64: 2>, scalar_prefetch = 0 : i64, scratch_operands = 0 : i64, tpu.core_type = #tpu.core_type<tc>, window_params = [{transform_indices = @transform_0, window_bounds = array<i64: 3, 2048>}, {pipeline_mode = #tpu.pipeline_mode<synchronous>, transform_indices = @transform_1, window_bounds = array<i64: 8, 3>}, {pipeline_mode = #tpu.pipeline_mode<synchronous>, transform_indices = @transform_2, window_bounds = array<i64: 8, 1>}, {transform_indices = @transform_3, window_bounds = array<i64: 8, 2048>}, {pipeline_mode = #tpu.pipeline_mode<synchronous>, transform_indices = @transform_4, window_bounds = array<i64: 16, 8>}, {pipeline_mode = #tpu.pipeline_mode<synchronous>, transform_indices = @transform_5, window_bounds = array<i64: 16, 1>}, {transform_indices = @transform_6, window_bounds = array<i64: 16, 2048>}]} {
    %c0 = arith.constant 0 : index
    %c0_0 = arith.constant 0 : index
    %0 = vector.load %arg2[%c0, %c0_0] : memref<8x3xf32, #tpu.memory_space<vmem>>, vector<8x3xf32>
    %c0_1 = arith.constant 0 : index
    %c0_2 = arith.constant 0 : index
    %1 = vector.load %arg1[%c0_1, %c0_2] : memref<3x2048xf32, #tpu.memory_space<vmem>>, vector<3x2048xf32>
    %cst = arith.constant dense<0.000000e+00> : vector<8x2048xf32>
    %2 = tpu.matmul %0, %1, %cst {dimension_numbers = #tpu.dot_dimension_numbers<[1], [0], [0], [1], [0, 0, 1, 1], [], []>} : vector<8x3xf32>, vector<3x2048xf32>, vector<8x2048xf32> -> vector<8x2048xf32>
    %c0_3 = arith.constant 0 : index
    %c0_4 = arith.constant 0 : index
    %3 = vector.load %arg3[%c0_3, %c0_4] : memref<8x1xf32, #tpu.memory_space<vmem>>, vector<8x1xf32>
    %4 = vector.broadcast %3 : vector<8x1xf32> to vector<8x2048xf32>
    %5 = arith.addf %2, %4 : vector<8x2048xf32>
    %c0_5 = arith.constant 0 : index
    %c0_6 = arith.constant 0 : index
    %6 = vector.load %arg4[%c0_5, %c0_6] : memref<8x2048xf32, #tpu.memory_space<vmem>>, vector<8x2048xf32>
    %7 = arith.mulf %5, %6 : vector<8x2048xf32>
    %8 = arith.negf %7 : vector<8x2048xf32>
    %9 = math.exp %8 : vector<8x2048xf32>
    %cst_7 = arith.constant 1.000000e+00 : f32
    %10 = vector.broadcast %cst_7 : f32 to vector<8x2048xf32>
    %11 = arith.addf %10, %9 : vector<8x2048xf32>
    %12 = arith.divf %10, %11 : vector<8x2048xf32>
    %c0_8 = arith.constant 0 : index
    %c0_9 = arith.constant 0 : index
    %13 = vector.load %arg5[%c0_8, %c0_9] : memref<16x8xf32, #tpu.memory_space<vmem>>, vector<16x8xf32>
    %cst_10 = arith.constant dense<0.000000e+00> : vector<16x2048xf32>
    %14 = tpu.matmul %13, %12, %cst_10 {dimension_numbers = #tpu.dot_dimension_numbers<[1], [0], [0], [1], [0, 0, 1, 1], [], []>} : vector<16x8xf32>, vector<8x2048xf32>, vector<16x2048xf32> -> vector<16x2048xf32>
    %c0_11 = arith.constant 0 : index
    %c0_12 = arith.constant 0 : index
    %15 = vector.load %arg6[%c0_11, %c0_12] : memref<16x1xf32, #tpu.memory_space<vmem>>, vector<16x1xf32>
    %16 = vector.broadcast %15 : vector<16x1xf32> to vector<16x2048xf32>
    %17 = arith.addf %14, %16 : vector<16x2048xf32>
    %c0_13 = arith.constant 0 : index
    %c0_14 = arith.constant 0 : index
    %18 = vector.load %arg7[%c0_13, %c0_14] : memref<16x2048xf32, #tpu.memory_space<vmem>>, vector<16x2048xf32>
    tpu.vector_store %arg7[%c0_13, %c0_14], %17 {strides = array<i32>} : memref<16x2048xf32, #tpu.memory_space<vmem>>, vector<16x2048xf32>,
    return
  }
  func.func @transform_0(%arg0: i32) -> (i32, i32) {
    %c0_i32 = arith.constant 0 : i32
    %c0_i32_0 = arith.constant 0 : i32
    return %c0_i32, %arg0 : i32, i32
  }
  func.func @transform_1(%arg0: i32) -> (i32, i32) {
    %c0_i32 = arith.constant 0 : i32
    %c0_i32_0 = arith.constant 0 : i32
    %c0_i32_1 = arith.constant 0 : i32
    return %c0_i32, %c0_i32_0 : i32, i32
  }
  func.func @transform_2(%arg0: i32) -> (i32, i32) {
    %c0_i32 = arith.constant 0 : i32
    %c0_i32_0 = arith.constant 0 : i32
    %c0_i32_1 = arith.constant 0 : i32
    return %c0_i32, %c0_i32_0 : i32, i32
  }
  func.func @transform_3(%arg0: i32) -> (i32, i32) {
    %c0_i32 = arith.constant 0 : i32
    %c0_i32_0 = arith.constant 0 : i32
    return %c0_i32, %arg0 : i32, i32
  }
  func.func @transform_4(%arg0: i32) -> (i32, i32) {
    %c0_i32 = arith.constant 0 : i32
    %c0_i32_0 = arith.constant 0 : i32
    %c0_i32_1 = arith.constant 0 : i32
    return %c0_i32, %c0_i32_0 : i32, i32
  }
  func.func @transform_5(%arg0: i32) -> (i32, i32) {
    %c0_i32 = arith.constant 0 : i32
    %c0_i32_0 = arith.constant 0 : i32
    %c0_i32_1 = arith.constant 0 : i32
    return %c0_i32, %c0_i32_0 : i32, i32
  }
  func.func @transform_6(%arg0: i32) -> (i32, i32) {
    %c0_i32 = arith.constant 0 : i32
    %c0_i32_0 = arith.constant 0 : i32
    return %c0_i32, %arg0 : i32, i32
  }
}

module attributes {stable_mosaic.version = 11 : i64} {
  func.func @_conv34_kernel(%arg0: i32, %arg1: memref<144x768xf32, #tpu.memory_space<vmem>>, %arg2: memref<8x144xf32, #tpu.memory_space<vmem>>, %arg3: memref<8x1xf32, #tpu.memory_space<vmem>>, %arg4: memref<1x768xf32, #tpu.memory_space<vmem>>, %arg5: memref<25x8x8xf32, #tpu.memory_space<vmem>>, %arg6: memref<8x1xf32, #tpu.memory_space<vmem>>, %arg7: memref<8x640xf32, #tpu.memory_space<vmem>>) attributes {dimension_semantics = [#tpu.dimension_semantics<arbitrary>], iteration_bounds = array<i64: 1>, scalar_prefetch = 0 : i64, scratch_operands = 0 : i64, tpu.core_type = #tpu.core_type<tc>, window_params = [{pipeline_mode = #tpu.pipeline_mode<synchronous>, transform_indices = @transform_0, window_bounds = array<i64: 144, 768>}, {pipeline_mode = #tpu.pipeline_mode<synchronous>, transform_indices = @transform_1, window_bounds = array<i64: 8, 144>}, {pipeline_mode = #tpu.pipeline_mode<synchronous>, transform_indices = @transform_2, window_bounds = array<i64: 8, 1>}, {pipeline_mode = #tpu.pipeline_mode<synchronous>, transform_indices = @transform_3, window_bounds = array<i64: 1, 768>}, {pipeline_mode = #tpu.pipeline_mode<synchronous>, transform_indices = @transform_4, window_bounds = array<i64: 25, 8, 8>}, {pipeline_mode = #tpu.pipeline_mode<synchronous>, transform_indices = @transform_5, window_bounds = array<i64: 8, 1>}, {pipeline_mode = #tpu.pipeline_mode<synchronous>, transform_indices = @transform_6, window_bounds = array<i64: 8, 640>}]} {
    %c0 = arith.constant 0 : index
    %c0_0 = arith.constant 0 : index
    %0 = vector.load %arg2[%c0, %c0_0] : memref<8x144xf32, #tpu.memory_space<vmem>>, vector<8x144xf32>
    %c0_1 = arith.constant 0 : index
    %c0_2 = arith.constant 0 : index
    %1 = vector.load %arg1[%c0_1, %c0_2] : memref<144x768xf32, #tpu.memory_space<vmem>>, vector<144x768xf32>
    %cst = arith.constant dense<0.000000e+00> : vector<8x768xf32>
    %2 = tpu.matmul %0, %1, %cst {dimension_numbers = #tpu.dot_dimension_numbers<[1], [0], [0], [1], [0, 0, 1, 1], [], []>} : vector<8x144xf32>, vector<144x768xf32>, vector<8x768xf32> -> vector<8x768xf32>
    %c0_3 = arith.constant 0 : index
    %c0_4 = arith.constant 0 : index
    %3 = vector.load %arg3[%c0_3, %c0_4] : memref<8x1xf32, #tpu.memory_space<vmem>>, vector<8x1xf32>
    %4 = vector.broadcast %3 : vector<8x1xf32> to vector<8x768xf32>
    %5 = arith.addf %2, %4 : vector<8x768xf32>
    %6 = arith.negf %5 : vector<8x768xf32>
    %7 = math.exp %6 : vector<8x768xf32>
    %cst_5 = arith.constant 1.000000e+00 : f32
    %8 = vector.broadcast %cst_5 : f32 to vector<8x768xf32>
    %9 = arith.addf %8, %7 : vector<8x768xf32>
    %10 = arith.divf %8, %9 : vector<8x768xf32>
    %c0_6 = arith.constant 0 : index
    %c0_7 = arith.constant 0 : index
    %11 = vector.load %arg4[%c0_6, %c0_7] : memref<1x768xf32, #tpu.memory_space<vmem>>, vector<1x768xf32>
    %12 = vector.broadcast %11 : vector<1x768xf32> to vector<8x768xf32>
    %13 = arith.mulf %10, %12 : vector<8x768xf32>
    %cst_8 = arith.constant 0.000000e+00 : f32
    %14 = vector.broadcast %cst_8 : f32 to vector<8x640xf32>
    %c0_9 = arith.constant 0 : index
    %c0_10 = arith.constant 0 : index
    %c0_11 = arith.constant 0 : index
    %15 = vector.load %arg5[%c0_9, %c0_10, %c0_11] : memref<25x8x8xf32, #tpu.memory_space<vmem>>, vector<1x8x8xf32>
    %16 = vector.shape_cast %15 : vector<1x8x8xf32> to vector<8x8xf32>
    %17 = vector.extract_strided_slice %13 {offsets = [0, 0], sizes = [8, 640], strides = [1, 1]} : vector<8x768xf32> to vector<8x640xf32>
    %cst_12 = arith.constant dense<0.000000e+00> : vector<8x640xf32>
    %18 = tpu.matmul %16, %17, %cst_12 {dimension_numbers = #tpu.dot_dimension_numbers<[1], [0], [0], [1], [0, 0, 1, 1], [], []>} : vector<8x8xf32>, vector<8x640xf32>, vector<8x640xf32> -> vector<8x640xf32>
    %19 = arith.addf %14, %18 : vector<8x640xf32>
    %c1 = arith.constant 1 : index
    %c0_13 = arith.constant 0 : index
    %c0_14 = arith.constant 0 : index
    %20 = vector.load %arg5[%c1, %c0_13, %c0_14] : memref<25x8x8xf32, #tpu.memory_space<vmem>>, vector<1x8x8xf32>
    %21 = vector.shape_cast %20 : vector<1x8x8xf32> to vector<8x8xf32>
    %22 = vector.extract_strided_slice %13 {offsets = [0, 1], sizes = [8, 640], strides = [1, 1]} : vector<8x768xf32> to vector<8x640xf32>
    %cst_15 = arith.constant dense<0.000000e+00> : vector<8x640xf32>
    %23 = tpu.matmul %21, %22, %cst_15 {dimension_numbers = #tpu.dot_dimension_numbers<[1], [0], [0], [1], [0, 0, 1, 1], [], []>} : vector<8x8xf32>, vector<8x640xf32>, vector<8x640xf32> -> vector<8x640xf32>
    %24 = arith.addf %19, %23 : vector<8x640xf32>
    %c2 = arith.constant 2 : index
    %c0_16 = arith.constant 0 : index
    %c0_17 = arith.constant 0 : index
    %25 = vector.load %arg5[%c2, %c0_16, %c0_17] : memref<25x8x8xf32, #tpu.memory_space<vmem>>, vector<1x8x8xf32>
    %26 = vector.shape_cast %25 : vector<1x8x8xf32> to vector<8x8xf32>
    %27 = vector.extract_strided_slice %13 {offsets = [0, 2], sizes = [8, 640], strides = [1, 1]} : vector<8x768xf32> to vector<8x640xf32>
    %cst_18 = arith.constant dense<0.000000e+00> : vector<8x640xf32>
    %28 = tpu.matmul %26, %27, %cst_18 {dimension_numbers = #tpu.dot_dimension_numbers<[1], [0], [0], [1], [0, 0, 1, 1], [], []>} : vector<8x8xf32>, vector<8x640xf32>, vector<8x640xf32> -> vector<8x640xf32>
    %29 = arith.addf %24, %28 : vector<8x640xf32>
    %c3 = arith.constant 3 : index
    %c0_19 = arith.constant 0 : index
    %c0_20 = arith.constant 0 : index
    %30 = vector.load %arg5[%c3, %c0_19, %c0_20] : memref<25x8x8xf32, #tpu.memory_space<vmem>>, vector<1x8x8xf32>
    %31 = vector.shape_cast %30 : vector<1x8x8xf32> to vector<8x8xf32>
    %32 = vector.extract_strided_slice %13 {offsets = [0, 3], sizes = [8, 640], strides = [1, 1]} : vector<8x768xf32> to vector<8x640xf32>
    %cst_21 = arith.constant dense<0.000000e+00> : vector<8x640xf32>
    %33 = tpu.matmul %31, %32, %cst_21 {dimension_numbers = #tpu.dot_dimension_numbers<[1], [0], [0], [1], [0, 0, 1, 1], [], []>} : vector<8x8xf32>, vector<8x640xf32>, vector<8x640xf32> -> vector<8x640xf32>
    %34 = arith.addf %29, %33 : vector<8x640xf32>
    %c4 = arith.constant 4 : index
    %c0_22 = arith.constant 0 : index
    %c0_23 = arith.constant 0 : index
    %35 = vector.load %arg5[%c4, %c0_22, %c0_23] : memref<25x8x8xf32, #tpu.memory_space<vmem>>, vector<1x8x8xf32>
    %36 = vector.shape_cast %35 : vector<1x8x8xf32> to vector<8x8xf32>
    %37 = vector.extract_strided_slice %13 {offsets = [0, 4], sizes = [8, 640], strides = [1, 1]} : vector<8x768xf32> to vector<8x640xf32>
    %cst_24 = arith.constant dense<0.000000e+00> : vector<8x640xf32>
    %38 = tpu.matmul %36, %37, %cst_24 {dimension_numbers = #tpu.dot_dimension_numbers<[1], [0], [0], [1], [0, 0, 1, 1], [], []>} : vector<8x8xf32>, vector<8x640xf32>, vector<8x640xf32> -> vector<8x640xf32>
    %39 = arith.addf %34, %38 : vector<8x640xf32>
    %c5 = arith.constant 5 : index
    %c0_25 = arith.constant 0 : index
    %c0_26 = arith.constant 0 : index
    %40 = vector.load %arg5[%c5, %c0_25, %c0_26] : memref<25x8x8xf32, #tpu.memory_space<vmem>>, vector<1x8x8xf32>
    %41 = vector.shape_cast %40 : vector<1x8x8xf32> to vector<8x8xf32>
    %42 = vector.extract_strided_slice %13 {offsets = [0, 24], sizes = [8, 640], strides = [1, 1]} : vector<8x768xf32> to vector<8x640xf32>
    %cst_27 = arith.constant dense<0.000000e+00> : vector<8x640xf32>
    %43 = tpu.matmul %41, %42, %cst_27 {dimension_numbers = #tpu.dot_dimension_numbers<[1], [0], [0], [1], [0, 0, 1, 1], [], []>} : vector<8x8xf32>, vector<8x640xf32>, vector<8x640xf32> -> vector<8x640xf32>
    %44 = arith.addf %39, %43 : vector<8x640xf32>
    %c6 = arith.constant 6 : index
    %c0_28 = arith.constant 0 : index
    %c0_29 = arith.constant 0 : index
    %45 = vector.load %arg5[%c6, %c0_28, %c0_29] : memref<25x8x8xf32, #tpu.memory_space<vmem>>, vector<1x8x8xf32>
    %46 = vector.shape_cast %45 : vector<1x8x8xf32> to vector<8x8xf32>
    %47 = vector.extract_strided_slice %13 {offsets = [0, 25], sizes = [8, 640], strides = [1, 1]} : vector<8x768xf32> to vector<8x640xf32>
    %cst_30 = arith.constant dense<0.000000e+00> : vector<8x640xf32>
    %48 = tpu.matmul %46, %47, %cst_30 {dimension_numbers = #tpu.dot_dimension_numbers<[1], [0], [0], [1], [0, 0, 1, 1], [], []>} : vector<8x8xf32>, vector<8x640xf32>, vector<8x640xf32> -> vector<8x640xf32>
    %49 = arith.addf %44, %48 : vector<8x640xf32>
    %c7 = arith.constant 7 : index
    %c0_31 = arith.constant 0 : index
    %c0_32 = arith.constant 0 : index
    %50 = vector.load %arg5[%c7, %c0_31, %c0_32] : memref<25x8x8xf32, #tpu.memory_space<vmem>>, vector<1x8x8xf32>
    %51 = vector.shape_cast %50 : vector<1x8x8xf32> to vector<8x8xf32>
    %52 = vector.extract_strided_slice %13 {offsets = [0, 26], sizes = [8, 640], strides = [1, 1]} : vector<8x768xf32> to vector<8x640xf32>
    %cst_33 = arith.constant dense<0.000000e+00> : vector<8x640xf32>
    %53 = tpu.matmul %51, %52, %cst_33 {dimension_numbers = #tpu.dot_dimension_numbers<[1], [0], [0], [1], [0, 0, 1, 1], [], []>} : vector<8x8xf32>, vector<8x640xf32>, vector<8x640xf32> -> vector<8x640xf32>
    %54 = arith.addf %49, %53 : vector<8x640xf32>
    %c8 = arith.constant 8 : index
    %c0_34 = arith.constant 0 : index
    %c0_35 = arith.constant 0 : index
    %55 = vector.load %arg5[%c8, %c0_34, %c0_35] : memref<25x8x8xf32, #tpu.memory_space<vmem>>, vector<1x8x8xf32>
    %56 = vector.shape_cast %55 : vector<1x8x8xf32> to vector<8x8xf32>
    %57 = vector.extract_strided_slice %13 {offsets = [0, 27], sizes = [8, 640], strides = [1, 1]} : vector<8x768xf32> to vector<8x640xf32>
    %cst_36 = arith.constant dense<0.000000e+00> : vector<8x640xf32>
    %58 = tpu.matmul %56, %57, %cst_36 {dimension_numbers = #tpu.dot_dimension_numbers<[1], [0], [0], [1], [0, 0, 1, 1], [], []>} : vector<8x8xf32>, vector<8x640xf32>, vector<8x640xf32> -> vector<8x640xf32>
    %59 = arith.addf %54, %58 : vector<8x640xf32>
    %c9 = arith.constant 9 : index
    %c0_37 = arith.constant 0 : index
    %c0_38 = arith.constant 0 : index
    %60 = vector.load %arg5[%c9, %c0_37, %c0_38] : memref<25x8x8xf32, #tpu.memory_space<vmem>>, vector<1x8x8xf32>
    %61 = vector.shape_cast %60 : vector<1x8x8xf32> to vector<8x8xf32>
    %62 = vector.extract_strided_slice %13 {offsets = [0, 28], sizes = [8, 640], strides = [1, 1]} : vector<8x768xf32> to vector<8x640xf32>
    %cst_39 = arith.constant dense<0.000000e+00> : vector<8x640xf32>
    %63 = tpu.matmul %61, %62, %cst_39 {dimension_numbers = #tpu.dot_dimension_numbers<[1], [0], [0], [1], [0, 0, 1, 1], [], []>} : vector<8x8xf32>, vector<8x640xf32>, vector<8x640xf32> -> vector<8x640xf32>
    %64 = arith.addf %59, %63 : vector<8x640xf32>
    %c10 = arith.constant 10 : index
    %c0_40 = arith.constant 0 : index
    %c0_41 = arith.constant 0 : index
    %65 = vector.load %arg5[%c10, %c0_40, %c0_41] : memref<25x8x8xf32, #tpu.memory_space<vmem>>, vector<1x8x8xf32>
    %66 = vector.shape_cast %65 : vector<1x8x8xf32> to vector<8x8xf32>
    %67 = vector.extract_strided_slice %13 {offsets = [0, 48], sizes = [8, 640], strides = [1, 1]} : vector<8x768xf32> to vector<8x640xf32>
    %cst_42 = arith.constant dense<0.000000e+00> : vector<8x640xf32>
    %68 = tpu.matmul %66, %67, %cst_42 {dimension_numbers = #tpu.dot_dimension_numbers<[1], [0], [0], [1], [0, 0, 1, 1], [], []>} : vector<8x8xf32>, vector<8x640xf32>, vector<8x640xf32> -> vector<8x640xf32>
    %69 = arith.addf %64, %68 : vector<8x640xf32>
    %c11 = arith.constant 11 : index
    %c0_43 = arith.constant 0 : index
    %c0_44 = arith.constant 0 : index
    %70 = vector.load %arg5[%c11, %c0_43, %c0_44] : memref<25x8x8xf32, #tpu.memory_space<vmem>>, vector<1x8x8xf32>
    %71 = vector.shape_cast %70 : vector<1x8x8xf32> to vector<8x8xf32>
    %72 = vector.extract_strided_slice %13 {offsets = [0, 49], sizes = [8, 640], strides = [1, 1]} : vector<8x768xf32> to vector<8x640xf32>
    %cst_45 = arith.constant dense<0.000000e+00> : vector<8x640xf32>
    %73 = tpu.matmul %71, %72, %cst_45 {dimension_numbers = #tpu.dot_dimension_numbers<[1], [0], [0], [1], [0, 0, 1, 1], [], []>} : vector<8x8xf32>, vector<8x640xf32>, vector<8x640xf32> -> vector<8x640xf32>
    %74 = arith.addf %69, %73 : vector<8x640xf32>
    %c12 = arith.constant 12 : index
    %c0_46 = arith.constant 0 : index
    %c0_47 = arith.constant 0 : index
    %75 = vector.load %arg5[%c12, %c0_46, %c0_47] : memref<25x8x8xf32, #tpu.memory_space<vmem>>, vector<1x8x8xf32>
    %76 = vector.shape_cast %75 : vector<1x8x8xf32> to vector<8x8xf32>
    %77 = vector.extract_strided_slice %13 {offsets = [0, 50], sizes = [8, 640], strides = [1, 1]} : vector<8x768xf32> to vector<8x640xf32>
    %cst_48 = arith.constant dense<0.000000e+00> : vector<8x640xf32>
    %78 = tpu.matmul %76, %77, %cst_48 {dimension_numbers = #tpu.dot_dimension_numbers<[1], [0], [0], [1], [0, 0, 1, 1], [], []>} : vector<8x8xf32>, vector<8x640xf32>, vector<8x640xf32> -> vector<8x640xf32>
    %79 = arith.addf %74, %78 : vector<8x640xf32>
    %c13 = arith.constant 13 : index
    %c0_49 = arith.constant 0 : index
    %c0_50 = arith.constant 0 : index
    %80 = vector.load %arg5[%c13, %c0_49, %c0_50] : memref<25x8x8xf32, #tpu.memory_space<vmem>>, vector<1x8x8xf32>
    %81 = vector.shape_cast %80 : vector<1x8x8xf32> to vector<8x8xf32>
    %82 = vector.extract_strided_slice %13 {offsets = [0, 51], sizes = [8, 640], strides = [1, 1]} : vector<8x768xf32> to vector<8x640xf32>
    %cst_51 = arith.constant dense<0.000000e+00> : vector<8x640xf32>
    %83 = tpu.matmul %81, %82, %cst_51 {dimension_numbers = #tpu.dot_dimension_numbers<[1], [0], [0], [1], [0, 0, 1, 1], [], []>} : vector<8x8xf32>, vector<8x640xf32>, vector<8x640xf32> -> vector<8x640xf32>
    %84 = arith.addf %79, %83 : vector<8x640xf32>
    %c14 = arith.constant 14 : index
    %c0_52 = arith.constant 0 : index
    %c0_53 = arith.constant 0 : index
    %85 = vector.load %arg5[%c14, %c0_52, %c0_53] : memref<25x8x8xf32, #tpu.memory_space<vmem>>, vector<1x8x8xf32>
    %86 = vector.shape_cast %85 : vector<1x8x8xf32> to vector<8x8xf32>
    %87 = vector.extract_strided_slice %13 {offsets = [0, 52], sizes = [8, 640], strides = [1, 1]} : vector<8x768xf32> to vector<8x640xf32>
    %cst_54 = arith.constant dense<0.000000e+00> : vector<8x640xf32>
    %88 = tpu.matmul %86, %87, %cst_54 {dimension_numbers = #tpu.dot_dimension_numbers<[1], [0], [0], [1], [0, 0, 1, 1], [], []>} : vector<8x8xf32>, vector<8x640xf32>, vector<8x640xf32> -> vector<8x640xf32>
    %89 = arith.addf %84, %88 : vector<8x640xf32>
    %c15 = arith.constant 15 : index
    %c0_55 = arith.constant 0 : index
    %c0_56 = arith.constant 0 : index
    %90 = vector.load %arg5[%c15, %c0_55, %c0_56] : memref<25x8x8xf32, #tpu.memory_space<vmem>>, vector<1x8x8xf32>
    %91 = vector.shape_cast %90 : vector<1x8x8xf32> to vector<8x8xf32>
    %92 = vector.extract_strided_slice %13 {offsets = [0, 72], sizes = [8, 640], strides = [1, 1]} : vector<8x768xf32> to vector<8x640xf32>
    %cst_57 = arith.constant dense<0.000000e+00> : vector<8x640xf32>
    %93 = tpu.matmul %91, %92, %cst_57 {dimension_numbers = #tpu.dot_dimension_numbers<[1], [0], [0], [1], [0, 0, 1, 1], [], []>} : vector<8x8xf32>, vector<8x640xf32>, vector<8x640xf32> -> vector<8x640xf32>
    %94 = arith.addf %89, %93 : vector<8x640xf32>
    %c16 = arith.constant 16 : index
    %c0_58 = arith.constant 0 : index
    %c0_59 = arith.constant 0 : index
    %95 = vector.load %arg5[%c16, %c0_58, %c0_59] : memref<25x8x8xf32, #tpu.memory_space<vmem>>, vector<1x8x8xf32>
    %96 = vector.shape_cast %95 : vector<1x8x8xf32> to vector<8x8xf32>
    %97 = vector.extract_strided_slice %13 {offsets = [0, 73], sizes = [8, 640], strides = [1, 1]} : vector<8x768xf32> to vector<8x640xf32>
    %cst_60 = arith.constant dense<0.000000e+00> : vector<8x640xf32>
    %98 = tpu.matmul %96, %97, %cst_60 {dimension_numbers = #tpu.dot_dimension_numbers<[1], [0], [0], [1], [0, 0, 1, 1], [], []>} : vector<8x8xf32>, vector<8x640xf32>, vector<8x640xf32> -> vector<8x640xf32>
    %99 = arith.addf %94, %98 : vector<8x640xf32>
    %c17 = arith.constant 17 : index
    %c0_61 = arith.constant 0 : index
    %c0_62 = arith.constant 0 : index
    %100 = vector.load %arg5[%c17, %c0_61, %c0_62] : memref<25x8x8xf32, #tpu.memory_space<vmem>>, vector<1x8x8xf32>
    %101 = vector.shape_cast %100 : vector<1x8x8xf32> to vector<8x8xf32>
    %102 = vector.extract_strided_slice %13 {offsets = [0, 74], sizes = [8, 640], strides = [1, 1]} : vector<8x768xf32> to vector<8x640xf32>
    %cst_63 = arith.constant dense<0.000000e+00> : vector<8x640xf32>
    %103 = tpu.matmul %101, %102, %cst_63 {dimension_numbers = #tpu.dot_dimension_numbers<[1], [0], [0], [1], [0, 0, 1, 1], [], []>} : vector<8x8xf32>, vector<8x640xf32>, vector<8x640xf32> -> vector<8x640xf32>
    %104 = arith.addf %99, %103 : vector<8x640xf32>
    %c18 = arith.constant 18 : index
    %c0_64 = arith.constant 0 : index
    %c0_65 = arith.constant 0 : index
    %105 = vector.load %arg5[%c18, %c0_64, %c0_65] : memref<25x8x8xf32, #tpu.memory_space<vmem>>, vector<1x8x8xf32>
    %106 = vector.shape_cast %105 : vector<1x8x8xf32> to vector<8x8xf32>
    %107 = vector.extract_strided_slice %13 {offsets = [0, 75], sizes = [8, 640], strides = [1, 1]} : vector<8x768xf32> to vector<8x640xf32>
    %cst_66 = arith.constant dense<0.000000e+00> : vector<8x640xf32>
    %108 = tpu.matmul %106, %107, %cst_66 {dimension_numbers = #tpu.dot_dimension_numbers<[1], [0], [0], [1], [0, 0, 1, 1], [], []>} : vector<8x8xf32>, vector<8x640xf32>, vector<8x640xf32> -> vector<8x640xf32>
    %109 = arith.addf %104, %108 : vector<8x640xf32>
    %c19 = arith.constant 19 : index
    %c0_67 = arith.constant 0 : index
    %c0_68 = arith.constant 0 : index
    %110 = vector.load %arg5[%c19, %c0_67, %c0_68] : memref<25x8x8xf32, #tpu.memory_space<vmem>>, vector<1x8x8xf32>
    %111 = vector.shape_cast %110 : vector<1x8x8xf32> to vector<8x8xf32>
    %112 = vector.extract_strided_slice %13 {offsets = [0, 76], sizes = [8, 640], strides = [1, 1]} : vector<8x768xf32> to vector<8x640xf32>
    %cst_69 = arith.constant dense<0.000000e+00> : vector<8x640xf32>
    %113 = tpu.matmul %111, %112, %cst_69 {dimension_numbers = #tpu.dot_dimension_numbers<[1], [0], [0], [1], [0, 0, 1, 1], [], []>} : vector<8x8xf32>, vector<8x640xf32>, vector<8x640xf32> -> vector<8x640xf32>
    %114 = arith.addf %109, %113 : vector<8x640xf32>
    %c20 = arith.constant 20 : index
    %c0_70 = arith.constant 0 : index
    %c0_71 = arith.constant 0 : index
    %115 = vector.load %arg5[%c20, %c0_70, %c0_71] : memref<25x8x8xf32, #tpu.memory_space<vmem>>, vector<1x8x8xf32>
    %116 = vector.shape_cast %115 : vector<1x8x8xf32> to vector<8x8xf32>
    %117 = vector.extract_strided_slice %13 {offsets = [0, 96], sizes = [8, 640], strides = [1, 1]} : vector<8x768xf32> to vector<8x640xf32>
    %cst_72 = arith.constant dense<0.000000e+00> : vector<8x640xf32>
    %118 = tpu.matmul %116, %117, %cst_72 {dimension_numbers = #tpu.dot_dimension_numbers<[1], [0], [0], [1], [0, 0, 1, 1], [], []>} : vector<8x8xf32>, vector<8x640xf32>, vector<8x640xf32> -> vector<8x640xf32>
    %119 = arith.addf %114, %118 : vector<8x640xf32>
    %c21 = arith.constant 21 : index
    %c0_73 = arith.constant 0 : index
    %c0_74 = arith.constant 0 : index
    %120 = vector.load %arg5[%c21, %c0_73, %c0_74] : memref<25x8x8xf32, #tpu.memory_space<vmem>>, vector<1x8x8xf32>
    %121 = vector.shape_cast %120 : vector<1x8x8xf32> to vector<8x8xf32>
    %122 = vector.extract_strided_slice %13 {offsets = [0, 97], sizes = [8, 640], strides = [1, 1]} : vector<8x768xf32> to vector<8x640xf32>
    %cst_75 = arith.constant dense<0.000000e+00> : vector<8x640xf32>
    %123 = tpu.matmul %121, %122, %cst_75 {dimension_numbers = #tpu.dot_dimension_numbers<[1], [0], [0], [1], [0, 0, 1, 1], [], []>} : vector<8x8xf32>, vector<8x640xf32>, vector<8x640xf32> -> vector<8x640xf32>
    %124 = arith.addf %119, %123 : vector<8x640xf32>
    %c22 = arith.constant 22 : index
    %c0_76 = arith.constant 0 : index
    %c0_77 = arith.constant 0 : index
    %125 = vector.load %arg5[%c22, %c0_76, %c0_77] : memref<25x8x8xf32, #tpu.memory_space<vmem>>, vector<1x8x8xf32>
    %126 = vector.shape_cast %125 : vector<1x8x8xf32> to vector<8x8xf32>
    %127 = vector.extract_strided_slice %13 {offsets = [0, 98], sizes = [8, 640], strides = [1, 1]} : vector<8x768xf32> to vector<8x640xf32>
    %cst_78 = arith.constant dense<0.000000e+00> : vector<8x640xf32>
    %128 = tpu.matmul %126, %127, %cst_78 {dimension_numbers = #tpu.dot_dimension_numbers<[1], [0], [0], [1], [0, 0, 1, 1], [], []>} : vector<8x8xf32>, vector<8x640xf32>, vector<8x640xf32> -> vector<8x640xf32>
    %129 = arith.addf %124, %128 : vector<8x640xf32>
    %c23 = arith.constant 23 : index
    %c0_79 = arith.constant 0 : index
    %c0_80 = arith.constant 0 : index
    %130 = vector.load %arg5[%c23, %c0_79, %c0_80] : memref<25x8x8xf32, #tpu.memory_space<vmem>>, vector<1x8x8xf32>
    %131 = vector.shape_cast %130 : vector<1x8x8xf32> to vector<8x8xf32>
    %132 = vector.extract_strided_slice %13 {offsets = [0, 99], sizes = [8, 640], strides = [1, 1]} : vector<8x768xf32> to vector<8x640xf32>
    %cst_81 = arith.constant dense<0.000000e+00> : vector<8x640xf32>
    %133 = tpu.matmul %131, %132, %cst_81 {dimension_numbers = #tpu.dot_dimension_numbers<[1], [0], [0], [1], [0, 0, 1, 1], [], []>} : vector<8x8xf32>, vector<8x640xf32>, vector<8x640xf32> -> vector<8x640xf32>
    %134 = arith.addf %129, %133 : vector<8x640xf32>
    %c24 = arith.constant 24 : index
    %c0_82 = arith.constant 0 : index
    %c0_83 = arith.constant 0 : index
    %135 = vector.load %arg5[%c24, %c0_82, %c0_83] : memref<25x8x8xf32, #tpu.memory_space<vmem>>, vector<1x8x8xf32>
    %136 = vector.shape_cast %135 : vector<1x8x8xf32> to vector<8x8xf32>
    %137 = vector.extract_strided_slice %13 {offsets = [0, 100], sizes = [8, 640], strides = [1, 1]} : vector<8x768xf32> to vector<8x640xf32>
    %cst_84 = arith.constant dense<0.000000e+00> : vector<8x640xf32>
    %138 = tpu.matmul %136, %137, %cst_84 {dimension_numbers = #tpu.dot_dimension_numbers<[1], [0], [0], [1], [0, 0, 1, 1], [], []>} : vector<8x8xf32>, vector<8x640xf32>, vector<8x640xf32> -> vector<8x640xf32>
    %139 = arith.addf %134, %138 : vector<8x640xf32>
    %c0_85 = arith.constant 0 : index
    %c0_86 = arith.constant 0 : index
    %140 = vector.load %arg6[%c0_85, %c0_86] : memref<8x1xf32, #tpu.memory_space<vmem>>, vector<8x1xf32>
    %141 = vector.broadcast %140 : vector<8x1xf32> to vector<8x640xf32>
    %142 = arith.addf %139, %141 : vector<8x640xf32>
    %143 = arith.negf %142 : vector<8x640xf32>
    %144 = math.exp %143 : vector<8x640xf32>
    %cst_87 = arith.constant 1.000000e+00 : f32
    %145 = vector.broadcast %cst_87 : f32 to vector<8x640xf32>
    %146 = arith.addf %145, %144 : vector<8x640xf32>
    %147 = arith.divf %145, %146 : vector<8x640xf32>
    %c0_88 = arith.constant 0 : index
    %c0_89 = arith.constant 0 : index
    %148 = vector.load %arg7[%c0_88, %c0_89] : memref<8x640xf32, #tpu.memory_space<vmem>>, vector<8x640xf32>
    tpu.vector_store %arg7[%c0_88, %c0_89], %147 {strides = array<i32>} : memref<8x640xf32, #tpu.memory_space<vmem>>, vector<8x640xf32>,
    return
  }
  func.func @transform_0(%arg0: i32) -> (i32, i32) {
    %c0_i32 = arith.constant 0 : i32
    %c0_i32_0 = arith.constant 0 : i32
    %c0_i32_1 = arith.constant 0 : i32
    return %c0_i32, %c0_i32_0 : i32, i32
  }
  func.func @transform_1(%arg0: i32) -> (i32, i32) {
    %c0_i32 = arith.constant 0 : i32
    %c0_i32_0 = arith.constant 0 : i32
    %c0_i32_1 = arith.constant 0 : i32
    return %c0_i32, %c0_i32_0 : i32, i32
  }
  func.func @transform_2(%arg0: i32) -> (i32, i32) {
    %c0_i32 = arith.constant 0 : i32
    %c0_i32_0 = arith.constant 0 : i32
    %c0_i32_1 = arith.constant 0 : i32
    return %c0_i32, %c0_i32_0 : i32, i32
  }
  func.func @transform_3(%arg0: i32) -> (i32, i32) {
    %c0_i32 = arith.constant 0 : i32
    %c0_i32_0 = arith.constant 0 : i32
    %c0_i32_1 = arith.constant 0 : i32
    return %c0_i32, %c0_i32_0 : i32, i32
  }
  func.func @transform_4(%arg0: i32) -> (i32, i32, i32) {
    %c0_i32 = arith.constant 0 : i32
    %c0_i32_0 = arith.constant 0 : i32
    %c0_i32_1 = arith.constant 0 : i32
    %c0_i32_2 = arith.constant 0 : i32
    return %c0_i32, %c0_i32_0, %c0_i32_1 : i32, i32, i32
  }
  func.func @transform_5(%arg0: i32) -> (i32, i32) {
    %c0_i32 = arith.constant 0 : i32
    %c0_i32_0 = arith.constant 0 : i32
    %c0_i32_1 = arith.constant 0 : i32
    return %c0_i32, %c0_i32_0 : i32, i32
  }
  func.func @transform_6(%arg0: i32) -> (i32, i32) {
    %c0_i32 = arith.constant 0 : i32
    %c0_i32_0 = arith.constant 0 : i32
    %c0_i32_1 = arith.constant 0 : i32
    return %c0_i32, %c0_i32_0 : i32, i32
  }
}

</mosaic_0001>

<llo_original>
// kernel: squeeze.5
$region0: #{squeeze.5}
  %s0 = inlined_call_operand.hbm [shape: f32[1,3,64,64], index: 0, kind: input, shape index: {}]
  %s1 = inlined_call_operand.vmem [shape: f32[3,4096], index: 1, kind: output, shape index: {}]
  $region1: #{squeeze.5} parent=0
    #allocation0 [shape = 'u8[98304]{0}', space=vmem, size = 0x18000, scoped, tag = 'operand span for operand 0']
    #allocation1 [shape = 's32[1]{0}', space=sflag, size = 0x4, scoped, tag = 'scoped memory for squeeze.5']
    #allocation2 [shape = 'u8[131072]{0}', space=vmem, size = 0x20000, scoped, tag = 'scoped mem for output reshape']
    %2 = vsyncpa [#allocation1], 0
    %s4 = ssub.s32 3072, 3072
    %5 = vsyncadd [#allocation1], %s4
    %s7 = sshll.u32 [#allocation0], 4
    %s8 = int_to_ptr.vmem [resolvable:$true] %s7
    %10 = dma.hbm_to_vmem [thread:$0]  %s0, 3072, %s8, [#allocation1]
    %11 = dma.done [#allocation1], 3072
    %v12 = vld [vmem:[#allocation0] ss:$2 sm:$0xff]
    %vm13 = vcmask 523264
    %14 = vst.msk [vmem:[#allocation2] ss:$8 sm:$0xf] %vm13, %v12
    %15 = vst.msk [vmem:[#allocation2] ss:$8 sm:$0xf0] %vm13, %v12
    %s16 = scalar_lea.vmem [#allocation0], 16
    %v17 = vld [vmem:[%s16] ss:$2 sm:$0xff]
    %vm18 = vcmask 523264
    %s19 = scalar_lea.vmem [#allocation2], 64
    %20 = vst.msk [vmem:[%s19] ss:$8 sm:$0xf] %vm18, %v17
    %s21 = scalar_lea.vmem [#allocation2], 64
    %22 = vst.msk [vmem:[%s21] ss:$8 sm:$0xf0] %vm18, %v17
    %s23 = scalar_lea.vmem [#allocation0], 32
    %v24 = vld [vmem:[%s23] ss:$2 sm:$0xff]
    %vm25 = vcmask 523264
    %s26 = scalar_lea.vmem [#allocation2], 128
    %27 = vst.msk [vmem:[%s26] ss:$8 sm:$0xf] %vm25, %v24
    %s28 = scalar_lea.vmem [#allocation2], 128
    %29 = vst.msk [vmem:[%s28] ss:$8 sm:$0xf0] %vm25, %v24
    %s30 = scalar_lea.vmem [#allocation0], 48
    %v31 = vld [vmem:[%s30] ss:$2 sm:$0xff]
    %vm32 = vcmask 523264
    %s33 = scalar_lea.vmem [#allocation2], 192
    %34 = vst.msk [vmem:[%s33] ss:$8 sm:$0xf] %vm32, %v31
    %s35 = scalar_lea.vmem [#allocation2], 192
    %36 = vst.msk [vmem:[%s35] ss:$8 sm:$0xf0] %vm32, %v31
    %s37 = scalar_lea.vmem [#allocation0], 64
    %v38 = vld [vmem:[%s37] ss:$2 sm:$0xff]
    %vm39 = vcmask 523264
    %s40 = scalar_lea.vmem [#allocation2], 1
    %41 = vst.msk [vmem:[%s40] ss:$8 sm:$0xf] %vm39, %v38
    %s42 = scalar_lea.vmem [#allocation2], 1
    %43 = vst.msk [vmem:[%s42] ss:$8 sm:$0xf0] %vm39, %v38
    %s44 = scalar_lea.vmem [#allocation0], 80
    %v45 = vld [vmem:[%s44] ss:$2 sm:$0xff]
    %vm46 = vcmask 523264
    %s47 = scalar_lea.vmem [#allocation2], 65
    %48 = vst.msk [vmem:[%s47] ss:$8 sm:$0xf] %vm46, %v45
    %s49 = scalar_lea.vmem [#allocation2], 65
    %50 = vst.msk [vmem:[%s49] ss:$8 sm:$0xf0] %vm46, %v45
    %s51 = scalar_lea.vmem [#allocation0], 96
    %v52 = vld [vmem:[%s51] ss:$2 sm:$0xff]
    %vm53 = vcmask 523264
    %s54 = scalar_lea.vmem [#allocation2], 129
    %55 = vst.msk [vmem:[%s54] ss:$8 sm:$0xf] %vm53, %v52
    %s56 = scalar_lea.vmem [#allocation2], 129
    %57 = vst.msk [vmem:[%s56] ss:$8 sm:$0xf0] %vm53, %v52
    %s58 = scalar_lea.vmem [#allocation0], 112
    %v59 = vld [vmem:[%s58] ss:$2 sm:$0xff]
    %vm60 = vcmask 523264
    %s61 = scalar_lea.vmem [#allocation2], 193
    %62 = vst.msk [vmem:[%s61] ss:$8 sm:$0xf] %vm60, %v59
    %s63 = scalar_lea.vmem [#allocation2], 193
    %64 = vst.msk [vmem:[%s63] ss:$8 sm:$0xf0] %vm60, %v59
    %s65 = scalar_lea.vmem [#allocation0], 128
    %v66 = vld [vmem:[%s65] ss:$2 sm:$0xff]
    %vm67 = vcmask 523264
    %s68 = scalar_lea.vmem [#allocation2], 2
    %69 = vst.msk [vmem:[%s68] ss:$8 sm:$0xf] %vm67, %v66
    %s70 = scalar_lea.vmem [#allocation2], 2
    %71 = vst.msk [vmem:[%s70] ss:$8 sm:$0xf0] %vm67, %v66
    %s72 = scalar_lea.vmem [#allocation0], 144
    %v73 = vld [vmem:[%s72] ss:$2 sm:$0xff]
    %vm74 = vcmask 523264
    %s75 = scalar_lea.vmem [#allocation2], 66
    %76 = vst.msk [vmem:[%s75] ss:$8 sm:$0xf] %vm74, %v73
    %s77 = scalar_lea.vmem [#allocation2], 66
    %78 = vst.msk [vmem:[%s77] ss:$8 sm:$0xf0] %vm74, %v73
    %s79 = scalar_lea.vmem [#allocation0], 160
    %v80 = vld [vmem:[%s79] ss:$2 sm:$0xff]
    %vm81 = vcmask 523264
    %s82 = scalar_lea.vmem [#allocation2], 130
    %83 = vst.msk [vmem:[%s82] ss:$8 sm:$0xf] %vm81, %v80
    %s84 = scalar_lea.vmem [#allocation2], 130
    %85 = vst.msk [vmem:[%s84] ss:$8 sm:$0xf0] %vm81, %v80
    %s86 = scalar_lea.vmem [#allocation0], 176
    %v87 = vld [vmem:[%s86] ss:$2 sm:$0xff]
    %vm88 = vcmask 523264
    %s89 = scalar_lea.vmem [#allocation2], 194
    %90 = vst.msk [vmem:[%s89] ss:$8 sm:$0xf] %vm88, %v87
    %s91 = scalar_lea.vmem [#allocation2], 194
    %92 = vst.msk [vmem:[%s91] ss:$8 sm:$0xf0] %vm88, %v87
    %s93 = scalar_lea.vmem [#allocation0], 1
    %v94 = vld [vmem:[%s93] sm:$0x1]
    %s95 = scalar_lea.vmem [#allocation0], 64
    %v96 = vld [vmem:[%s95] sm:$0x2]
    %vm97 = vcmask 1041409
    %v98 = vsel %vm97, %v96, %v94
    %s99 = scalar_lea.vmem [#allocation0], 381
    %s100 = smov 12
    %v101 = vld [vmem:[%s99] ss:$-126 sm:%s100]
    %vm102 = vcmask 1043458
    %v103 = vsel %vm102, %v101, %v98
    %s104 = scalar_lea.vmem [#allocation0], 63
    %v105 = vld [vmem:[%s104] sm:$0x10]
    %vm106 = vcmask 1044484
    %v107 = vsel %vm106, %v105, %v103
    %s108 = scalar_lea.vmem [#allocation0], 761
    %s109 = smov 96
    %v110 = vld [vmem:[%s108] ss:$-126 sm:%s109]
    %vm111 = vcmask 1046533
    %v112 = vsel %vm111, %v110, %v107
    %s113 = scalar_lea.vmem [#allocation0], 62
    %v114 = vld [vmem:[%s113] sm:$0x80]
    %vm115 = vcmask 1047559
    %v116 = vsel %vm115, %v114, %v112
    %117 = vrot.lane.b32.xlu0 %v116, 64
    %v118 = vpop.permute.xlu0 %117
    %vm119 = vcmask 1048064
    %120 = vst.msk [vmem:[#allocation2] sm:$0x7] %vm119, %v118
    %s121 = scalar_lea.vmem [#allocation2], 5
    %122 = vst.msk [vmem:[%s121] sm:$0x38] %vm119, %v118
    %s123 = scalar_lea.vmem [#allocation2], 10
    %124 = vst.msk [vmem:[%s123] sm:$0xc0] %vm119, %v118
    %s125 = scalar_lea.vmem [#allocation0], 9
    %v126 = vld [vmem:[%s125] sm:$0x1]
    %s127 = scalar_lea.vmem [#allocation0], 72
    %v128 = vld [vmem:[%s127] sm:$0x2]
    %vm129 = vcmask 1041409
    %v130 = vsel %vm129, %v128, %v126
    %s131 = scalar_lea.vmem [#allocation0], 389
    %s132 = smov 12
    %v133 = vld [vmem:[%s131] ss:$-126 sm:%s132]
    %vm134 = vcmask 1043458
    %v135 = vsel %vm134, %v133, %v130
    %s136 = scalar_lea.vmem [#allocation0], 71
    %v137 = vld [vmem:[%s136] sm:$0x10]
    %vm138 = vcmask 1044484
    %v139 = vsel %vm138, %v137, %v135
    %s140 = scalar_lea.vmem [#allocation0], 769
    %s141 = smov 96
    %v142 = vld [vmem:[%s140] ss:$-126 sm:%s141]
    %vm143 = vcmask 1046533
    %v144 = vsel %vm143, %v142, %v139
    %s145 = scalar_lea.vmem [#allocation0], 70
    %v146 = vld [vmem:[%s145] sm:$0x80]
    %vm147 = vcmask 1047559
    %v148 = vsel %vm147, %v146, %v144
    %149 = vrot.lane.b32.xlu0 %v148, 64
    %v150 = vpop.permute.xlu0 %149
    %vm151 = vcmask 1048064
    %s152 = scalar_lea.vmem [#allocation2], 32
    %153 = vst.msk [vmem:[%s152] sm:$0x7] %vm151, %v150
    %s154 = scalar_lea.vmem [#allocation2], 37
    %155 = vst.msk [vmem:[%s154] sm:$0x38] %vm151, %v150
    %s156 = scalar_lea.vmem [#allocation2], 42
    %157 = vst.msk [vmem:[%s156] sm:$0xc0] %vm151, %v150
    %s158 = scalar_lea.vmem [#allocation0], 17
    %v159 = vld [vmem:[%s158] sm:$0x1]
    %s160 = scalar_lea.vmem [#allocation0], 80
    %v161 = vld [vmem:[%s160] sm:$0x2]
    %vm162 = vcmask 1041409
    %v163 = vsel %vm162, %v161, %v159
    %s164 = scalar_lea.vmem [#allocation0], 397
    %s165 = smov 12
    %v166 = vld [vmem:[%s164] ss:$-126 sm:%s165]
    %vm167 = vcmask 1043458
    %v168 = vsel %vm167, %v166, %v163
    %s169 = scalar_lea.vmem [#allocation0], 79
    %v170 = vld [vmem:[%s169] sm:$0x10]
    %vm171 = vcmask 1044484
    %v172 = vsel %vm171, %v170, %v168
    %s173 = scalar_lea.vmem [#allocation0], 777
    %s174 = smov 96
    %v175 = vld [vmem:[%s173] ss:$-126 sm:%s174]
    %vm176 = vcmask 1046533
    %v177 = vsel %vm176, %v175, %v172
    %s178 = scalar_lea.vmem [#allocation0], 78
    %v179 = vld [vmem:[%s178] sm:$0x80]
    %vm180 = vcmask 1047559
    %v181 = vsel %vm180, %v179, %v177
    %182 = vrot.lane.b32.xlu0 %v181, 64
    %v183 = vpop.permute.xlu0 %182
    %vm184 = vcmask 1048064
    %s185 = scalar_lea.vmem [#allocation2], 64
    %186 = vst.msk [vmem:[%s185] sm:$0x7] %vm184, %v183
    %s187 = scalar_lea.vmem [#allocation2], 69
    %188 = vst.msk [vmem:[%s187] sm:$0x38] %vm184, %v183
    %s189 = scalar_lea.vmem [#allocation2], 74
    %190 = vst.msk [vmem:[%s189] sm:$0xc0] %vm184, %v183
    %s191 = scalar_lea.vmem [#allocation0], 25
    %v192 = vld [vmem:[%s191] sm:$0x1]
    %s193 = scalar_lea.vmem [#allocation0], 88
    %v194 = vld [vmem:[%s193] sm:$0x2]
    %vm195 = vcmask 1041409
    %v196 = vsel %vm195, %v194, %v192
    %s197 = scalar_lea.vmem [#allocation0], 405
    %s198 = smov 12
    %v199 = vld [vmem:[%s197] ss:$-126 sm:%s198]
    %vm200 = vcmask 1043458
    %v201 = vsel %vm200, %v199, %v196
    %s202 = scalar_lea.vmem [#allocation0], 87
    %v203 = vld [vmem:[%s202] sm:$0x10]
    %vm204 = vcmask 1044484
    %v205 = vsel %vm204, %v203, %v201
    %s206 = scalar_lea.vmem [#allocation0], 785
    %s207 = smov 96
    %v208 = vld [vmem:[%s206] ss:$-126 sm:%s207]
    %vm209 = vcmask 1046533
    %v210 = vsel %vm209, %v208, %v205
    %s211 = scalar_lea.vmem [#allocation0], 86
    %v212 = vld [vmem:[%s211] sm:$0x80]
    %vm213 = vcmask 1047559
    %v214 = vsel %vm213, %v212, %v210
    %215 = vrot.lane.b32.xlu0 %v214, 64
    %v216 = vpop.permute.xlu0 %215
    %vm217 = vcmask 1048064
    %s218 = scalar_lea.vmem [#allocation2], 96
    %219 = vst.msk [vmem:[%s218] sm:$0x7] %vm217, %v216
    %s220 = scalar_lea.vmem [#allocation2], 101
    %221 = vst.msk [vmem:[%s220] sm:$0x38] %vm217, %v216
    %s222 = scalar_lea.vmem [#allocation2], 106
    %223 = vst.msk [vmem:[%s222] sm:$0xc0] %vm217, %v216
    %s224 = scalar_lea.vmem [#allocation0], 33
    %v225 = vld [vmem:[%s224] sm:$0x1]
    %s226 = scalar_lea.vmem [#allocation0], 96
    %v227 = vld [vmem:[%s226] sm:$0x2]
    %vm228 = vcmask 1041409
    %v229 = vsel %vm228, %v227, %v225
    %s230 = scalar_lea.vmem [#allocation0], 413
    %s231 = smov 12
    %v232 = vld [vmem:[%s230] ss:$-126 sm:%s231]
    %vm233 = vcmask 1043458
    %v234 = vsel %vm233, %v232, %v229
    %s235 = scalar_lea.vmem [#allocation0], 95
    %v236 = vld [vmem:[%s235] sm:$0x10]
    %vm237 = vcmask 1044484
    %v238 = vsel %vm237, %v236, %v234
    %s239 = scalar_lea.vmem [#allocation0], 793
    %s240 = smov 96
    %v241 = vld [vmem:[%s239] ss:$-126 sm:%s240]
    %vm242 = vcmask 1046533
    %v243 = vsel %vm242, %v241, %v238
    %s244 = scalar_lea.vmem [#allocation0], 94
    %v245 = vld [vmem:[%s244] sm:$0x80]
    %vm246 = vcmask 1047559
    %v247 = vsel %vm246, %v245, %v243
    %248 = vrot.lane.b32.xlu0 %v247, 64
    %v249 = vpop.permute.xlu0 %248
    %vm250 = vcmask 1048064
    %s251 = scalar_lea.vmem [#allocation2], 128
    %252 = vst.msk [vmem:[%s251] sm:$0x7] %vm250, %v249
    %s253 = scalar_lea.vmem [#allocation2], 133
    %254 = vst.msk [vmem:[%s253] sm:$0x38] %vm250, %v249
    %s255 = scalar_lea.vmem [#allocation2], 138
    %256 = vst.msk [vmem:[%s255] sm:$0xc0] %vm250, %v249
    %s257 = scalar_lea.vmem [#allocation0], 41
    %v258 = vld [vmem:[%s257] sm:$0x1]
    %s259 = scalar_lea.vmem [#allocation0], 104
    %v260 = vld [vmem:[%s259] sm:$0x2]
    %vm261 = vcmask 1041409
    %v262 = vsel %vm261, %v260, %v258
    %s263 = scalar_lea.vmem [#allocation0], 421
    %s264 = smov 12
    %v265 = vld [vmem:[%s263] ss:$-126 sm:%s264]
    %vm266 = vcmask 1043458
    %v267 = vsel %vm266, %v265, %v262
    %s268 = scalar_lea.vmem [#allocation0], 103
    %v269 = vld [vmem:[%s268] sm:$0x10]
    %vm270 = vcmask 1044484
    %v271 = vsel %vm270, %v269, %v267
    %s272 = scalar_lea.vmem [#allocation0], 801
    %s273 = smov 96
    %v274 = vld [vmem:[%s272] ss:$-126 sm:%s273]
    %vm275 = vcmask 1046533
    %v276 = vsel %vm275, %v274, %v271
    %s277 = scalar_lea.vmem [#allocation0], 102
    %v278 = vld [vmem:[%s277] sm:$0x80]
    %vm279 = vcmask 1047559
    %v280 = vsel %vm279, %v278, %v276
    %281 = vrot.lane.b32.xlu0 %v280, 64
    %v282 = vpop.permute.xlu0 %281
    %vm283 = vcmask 1048064
    %s284 = scalar_lea.vmem [#allocation2], 160
    %285 = vst.msk [vmem:[%s284] sm:$0x7] %vm283, %v282
    %s286 = scalar_lea.vmem [#allocation2], 165
    %287 = vst.msk [vmem:[%s286] sm:$0x38] %vm283, %v282
    %s288 = scalar_lea.vmem [#allocation2], 170
    %289 = vst.msk [vmem:[%s288] sm:$0xc0] %vm283, %v282
    %s290 = scalar_lea.vmem [#allocation0], 49
    %v291 = vld [vmem:[%s290] sm:$0x1]
    %s292 = scalar_lea.vmem [#allocation0], 112
    %v293 = vld [vmem:[%s292] sm:$0x2]
    %vm294 = vcmask 1041409
    %v295 = vsel %vm294, %v293, %v291
    %s296 = scalar_lea.vmem [#allocation0], 429
    %s297 = smov 12
    %v298 = vld [vmem:[%s296] ss:$-126 sm:%s297]
    %vm299 = vcmask 1043458
    %v300 = vsel %vm299, %v298, %v295
    %s301 = scalar_lea.vmem [#allocation0], 111
    %v302 = vld [vmem:[%s301] sm:$0x10]
    %vm303 = vcmask 1044484
    %v304 = vsel %vm303, %v302, %v300
    %s305 = scalar_lea.vmem [#allocation0], 809
    %s306 = smov 96
    %v307 = vld [vmem:[%s305] ss:$-126 sm:%s306]
    %vm308 = vcmask 1046533
    %v309 = vsel %vm308, %v307, %v304
    %s310 = scalar_lea.vmem [#allocation0], 110
    %v311 = vld [vmem:[%s310] sm:$0x80]
    %vm312 = vcmask 1047559
    %v313 = vsel %vm312, %v311, %v309
    %314 = vrot.lane.b32.xlu0 %v313, 64
    %v315 = vpop.permute.xlu0 %314
    %vm316 = vcmask 1048064
    %s317 = scalar_lea.vmem [#allocation2], 192
    %318 = vst.msk [vmem:[%s317] sm:$0x7] %vm316, %v315
    %s319 = scalar_lea.vmem [#allocation2], 197
    %320 = vst.msk [vmem:[%s319] sm:$0x38] %vm316, %v315
    %s321 = scalar_lea.vmem [#allocation2], 202
    %322 = vst.msk [vmem:[%s321] sm:$0xc0] %vm316, %v315
    %s323 = scalar_lea.vmem [#allocation0], 57
    %v324 = vld [vmem:[%s323] sm:$0x1]
    %s325 = scalar_lea.vmem [#allocation0], 120
    %v326 = vld [vmem:[%s325] sm:$0x2]
    %vm327 = vcmask 1041409
    %v328 = vsel %vm327, %v326, %v324
    %s329 = scalar_lea.vmem [#allocation0], 437
    %s330 = smov 12
    %v331 = vld [vmem:[%s329] ss:$-126 sm:%s330]
    %vm332 = vcmask 1043458
    %v333 = vsel %vm332, %v331, %v328
    %s334 = scalar_lea.vmem [#allocation0], 119
    %v335 = vld [vmem:[%s334] sm:$0x10]
    %vm336 = vcmask 1044484
    %v337 = vsel %vm336, %v335, %v333
    %s338 = scalar_lea.vmem [#allocation0], 817
    %s339 = smov 96
    %v340 = vld [vmem:[%s338] ss:$-126 sm:%s339]
    %vm341 = vcmask 1046533
    %v342 = vsel %vm341, %v340, %v337
    %s343 = scalar_lea.vmem [#allocation0], 118
    %v344 = vld [vmem:[%s343] sm:$0x80]
    %vm345 = vcmask 1047559
    %v346 = vsel %vm345, %v344, %v342
    %347 = vrot.lane.b32.xlu0 %v346, 64
    %v348 = vpop.permute.xlu0 %347
    %vm349 = vcmask 1048064
    %s350 = scalar_lea.vmem [#allocation2], 224
    %351 = vst.msk [vmem:[%s350] sm:$0x7] %vm349, %v348
    %s352 = scalar_lea.vmem [#allocation2], 229
    %353 = vst.msk [vmem:[%s352] sm:$0x38] %vm349, %v348
    %s354 = scalar_lea.vmem [#allocation2], 234
    %355 = vst.msk [vmem:[%s354] sm:$0xc0] %vm349, %v348
    %s356 = scalar_lea.vmem [#allocation0], 133
    %s357 = smov 3
    %v358 = vld [vmem:[%s356] ss:$-126 sm:%s357]
    %s359 = scalar_lea.vmem [#allocation0], 69
    %v360 = vld [vmem:[%s359] sm:$0x4]
    %vm361 = vcmask 1042434
    %v362 = vsel %vm361, %v360, %v358
    %s363 = scalar_lea.vmem [#allocation0], 117
    %s364 = smov 24
    %v365 = vld [vmem:[%s363] ss:$6 sm:%s364]
    %vm366 = vcmask 1044483
    %v367 = vsel %vm366, %v365, %v362
    %s368 = scalar_lea.vmem [#allocation0], 10
    %v369 = vld [vmem:[%s368] sm:$0x20]
    %vm370 = vcmask 1045509
    %v371 = vsel %vm370, %v369, %v367
    %s372 = scalar_lea.vmem [#allocation0], 73
    %v373 = vld [vmem:[%s372] sm:$0x40]
    %vm374 = vcmask 1046534
    %v375 = vsel %vm374, %v373, %v371
    %s376 = scalar_lea.vmem [#allocation0], 136
    %v377 = vld [vmem:[%s376] sm:$0x80]
    %vm378 = vcmask 1047559
    %v379 = vsel %vm378, %v377, %v375
    %380 = vrot.lane.b32.xlu0 %v379, 64
    %v381 = vpop.permute.xlu0 %380
    %vm382 = vcmask 1048064
    %s383 = scalar_lea.vmem [#allocation2], 18
    %384 = vst.msk [vmem:[%s383] ss:$6 sm:$0x3] %vm382, %v381
    %s385 = scalar_lea.vmem [#allocation2], 23
    %386 = vst.msk [vmem:[%s385] sm:$0xc] %vm382, %v381
    %s387 = scalar_lea.vmem [#allocation2], 26
    %388 = vst.msk [vmem:[%s387] ss:$6 sm:$0x30] %vm382, %v381
    %s389 = scalar_lea.vmem [#allocation2], 51
    %390 = vst.msk [vmem:[%s389] sm:$0xc0] %vm382, %v381
    %s391 = scalar_lea.vmem [#allocation0], 149
    %s392 = smov 3
    %v393 = vld [vmem:[%s391] ss:$-126 sm:%s392]
    %s394 = scalar_lea.vmem [#allocation0], 85
    %v395 = vld [vmem:[%s394] sm:$0x4]
    %vm396 = vcmask 1042434
    %v397 = vsel %vm396, %v395, %v393
    %s398 = scalar_lea.vmem [#allocation0], 133
    %s399 = smov 24
    %v400 = vld [vmem:[%s398] ss:$6 sm:%s399]
    %vm401 = vcmask 1044483
    %v402 = vsel %vm401, %v400, %v397
    %s403 = scalar_lea.vmem [#allocation0], 26
    %v404 = vld [vmem:[%s403] sm:$0x20]
    %vm405 = vcmask 1045509
    %v406 = vsel %vm405, %v404, %v402
    %s407 = scalar_lea.vmem [#allocation0], 89
    %v408 = vld [vmem:[%s407] sm:$0x40]
    %vm409 = vcmask 1046534
    %v410 = vsel %vm409, %v408, %v406
    %s411 = scalar_lea.vmem [#allocation0], 152
    %v412 = vld [vmem:[%s411] sm:$0x80]
    %vm413 = vcmask 1047559
    %v414 = vsel %vm413, %v412, %v410
    %415 = vrot.lane.b32.xlu0 %v414, 64
    %v416 = vpop.permute.xlu0 %415
    %vm417 = vcmask 1048064
    %s418 = scalar_lea.vmem [#allocation2], 82
    %419 = vst.msk [vmem:[%s418] ss:$6 sm:$0x3] %vm417, %v416
    %s420 = scalar_lea.vmem [#allocation2], 87
    %421 = vst.msk [vmem:[%s420] sm:$0xc] %vm417, %v416
    %s422 = scalar_lea.vmem [#allocation2], 90
    %423 = vst.msk [vmem:[%s422] ss:$6 sm:$0x30] %vm417, %v416
    %s424 = scalar_lea.vmem [#allocation2], 115
    %425 = vst.msk [vmem:[%s424] sm:$0xc0] %vm417, %v416
    %s426 = scalar_lea.vmem [#allocation0], 165
    %s427 = smov 3
    %v428 = vld [vmem:[%s426] ss:$-126 sm:%s427]
    %s429 = scalar_lea.vmem [#allocation0], 101
    %v430 = vld [vmem:[%s429] sm:$0x4]
    %vm431 = vcmask 1042434
    %v432 = vsel %vm431, %v430, %v428
    %s433 = scalar_lea.vmem [#allocation0], 149
    %s434 = smov 24
    %v435 = vld [vmem:[%s433] ss:$6 sm:%s434]
    %vm436 = vcmask 1044483
    %v437 = vsel %vm436, %v435, %v432
    %s438 = scalar_lea.vmem [#allocation0], 42
    %v439 = vld [vmem:[%s438] sm:$0x20]
    %vm440 = vcmask 1045509
    %v441 = vsel %vm440, %v439, %v437
    %s442 = scalar_lea.vmem [#allocation0], 105
    %v443 = vld [vmem:[%s442] sm:$0x40]
    %vm444 = vcmask 1046534
    %v445 = vsel %vm444, %v443, %v441
    %s446 = scalar_lea.vmem [#allocation0], 168
    %v447 = vld [vmem:[%s446] sm:$0x80]
    %vm448 = vcmask 1047559
    %v449 = vsel %vm448, %v447, %v445
    %450 = vrot.lane.b32.xlu0 %v449, 64
    %v451 = vpop.permute.xlu0 %450
    %vm452 = vcmask 1048064
    %s453 = scalar_lea.vmem [#allocation2], 146
    %454 = vst.msk [vmem:[%s453] ss:$6 sm:$0x3] %vm452, %v451
    %s455 = scalar_lea.vmem [#allocation2], 151
    %456 = vst.msk [vmem:[%s455] sm:$0xc] %vm452, %v451
    %s457 = scalar_lea.vmem [#allocation2], 154
    %458 = vst.msk [vmem:[%s457] ss:$6 sm:$0x30] %vm452, %v451
    %s459 = scalar_lea.vmem [#allocation2], 179
    %460 = vst.msk [vmem:[%s459] sm:$0xc0] %vm452, %v451
    %s461 = scalar_lea.vmem [#allocation0], 181
    %s462 = smov 3
    %v463 = vld [vmem:[%s461] ss:$-126 sm:%s462]
    %s464 = scalar_lea.vmem [#allocation0], 117
    %v465 = vld [vmem:[%s464] sm:$0x4]
    %vm466 = vcmask 1042434
    %v467 = vsel %vm466, %v465, %v463
    %s468 = scalar_lea.vmem [#allocation0], 165
    %s469 = smov 24
    %v470 = vld [vmem:[%s468] ss:$6 sm:%s469]
    %vm471 = vcmask 1044483
    %v472 = vsel %vm471, %v470, %v467
    %s473 = scalar_lea.vmem [#allocation0], 58
    %v474 = vld [vmem:[%s473] sm:$0x20]
    %vm475 = vcmask 1045509
    %v476 = vsel %vm475, %v474, %v472
    %s477 = scalar_lea.vmem [#allocation0], 121
    %v478 = vld [vmem:[%s477] sm:$0x40]
    %vm479 = vcmask 1046534
    %v480 = vsel %vm479, %v478, %v476
    %s481 = scalar_lea.vmem [#allocation0], 184
    %v482 = vld [vmem:[%s481] sm:$0x80]
    %vm483 = vcmask 1047559
    %v484 = vsel %vm483, %v482, %v480
    %485 = vrot.lane.b32.xlu0 %v484, 64
    %v486 = vpop.permute.xlu0 %485
    %vm487 = vcmask 1048064
    %s488 = scalar_lea.vmem [#allocation2], 210
    %489 = vst.msk [vmem:[%s488] ss:$6 sm:$0x3] %vm487, %v486
    %s490 = scalar_lea.vmem [#allocation2], 215
    %491 = vst.msk [vmem:[%s490] sm:$0xc] %vm487, %v486
    %s492 = scalar_lea.vmem [#allocation2], 218
    %493 = vst.msk [vmem:[%s492] ss:$6 sm:$0x30] %vm487, %v486
    %s494 = scalar_lea.vmem [#allocation2], 243
    %495 = vst.msk [vmem:[%s494] sm:$0xc0] %vm487, %v486
    %s497 = sshll.u32 1, 4
    %s498 = ssub.s32 %s497, 1
    %v500 = vld [vmem:[#allocation2] sm:%s498]
    %s501 = sshll.u32 1, 4
    %s502 = ssub.s32 %s501, 1
    %503 = vst [vmem:[%s1] sm:%s502] %v500
    %s504 = scalar_lea.vmem [#allocation2], 8
    %v505 = vld [vmem:[%s504] sm:%s498]
    %s506 = sshll.u32 1, 4
    %s507 = ssub.s32 %s506, 1
    %s508 = scalar_lea.vmem %s1, 4
    %509 = vst [vmem:[%s508] sm:%s507] %v505
    %s510 = scalar_lea.vmem [#allocation2], 16
    %v511 = vld [vmem:[%s510] sm:%s498]
    %s512 = sshll.u32 1, 4
    %s513 = ssub.s32 %s512, 1
    %s514 = smul.addr 4, 2
    %s515 = scalar_lea.vmem %s1, %s514
    %516 = vst [vmem:[%s515] sm:%s513] %v511
    %s517 = scalar_lea.vmem [#allocation2], 24
    %v518 = vld [vmem:[%s517] sm:%s498]
    %s519 = sshll.u32 1, 4
    %s520 = ssub.s32 %s519, 1
    %s521 = smul.addr 4, 3
    %s522 = scalar_lea.vmem %s1, %s521
    %523 = vst [vmem:[%s522] sm:%s520] %v518
    %s524 = scalar_lea.vmem [#allocation2], 32
    %v525 = vld [vmem:[%s524] sm:%s498]
    %s526 = sshll.u32 1, 4
    %s527 = ssub.s32 %s526, 1
    %s528 = smul.addr 4, 4
    %s529 = scalar_lea.vmem %s1, %s528
    %530 = vst [vmem:[%s529] sm:%s527] %v525
    %s531 = scalar_lea.vmem [#allocation2], 40
    %v532 = vld [vmem:[%s531] sm:%s498]
    %s533 = sshll.u32 1, 4
    %s534 = ssub.s32 %s533, 1
    %s535 = smul.addr 4, 5
    %s536 = scalar_lea.vmem %s1, %s535
    %537 = vst [vmem:[%s536] sm:%s534] %v532
    %s538 = scalar_lea.vmem [#allocation2], 48
    %v539 = vld [vmem:[%s538] sm:%s498]
    %s540 = sshll.u32 1, 4
    %s541 = ssub.s32 %s540, 1
    %s542 = smul.addr 4, 6
    %s543 = scalar_lea.vmem %s1, %s542
    %544 = vst [vmem:[%s543] sm:%s541] %v539
    %s545 = scalar_lea.vmem [#allocation2], 56
    %v546 = vld [vmem:[%s545] sm:%s498]
    %s547 = sshll.u32 1, 4
    %s548 = ssub.s32 %s547, 1
    %s549 = smul.addr 4, 7
    %s550 = scalar_lea.vmem %s1, %s549
    %551 = vst [vmem:[%s550] sm:%s548] %v546
    %s552 = scalar_lea.vmem [#allocation2], 64
    %v553 = vld [vmem:[%s552] sm:%s498]
    %s554 = sshll.u32 1, 4
    %s555 = ssub.s32 %s554, 1
    %s556 = smul.addr 4, 8
    %s557 = scalar_lea.vmem %s1, %s556
    %558 = vst [vmem:[%s557] sm:%s555] %v553
    %s559 = scalar_lea.vmem [#allocation2], 72
    %v560 = vld [vmem:[%s559] sm:%s498]
    %s561 = sshll.u32 1, 4
    %s562 = ssub.s32 %s561, 1
    %s563 = smul.addr 4, 9
    %s564 = scalar_lea.vmem %s1, %s563
    %565 = vst [vmem:[%s564] sm:%s562] %v560
    %s566 = scalar_lea.vmem [#allocation2], 80
    %v567 = vld [vmem:[%s566] sm:%s498]
    %s568 = sshll.u32 1, 4
    %s569 = ssub.s32 %s568, 1
    %s570 = smul.addr 4, 10
    %s571 = scalar_lea.vmem %s1, %s570
    %572 = vst [vmem:[%s571] sm:%s569] %v567
    %s573 = scalar_lea.vmem [#allocation2], 88
    %v574 = vld [vmem:[%s573] sm:%s498]
    %s575 = sshll.u32 1, 4
    %s576 = ssub.s32 %s575, 1
    %s577 = smul.addr 4, 11
    %s578 = scalar_lea.vmem %s1, %s577
    %579 = vst [vmem:[%s578] sm:%s576] %v574
    %s580 = scalar_lea.vmem [#allocation2], 96
    %v581 = vld [vmem:[%s580] sm:%s498]
    %s582 = sshll.u32 1, 4
    %s583 = ssub.s32 %s582, 1
    %s584 = smul.addr 4, 12
    %s585 = scalar_lea.vmem %s1, %s584
    %586 = vst [vmem:[%s585] sm:%s583] %v581
    %s587 = scalar_lea.vmem [#allocation2], 104
    %v588 = vld [vmem:[%s587] sm:%s498]
    %s589 = sshll.u32 1, 4
    %s590 = ssub.s32 %s589, 1
    %s591 = smul.addr 4, 13
    %s592 = scalar_lea.vmem %s1, %s591
    %593 = vst [vmem:[%s592] sm:%s590] %v588
    %s594 = scalar_lea.vmem [#allocation2], 112
    %v595 = vld [vmem:[%s594] sm:%s498]
    %s596 = sshll.u32 1, 4
    %s597 = ssub.s32 %s596, 1
    %s598 = smul.addr 4, 14
    %s599 = scalar_lea.vmem %s1, %s598
    %600 = vst [vmem:[%s599] sm:%s597] %v595
    %s601 = scalar_lea.vmem [#allocation2], 120
    %v602 = vld [vmem:[%s601] sm:%s498]
    %s603 = sshll.u32 1, 4
    %s604 = ssub.s32 %s603, 1
    %s605 = smul.addr 4, 15
    %s606 = scalar_lea.vmem %s1, %s605
    %607 = vst [vmem:[%s606] sm:%s604] %v602
    %s608 = scalar_lea.vmem [#allocation2], 128
    %v609 = vld [vmem:[%s608] sm:%s498]
    %s610 = sshll.u32 1, 4
    %s611 = ssub.s32 %s610, 1
    %s612 = smul.addr 4, 16
    %s613 = scalar_lea.vmem %s1, %s612
    %614 = vst [vmem:[%s613] sm:%s611] %v609
    %s615 = scalar_lea.vmem [#allocation2], 136
    %v616 = vld [vmem:[%s615] sm:%s498]
    %s617 = sshll.u32 1, 4
    %s618 = ssub.s32 %s617, 1
    %s619 = smul.addr 4, 17
    %s620 = scalar_lea.vmem %s1, %s619
    %621 = vst [vmem:[%s620] sm:%s618] %v616
    %s622 = scalar_lea.vmem [#allocation2], 144
    %v623 = vld [vmem:[%s622] sm:%s498]
    %s624 = sshll.u32 1, 4
    %s625 = ssub.s32 %s624, 1
    %s626 = smul.addr 4, 18
    %s627 = scalar_lea.vmem %s1, %s626
    %628 = vst [vmem:[%s627] sm:%s625] %v623
    %s629 = scalar_lea.vmem [#allocation2], 152
    %v630 = vld [vmem:[%s629] sm:%s498]
    %s631 = sshll.u32 1, 4
    %s632 = ssub.s32 %s631, 1
    %s633 = smul.addr 4, 19
    %s634 = scalar_lea.vmem %s1, %s633
    %635 = vst [vmem:[%s634] sm:%s632] %v630
    %s636 = scalar_lea.vmem [#allocation2], 160
    %v637 = vld [vmem:[%s636] sm:%s498]
    %s638 = sshll.u32 1, 4
    %s639 = ssub.s32 %s638, 1
    %s640 = smul.addr 4, 20
    %s641 = scalar_lea.vmem %s1, %s640
    %642 = vst [vmem:[%s641] sm:%s639] %v637
    %s643 = scalar_lea.vmem [#allocation2], 168
    %v644 = vld [vmem:[%s643] sm:%s498]
    %s645 = sshll.u32 1, 4
    %s646 = ssub.s32 %s645, 1
    %s647 = smul.addr 4, 21
    %s648 = scalar_lea.vmem %s1, %s647
    %649 = vst [vmem:[%s648] sm:%s646] %v644
    %s650 = scalar_lea.vmem [#allocation2], 176
    %v651 = vld [vmem:[%s650] sm:%s498]
    %s652 = sshll.u32 1, 4
    %s653 = ssub.s32 %s652, 1
    %s654 = smul.addr 4, 22
    %s655 = scalar_lea.vmem %s1, %s654
    %656 = vst [vmem:[%s655] sm:%s653] %v651
    %s657 = scalar_lea.vmem [#allocation2], 184
    %v658 = vld [vmem:[%s657] sm:%s498]
    %s659 = sshll.u32 1, 4
    %s660 = ssub.s32 %s659, 1
    %s661 = smul.addr 4, 23
    %s662 = scalar_lea.vmem %s1, %s661
    %663 = vst [vmem:[%s662] sm:%s660] %v658
    %s664 = scalar_lea.vmem [#allocation2], 192
    %v665 = vld [vmem:[%s664] sm:%s498]
    %s666 = sshll.u32 1, 4
    %s667 = ssub.s32 %s666, 1
    %s668 = smul.addr 4, 24
    %s669 = scalar_lea.vmem %s1, %s668
    %670 = vst [vmem:[%s669] sm:%s667] %v665
    %s671 = scalar_lea.vmem [#allocation2], 200
    %v672 = vld [vmem:[%s671] sm:%s498]
    %s673 = sshll.u32 1, 4
    %s674 = ssub.s32 %s673, 1
    %s675 = smul.addr 4, 25
    %s676 = scalar_lea.vmem %s1, %s675
    %677 = vst [vmem:[%s676] sm:%s674] %v672
    %s678 = scalar_lea.vmem [#allocation2], 208
    %v679 = vld [vmem:[%s678] sm:%s498]
    %s680 = sshll.u32 1, 4
    %s681 = ssub.s32 %s680, 1
    %s682 = smul.addr 4, 26
    %s683 = scalar_lea.vmem %s1, %s682
    %684 = vst [vmem:[%s683] sm:%s681] %v679
    %s685 = scalar_lea.vmem [#allocation2], 216
    %v686 = vld [vmem:[%s685] sm:%s498]
    %s687 = sshll.u32 1, 4
    %s688 = ssub.s32 %s687, 1
    %s689 = smul.addr 4, 27
    %s690 = scalar_lea.vmem %s1, %s689
    %691 = vst [vmem:[%s690] sm:%s688] %v686
    %s692 = scalar_lea.vmem [#allocation2], 224
    %v693 = vld [vmem:[%s692] sm:%s498]
    %s694 = sshll.u32 1, 4
    %s695 = ssub.s32 %s694, 1
    %s696 = smul.addr 4, 28
    %s697 = scalar_lea.vmem %s1, %s696
    %698 = vst [vmem:[%s697] sm:%s695] %v693
    %s699 = scalar_lea.vmem [#allocation2], 232
    %v700 = vld [vmem:[%s699] sm:%s498]
    %s701 = sshll.u32 1, 4
    %s702 = ssub.s32 %s701, 1
    %s703 = smul.addr 4, 29
    %s704 = scalar_lea.vmem %s1, %s703
    %705 = vst [vmem:[%s704] sm:%s702] %v700
    %s706 = scalar_lea.vmem [#allocation2], 240
    %v707 = vld [vmem:[%s706] sm:%s498]
    %s708 = sshll.u32 1, 4
    %s709 = ssub.s32 %s708, 1
    %s710 = smul.addr 4, 30
    %s711 = scalar_lea.vmem %s1, %s710
    %712 = vst [vmem:[%s711] sm:%s709] %v707
    %s713 = scalar_lea.vmem [#allocation2], 248
    %v714 = vld [vmem:[%s713] sm:%s498]
    %s715 = sshll.u32 1, 4
    %s716 = ssub.s32 %s715, 1
    %s717 = smul.addr 4, 31
    %s718 = scalar_lea.vmem %s1, %s717
    %719 = vst [vmem:[%s718] sm:%s716] %v714
    %720 = vsyncpa [#allocation1], 1

// kernel: model_forward.2
$region0: #{model_forward.2}
  #allocation0 [shape = 'u32[]', space=smem, size = 0x4, offset = 0x4, fixed_abs, tag = 'smem constant byte address 0x4 - core index']
  #allocation1 [shape = 'u32[144,128]{1,0:T(1,128)}', space=vmem, size = 0x12000, scoped, tag = 'internal scratch']
  %s0 = inlined_call_operand.vmem [shape: f32[3,4096], index: 0, kind: input, shape index: {}]
  %s1 = inlined_call_operand.vmem [shape: f32[8,3], index: 1, kind: input, shape index: {}]
  %s2 = inlined_call_operand.vmem [shape: f32[8,1], index: 2, kind: input, shape index: {}]
  %s3 = inlined_call_operand.vmem [shape: f32[8,4096], index: 3, kind: input, shape index: {}]
  %s4 = inlined_call_operand.vmem [shape: f32[16,8], index: 4, kind: input, shape index: {}]
  %s5 = inlined_call_operand.vmem [shape: f32[16,1], index: 5, kind: input, shape index: {}]
  %s6 = inlined_call_operand.vmem [shape: f32[16,4096], index: 6, kind: output, shape index: {}]
  %s7 = sld [smem:[#allocation0]]
  $region76: #{model_forward.2} parent=0
    _
  %s9 = ssub.s32 1, %s7
  %s10 = scalar_select 0, %s9, %s7
  $region1: #{model_forward.2} parent=0
    #allocation2 [shape = 'u8[262144]{0}', space=vmem, size = 0x40000, scoped, tag = 'output window, operand 0']
    loop: start=0, step=1, limit=4
    $region2: #{model_forward.2} parent=1 // loop_pre_header
      _
    $region3: #{model_forward.2} parent=1 // loop_header
      %s12 = sphi 0, %s16
      %p13 = scmp.ge.s32.totalorder %s12, 4
      %s22 = sphi 0, %s24
      %s25 = sphi 0, %s22
      %s26 = sphi 0, %s25
      %s42 = sphi 0, %s26
      %s46 = sphi 0, %s46
      %s48 = sphi 0, %s46
      %s49 = sphi 0, %s48
      %s63 = sphi 0, %s49
      %s67 = sphi 0, %s67
      %s69 = sphi 0, %s67
      %s70 = sphi 0, %s69
      %s84 = sphi 0, %s70
      %s90 = sphi 0, %s92
      %s93 = sphi 0, %s90
      %s94 = sphi 0, %s93
      %s110 = sphi 0, %s94
      %s114 = sphi 0, %s114
      %s116 = sphi 0, %s114
      %s117 = sphi 0, %s116
      %s131 = sphi 0, %s117
      %s135 = sphi 0, %s135
      %s137 = sphi 0, %s135
      %s138 = sphi 0, %s137
      %s152 = sphi 0, %s138
      %s158 = sphi 0, %s160
      %s161 = sphi 0, %s158
      %s162 = sphi 0, %s161
      %s178 = sphi 0, %s162
    $region4: #{model_forward.2} parent=1 // loop_header_branch
      %15 = sbr.rel (%p13) target = $region8
    $region5: #{model_forward.2} parent=1 // loop_body
      %s17 = ssub.s32 %s12, 1
      %s18 = ssub.s32 %s12, 2
      %s19 = sadd.s32 %s12, 1
      %s20 = ssub.s32 %s12, %s19
      %p21 = scmp.eq.s32.totalorder %s20, 0
      %s23 = sadd.s32 %s22, 1
      %s24 = scalar_select %p21, %s22, %s23
      %p27 = pneg %p21
      %p28 = scmp.eq.s32.totalorder %s12, 1
      %p29 = por %p27, %p28
      %p30 = scmp.ne.s32.totalorder %s22, %s25
      %p31 = scmp.eq.s32.totalorder %s12, 0
      %p32 = por %p30, %p31
      %p33 = scmp.ne.s32.totalorder %s22, %s25
      %p34 = scmp.eq.s32.totalorder %s17, 1
      %p35 = por %p33, %p34
      %p36 = scmp.ne.s32.totalorder %s25, %s26
      %p37 = scmp.eq.s32.totalorder %s17, 0
      %p38 = por %p36, %p37
      %p39 = scmp.ne.s32.totalorder %s25, %s26
      %p40 = scmp.eq.s32.totalorder %s18, 1
      %p41 = por %p39, %p40
      %p43 = scmp.ne.s32.totalorder %s26, %s42
      %p44 = scmp.eq.s32.totalorder %s18, 0
      %p45 = por %p43, %p44
      %s47 = sadd.s32 %s46, 1
      %p50 = scmp.eq.s32.totalorder %s12, 1
      %p51 = scmp.ne.s32.totalorder %s46, %s48
      %p52 = scmp.eq.s32.totalorder %s12, 0
      %p53 = por %p51, %p52
      %p54 = scmp.ne.s32.totalorder %s46, %s48
      %p55 = scmp.eq.s32.totalorder %s17, 1
      %p56 = por %p54, %p55
      %p57 = scmp.ne.s32.totalorder %s48, %s49
      %p58 = scmp.eq.s32.totalorder %s17, 0
      %p59 = por %p57, %p58
      %p60 = scmp.ne.s32.totalorder %s48, %s49
      %p61 = scmp.eq.s32.totalorder %s18, 1
      %p62 = por %p60, %p61
      %p64 = scmp.ne.s32.totalorder %s49, %s63
      %p65 = scmp.eq.s32.totalorder %s18, 0
      %p66 = por %p64, %p65
      %s68 = sadd.s32 %s67, 1
      %p71 = scmp.eq.s32.totalorder %s12, 1
      %p72 = scmp.ne.s32.totalorder %s67, %s69
      %p73 = scmp.eq.s32.totalorder %s12, 0
      %p74 = por %p72, %p73
      %p75 = scmp.ne.s32.totalorder %s67, %s69
      %p76 = scmp.eq.s32.totalorder %s17, 1
      %p77 = por %p75, %p76
      %p78 = scmp.ne.s32.totalorder %s69, %s70
      %p79 = scmp.eq.s32.totalorder %s17, 0
      %p80 = por %p78, %p79
      %p81 = scmp.ne.s32.totalorder %s69, %s70
      %p82 = scmp.eq.s32.totalorder %s18, 1
      %p83 = por %p81, %p82
      %p85 = scmp.ne.s32.totalorder %s70, %s84
      %p86 = scmp.eq.s32.totalorder %s18, 0
      %p87 = por %p85, %p86
      %s88 = ssub.s32 %s12, %s19
      %p89 = scmp.eq.s32.totalorder %s88, 0
      %s91 = sadd.s32 %s90, 1
      %s92 = scalar_select %p89, %s90, %s91
      %p95 = pneg %p89
      %p96 = scmp.eq.s32.totalorder %s12, 1
      %p97 = por %p95, %p96
      %p98 = scmp.ne.s32.totalorder %s90, %s93
      %p99 = scmp.eq.s32.totalorder %s12, 0
      %p100 = por %p98, %p99
      %p101 = scmp.ne.s32.totalorder %s90, %s93
      %p102 = scmp.eq.s32.totalorder %s17, 1
      %p103 = por %p101, %p102
      %p104 = scmp.ne.s32.totalorder %s93, %s94
      %p105 = scmp.eq.s32.totalorder %s17, 0
      %p106 = por %p104, %p105
      %p107 = scmp.ne.s32.totalorder %s93, %s94
      %p108 = scmp.eq.s32.totalorder %s18, 1
      %p109 = por %p107, %p108
      %p111 = scmp.ne.s32.totalorder %s94, %s110
      %p112 = scmp.eq.s32.totalorder %s18, 0
      %p113 = por %p111, %p112
      %s115 = sadd.s32 %s114, 1
      %p118 = scmp.eq.s32.totalorder %s12, 1
      %p119 = scmp.ne.s32.totalorder %s114, %s116
      %p120 = scmp.eq.s32.totalorder %s12, 0
      %p121 = por %p119, %p120
      %p122 = scmp.ne.s32.totalorder %s114, %s116
      %p123 = scmp.eq.s32.totalorder %s17, 1
      %p124 = por %p122, %p123
      %p125 = scmp.ne.s32.totalorder %s116, %s117
      %p126 = scmp.eq.s32.totalorder %s17, 0
      %p127 = por %p125, %p126
      %p128 = scmp.ne.s32.totalorder %s116, %s117
      %p129 = scmp.eq.s32.totalorder %s18, 1
      %p130 = por %p128, %p129
      %p132 = scmp.ne.s32.totalorder %s117, %s131
      %p133 = scmp.eq.s32.totalorder %s18, 0
      %p134 = por %p132, %p133
      %s136 = sadd.s32 %s135, 1
      %p139 = scmp.eq.s32.totalorder %s12, 1
      %p140 = scmp.ne.s32.totalorder %s135, %s137
      %p141 = scmp.eq.s32.totalorder %s12, 0
      %p142 = por %p140, %p141
      %p143 = scmp.ne.s32.totalorder %s135, %s137
      %p144 = scmp.eq.s32.totalorder %s17, 1
      %p145 = por %p143, %p144
      %p146 = scmp.ne.s32.totalorder %s137, %s138
      %p147 = scmp.eq.s32.totalorder %s17, 0
      %p148 = por %p146, %p147
      %p149 = scmp.ne.s32.totalorder %s137, %s138
      %p150 = scmp.eq.s32.totalorder %s18, 1
      %p151 = por %p149, %p150
      %p153 = scmp.ne.s32.totalorder %s138, %s152
      %p154 = scmp.eq.s32.totalorder %s18, 0
      %p155 = por %p153, %p154
      %s156 = ssub.s32 %s12, %s19
      %p157 = scmp.eq.s32.totalorder %s156, 0
      %s159 = sadd.s32 %s158, 1
      %s160 = scalar_select %p157, %s158, %s159
      %p163 = pneg %p157
      %p164 = scmp.eq.s32.totalorder %s12, 1
      %p165 = por %p163, %p164
      %p166 = scmp.ne.s32.totalorder %s158, %s161
      %p167 = scmp.eq.s32.totalorder %s12, 0
      %p168 = por %p166, %p167
      %p169 = scmp.ne.s32.totalorder %s158, %s161
      %p170 = scmp.eq.s32.totalorder %s17, 1
      %p171 = por %p169, %p170
      %p172 = scmp.ne.s32.totalorder %s161, %s162
      %p173 = scmp.eq.s32.totalorder %s17, 0
      %p174 = por %p172, %p173
      %p175 = scmp.ne.s32.totalorder %s161, %s162
      %p176 = scmp.eq.s32.totalorder %s18, 1
      %p177 = por %p175, %p176
      %p179 = scmp.ne.s32.totalorder %s162, %s178
      %p180 = scmp.eq.s32.totalorder %s18, 0
      %p181 = por %p179, %p180
      %p182 = scmp.le.s32.totalorder 1, %s12
      %p183 = scmp.lt.s32.totalorder %s12, 3
      %p184 = pnand %p182, %p183
      %p185 = pneg %p184
      // Predicated region
      $region9: #{model_forward.2} parent=5 // pred_check
        _
      $region10: #{model_forward.2} parent=5 // pred_check_branch
        %187 = sbr.rel (%p184) target = $region12
      $region11: #{model_forward.2} parent=5 // pred_region
        %s188 = ssub.s32 %s12, 1
        // Predicated region
        $region13: #{model_forward.2} parent=11 // pred_check
          %p189 = pneg %p59
        $region14: #{model_forward.2} parent=11 // pred_check_branch
          %191 = sbr.rel (%p189) target = $region16
        $region15: #{model_forward.2} parent=11 // pred_region
          _
        $region16: #{model_forward.2} parent=11 // pred_fallthru
          _
        // Predicated region
        $region17: #{model_forward.2} parent=11 // pred_check
          %p192 = pneg %p80
        $region18: #{model_forward.2} parent=11 // pred_check_branch
          %194 = sbr.rel (%p192) target = $region20
        $region19: #{model_forward.2} parent=11 // pred_region
          _
        $region20: #{model_forward.2} parent=11 // pred_fallthru
          _
        // Predicated region
        $region21: #{model_forward.2} parent=11 // pred_check
          %p195 = pneg %p127
        $region22: #{model_forward.2} parent=11 // pred_check_branch
          %197 = sbr.rel (%p195) target = $region24
        $region23: #{model_forward.2} parent=11 // pred_region
          _
        $region24: #{model_forward.2} parent=11 // pred_fallthru
          _
        // Predicated region
        $region25: #{model_forward.2} parent=11 // pred_check
          %p198 = pneg %p148
        $region26: #{model_forward.2} parent=11 // pred_check_branch
          %200 = sbr.rel (%p198) target = $region28
        $region27: #{model_forward.2} parent=11 // pred_region
          _
        $region28: #{model_forward.2} parent=11 // pred_fallthru
          _
      $region12: #{model_forward.2} parent=5 // pred_fallthru
        _
      %p201 = scmp.lt.s32.totalorder %s12, 2
      // Predicated region
      $region29: #{model_forward.2} parent=5 // pred_check
        %p202 = pneg %p201
      $region30: #{model_forward.2} parent=5 // pred_check_branch
        %204 = sbr.rel (%p202) target = $region32
      $region31: #{model_forward.2} parent=5 // pred_region
        // Predicated region
        $region33: #{model_forward.2} parent=31 // pred_check
          %p205 = pneg %p32
        $region34: #{model_forward.2} parent=31 // pred_check_branch
          %207 = sbr.rel (%p205) target = $region36
        $region35: #{model_forward.2} parent=31 // pred_region
          %s208 = smul.u32 16, %s12
          %p209 = scmp.lt.s32.totalorder %s208, 31
          %s210 = scalar_select %p209, %s208, 31
          %s211 = smul.addr %s210, 4
          %s212 = scalar_lea.vmem %s0, %s211
          %s213 = smul.u32 16, %s12
        $region36: #{model_forward.2} parent=31 // pred_fallthru
          _
        // Predicated region
        $region37: #{model_forward.2} parent=31 // pred_check
          %p214 = pneg %p100
        $region38: #{model_forward.2} parent=31 // pred_check_branch
          %216 = sbr.rel (%p214) target = $region40
        $region39: #{model_forward.2} parent=31 // pred_region
          %s217 = smul.u32 16, %s12
          %p218 = scmp.lt.s32.totalorder %s217, 31
          %s219 = scalar_select %p218, %s217, 31
          %s220 = smul.addr %s219, 8
          %s221 = scalar_lea.vmem %s3, %s220
          %s222 = smul.u32 16, %s12
        $region40: #{model_forward.2} parent=31 // pred_fallthru
          _
      $region32: #{model_forward.2} parent=5 // pred_fallthru
        _
      %p223 = scmp.le.s32.totalorder 1, %s12
      %p224 = scmp.lt.s32.totalorder %s12, 3
      %p225 = pnand %p223, %p224
      %p226 = pneg %p225
      // Predicated region
      $region41: #{model_forward.2} parent=5 // pred_check
        _
      $region42: #{model_forward.2} parent=5 // pred_check_branch
        %228 = sbr.rel (%p225) target = $region44
      $region43: #{model_forward.2} parent=5 // pred_region
        %s229 = ssub.s32 %s12, 1
        %s230 = smul.u32 16, %s17
        %p231 = scmp.lt.s32.totalorder %s230, 31
        %s232 = scalar_select %p231, %s230, 31
        %s233 = smul.addr %s232, 4
        %s234 = scalar_lea.vmem %s0, %s233
        %p235 = pneg %p38
        %p236 = pneg %p35
        %p237 = pneg %p59
        %p238 = pneg %p56
        %p239 = pneg %p80
        %p240 = pneg %p77
        %s241 = smul.u32 16, %s17
        %p242 = scmp.lt.s32.totalorder %s241, 31
        %s243 = scalar_select %p242, %s241, 31
        %s244 = smul.addr %s243, 8
        %s245 = scalar_lea.vmem %s3, %s244
        %p246 = pneg %p106
        %p247 = pneg %p103
        %p248 = pneg %p127
        %p249 = pneg %p124
        %p250 = pneg %p148
        %p251 = pneg %p145
        %p252 = pneg %p174
        %p253 = pneg %p171
        %s254 = sand.u32 %s161, 1
        %s255 = sand.u32 %s161, 1
        %s256 = smul.addr %s255, 256
        %s257 = scalar_lea.vmem [#allocation2], %s256
        %s258 = smul.u32 16, %s17
        %p259 = scmp.lt.s32.totalorder %s258, 31
        %s260 = scalar_select %p259, %s258, 31
        %s261 = smul.addr %s260, 4
        %s262 = scalar_lea.vmem %s0, %s261
        %s263 = smul.u32 16, %s17
        %s264 = smul.u32 16, %s17
        %p265 = scmp.lt.s32.totalorder %s264, 31
        %s266 = scalar_select %p265, %s264, 31
        %s267 = smul.addr %s266, 8
        %s268 = scalar_lea.vmem %s3, %s267
        %s269 = smul.u32 16, %s17
        %s270 = smul.u32 16, %s17
        %v271 = vld [vmem:[%s1] sm:$0xff]
        %v272 = vld [vmem:[%s262] sm:$0x77]
        %v273 = vld [vmem:[%s262 + $0x8] sm:$0x77]
        %v274 = vld [vmem:[%s262 + $0x10] sm:$0x77]
        %v275 = vld [vmem:[%s262 + $0x18] sm:$0x77]
        %v276 = vld [vmem:[%s262 + $0x20] sm:$0x77]
        %v277 = vld [vmem:[%s262 + $0x28] sm:$0x77]
        %v278 = vld [vmem:[%s262 + $0x30] sm:$0x77]
        %v279 = vld [vmem:[%s262 + $0x38] sm:$0x77]
        %v280 = vld [vmem:[%s2] sm:$0xff]
        %282 = vset.pattern.permute.xlu0 0
        %283 = vperm.xlu0 %282, %v280
        %v284 = vpop.permute.xlu0 %283
        %v294 = vcombine.high %v272, %v272
        %v295 = vcombine.high %v273, %v273
        %v296 = vcombine.high %v274, %v274
        %v297 = vcombine.high %v275, %v275
        %v298 = vcombine.high %v276, %v276
        %v299 = vcombine.high %v277, %v277
        %v300 = vcombine.high %v278, %v278
        %v301 = vcombine.high %v279, %v279
        %vm302 = vcmask 23552
        %v304 = vsel %vm302, %v271, 0
        %vm306 = vcmask 1042432
        %v307 = vsel %vm306, %v272, 0
        %v309 = vsel %vm306, %v294, 0
        %v311 = vsel %vm306, %v273, 0
        %v313 = vsel %vm306, %v295, 0
        %v315 = vsel %vm306, %v274, 0
        %v317 = vsel %vm306, %v296, 0
        %v319 = vsel %vm306, %v275, 0
        %v321 = vsel %vm306, %v297, 0
        %v323 = vsel %vm306, %v276, 0
        %v325 = vsel %vm306, %v298, 0
        %v327 = vsel %vm306, %v277, 0
        %v329 = vsel %vm306, %v299, 0
        %v331 = vsel %vm306, %v278, 0
        %v333 = vsel %vm306, %v300, 0
        %v335 = vsel %vm306, %v279, 0
        %v337 = vsel %vm306, %v301, 0
        %339 = vmatprep.subr.mxu0 0.0
        %340 = vmatpush1.msra.mxu0 0.0
        %341 = vmatprep.subr.mxu0 0.0
        %342 = vmatpush1.msra.mxu0 0.0
        %343 = vmatprep.subr.mxu0 0.0
        %344 = vmatpush1.msra.mxu0 0.0
        %345 = vmatprep.subr.mxu0 0.0
        %346 = vmatpush1.msra.mxu0 0.0
        %347 = vmatprep.subr.mxu0 0.0
        %348 = vmatpush1.msra.mxu0 0.0
        %349 = vmatprep.subr.mxu0 0.0
        %350 = vmatpush1.msra.mxu0 0.0
        %351 = vmatprep.subr.mxu0 0.0
        %352 = vmatpush1.msra.mxu0 0.0
        %353 = vmatprep.subr.mxu0 0.0
        %354 = vmatpush1.msra.mxu0 0.0
        %355 = vmatprep.subr.mxu0 0.0
        %356 = vmatpush1.msra.mxu0 0.0
        %357 = vmatprep.subr.mxu0 0.0
        %358 = vmatpush1.msra.mxu0 0.0
        %359 = vmatprep.subr.mxu0 0.0
        %360 = vmatpush1.msra.mxu0 0.0
        %361 = vmatprep.subr.mxu0 0.0
        %362 = vmatpush1.msra.mxu0 0.0
        %363 = vmatprep.subr.mxu0 0.0
        %364 = vmatpush1.msra.mxu0 0.0
        %365 = vmatprep.subr.mxu0 0.0
        %366 = vmatpush1.msra.mxu0 0.0
        %367 = vmatprep.subr.mxu0 0.0
        %368 = vmatpush1.msra.mxu0 0.0
        %369 = vmatprep.subr.mxu0 %v309
        %370 = vmatpush1.msra.mxu0 %v307
        %371 = vmatprep.subr.mxu0 0.0
        %372 = vmatpush2.msra.mxu0 0.0
        %373 = vmatprep.subr.mxu0 0.0
        %374 = vmatpush2.msra.mxu0 0.0
        %375 = vmatprep.subr.mxu0 0.0
        %376 = vmatpush2.msra.mxu0 0.0
        %377 = vmatprep.subr.mxu0 0.0
        %378 = vmatpush2.msra.mxu0 0.0
        %379 = vmatprep.subr.mxu0 0.0
        %380 = vmatpush2.msra.mxu0 0.0
        %381 = vmatprep.subr.mxu0 0.0
        %382 = vmatpush2.msra.mxu0 0.0
        %383 = vmatprep.subr.mxu0 0.0
        %384 = vmatpush2.msra.mxu0 0.0
        %385 = vmatprep.subr.mxu0 0.0
        %386 = vmatpush2.msra.mxu0 0.0
        %387 = vmatprep.subr.mxu0 0.0
        %388 = vmatpush2.msra.mxu0 0.0
        %389 = vmatprep.subr.mxu0 0.0
        %390 = vmatpush2.msra.mxu0 0.0
        %391 = vmatprep.subr.mxu0 0.0
        %392 = vmatpush2.msra.mxu0 0.0
        %393 = vmatprep.subr.mxu0 0.0
        %394 = vmatpush2.msra.mxu0 0.0
        %395 = vmatprep.subr.mxu0 0.0
        %396 = vmatpush2.msra.mxu0 0.0
        %397 = vmatprep.subr.mxu0 0.0
        %398 = vmatpush2.msra.mxu0 0.0
        %399 = vmatprep.subr.mxu0 0.0
        %400 = vmatpush2.msra.mxu0 0.0
        %401 = vmatprep.subr.mxu0 0.0
        %402 = vmatpush2.msra.mxu0 0.0
        %403 = vmatprep.mubr.f32.mxu0 0.0
        %404 = vmatmul.mubr.f32.gmra.mxu0 %v304
        %v405 = vpop.f32.mrf.mxu0
        %v406 = vadd.f32 %v284, %v405
        %v407 = vpop.f32.mrf.mxu0
        %v408 = vadd.f32 %v284, %v407
        %409 = vdwg.mxu0
        %410 = vmatprep.subr.mxu0 0.0
        %411 = vmatpush1.msra.mxu0 0.0
        %412 = vmatprep.subr.mxu0 0.0
        %413 = vmatpush1.msra.mxu0 0.0
        %414 = vmatprep.subr.mxu0 0.0
        %415 = vmatpush1.msra.mxu0 0.0
        %416 = vmatprep.subr.mxu0 0.0
        %417 = vmatpush1.msra.mxu0 0.0
        %418 = vmatprep.subr.mxu0 0.0
        %419 = vmatpush1.msra.mxu0 0.0
        %420 = vmatprep.subr.mxu0 0.0
        %421 = vmatpush1.msra.mxu0 0.0
        %422 = vmatprep.subr.mxu0 0.0
        %423 = vmatpush1.msra.mxu0 0.0
        %424 = vmatprep.subr.mxu0 0.0
        %425 = vmatpush1.msra.mxu0 0.0
        %426 = vmatprep.subr.mxu0 0.0
        %427 = vmatpush1.msra.mxu0 0.0
        %428 = vmatprep.subr.mxu0 0.0
        %429 = vmatpush1.msra.mxu0 0.0
        %430 = vmatprep.subr.mxu0 0.0
        %431 = vmatpush1.msra.mxu0 0.0
        %432 = vmatprep.subr.mxu0 0.0
        %433 = vmatpush1.msra.mxu0 0.0
        %434 = vmatprep.subr.mxu0 0.0
        %435 = vmatpush1.msra.mxu0 0.0
        %436 = vmatprep.subr.mxu0 0.0
        %437 = vmatpush1.msra.mxu0 0.0
        %438 = vmatprep.subr.mxu0 0.0
        %439 = vmatpush1.msra.mxu0 0.0
        %440 = vmatprep.subr.mxu0 %v313
        %441 = vmatpush1.msra.mxu0 %v311
        %442 = vmatprep.subr.mxu0 0.0
        %443 = vmatpush2.msra.mxu0 0.0
        %444 = vmatprep.subr.mxu0 0.0
        %445 = vmatpush2.msra.mxu0 0.0
        %446 = vmatprep.subr.mxu0 0.0
        %447 = vmatpush2.msra.mxu0 0.0
        %448 = vmatprep.subr.mxu0 0.0
        %449 = vmatpush2.msra.mxu0 0.0
        %450 = vmatprep.subr.mxu0 0.0
        %451 = vmatpush2.msra.mxu0 0.0
        %452 = vmatprep.subr.mxu0 0.0
        %453 = vmatpush2.msra.mxu0 0.0
        %454 = vmatprep.subr.mxu0 0.0
        %455 = vmatpush2.msra.mxu0 0.0
        %456 = vmatprep.subr.mxu0 0.0
        %457 = vmatpush2.msra.mxu0 0.0
        %458 = vmatprep.subr.mxu0 0.0
        %459 = vmatpush2.msra.mxu0 0.0
        %460 = vmatprep.subr.mxu0 0.0
        %461 = vmatpush2.msra.mxu0 0.0
        %462 = vmatprep.subr.mxu0 0.0
        %463 = vmatpush2.msra.mxu0 0.0
        %464 = vmatprep.subr.mxu0 0.0
        %465 = vmatpush2.msra.mxu0 0.0
        %466 = vmatprep.subr.mxu0 0.0
        %467 = vmatpush2.msra.mxu0 0.0
        %468 = vmatprep.subr.mxu0 0.0
        %469 = vmatpush2.msra.mxu0 0.0
        %470 = vmatprep.subr.mxu0 0.0
        %471 = vmatpush2.msra.mxu0 0.0
        %472 = vmatprep.subr.mxu0 0.0
        %473 = vmatpush2.msra.mxu0 0.0
        %474 = vmatprep.mubr.f32.mxu0 0.0
        %475 = vmatmul.mubr.f32.gmra.mxu0 %v304
        %v476 = vpop.f32.mrf.mxu0
        %v477 = vadd.f32 %v284, %v476
        %v478 = vpop.f32.mrf.mxu0
        %v479 = vadd.f32 %v284, %v478
        %480 = vdwg.mxu0
        %481 = vmatprep.subr.mxu0 0.0
        %482 = vmatpush1.msra.mxu0 0.0
        %483 = vmatprep.subr.mxu0 0.0
        %484 = vmatpush1.msra.mxu0 0.0
        %485 = vmatprep.subr.mxu0 0.0
        %486 = vmatpush1.msra.mxu0 0.0
        %487 = vmatprep.subr.mxu0 0.0
        %488 = vmatpush1.msra.mxu0 0.0
        %489 = vmatprep.subr.mxu0 0.0
        %490 = vmatpush1.msra.mxu0 0.0
        %491 = vmatprep.subr.mxu0 0.0
        %492 = vmatpush1.msra.mxu0 0.0
        %493 = vmatprep.subr.mxu0 0.0
        %494 = vmatpush1.msra.mxu0 0.0
        %495 = vmatprep.subr.mxu0 0.0
        %496 = vmatpush1.msra.mxu0 0.0
        %497 = vmatprep.subr.mxu0 0.0
        %498 = vmatpush1.msra.mxu0 0.0
        %499 = vmatprep.subr.mxu0 0.0
        %500 = vmatpush1.msra.mxu0 0.0
        %501 = vmatprep.subr.mxu0 0.0
        %502 = vmatpush1.msra.mxu0 0.0
        %503 = vmatprep.subr.mxu0 0.0
        %504 = vmatpush1.msra.mxu0 0.0
        %505 = vmatprep.subr.mxu0 0.0
        %506 = vmatpush1.msra.mxu0 0.0
        %507 = vmatprep.subr.mxu0 0.0
        %508 = vmatpush1.msra.mxu0 0.0
        %509 = vmatprep.subr.mxu0 0.0
        %510 = vmatpush1.msra.mxu0 0.0
        %511 = vmatprep.subr.mxu0 %v317
        %512 = vmatpush1.msra.mxu0 %v315
        %513 = vmatprep.subr.mxu0 0.0
        %514 = vmatpush2.msra.mxu0 0.0
        %515 = vmatprep.subr.mxu0 0.0
        %516 = vmatpush2.msra.mxu0 0.0
        %517 = vmatprep.subr.mxu0 0.0
        %518 = vmatpush2.msra.mxu0 0.0
        %519 = vmatprep.subr.mxu0 0.0
        %520 = vmatpush2.msra.mxu0 0.0
        %521 = vmatprep.subr.mxu0 0.0
        %522 = vmatpush2.msra.mxu0 0.0
        %523 = vmatprep.subr.mxu0 0.0
        %524 = vmatpush2.msra.mxu0 0.0
        %525 = vmatprep.subr.mxu0 0.0
        %526 = vmatpush2.msra.mxu0 0.0
        %527 = vmatprep.subr.mxu0 0.0
        %528 = vmatpush2.msra.mxu0 0.0
        %529 = vmatprep.subr.mxu0 0.0
        %530 = vmatpush2.msra.mxu0 0.0
        %531 = vmatprep.subr.mxu0 0.0
        %532 = vmatpush2.msra.mxu0 0.0
        %533 = vmatprep.subr.mxu0 0.0
        %534 = vmatpush2.msra.mxu0 0.0
        %535 = vmatprep.subr.mxu0 0.0
        %536 = vmatpush2.msra.mxu0 0.0
        %537 = vmatprep.subr.mxu0 0.0
        %538 = vmatpush2.msra.mxu0 0.0
        %539 = vmatprep.subr.mxu0 0.0
        %540 = vmatpush2.msra.mxu0 0.0
        %541 = vmatprep.subr.mxu0 0.0
        %542 = vmatpush2.msra.mxu0 0.0
        %543 = vmatprep.subr.mxu0 0.0
        %544 = vmatpush2.msra.mxu0 0.0
        %545 = vmatprep.mubr.f32.mxu0 0.0
        %546 = vmatmul.mubr.f32.gmra.mxu0 %v304
        %v547 = vpop.f32.mrf.mxu0
        %v548 = vadd.f32 %v284, %v547
        %v549 = vpop.f32.mrf.mxu0
        %v550 = vadd.f32 %v284, %v549
        %551 = vdwg.mxu0
        %552 = vmatprep.subr.mxu0 0.0
        %553 = vmatpush1.msra.mxu0 0.0
        %554 = vmatprep.subr.mxu0 0.0
        %555 = vmatpush1.msra.mxu0 0.0
        %556 = vmatprep.subr.mxu0 0.0
        %557 = vmatpush1.msra.mxu0 0.0
        %558 = vmatprep.subr.mxu0 0.0
        %559 = vmatpush1.msra.mxu0 0.0
        %560 = vmatprep.subr.mxu0 0.0
        %561 = vmatpush1.msra.mxu0 0.0
        %562 = vmatprep.subr.mxu0 0.0
        %563 = vmatpush1.msra.mxu0 0.0
        %564 = vmatprep.subr.mxu0 0.0
        %565 = vmatpush1.msra.mxu0 0.0
        %566 = vmatprep.subr.mxu0 0.0
        %567 = vmatpush1.msra.mxu0 0.0
        %568 = vmatprep.subr.mxu0 0.0
        %569 = vmatpush1.msra.mxu0 0.0
        %570 = vmatprep.subr.mxu0 0.0
        %571 = vmatpush1.msra.mxu0 0.0
        %572 = vmatprep.subr.mxu0 0.0
        %573 = vmatpush1.msra.mxu0 0.0
        %574 = vmatprep.subr.mxu0 0.0
        %575 = vmatpush1.msra.mxu0 0.0
        %576 = vmatprep.subr.mxu0 0.0
        %577 = vmatpush1.msra.mxu0 0.0
        %578 = vmatprep.subr.mxu0 0.0
        %579 = vmatpush1.msra.mxu0 0.0
        %580 = vmatprep.subr.mxu0 0.0
        %581 = vmatpush1.msra.mxu0 0.0
        %582 = vmatprep.subr.mxu0 %v321
        %583 = vmatpush1.msra.mxu0 %v319
        %584 = vmatprep.subr.mxu0 0.0
        %585 = vmatpush2.msra.mxu0 0.0
        %586 = vmatprep.subr.mxu0 0.0
        %587 = vmatpush2.msra.mxu0 0.0
        %588 = vmatprep.subr.mxu0 0.0
        %589 = vmatpush2.msra.mxu0 0.0
        %590 = vmatprep.subr.mxu0 0.0
        %591 = vmatpush2.msra.mxu0 0.0
        %592 = vmatprep.subr.mxu0 0.0
        %593 = vmatpush2.msra.mxu0 0.0
        %594 = vmatprep.subr.mxu0 0.0
        %595 = vmatpush2.msra.mxu0 0.0
        %596 = vmatprep.subr.mxu0 0.0
        %597 = vmatpush2.msra.mxu0 0.0
        %598 = vmatprep.subr.mxu0 0.0
        %599 = vmatpush2.msra.mxu0 0.0
        %600 = vmatprep.subr.mxu0 0.0
        %601 = vmatpush2.msra.mxu0 0.0
        %602 = vmatprep.subr.mxu0 0.0
        %603 = vmatpush2.msra.mxu0 0.0
        %604 = vmatprep.subr.mxu0 0.0
        %605 = vmatpush2.msra.mxu0 0.0
        %606 = vmatprep.subr.mxu0 0.0
        %607 = vmatpush2.msra.mxu0 0.0
        %608 = vmatprep.subr.mxu0 0.0
        %609 = vmatpush2.msra.mxu0 0.0
        %610 = vmatprep.subr.mxu0 0.0
        %611 = vmatpush2.msra.mxu0 0.0
        %612 = vmatprep.subr.mxu0 0.0
        %613 = vmatpush2.msra.mxu0 0.0
        %614 = vmatprep.subr.mxu0 0.0
        %615 = vmatpush2.msra.mxu0 0.0
        %616 = vmatprep.mubr.f32.mxu0 0.0
        %617 = vmatmul.mubr.f32.gmra.mxu0 %v304
        %v618 = vpop.f32.mrf.mxu0
        %v619 = vadd.f32 %v284, %v618
        %v620 = vpop.f32.mrf.mxu0
        %v621 = vadd.f32 %v284, %v620
        %622 = vdwg.mxu0
        %623 = vmatprep.subr.mxu0 0.0
        %624 = vmatpush1.msra.mxu0 0.0
        %625 = vmatprep.subr.mxu0 0.0
        %626 = vmatpush1.msra.mxu0 0.0
        %627 = vmatprep.subr.mxu0 0.0
        %628 = vmatpush1.msra.mxu0 0.0
        %629 = vmatprep.subr.mxu0 0.0
        %630 = vmatpush1.msra.mxu0 0.0
        %631 = vmatprep.subr.mxu0 0.0
        %632 = vmatpush1.msra.mxu0 0.0
        %633 = vmatprep.subr.mxu0 0.0
        %634 = vmatpush1.msra.mxu0 0.0
        %635 = vmatprep.subr.mxu0 0.0
        %636 = vmatpush1.msra.mxu0 0.0
        %637 = vmatprep.subr.mxu0 0.0
        %638 = vmatpush1.msra.mxu0 0.0
        %639 = vmatprep.subr.mxu0 0.0
        %640 = vmatpush1.msra.mxu0 0.0
        %641 = vmatprep.subr.mxu0 0.0
        %642 = vmatpush1.msra.mxu0 0.0
        %643 = vmatprep.subr.mxu0 0.0
        %644 = vmatpush1.msra.mxu0 0.0
        %645 = vmatprep.subr.mxu0 0.0
        %646 = vmatpush1.msra.mxu0 0.0
        %647 = vmatprep.subr.mxu0 0.0
        %648 = vmatpush1.msra.mxu0 0.0
        %649 = vmatprep.subr.mxu0 0.0
        %650 = vmatpush1.msra.mxu0 0.0
        %651 = vmatprep.subr.mxu0 0.0
        %652 = vmatpush1.msra.mxu0 0.0
        %653 = vmatprep.subr.mxu0 %v325
        %654 = vmatpush1.msra.mxu0 %v323
        %655 = vmatprep.subr.mxu0 0.0
        %656 = vmatpush2.msra.mxu0 0.0
        %657 = vmatprep.subr.mxu0 0.0
        %658 = vmatpush2.msra.mxu0 0.0
        %659 = vmatprep.subr.mxu0 0.0
        %660 = vmatpush2.msra.mxu0 0.0
        %661 = vmatprep.subr.mxu0 0.0
        %662 = vmatpush2.msra.mxu0 0.0
        %663 = vmatprep.subr.mxu0 0.0
        %664 = vmatpush2.msra.mxu0 0.0
        %665 = vmatprep.subr.mxu0 0.0
        %666 = vmatpush2.msra.mxu0 0.0
        %667 = vmatprep.subr.mxu0 0.0
        %668 = vmatpush2.msra.mxu0 0.0
        %669 = vmatprep.subr.mxu0 0.0
        %670 = vmatpush2.msra.mxu0 0.0
        %671 = vmatprep.subr.mxu0 0.0
        %672 = vmatpush2.msra.mxu0 0.0
        %673 = vmatprep.subr.mxu0 0.0
        %674 = vmatpush2.msra.mxu0 0.0
        %675 = vmatprep.subr.mxu0 0.0
        %676 = vmatpush2.msra.mxu0 0.0
        %677 = vmatprep.subr.mxu0 0.0
        %678 = vmatpush2.msra.mxu0 0.0
        %679 = vmatprep.subr.mxu0 0.0
        %680 = vmatpush2.msra.mxu0 0.0
        %681 = vmatprep.subr.mxu0 0.0
        %682 = vmatpush2.msra.mxu0 0.0
        %683 = vmatprep.subr.mxu0 0.0
        %684 = vmatpush2.msra.mxu0 0.0
        %685 = vmatprep.subr.mxu0 0.0
        %686 = vmatpush2.msra.mxu0 0.0
        %687 = vmatprep.mubr.f32.mxu0 0.0
        %688 = vmatmul.mubr.f32.gmra.mxu0 %v304
        %v689 = vpop.f32.mrf.mxu0
        %v690 = vadd.f32 %v284, %v689
        %v691 = vpop.f32.mrf.mxu0
        %v692 = vadd.f32 %v284, %v691
        %693 = vdwg.mxu0
        %694 = vmatprep.subr.mxu0 0.0
        %695 = vmatpush1.msra.mxu0 0.0
        %696 = vmatprep.subr.mxu0 0.0
        %697 = vmatpush1.msra.mxu0 0.0
        %698 = vmatprep.subr.mxu0 0.0
        %699 = vmatpush1.msra.mxu0 0.0
        %700 = vmatprep.subr.mxu0 0.0
        %701 = vmatpush1.msra.mxu0 0.0
        %702 = vmatprep.subr.mxu0 0.0
        %703 = vmatpush1.msra.mxu0 0.0
        %704 = vmatprep.subr.mxu0 0.0
        %705 = vmatpush1.msra.mxu0 0.0
        %706 = vmatprep.subr.mxu0 0.0
        %707 = vmatpush1.msra.mxu0 0.0
        %708 = vmatprep.subr.mxu0 0.0
        %709 = vmatpush1.msra.mxu0 0.0
        %710 = vmatprep.subr.mxu0 0.0
        %711 = vmatpush1.msra.mxu0 0.0
        %712 = vmatprep.subr.mxu0 0.0
        %713 = vmatpush1.msra.mxu0 0.0
        %714 = vmatprep.subr.mxu0 0.0
        %715 = vmatpush1.msra.mxu0 0.0
        %716 = vmatprep.subr.mxu0 0.0
        %717 = vmatpush1.msra.mxu0 0.0
        %718 = vmatprep.subr.mxu0 0.0
        %719 = vmatpush1.msra.mxu0 0.0
        %720 = vmatprep.subr.mxu0 0.0
        %721 = vmatpush1.msra.mxu0 0.0
        %722 = vmatprep.subr.mxu0 0.0
        %723 = vmatpush1.msra.mxu0 0.0
        %724 = vmatprep.subr.mxu0 %v329
        %725 = vmatpush1.msra.mxu0 %v327
        %726 = vmatprep.subr.mxu0 0.0
        %727 = vmatpush2.msra.mxu0 0.0
        %728 = vmatprep.subr.mxu0 0.0
        %729 = vmatpush2.msra.mxu0 0.0
        %730 = vmatprep.subr.mxu0 0.0
        %731 = vmatpush2.msra.mxu0 0.0
        %732 = vmatprep.subr.mxu0 0.0
        %733 = vmatpush2.msra.mxu0 0.0
        %734 = vmatprep.subr.mxu0 0.0
        %735 = vmatpush2.msra.mxu0 0.0
        %736 = vmatprep.subr.mxu0 0.0
        %737 = vmatpush2.msra.mxu0 0.0
        %738 = vmatprep.subr.mxu0 0.0
        %739 = vmatpush2.msra.mxu0 0.0
        %740 = vmatprep.subr.mxu0 0.0
        %741 = vmatpush2.msra.mxu0 0.0
        %742 = vmatprep.subr.mxu0 0.0
        %743 = vmatpush2.msra.mxu0 0.0
        %744 = vmatprep.subr.mxu0 0.0
        %745 = vmatpush2.msra.mxu0 0.0
        %746 = vmatprep.subr.mxu0 0.0
        %747 = vmatpush2.msra.mxu0 0.0
        %748 = vmatprep.subr.mxu0 0.0
        %749 = vmatpush2.msra.mxu0 0.0
        %750 = vmatprep.subr.mxu0 0.0
        %751 = vmatpush2.msra.mxu0 0.0
        %752 = vmatprep.subr.mxu0 0.0
        %753 = vmatpush2.msra.mxu0 0.0
        %754 = vmatprep.subr.mxu0 0.0
        %755 = vmatpush2.msra.mxu0 0.0
        %756 = vmatprep.subr.mxu0 0.0
        %757 = vmatpush2.msra.mxu0 0.0
        %758 = vmatprep.mubr.f32.mxu0 0.0
        %759 = vmatmul.mubr.f32.gmra.mxu0 %v304
        %v760 = vpop.f32.mrf.mxu0
        %v761 = vadd.f32 %v284, %v760
        %v762 = vpop.f32.mrf.mxu0
        %v763 = vadd.f32 %v284, %v762
        %764 = vdwg.mxu0
        %765 = vmatprep.subr.mxu0 0.0
        %766 = vmatpush1.msra.mxu0 0.0
        %767 = vmatprep.subr.mxu0 0.0
        %768 = vmatpush1.msra.mxu0 0.0
        %769 = vmatprep.subr.mxu0 0.0
        %770 = vmatpush1.msra.mxu0 0.0
        %771 = vmatprep.subr.mxu0 0.0
        %772 = vmatpush1.msra.mxu0 0.0
        %773 = vmatprep.subr.mxu0 0.0
        %774 = vmatpush1.msra.mxu0 0.0
        %775 = vmatprep.subr.mxu0 0.0
        %776 = vmatpush1.msra.mxu0 0.0
        %777 = vmatprep.subr.mxu0 0.0
        %778 = vmatpush1.msra.mxu0 0.0
        %779 = vmatprep.subr.mxu0 0.0
        %780 = vmatpush1.msra.mxu0 0.0
        %781 = vmatprep.subr.mxu0 0.0
        %782 = vmatpush1.msra.mxu0 0.0
        %783 = vmatprep.subr.mxu0 0.0
        %784 = vmatpush1.msra.mxu0 0.0
        %785 = vmatprep.subr.mxu0 0.0
        %786 = vmatpush1.msra.mxu0 0.0
        %787 = vmatprep.subr.mxu0 0.0
        %788 = vmatpush1.msra.mxu0 0.0
        %789 = vmatprep.subr.mxu0 0.0
        %790 = vmatpush1.msra.mxu0 0.0
        %791 = vmatprep.subr.mxu0 0.0
        %792 = vmatpush1.msra.mxu0 0.0
        %793 = vmatprep.subr.mxu0 0.0
        %794 = vmatpush1.msra.mxu0 0.0
        %795 = vmatprep.subr.mxu0 %v333
        %796 = vmatpush1.msra.mxu0 %v331
        %797 = vmatprep.subr.mxu0 0.0
        %798 = vmatpush2.msra.mxu0 0.0
        %799 = vmatprep.subr.mxu0 0.0
        %800 = vmatpush2.msra.mxu0 0.0
        %801 = vmatprep.subr.mxu0 0.0
        %802 = vmatpush2.msra.mxu0 0.0
        %803 = vmatprep.subr.mxu0 0.0
        %804 = vmatpush2.msra.mxu0 0.0
        %805 = vmatprep.subr.mxu0 0.0
        %806 = vmatpush2.msra.mxu0 0.0
        %807 = vmatprep.subr.mxu0 0.0
        %808 = vmatpush2.msra.mxu0 0.0
        %809 = vmatprep.subr.mxu0 0.0
        %810 = vmatpush2.msra.mxu0 0.0
        %811 = vmatprep.subr.mxu0 0.0
        %812 = vmatpush2.msra.mxu0 0.0
        %813 = vmatprep.subr.mxu0 0.0
        %814 = vmatpush2.msra.mxu0 0.0
        %815 = vmatprep.subr.mxu0 0.0
        %816 = vmatpush2.msra.mxu0 0.0
        %817 = vmatprep.subr.mxu0 0.0
        %818 = vmatpush2.msra.mxu0 0.0
        %819 = vmatprep.subr.mxu0 0.0
        %820 = vmatpush2.msra.mxu0 0.0
        %821 = vmatprep.subr.mxu0 0.0
        %822 = vmatpush2.msra.mxu0 0.0
        %823 = vmatprep.subr.mxu0 0.0
        %824 = vmatpush2.msra.mxu0 0.0
        %825 = vmatprep.subr.mxu0 0.0
        %826 = vmatpush2.msra.mxu0 0.0
        %827 = vmatprep.subr.mxu0 0.0
        %828 = vmatpush2.msra.mxu0 0.0
        %829 = vmatprep.mubr.f32.mxu0 0.0
        %830 = vmatmul.mubr.f32.gmra.mxu0 %v304
        %v831 = vpop.f32.mrf.mxu0
        %v832 = vadd.f32 %v284, %v831
        %v833 = vpop.f32.mrf.mxu0
        %v834 = vadd.f32 %v284, %v833
        %835 = vdwg.mxu0
        %836 = vmatprep.subr.mxu0 0.0
        %837 = vmatpush1.msra.mxu0 0.0
        %838 = vmatprep.subr.mxu0 0.0
        %839 = vmatpush1.msra.mxu0 0.0
        %840 = vmatprep.subr.mxu0 0.0
        %841 = vmatpush1.msra.mxu0 0.0
        %842 = vmatprep.subr.mxu0 0.0
        %843 = vmatpush1.msra.mxu0 0.0
        %844 = vmatprep.subr.mxu0 0.0
        %845 = vmatpush1.msra.mxu0 0.0
        %846 = vmatprep.subr.mxu0 0.0
        %847 = vmatpush1.msra.mxu0 0.0
        %848 = vmatprep.subr.mxu0 0.0
        %849 = vmatpush1.msra.mxu0 0.0
        %850 = vmatprep.subr.mxu0 0.0
        %851 = vmatpush1.msra.mxu0 0.0
        %852 = vmatprep.subr.mxu0 0.0
        %853 = vmatpush1.msra.mxu0 0.0
        %854 = vmatprep.subr.mxu0 0.0
        %855 = vmatpush1.msra.mxu0 0.0
        %856 = vmatprep.subr.mxu0 0.0
        %857 = vmatpush1.msra.mxu0 0.0
        %858 = vmatprep.subr.mxu0 0.0
        %859 = vmatpush1.msra.mxu0 0.0
        %860 = vmatprep.subr.mxu0 0.0
        %861 = vmatpush1.msra.mxu0 0.0
        %862 = vmatprep.subr.mxu0 0.0
        %863 = vmatpush1.msra.mxu0 0.0
        %864 = vmatprep.subr.mxu0 0.0
        %865 = vmatpush1.msra.mxu0 0.0
        %866 = vmatprep.subr.mxu0 %v337
        %867 = vmatpush1.msra.mxu0 %v335
        %868 = vmatprep.subr.mxu0 0.0
        %869 = vmatpush2.msra.mxu0 0.0
        %870 = vmatprep.subr.mxu0 0.0
        %871 = vmatpush2.msra.mxu0 0.0
        %872 = vmatprep.subr.mxu0 0.0
        %873 = vmatpush2.msra.mxu0 0.0
        %874 = vmatprep.subr.mxu0 0.0
        %875 = vmatpush2.msra.mxu0 0.0
        %876 = vmatprep.subr.mxu0 0.0
        %877 = vmatpush2.msra.mxu0 0.0
        %878 = vmatprep.subr.mxu0 0.0
        %879 = vmatpush2.msra.mxu0 0.0
        %880 = vmatprep.subr.mxu0 0.0
        %881 = vmatpush2.msra.mxu0 0.0
        %882 = vmatprep.subr.mxu0 0.0
        %883 = vmatpush2.msra.mxu0 0.0
        %884 = vmatprep.subr.mxu0 0.0
        %885 = vmatpush2.msra.mxu0 0.0
        %886 = vmatprep.subr.mxu0 0.0
        %887 = vmatpush2.msra.mxu0 0.0
        %888 = vmatprep.subr.mxu0 0.0
        %889 = vmatpush2.msra.mxu0 0.0
        %890 = vmatprep.subr.mxu0 0.0
        %891 = vmatpush2.msra.mxu0 0.0
        %892 = vmatprep.subr.mxu0 0.0
        %893 = vmatpush2.msra.mxu0 0.0
        %894 = vmatprep.subr.mxu0 0.0
        %895 = vmatpush2.msra.mxu0 0.0
        %896 = vmatprep.subr.mxu0 0.0
        %897 = vmatpush2.msra.mxu0 0.0
        %898 = vmatprep.subr.mxu0 0.0
        %899 = vmatpush2.msra.mxu0 0.0
        %900 = vmatprep.mubr.f32.mxu0 0.0
        %901 = vmatmul.mubr.f32.gmra.mxu0 %v304
        %v902 = vpop.f32.mrf.mxu0
        %v903 = vadd.f32 %v284, %v902
        %v904 = vpop.f32.mrf.mxu0
        %v905 = vadd.f32 %v284, %v904
        %906 = vdwg.mxu0
        %v907 = vld [vmem:[%s268] sm:$0xff]
        %v908 = vld [vmem:[%s268 + $0x8] sm:$0xff]
        %v909 = vld [vmem:[%s268 + $0x10] sm:$0xff]
        %v910 = vld [vmem:[%s268 + $0x18] sm:$0xff]
        %v911 = vld [vmem:[%s268 + $0x20] sm:$0xff]
        %v912 = vld [vmem:[%s268 + $0x28] sm:$0xff]
        %v913 = vld [vmem:[%s268 + $0x30] sm:$0xff]
        %v914 = vld [vmem:[%s268 + $0x38] sm:$0xff]
        %v915 = vld [vmem:[%s268 + $0x40] sm:$0xff]
        %v916 = vld [vmem:[%s268 + $0x48] sm:$0xff]
        %v917 = vld [vmem:[%s268 + $0x50] sm:$0xff]
        %v918 = vld [vmem:[%s268 + $0x58] sm:$0xff]
        %v919 = vld [vmem:[%s268 + $0x60] sm:$0xff]
        %v920 = vld [vmem:[%s268 + $0x68] sm:$0xff]
        %v921 = vld [vmem:[%s268 + $0x70] sm:$0xff]
        %v922 = vld [vmem:[%s268 + $0x78] sm:$0xff]
        %v923 = vmul.f32 %v406, %v907
        %v924 = vmul.f32 %v408, %v908
        %v925 = vmul.f32 %v477, %v909
        %v926 = vmul.f32 %v479, %v910
        %v927 = vmul.f32 %v548, %v911
        %v928 = vmul.f32 %v550, %v912
        %v929 = vmul.f32 %v619, %v913
        %v930 = vmul.f32 %v621, %v914
        %v931 = vmul.f32 %v690, %v915
        %v932 = vmul.f32 %v692, %v916
        %v933 = vmul.f32 %v761, %v917
        %v934 = vmul.f32 %v763, %v918
        %v935 = vmul.f32 %v832, %v919
        %v936 = vmul.f32 %v834, %v920
        %v937 = vmul.f32 %v903, %v921
        %v938 = vmul.f32 %v905, %v922
        %v939 = vxor.u32 %v923, 2147483648
        %v940 = vxor.u32 %v924, 2147483648
        %v941 = vxor.u32 %v925, 2147483648
        %v942 = vxor.u32 %v926, 2147483648
        %v943 = vxor.u32 %v927, 2147483648
        %v944 = vxor.u32 %v928, 2147483648
        %v945 = vxor.u32 %v929, 2147483648
        %v946 = vxor.u32 %v930, 2147483648
        %v947 = vxor.u32 %v931, 2147483648
        %v948 = vxor.u32 %v932, 2147483648
        %v949 = vxor.u32 %v933, 2147483648
        %v950 = vxor.u32 %v934, 2147483648
        %v951 = vxor.u32 %v935, 2147483648
        %v952 = vxor.u32 %v936, 2147483648
        %v953 = vxor.u32 %v937, 2147483648
        %v954 = vxor.u32 %v938, 2147483648
        %v955 = vmul.f32 %v939, 1.442695
        %v956 = vpow.pop %v955
        %v957 = vmul.f32 %v940, 1.442695
        %v958 = vpow.pop %v957
        %v959 = vmul.f32 %v941, 1.442695
        %v960 = vpow.pop %v959
        %v961 = vmul.f32 %v942, 1.442695
        %v962 = vpow.pop %v961
        %v963 = vmul.f32 %v943, 1.442695
        %v964 = vpow.pop %v963
        %v965 = vmul.f32 %v944, 1.442695
        %v966 = vpow.pop %v965
        %v967 = vmul.f32 %v945, 1.442695
        %v968 = vpow.pop %v967
        %v969 = vmul.f32 %v946, 1.442695
        %v970 = vpow.pop %v969
        %v971 = vmul.f32 %v947, 1.442695
        %v972 = vpow.pop %v971
        %v973 = vmul.f32 %v948, 1.442695
        %v974 = vpow.pop %v973
        %v975 = vmul.f32 %v949, 1.442695
        %v976 = vpow.pop %v975
        %v977 = vmul.f32 %v950, 1.442695
        %v978 = vpow.pop %v977
        %v979 = vmul.f32 %v951, 1.442695
        %v980 = vpow.pop %v979
        %v981 = vmul.f32 %v952, 1.442695
        %v982 = vpow.pop %v981
        %v983 = vmul.f32 %v953, 1.442695
        %v984 = vpow.pop %v983
        %v985 = vmul.f32 %v954, 1.442695
        %v986 = vpow.pop %v985
        %v987 = vadd.f32 %v956, 1.0
        %v988 = vadd.f32 %v958, 1.0
        %v989 = vadd.f32 %v960, 1.0
        %v990 = vadd.f32 %v962, 1.0
        %v991 = vadd.f32 %v964, 1.0
        %v992 = vadd.f32 %v966, 1.0
        %v993 = vadd.f32 %v968, 1.0
        %v994 = vadd.f32 %v970, 1.0
        %v995 = vadd.f32 %v972, 1.0
        %v996 = vadd.f32 %v974, 1.0
        %v997 = vadd.f32 %v976, 1.0
        %v998 = vadd.f32 %v978, 1.0
        %v999 = vadd.f32 %v980, 1.0
        %v1000 = vadd.f32 %v982, 1.0
        %v1001 = vadd.f32 %v984, 1.0
        %v1002 = vadd.f32 %v986, 1.0
        %v1003 = vrcp.pop %v987
        %v1004 = vmul.f32 1.0, %v1003
        %v1005 = vrcp.pop %v988
        %v1006 = vmul.f32 1.0, %v1005
        %v1007 = vrcp.pop %v989
        %v1008 = vmul.f32 1.0, %v1007
        %v1009 = vrcp.pop %v990
        %v1010 = vmul.f32 1.0, %v1009
        %v1011 = vrcp.pop %v991
        %v1012 = vmul.f32 1.0, %v1011
        %v1013 = vrcp.pop %v992
        %v1014 = vmul.f32 1.0, %v1013
        %v1015 = vrcp.pop %v993
        %v1016 = vmul.f32 1.0, %v1015
        %v1017 = vrcp.pop %v994
        %v1018 = vmul.f32 1.0, %v1017
        %v1019 = vrcp.pop %v995
        %v1020 = vmul.f32 1.0, %v1019
        %v1021 = vrcp.pop %v996
        %v1022 = vmul.f32 1.0, %v1021
        %v1023 = vrcp.pop %v997
        %v1024 = vmul.f32 1.0, %v1023
        %v1025 = vrcp.pop %v998
        %v1026 = vmul.f32 1.0, %v1025
        %v1027 = vrcp.pop %v999
        %v1028 = vmul.f32 1.0, %v1027
        %v1029 = vrcp.pop %v1000
        %v1030 = vmul.f32 1.0, %v1029
        %v1031 = vrcp.pop %v1001
        %v1032 = vmul.f32 1.0, %v1031
        %v1033 = vrcp.pop %v1002
        %v1034 = vmul.f32 1.0, %v1033
        %v1035 = vld [vmem:[%s4] sm:$0xff]
        %v1036 = vld [vmem:[%s4 + $0x8] sm:$0xff]
        %v1037 = vld [vmem:[%s5] sm:$0xff]
        %v1038 = vld [vmem:[%s5 + $0x8] sm:$0xff]
        %1040 = vset.pattern.permute.xlu0 0
        %1041 = vperm.xlu0 %1040, %v1037
        %v1042 = vpop.permute.xlu0 %1041
        %1045 = vset.pattern.permute.xlu0 0
        %1046 = vperm.xlu0 %1045, %v1038
        %v1047 = vpop.permute.xlu0 %1046
        %vm1049 = vcmask 64512
        %v1051 = vsel %vm1049, %v1035, 0
        %v1054 = vsel %vm1049, %v1036, 0
        %1056 = vmatprep.subr.mxu0 0.0
        %1057 = vmatpush1.msra.mxu0 0.0
        %1058 = vmatprep.subr.mxu0 0.0
        %1059 = vmatpush1.msra.mxu0 0.0
        %1060 = vmatprep.subr.mxu0 0.0
        %1061 = vmatpush1.msra.mxu0 0.0
        %1062 = vmatprep.subr.mxu0 0.0
        %1063 = vmatpush1.msra.mxu0 0.0
        %1064 = vmatprep.subr.mxu0 0.0
        %1065 = vmatpush1.msra.mxu0 0.0
        %1066 = vmatprep.subr.mxu0 0.0
        %1067 = vmatpush1.msra.mxu0 0.0
        %1068 = vmatprep.subr.mxu0 0.0
        %1069 = vmatpush1.msra.mxu0 0.0
        %1070 = vmatprep.subr.mxu0 0.0
        %1071 = vmatpush1.msra.mxu0 0.0
        %1072 = vmatprep.subr.mxu0 0.0
        %1073 = vmatpush1.msra.mxu0 0.0
        %1074 = vmatprep.subr.mxu0 0.0
        %1075 = vmatpush1.msra.mxu0 0.0
        %1076 = vmatprep.subr.mxu0 0.0
        %1077 = vmatpush1.msra.mxu0 0.0
        %1078 = vmatprep.subr.mxu0 0.0
        %1079 = vmatpush1.msra.mxu0 0.0
        %1080 = vmatprep.subr.mxu0 0.0
        %1081 = vmatpush1.msra.mxu0 0.0
        %1082 = vmatprep.subr.mxu0 0.0
        %1083 = vmatpush1.msra.mxu0 0.0
        %1084 = vmatprep.subr.mxu0 0.0
        %1085 = vmatpush1.msra.mxu0 0.0
        %1086 = vmatprep.subr.mxu0 %v1006
        %1087 = vmatpush1.msra.mxu0 %v1004
        %1088 = vmatprep.subr.mxu0 0.0
        %1089 = vmatpush2.msra.mxu0 0.0
        %1090 = vmatprep.subr.mxu0 0.0
        %1091 = vmatpush2.msra.mxu0 0.0
        %1092 = vmatprep.subr.mxu0 0.0
        %1093 = vmatpush2.msra.mxu0 0.0
        %1094 = vmatprep.subr.mxu0 0.0
        %1095 = vmatpush2.msra.mxu0 0.0
        %1096 = vmatprep.subr.mxu0 0.0
        %1097 = vmatpush2.msra.mxu0 0.0
        %1098 = vmatprep.subr.mxu0 0.0
        %1099 = vmatpush2.msra.mxu0 0.0
        %1100 = vmatprep.subr.mxu0 0.0
        %1101 = vmatpush2.msra.mxu0 0.0
        %1102 = vmatprep.subr.mxu0 0.0
        %1103 = vmatpush2.msra.mxu0 0.0
        %1104 = vmatprep.subr.mxu0 0.0
        %1105 = vmatpush2.msra.mxu0 0.0
        %1106 = vmatprep.subr.mxu0 0.0
        %1107 = vmatpush2.msra.mxu0 0.0
        %1108 = vmatprep.subr.mxu0 0.0
        %1109 = vmatpush2.msra.mxu0 0.0
        %1110 = vmatprep.subr.mxu0 0.0
        %1111 = vmatpush2.msra.mxu0 0.0
        %1112 = vmatprep.subr.mxu0 0.0
        %1113 = vmatpush2.msra.mxu0 0.0
        %1114 = vmatprep.subr.mxu0 0.0
        %1115 = vmatpush2.msra.mxu0 0.0
        %1116 = vmatprep.subr.mxu0 0.0
        %1117 = vmatpush2.msra.mxu0 0.0
        %1118 = vmatprep.subr.mxu0 0.0
        %1119 = vmatpush2.msra.mxu0 0.0
        %1120 = vmatprep.mubr.f32.mxu0 0.0
        %1121 = vmatmul.mubr.f32.gmra.mxu0 %v1051
        %v1122 = vpop.f32.mrf.mxu0
        %v1123 = vadd.f32 %v1042, %v1122
        %v1124 = vpop.f32.mrf.mxu0
        %v1125 = vadd.f32 %v1042, %v1124
        %1126 = vmatprep.mubr.f32.mxu0 0.0
        %1127 = vmatmul.mubr.f32.gmra.mxu0 %v1054
        %v1128 = vpop.f32.mrf.mxu0
        %v1129 = vadd.f32 %v1047, %v1128
        %v1130 = vpop.f32.mrf.mxu0
        %v1131 = vadd.f32 %v1047, %v1130
        %1132 = vdwg.mxu0
        %1133 = vmatprep.subr.mxu0 0.0
        %1134 = vmatpush1.msra.mxu0 0.0
        %1135 = vmatprep.subr.mxu0 0.0
        %1136 = vmatpush1.msra.mxu0 0.0
        %1137 = vmatprep.subr.mxu0 0.0
        %1138 = vmatpush1.msra.mxu0 0.0
        %1139 = vmatprep.subr.mxu0 0.0
        %1140 = vmatpush1.msra.mxu0 0.0
        %1141 = vmatprep.subr.mxu0 0.0
        %1142 = vmatpush1.msra.mxu0 0.0
        %1143 = vmatprep.subr.mxu0 0.0
        %1144 = vmatpush1.msra.mxu0 0.0
        %1145 = vmatprep.subr.mxu0 0.0
        %1146 = vmatpush1.msra.mxu0 0.0
        %1147 = vmatprep.subr.mxu0 0.0
        %1148 = vmatpush1.msra.mxu0 0.0
        %1149 = vmatprep.subr.mxu0 0.0
        %1150 = vmatpush1.msra.mxu0 0.0
        %1151 = vmatprep.subr.mxu0 0.0
        %1152 = vmatpush1.msra.mxu0 0.0
        %1153 = vmatprep.subr.mxu0 0.0
        %1154 = vmatpush1.msra.mxu0 0.0
        %1155 = vmatprep.subr.mxu0 0.0
        %1156 = vmatpush1.msra.mxu0 0.0
        %1157 = vmatprep.subr.mxu0 0.0
        %1158 = vmatpush1.msra.mxu0 0.0
        %1159 = vmatprep.subr.mxu0 0.0
        %1160 = vmatpush1.msra.mxu0 0.0
        %1161 = vmatprep.subr.mxu0 0.0
        %1162 = vmatpush1.msra.mxu0 0.0
        %1163 = vmatprep.subr.mxu0 %v1010
        %1164 = vmatpush1.msra.mxu0 %v1008
        %1165 = vmatprep.subr.mxu0 0.0
        %1166 = vmatpush2.msra.mxu0 0.0
        %1167 = vmatprep.subr.mxu0 0.0
        %1168 = vmatpush2.msra.mxu0 0.0
        %1169 = vmatprep.subr.mxu0 0.0
        %1170 = vmatpush2.msra.mxu0 0.0
        %1171 = vmatprep.subr.mxu0 0.0
        %1172 = vmatpush2.msra.mxu0 0.0
        %1173 = vmatprep.subr.mxu0 0.0
        %1174 = vmatpush2.msra.mxu0 0.0
        %1175 = vmatprep.subr.mxu0 0.0
        %1176 = vmatpush2.msra.mxu0 0.0
        %1177 = vmatprep.subr.mxu0 0.0
        %1178 = vmatpush2.msra.mxu0 0.0
        %1179 = vmatprep.subr.mxu0 0.0
        %1180 = vmatpush2.msra.mxu0 0.0
        %1181 = vmatprep.subr.mxu0 0.0
        %1182 = vmatpush2.msra.mxu0 0.0
        %1183 = vmatprep.subr.mxu0 0.0
        %1184 = vmatpush2.msra.mxu0 0.0
        %1185 = vmatprep.subr.mxu0 0.0
        %1186 = vmatpush2.msra.mxu0 0.0
        %1187 = vmatprep.subr.mxu0 0.0
        %1188 = vmatpush2.msra.mxu0 0.0
        %1189 = vmatprep.subr.mxu0 0.0
        %1190 = vmatpush2.msra.mxu0 0.0
        %1191 = vmatprep.subr.mxu0 0.0
        %1192 = vmatpush2.msra.mxu0 0.0
        %1193 = vmatprep.subr.mxu0 0.0
        %1194 = vmatpush2.msra.mxu0 0.0
        %1195 = vmatprep.subr.mxu0 0.0
        %1196 = vmatpush2.msra.mxu0 0.0
        %1197 = vmatprep.mubr.f32.mxu0 0.0
        %1198 = vmatmul.mubr.f32.gmra.mxu0 %v1051
        %v1199 = vpop.f32.mrf.mxu0
        %v1200 = vadd.f32 %v1042, %v1199
        %v1201 = vpop.f32.mrf.mxu0
        %v1202 = vadd.f32 %v1042, %v1201
        %1203 = vmatprep.mubr.f32.mxu0 0.0
        %1204 = vmatmul.mubr.f32.gmra.mxu0 %v1054
        %v1205 = vpop.f32.mrf.mxu0
        %v1206 = vadd.f32 %v1047, %v1205
        %v1207 = vpop.f32.mrf.mxu0
        %v1208 = vadd.f32 %v1047, %v1207
        %1209 = vdwg.mxu0
        %1210 = vmatprep.subr.mxu0 0.0
        %1211 = vmatpush1.msra.mxu0 0.0
        %1212 = vmatprep.subr.mxu0 0.0
        %1213 = vmatpush1.msra.mxu0 0.0
        %1214 = vmatprep.subr.mxu0 0.0
        %1215 = vmatpush1.msra.mxu0 0.0
        %1216 = vmatprep.subr.mxu0 0.0
        %1217 = vmatpush1.msra.mxu0 0.0
        %1218 = vmatprep.subr.mxu0 0.0
        %1219 = vmatpush1.msra.mxu0 0.0
        %1220 = vmatprep.subr.mxu0 0.0
        %1221 = vmatpush1.msra.mxu0 0.0
        %1222 = vmatprep.subr.mxu0 0.0
        %1223 = vmatpush1.msra.mxu0 0.0
        %1224 = vmatprep.subr.mxu0 0.0
        %1225 = vmatpush1.msra.mxu0 0.0
        %1226 = vmatprep.subr.mxu0 0.0
        %1227 = vmatpush1.msra.mxu0 0.0
        %1228 = vmatprep.subr.mxu0 0.0
        %1229 = vmatpush1.msra.mxu0 0.0
        %1230 = vmatprep.subr.mxu0 0.0
        %1231 = vmatpush1.msra.mxu0 0.0
        %1232 = vmatprep.subr.mxu0 0.0
        %1233 = vmatpush1.msra.mxu0 0.0
        %1234 = vmatprep.subr.mxu0 0.0
        %1235 = vmatpush1.msra.mxu0 0.0
        %1236 = vmatprep.subr.mxu0 0.0
        %1237 = vmatpush1.msra.mxu0 0.0
        %1238 = vmatprep.subr.mxu0 0.0
        %1239 = vmatpush1.msra.mxu0 0.0
        %1240 = vmatprep.subr.mxu0 %v1014
        %1241 = vmatpush1.msra.mxu0 %v1012
        %1242 = vmatprep.subr.mxu0 0.0
        %1243 = vmatpush2.msra.mxu0 0.0
        %1244 = vmatprep.subr.mxu0 0.0
        %1245 = vmatpush2.msra.mxu0 0.0
        %1246 = vmatprep.subr.mxu0 0.0
        %1247 = vmatpush2.msra.mxu0 0.0
        %1248 = vmatprep.subr.mxu0 0.0
        %1249 = vmatpush2.msra.mxu0 0.0
        %1250 = vmatprep.subr.mxu0 0.0
        %1251 = vmatpush2.msra.mxu0 0.0
        %1252 = vmatprep.subr.mxu0 0.0
        %1253 = vmatpush2.msra.mxu0 0.0
        %1254 = vmatprep.subr.mxu0 0.0
        %1255 = vmatpush2.msra.mxu0 0.0
        %1256 = vmatprep.subr.mxu0 0.0
        %1257 = vmatpush2.msra.mxu0 0.0
        %1258 = vmatprep.subr.mxu0 0.0
        %1259 = vmatpush2.msra.mxu0 0.0
        %1260 = vmatprep.subr.mxu0 0.0
        %1261 = vmatpush2.msra.mxu0 0.0
        %1262 = vmatprep.subr.mxu0 0.0
        %1263 = vmatpush2.msra.mxu0 0.0
        %1264 = vmatprep.subr.mxu0 0.0
        %1265 = vmatpush2.msra.mxu0 0.0
        %1266 = vmatprep.subr.mxu0 0.0
        %1267 = vmatpush2.msra.mxu0 0.0
        %1268 = vmatprep.subr.mxu0 0.0
        %1269 = vmatpush2.msra.mxu0 0.0
        %1270 = vmatprep.subr.mxu0 0.0
        %1271 = vmatpush2.msra.mxu0 0.0
        %1272 = vmatprep.subr.mxu0 0.0
        %1273 = vmatpush2.msra.mxu0 0.0
        %1274 = vmatprep.mubr.f32.mxu0 0.0
        %1275 = vmatmul.mubr.f32.gmra.mxu0 %v1051
        %v1276 = vpop.f32.mrf.mxu0
        %v1277 = vadd.f32 %v1042, %v1276
        %v1278 = vpop.f32.mrf.mxu0
        %v1279 = vadd.f32 %v1042, %v1278
        %1280 = vmatprep.mubr.f32.mxu0 0.0
        %1281 = vmatmul.mubr.f32.gmra.mxu0 %v1054
        %v1282 = vpop.f32.mrf.mxu0
        %v1283 = vadd.f32 %v1047, %v1282
        %v1284 = vpop.f32.mrf.mxu0
        %v1285 = vadd.f32 %v1047, %v1284
        %1286 = vdwg.mxu0
        %1287 = vmatprep.subr.mxu0 0.0
        %1288 = vmatpush1.msra.mxu0 0.0
        %1289 = vmatprep.subr.mxu0 0.0
        %1290 = vmatpush1.msra.mxu0 0.0
        %1291 = vmatprep.subr.mxu0 0.0
        %1292 = vmatpush1.msra.mxu0 0.0
        %1293 = vmatprep.subr.mxu0 0.0
        %1294 = vmatpush1.msra.mxu0 0.0
        %1295 = vmatprep.subr.mxu0 0.0
        %1296 = vmatpush1.msra.mxu0 0.0
        %1297 = vmatprep.subr.mxu0 0.0
        %1298 = vmatpush1.msra.mxu0 0.0
        %1299 = vmatprep.subr.mxu0 0.0
        %1300 = vmatpush1.msra.mxu0 0.0
        %1301 = vmatprep.subr.mxu0 0.0
        %1302 = vmatpush1.msra.mxu0 0.0
        %1303 = vmatprep.subr.mxu0 0.0
        %1304 = vmatpush1.msra.mxu0 0.0
        %1305 = vmatprep.subr.mxu0 0.0
        %1306 = vmatpush1.msra.mxu0 0.0
        %1307 = vmatprep.subr.mxu0 0.0
        %1308 = vmatpush1.msra.mxu0 0.0
        %1309 = vmatprep.subr.mxu0 0.0
        %1310 = vmatpush1.msra.mxu0 0.0
        %1311 = vmatprep.subr.mxu0 0.0
        %1312 = vmatpush1.msra.mxu0 0.0
        %1313 = vmatprep.subr.mxu0 0.0
        %1314 = vmatpush1.msra.mxu0 0.0
        %1315 = vmatprep.subr.mxu0 0.0
        %1316 = vmatpush1.msra.mxu0 0.0
        %1317 = vmatprep.subr.mxu0 %v1018
        %1318 = vmatpush1.msra.mxu0 %v1016
        %1319 = vmatprep.subr.mxu0 0.0
        %1320 = vmatpush2.msra.mxu0 0.0
        %1321 = vmatprep.subr.mxu0 0.0
        %1322 = vmatpush2.msra.mxu0 0.0
        %1323 = vmatprep.subr.mxu0 0.0
        %1324 = vmatpush2.msra.mxu0 0.0
        %1325 = vmatprep.subr.mxu0 0.0
        %1326 = vmatpush2.msra.mxu0 0.0
        %1327 = vmatprep.subr.mxu0 0.0
        %1328 = vmatpush2.msra.mxu0 0.0
        %1329 = vmatprep.subr.mxu0 0.0
        %1330 = vmatpush2.msra.mxu0 0.0
        %1331 = vmatprep.subr.mxu0 0.0
        %1332 = vmatpush2.msra.mxu0 0.0
        %1333 = vmatprep.subr.mxu0 0.0
        %1334 = vmatpush2.msra.mxu0 0.0
        %1335 = vmatprep.subr.mxu0 0.0
        %1336 = vmatpush2.msra.mxu0 0.0
        %1337 = vmatprep.subr.mxu0 0.0
        %1338 = vmatpush2.msra.mxu0 0.0
        %1339 = vmatprep.subr.mxu0 0.0
        %1340 = vmatpush2.msra.mxu0 0.0
        %1341 = vmatprep.subr.mxu0 0.0
        %1342 = vmatpush2.msra.mxu0 0.0
        %1343 = vmatprep.subr.mxu0 0.0
        %1344 = vmatpush2.msra.mxu0 0.0
        %1345 = vmatprep.subr.mxu0 0.0
        %1346 = vmatpush2.msra.mxu0 0.0
        %1347 = vmatprep.subr.mxu0 0.0
        %1348 = vmatpush2.msra.mxu0 0.0
        %1349 = vmatprep.subr.mxu0 0.0
        %1350 = vmatpush2.msra.mxu0 0.0
        %1351 = vmatprep.mubr.f32.mxu0 0.0
        %1352 = vmatmul.mubr.f32.gmra.mxu0 %v1051
        %v1353 = vpop.f32.mrf.mxu0
        %v1354 = vadd.f32 %v1042, %v1353
        %v1355 = vpop.f32.mrf.mxu0
        %v1356 = vadd.f32 %v1042, %v1355
        %1357 = vmatprep.mubr.f32.mxu0 0.0
        %1358 = vmatmul.mubr.f32.gmra.mxu0 %v1054
        %v1359 = vpop.f32.mrf.mxu0
        %v1360 = vadd.f32 %v1047, %v1359
        %v1361 = vpop.f32.mrf.mxu0
        %v1362 = vadd.f32 %v1047, %v1361
        %1363 = vdwg.mxu0
        %1364 = vmatprep.subr.mxu0 0.0
        %1365 = vmatpush1.msra.mxu0 0.0
        %1366 = vmatprep.subr.mxu0 0.0
        %1367 = vmatpush1.msra.mxu0 0.0
        %1368 = vmatprep.subr.mxu0 0.0
        %1369 = vmatpush1.msra.mxu0 0.0
        %1370 = vmatprep.subr.mxu0 0.0
        %1371 = vmatpush1.msra.mxu0 0.0
        %1372 = vmatprep.subr.mxu0 0.0
        %1373 = vmatpush1.msra.mxu0 0.0
        %1374 = vmatprep.subr.mxu0 0.0
        %1375 = vmatpush1.msra.mxu0 0.0
        %1376 = vmatprep.subr.mxu0 0.0
        %1377 = vmatpush1.msra.mxu0 0.0
        %1378 = vmatprep.subr.mxu0 0.0
        %1379 = vmatpush1.msra.mxu0 0.0
        %1380 = vmatprep.subr.mxu0 0.0
        %1381 = vmatpush1.msra.mxu0 0.0
        %1382 = vmatprep.subr.mxu0 0.0
        %1383 = vmatpush1.msra.mxu0 0.0
        %1384 = vmatprep.subr.mxu0 0.0
        %1385 = vmatpush1.msra.mxu0 0.0
        %1386 = vmatprep.subr.mxu0 0.0
        %1387 = vmatpush1.msra.mxu0 0.0
        %1388 = vmatprep.subr.mxu0 0.0
        %1389 = vmatpush1.msra.mxu0 0.0
        %1390 = vmatprep.subr.mxu0 0.0
        %1391 = vmatpush1.msra.mxu0 0.0
        %1392 = vmatprep.subr.mxu0 0.0
        %1393 = vmatpush1.msra.mxu0 0.0
        %1394 = vmatprep.subr.mxu0 %v1022
        %1395 = vmatpush1.msra.mxu0 %v1020
        %1396 = vmatprep.subr.mxu0 0.0
        %1397 = vmatpush2.msra.mxu0 0.0
        %1398 = vmatprep.subr.mxu0 0.0
        %1399 = vmatpush2.msra.mxu0 0.0
        %1400 = vmatprep.subr.mxu0 0.0
        %1401 = vmatpush2.msra.mxu0 0.0
        %1402 = vmatprep.subr.mxu0 0.0
        %1403 = vmatpush2.msra.mxu0 0.0
        %1404 = vmatprep.subr.mxu0 0.0
        %1405 = vmatpush2.msra.mxu0 0.0
        %1406 = vmatprep.subr.mxu0 0.0
        %1407 = vmatpush2.msra.mxu0 0.0
        %1408 = vmatprep.subr.mxu0 0.0
        %1409 = vmatpush2.msra.mxu0 0.0
        %1410 = vmatprep.subr.mxu0 0.0
        %1411 = vmatpush2.msra.mxu0 0.0
        %1412 = vmatprep.subr.mxu0 0.0
        %1413 = vmatpush2.msra.mxu0 0.0
        %1414 = vmatprep.subr.mxu0 0.0
        %1415 = vmatpush2.msra.mxu0 0.0
        %1416 = vmatprep.subr.mxu0 0.0
        %1417 = vmatpush2.msra.mxu0 0.0
        %1418 = vmatprep.subr.mxu0 0.0
        %1419 = vmatpush2.msra.mxu0 0.0
        %1420 = vmatprep.subr.mxu0 0.0
        %1421 = vmatpush2.msra.mxu0 0.0
        %1422 = vmatprep.subr.mxu0 0.0
        %1423 = vmatpush2.msra.mxu0 0.0
        %1424 = vmatprep.subr.mxu0 0.0
        %1425 = vmatpush2.msra.mxu0 0.0
        %1426 = vmatprep.subr.mxu0 0.0
        %1427 = vmatpush2.msra.mxu0 0.0
        %1428 = vmatprep.mubr.f32.mxu0 0.0
        %1429 = vmatmul.mubr.f32.gmra.mxu0 %v1051
        %v1430 = vpop.f32.mrf.mxu0
        %v1431 = vadd.f32 %v1042, %v1430
        %v1432 = vpop.f32.mrf.mxu0
        %v1433 = vadd.f32 %v1042, %v1432
        %1434 = vmatprep.mubr.f32.mxu0 0.0
        %1435 = vmatmul.mubr.f32.gmra.mxu0 %v1054
        %v1436 = vpop.f32.mrf.mxu0
        %v1437 = vadd.f32 %v1047, %v1436
        %v1438 = vpop.f32.mrf.mxu0
        %v1439 = vadd.f32 %v1047, %v1438
        %1440 = vdwg.mxu0
        %1441 = vmatprep.subr.mxu0 0.0
        %1442 = vmatpush1.msra.mxu0 0.0
        %1443 = vmatprep.subr.mxu0 0.0
        %1444 = vmatpush1.msra.mxu0 0.0
        %1445 = vmatprep.subr.mxu0 0.0
        %1446 = vmatpush1.msra.mxu0 0.0
        %1447 = vmatprep.subr.mxu0 0.0
        %1448 = vmatpush1.msra.mxu0 0.0
        %1449 = vmatprep.subr.mxu0 0.0
        %1450 = vmatpush1.msra.mxu0 0.0
        %1451 = vmatprep.subr.mxu0 0.0
        %1452 = vmatpush1.msra.mxu0 0.0
        %1453 = vmatprep.subr.mxu0 0.0
        %1454 = vmatpush1.msra.mxu0 0.0
        %1455 = vmatprep.subr.mxu0 0.0
        %1456 = vmatpush1.msra.mxu0 0.0
        %1457 = vmatprep.subr.mxu0 0.0
        %1458 = vmatpush1.msra.mxu0 0.0
        %1459 = vmatprep.subr.mxu0 0.0
        %1460 = vmatpush1.msra.mxu0 0.0
        %1461 = vmatprep.subr.mxu0 0.0
        %1462 = vmatpush1.msra.mxu0 0.0
        %1463 = vmatprep.subr.mxu0 0.0
        %1464 = vmatpush1.msra.mxu0 0.0
        %1465 = vmatprep.subr.mxu0 0.0
        %1466 = vmatpush1.msra.mxu0 0.0
        %1467 = vmatprep.subr.mxu0 0.0
        %1468 = vmatpush1.msra.mxu0 0.0
        %1469 = vmatprep.subr.mxu0 0.0
        %1470 = vmatpush1.msra.mxu0 0.0
        %1471 = vmatprep.subr.mxu0 %v1026
        %1472 = vmatpush1.msra.mxu0 %v1024
        %1473 = vmatprep.subr.mxu0 0.0
        %1474 = vmatpush2.msra.mxu0 0.0
        %1475 = vmatprep.subr.mxu0 0.0
        %1476 = vmatpush2.msra.mxu0 0.0
        %1477 = vmatprep.subr.mxu0 0.0
        %1478 = vmatpush2.msra.mxu0 0.0
        %1479 = vmatprep.subr.mxu0 0.0
        %1480 = vmatpush2.msra.mxu0 0.0
        %1481 = vmatprep.subr.mxu0 0.0
        %1482 = vmatpush2.msra.mxu0 0.0
        %1483 = vmatprep.subr.mxu0 0.0
        %1484 = vmatpush2.msra.mxu0 0.0
        %1485 = vmatprep.subr.mxu0 0.0
        %1486 = vmatpush2.msra.mxu0 0.0
        %1487 = vmatprep.subr.mxu0 0.0
        %1488 = vmatpush2.msra.mxu0 0.0
        %1489 = vmatprep.subr.mxu0 0.0
        %1490 = vmatpush2.msra.mxu0 0.0
        %1491 = vmatprep.subr.mxu0 0.0
        %1492 = vmatpush2.msra.mxu0 0.0
        %1493 = vmatprep.subr.mxu0 0.0
        %1494 = vmatpush2.msra.mxu0 0.0
        %1495 = vmatprep.subr.mxu0 0.0
        %1496 = vmatpush2.msra.mxu0 0.0
        %1497 = vmatprep.subr.mxu0 0.0
        %1498 = vmatpush2.msra.mxu0 0.0
        %1499 = vmatprep.subr.mxu0 0.0
        %1500 = vmatpush2.msra.mxu0 0.0
        %1501 = vmatprep.subr.mxu0 0.0
        %1502 = vmatpush2.msra.mxu0 0.0
        %1503 = vmatprep.subr.mxu0 0.0
        %1504 = vmatpush2.msra.mxu0 0.0
        %1505 = vmatprep.mubr.f32.mxu0 0.0
        %1506 = vmatmul.mubr.f32.gmra.mxu0 %v1051
        %v1507 = vpop.f32.mrf.mxu0
        %v1508 = vadd.f32 %v1042, %v1507
        %v1509 = vpop.f32.mrf.mxu0
        %v1510 = vadd.f32 %v1042, %v1509
        %1511 = vmatprep.mubr.f32.mxu0 0.0
        %1512 = vmatmul.mubr.f32.gmra.mxu0 %v1054
        %v1513 = vpop.f32.mrf.mxu0
        %v1514 = vadd.f32 %v1047, %v1513
        %v1515 = vpop.f32.mrf.mxu0
        %v1516 = vadd.f32 %v1047, %v1515
        %1517 = vdwg.mxu0
        %1518 = vmatprep.subr.mxu0 0.0
        %1519 = vmatpush1.msra.mxu0 0.0
        %1520 = vmatprep.subr.mxu0 0.0
        %1521 = vmatpush1.msra.mxu0 0.0
        %1522 = vmatprep.subr.mxu0 0.0
        %1523 = vmatpush1.msra.mxu0 0.0
        %1524 = vmatprep.subr.mxu0 0.0
        %1525 = vmatpush1.msra.mxu0 0.0
        %1526 = vmatprep.subr.mxu0 0.0
        %1527 = vmatpush1.msra.mxu0 0.0
        %1528 = vmatprep.subr.mxu0 0.0
        %1529 = vmatpush1.msra.mxu0 0.0
        %1530 = vmatprep.subr.mxu0 0.0
        %1531 = vmatpush1.msra.mxu0 0.0
        %1532 = vmatprep.subr.mxu0 0.0
        %1533 = vmatpush1.msra.mxu0 0.0
        %1534 = vmatprep.subr.mxu0 0.0
        %1535 = vmatpush1.msra.mxu0 0.0
        %1536 = vmatprep.subr.mxu0 0.0
        %1537 = vmatpush1.msra.mxu0 0.0
        %1538 = vmatprep.subr.mxu0 0.0
        %1539 = vmatpush1.msra.mxu0 0.0
        %1540 = vmatprep.subr.mxu0 0.0
        %1541 = vmatpush1.msra.mxu0 0.0
        %1542 = vmatprep.subr.mxu0 0.0
        %1543 = vmatpush1.msra.mxu0 0.0
        %1544 = vmatprep.subr.mxu0 0.0
        %1545 = vmatpush1.msra.mxu0 0.0
        %1546 = vmatprep.subr.mxu0 0.0
        %1547 = vmatpush1.msra.mxu0 0.0
        %1548 = vmatprep.subr.mxu0 %v1030
        %1549 = vmatpush1.msra.mxu0 %v1028
        %1550 = vmatprep.subr.mxu0 0.0
        %1551 = vmatpush2.msra.mxu0 0.0
        %1552 = vmatprep.subr.mxu0 0.0
        %1553 = vmatpush2.msra.mxu0 0.0
        %1554 = vmatprep.subr.mxu0 0.0
        %1555 = vmatpush2.msra.mxu0 0.0
        %1556 = vmatprep.subr.mxu0 0.0
        %1557 = vmatpush2.msra.mxu0 0.0
        %1558 = vmatprep.subr.mxu0 0.0
        %1559 = vmatpush2.msra.mxu0 0.0
        %1560 = vmatprep.subr.mxu0 0.0
        %1561 = vmatpush2.msra.mxu0 0.0
        %1562 = vmatprep.subr.mxu0 0.0
        %1563 = vmatpush2.msra.mxu0 0.0
        %1564 = vmatprep.subr.mxu0 0.0
        %1565 = vmatpush2.msra.mxu0 0.0
        %1566 = vmatprep.subr.mxu0 0.0
        %1567 = vmatpush2.msra.mxu0 0.0
        %1568 = vmatprep.subr.mxu0 0.0
        %1569 = vmatpush2.msra.mxu0 0.0
        %1570 = vmatprep.subr.mxu0 0.0
        %1571 = vmatpush2.msra.mxu0 0.0
        %1572 = vmatprep.subr.mxu0 0.0
        %1573 = vmatpush2.msra.mxu0 0.0
        %1574 = vmatprep.subr.mxu0 0.0
        %1575 = vmatpush2.msra.mxu0 0.0
        %1576 = vmatprep.subr.mxu0 0.0
        %1577 = vmatpush2.msra.mxu0 0.0
        %1578 = vmatprep.subr.mxu0 0.0
        %1579 = vmatpush2.msra.mxu0 0.0
        %1580 = vmatprep.subr.mxu0 0.0
        %1581 = vmatpush2.msra.mxu0 0.0
        %1582 = vmatprep.mubr.f32.mxu0 0.0
        %1583 = vmatmul.mubr.f32.gmra.mxu0 %v1051
        %v1584 = vpop.f32.mrf.mxu0
        %v1585 = vadd.f32 %v1042, %v1584
        %v1586 = vpop.f32.mrf.mxu0
        %v1587 = vadd.f32 %v1042, %v1586
        %1588 = vmatprep.mubr.f32.mxu0 0.0
        %1589 = vmatmul.mubr.f32.gmra.mxu0 %v1054
        %v1590 = vpop.f32.mrf.mxu0
        %v1591 = vadd.f32 %v1047, %v1590
        %v1592 = vpop.f32.mrf.mxu0
        %v1593 = vadd.f32 %v1047, %v1592
        %1594 = vdwg.mxu0
        %1595 = vmatprep.subr.mxu0 0.0
        %1596 = vmatpush1.msra.mxu0 0.0
        %1597 = vmatprep.subr.mxu0 0.0
        %1598 = vmatpush1.msra.mxu0 0.0
        %1599 = vmatprep.subr.mxu0 0.0
        %1600 = vmatpush1.msra.mxu0 0.0
        %1601 = vmatprep.subr.mxu0 0.0
        %1602 = vmatpush1.msra.mxu0 0.0
        %1603 = vmatprep.subr.mxu0 0.0
        %1604 = vmatpush1.msra.mxu0 0.0
        %1605 = vmatprep.subr.mxu0 0.0
        %1606 = vmatpush1.msra.mxu0 0.0
        %1607 = vmatprep.subr.mxu0 0.0
        %1608 = vmatpush1.msra.mxu0 0.0
        %1609 = vmatprep.subr.mxu0 0.0
        %1610 = vmatpush1.msra.mxu0 0.0
        %1611 = vmatprep.subr.mxu0 0.0
        %1612 = vmatpush1.msra.mxu0 0.0
        %1613 = vmatprep.subr.mxu0 0.0
        %1614 = vmatpush1.msra.mxu0 0.0
        %1615 = vmatprep.subr.mxu0 0.0
        %1616 = vmatpush1.msra.mxu0 0.0
        %1617 = vmatprep.subr.mxu0 0.0
        %1618 = vmatpush1.msra.mxu0 0.0
        %1619 = vmatprep.subr.mxu0 0.0
        %1620 = vmatpush1.msra.mxu0 0.0
        %1621 = vmatprep.subr.mxu0 0.0
        %1622 = vmatpush1.msra.mxu0 0.0
        %1623 = vmatprep.subr.mxu0 0.0
        %1624 = vmatpush1.msra.mxu0 0.0
        %1625 = vmatprep.subr.mxu0 %v1034
        %1626 = vmatpush1.msra.mxu0 %v1032
        %1627 = vmatprep.subr.mxu0 0.0
        %1628 = vmatpush2.msra.mxu0 0.0
        %1629 = vmatprep.subr.mxu0 0.0
        %1630 = vmatpush2.msra.mxu0 0.0
        %1631 = vmatprep.subr.mxu0 0.0
        %1632 = vmatpush2.msra.mxu0 0.0
        %1633 = vmatprep.subr.mxu0 0.0
        %1634 = vmatpush2.msra.mxu0 0.0
        %1635 = vmatprep.subr.mxu0 0.0
        %1636 = vmatpush2.msra.mxu0 0.0
        %1637 = vmatprep.subr.mxu0 0.0
        %1638 = vmatpush2.msra.mxu0 0.0
        %1639 = vmatprep.subr.mxu0 0.0
        %1640 = vmatpush2.msra.mxu0 0.0
        %1641 = vmatprep.subr.mxu0 0.0
        %1642 = vmatpush2.msra.mxu0 0.0
        %1643 = vmatprep.subr.mxu0 0.0
        %1644 = vmatpush2.msra.mxu0 0.0
        %1645 = vmatprep.subr.mxu0 0.0
        %1646 = vmatpush2.msra.mxu0 0.0
        %1647 = vmatprep.subr.mxu0 0.0
        %1648 = vmatpush2.msra.mxu0 0.0
        %1649 = vmatprep.subr.mxu0 0.0
        %1650 = vmatpush2.msra.mxu0 0.0
        %1651 = vmatprep.subr.mxu0 0.0
        %1652 = vmatpush2.msra.mxu0 0.0
        %1653 = vmatprep.subr.mxu0 0.0
        %1654 = vmatpush2.msra.mxu0 0.0
        %1655 = vmatprep.subr.mxu0 0.0
        %1656 = vmatpush2.msra.mxu0 0.0
        %1657 = vmatprep.subr.mxu0 0.0
        %1658 = vmatpush2.msra.mxu0 0.0
        %1659 = vmatprep.mubr.f32.mxu0 0.0
        %1660 = vmatmul.mubr.f32.gmra.mxu0 %v1051
        %v1661 = vpop.f32.mrf.mxu0
        %v1662 = vadd.f32 %v1042, %v1661
        %v1663 = vpop.f32.mrf.mxu0
        %v1664 = vadd.f32 %v1042, %v1663
        %1665 = vmatprep.mubr.f32.mxu0 0.0
        %1666 = vmatmul.mubr.f32.gmra.mxu0 %v1054
        %v1667 = vpop.f32.mrf.mxu0
        %v1668 = vadd.f32 %v1047, %v1667
        %v1669 = vpop.f32.mrf.mxu0
        %v1670 = vadd.f32 %v1047, %v1669
        %1671 = vdwg.mxu0
        %1672 = vst [vmem:[%s257] sm:$0xff] %v1123
        %1673 = vst [vmem:[%s257 + $0x8] sm:$0xff] %v1125
        %1674 = vst [vmem:[%s257 + $0x10] sm:$0xff] %v1200
        %1675 = vst [vmem:[%s257 + $0x18] sm:$0xff] %v1202
        %1676 = vst [vmem:[%s257 + $0x20] sm:$0xff] %v1277
        %1677 = vst [vmem:[%s257 + $0x28] sm:$0xff] %v1279
        %1678 = vst [vmem:[%s257 + $0x30] sm:$0xff] %v1354
        %1679 = vst [vmem:[%s257 + $0x38] sm:$0xff] %v1356
        %1680 = vst [vmem:[%s257 + $0x40] sm:$0xff] %v1431
        %1681 = vst [vmem:[%s257 + $0x48] sm:$0xff] %v1433
        %1682 = vst [vmem:[%s257 + $0x50] sm:$0xff] %v1508
        %1683 = vst [vmem:[%s257 + $0x58] sm:$0xff] %v1510
        %1684 = vst [vmem:[%s257 + $0x60] sm:$0xff] %v1585
        %1685 = vst [vmem:[%s257 + $0x68] sm:$0xff] %v1587
        %1686 = vst [vmem:[%s257 + $0x70] sm:$0xff] %v1662
        %1687 = vst [vmem:[%s257 + $0x78] sm:$0xff] %v1664
        %1688 = vst [vmem:[%s257 + $0x80] sm:$0xff] %v1129
        %1689 = vst [vmem:[%s257 + $0x88] sm:$0xff] %v1131
        %1690 = vst [vmem:[%s257 + $0x90] sm:$0xff] %v1206
        %1691 = vst [vmem:[%s257 + $0x98] sm:$0xff] %v1208
        %1692 = vst [vmem:[%s257 + $0xa0] sm:$0xff] %v1283
        %1693 = vst [vmem:[%s257 + $0xa8] sm:$0xff] %v1285
        %1694 = vst [vmem:[%s257 + $0xb0] sm:$0xff] %v1360
        %1695 = vst [vmem:[%s257 + $0xb8] sm:$0xff] %v1362
        %1696 = vst [vmem:[%s257 + $0xc0] sm:$0xff] %v1437
        %1697 = vst [vmem:[%s257 + $0xc8] sm:$0xff] %v1439
        %1698 = vst [vmem:[%s257 + $0xd0] sm:$0xff] %v1514
        %1699 = vst [vmem:[%s257 + $0xd8] sm:$0xff] %v1516
        %1700 = vst [vmem:[%s257 + $0xe0] sm:$0xff] %v1591
        %1701 = vst [vmem:[%s257 + $0xe8] sm:$0xff] %v1593
        %1702 = vst [vmem:[%s257 + $0xf0] sm:$0xff] %v1668
        %1703 = vst [vmem:[%s257 + $0xf8] sm:$0xff] %v1670
        %s1704 = sand.u32 %s161, 1
        %s1705 = sand.u32 %s161, 1
        %s1706 = smul.addr %s1705, 256
        %s1707 = scalar_lea.vmem [#allocation2], %s1706
        // Predicated region
        $region45: #{model_forward.2} parent=43 // pred_check
          %p1708 = pneg %p171
        $region46: #{model_forward.2} parent=43 // pred_check_branch
          %1710 = sbr.rel (%p1708) target = $region48
        $region47: #{model_forward.2} parent=43 // pred_region
          %s1711 = smul.u32 16, %s17
          %s1712 = smul.addr %s1711, 8
          %s1713 = scalar_lea.vmem %s6, %s1712
          // Predicated region
          $region49: #{model_forward.2} parent=47 // pred_check
            _
          $region50: #{model_forward.2} parent=47 // pred_check_branch
            %1715 = sbr.rel (0) target = $region52
          $region51: #{model_forward.2} parent=47 // pred_region
            // Predicated region
            $region53: #{model_forward.2} parent=51 // pred_check
              _
            $region54: #{model_forward.2} parent=51 // pred_check_branch
              %1717 = sbr.rel (0) target = $region56
            $region55: #{model_forward.2} parent=51 // pred_region
              loop: start=0, step=1, limit=1
              $region57: #{model_forward.2} parent=55 // loop_pre_header
                _
              $region58: #{model_forward.2} parent=55 // loop_header
                %s1719 = sphi 0, %s1723
                %p1720 = scmp.ge.s32.totalorder %s1719, 1
                %s1724 = sphi %s1707, %s1707
                %s1725 = sphi %s1713, %s1713
              $region59: #{model_forward.2} parent=55 // loop_header_branch
                %1722 = sbr.rel (%p1720) target = $region63
              $region60: #{model_forward.2} parent=55 // loop_body
                %v1726 = vld [vmem:[%s1724] sm:$0xff]
                %1727 = vst [vmem:[%s1725] sm:$0xff] %v1726
                %v1728 = vld [vmem:[%s1724 + $0x8] sm:$0xff]
                %1729 = vst [vmem:[%s1725 + $0x8] sm:$0xff] %v1728
                %v1730 = vld [vmem:[%s1724 + $0x10] sm:$0xff]
                %1731 = vst [vmem:[%s1725 + $0x10] sm:$0xff] %v1730
                %v1732 = vld [vmem:[%s1724 + $0x18] sm:$0xff]
                %1733 = vst [vmem:[%s1725 + $0x18] sm:$0xff] %v1732
                %v1734 = vld [vmem:[%s1724 + $0x20] sm:$0xff]
                %1735 = vst [vmem:[%s1725 + $0x20] sm:$0xff] %v1734
                %v1736 = vld [vmem:[%s1724 + $0x28] sm:$0xff]
                %1737 = vst [vmem:[%s1725 + $0x28] sm:$0xff] %v1736
                %v1738 = vld [vmem:[%s1724 + $0x30] sm:$0xff]
                %1739 = vst [vmem:[%s1725 + $0x30] sm:$0xff] %v1738
                %v1740 = vld [vmem:[%s1724 + $0x38] sm:$0xff]
                %1741 = vst [vmem:[%s1725 + $0x38] sm:$0xff] %v1740
                %v1742 = vld [vmem:[%s1724 + $0x40] sm:$0xff]
                %1743 = vst [vmem:[%s1725 + $0x40] sm:$0xff] %v1742
                %v1744 = vld [vmem:[%s1724 + $0x48] sm:$0xff]
                %1745 = vst [vmem:[%s1725 + $0x48] sm:$0xff] %v1744
                %v1746 = vld [vmem:[%s1724 + $0x50] sm:$0xff]
                %1747 = vst [vmem:[%s1725 + $0x50] sm:$0xff] %v1746
                %v1748 = vld [vmem:[%s1724 + $0x58] sm:$0xff]
                %1749 = vst [vmem:[%s1725 + $0x58] sm:$0xff] %v1748
                %v1750 = vld [vmem:[%s1724 + $0x60] sm:$0xff]
                %1751 = vst [vmem:[%s1725 + $0x60] sm:$0xff] %v1750
                %v1752 = vld [vmem:[%s1724 + $0x68] sm:$0xff]
                %1753 = vst [vmem:[%s1725 + $0x68] sm:$0xff] %v1752
                %v1754 = vld [vmem:[%s1724 + $0x70] sm:$0xff]
                %1755 = vst [vmem:[%s1725 + $0x70] sm:$0xff] %v1754
                %v1756 = vld [vmem:[%s1724 + $0x78] sm:$0xff]
                %1757 = vst [vmem:[%s1725 + $0x78] sm:$0xff] %v1756
                %v1758 = vld [vmem:[%s1724 + $0x80] sm:$0xff]
                %1759 = vst [vmem:[%s1725 + $0x100] sm:$0xff] %v1758
                %v1760 = vld [vmem:[%s1724 + $0x88] sm:$0xff]
                %1761 = vst [vmem:[%s1725 + $0x108] sm:$0xff] %v1760
                %v1762 = vld [vmem:[%s1724 + $0x90] sm:$0xff]
                %1763 = vst [vmem:[%s1725 + $0x110] sm:$0xff] %v1762
                %v1764 = vld [vmem:[%s1724 + $0x98] sm:$0xff]
                %1765 = vst [vmem:[%s1725 + $0x118] sm:$0xff] %v1764
                %v1766 = vld [vmem:[%s1724 + $0xa0] sm:$0xff]
                %1767 = vst [vmem:[%s1725 + $0x120] sm:$0xff] %v1766
                %v1768 = vld [vmem:[%s1724 + $0xa8] sm:$0xff]
                %1769 = vst [vmem:[%s1725 + $0x128] sm:$0xff] %v1768
                %v1770 = vld [vmem:[%s1724 + $0xb0] sm:$0xff]
                %1771 = vst [vmem:[%s1725 + $0x130] sm:$0xff] %v1770
                %v1772 = vld [vmem:[%s1724 + $0xb8] sm:$0xff]
                %1773 = vst [vmem:[%s1725 + $0x138] sm:$0xff] %v1772
                %v1774 = vld [vmem:[%s1724 + $0xc0] sm:$0xff]
                %1775 = vst [vmem:[%s1725 + $0x140] sm:$0xff] %v1774
                %v1776 = vld [vmem:[%s1724 + $0xc8] sm:$0xff]
                %1777 = vst [vmem:[%s1725 + $0x148] sm:$0xff] %v1776
                %v1778 = vld [vmem:[%s1724 + $0xd0] sm:$0xff]
                %1779 = vst [vmem:[%s1725 + $0x150] sm:$0xff] %v1778
                %v1780 = vld [vmem:[%s1724 + $0xd8] sm:$0xff]
                %1781 = vst [vmem:[%s1725 + $0x158] sm:$0xff] %v1780
                %v1782 = vld [vmem:[%s1724 + $0xe0] sm:$0xff]
                %1783 = vst [vmem:[%s1725 + $0x160] sm:$0xff] %v1782
                %v1784 = vld [vmem:[%s1724 + $0xe8] sm:$0xff]
                %1785 = vst [vmem:[%s1725 + $0x168] sm:$0xff] %v1784
                %v1786 = vld [vmem:[%s1724 + $0xf0] sm:$0xff]
                %1787 = vst [vmem:[%s1725 + $0x170] sm:$0xff] %v1786
                %v1788 = vld [vmem:[%s1724 + $0xf8] sm:$0xff]
                %1789 = vst [vmem:[%s1725 + $0x178] sm:$0xff] %v1788
              $region61: #{model_forward.2} parent=55 // loop_footer
                %s1723 = sadd.s32 1, %s1719
              $region62: #{model_forward.2} parent=55 // loop_footer_branch
                %1718 = sbr.rel target = $region58
              $region63: #{model_forward.2} parent=55 // loop_exit
                _
            $region56: #{model_forward.2} parent=51 // pred_fallthru
              _
            // Predicated region
            $region64: #{model_forward.2} parent=51 // pred_check
              _
            $region65: #{model_forward.2} parent=51 // pred_check_branch
              %1791 = sbr.rel target = $region67
            $region66: #{model_forward.2} parent=51 // pred_region
              _
            $region67: #{model_forward.2} parent=51 // pred_fallthru
              _
          $region52: #{model_forward.2} parent=47 // pred_fallthru
            _
          %1792 = vnop
        $region48: #{model_forward.2} parent=43 // pred_fallthru
          _
      $region44: #{model_forward.2} parent=5 // pred_fallthru
        _
      %p1793 = scmp.le.s32.totalorder 2, %s12
      // Predicated region
      $region68: #{model_forward.2} parent=5 // pred_check
        %p1794 = pneg %p1793
      $region69: #{model_forward.2} parent=5 // pred_check_branch
        %1796 = sbr.rel (%p1794) target = $region71
      $region70: #{model_forward.2} parent=5 // pred_region
        %s1797 = ssub.s32 %s12, 2
        // Predicated region
        $region72: #{model_forward.2} parent=70 // pred_check
          %p1798 = pneg %p177
        $region73: #{model_forward.2} parent=70 // pred_check_branch
          %1800 = sbr.rel (%p1798) target = $region75
        $region74: #{model_forward.2} parent=70 // pred_region
          %s1801 = sand.u32 %s162, 1
          %s1802 = sand.u32 %s162, 1
          %s1803 = smul.addr %s1802, 256
          %s1804 = scalar_lea.vmem [#allocation2], %s1803
        $region75: #{model_forward.2} parent=70 // pred_fallthru
          _
      $region71: #{model_forward.2} parent=5 // pred_fallthru
        _
    $region6: #{model_forward.2} parent=1 // loop_footer
      %s16 = sadd.s32 1, %s12
    $region7: #{model_forward.2} parent=1 // loop_footer_branch
      %11 = sbr.rel target = $region3
    $region8: #{model_forward.2} parent=1 // loop_exit
      _

// kernel: model_forward.3
$region0: #{model_forward.3}
  #allocation0 [shape = 'u32[]', space=smem, size = 0x4, offset = 0x4, fixed_abs, tag = 'smem constant byte address 0x4 - core index']
  #allocation1 [shape = 'u32[144,128]{1,0:T(1,128)}', space=vmem, size = 0x12000, scoped, tag = 'internal scratch']
  %s0 = inlined_call_operand.vmem [shape: f32[144,768], index: 0, kind: input, shape index: {}]
  %s1 = inlined_call_operand.vmem [shape: f32[8,144], index: 1, kind: input, shape index: {}]
  %s2 = inlined_call_operand.vmem [shape: f32[8,1], index: 2, kind: input, shape index: {}]
  %s3 = inlined_call_operand.vmem [shape: f32[1,768], index: 3, kind: input, shape index: {}]
  %s4 = inlined_call_operand.vmem [shape: f32[25,8,8], index: 4, kind: input, shape index: {}]
  %s5 = inlined_call_operand.vmem [shape: f32[8,1], index: 5, kind: input, shape index: {}]
  %s6 = inlined_call_operand.vmem [shape: f32[8,640], index: 6, kind: output, shape index: {}]
  %s7 = sld [smem:[#allocation0]]
  $region34: #{model_forward.3} parent=0
    _
  %s9 = ssub.s32 1, %s7
  %s10 = scalar_select 0, %s9, %s7
  // Predicated region
  $region2: #{model_forward.3} parent=0 // pred_check
    _
  $region3: #{model_forward.3} parent=0 // pred_check_branch
    %12 = sbr.rel (0) target = $region5
  $region4: #{model_forward.3} parent=0 // pred_region
    _
  $region5: #{model_forward.3} parent=0 // pred_fallthru
    _
  // Predicated region
  $region6: #{model_forward.3} parent=0 // pred_check
    _
  $region7: #{model_forward.3} parent=0 // pred_check_branch
    %14 = sbr.rel (0) target = $region9
  $region8: #{model_forward.3} parent=0 // pred_region
    _
  $region9: #{model_forward.3} parent=0 // pred_fallthru
    _
  // Predicated region
  $region10: #{model_forward.3} parent=0 // pred_check
    _
  $region11: #{model_forward.3} parent=0 // pred_check_branch
    %16 = sbr.rel (0) target = $region13
  $region12: #{model_forward.3} parent=0 // pred_region
    _
  $region13: #{model_forward.3} parent=0 // pred_fallthru
    _
  // Predicated region
  $region14: #{model_forward.3} parent=0 // pred_check
    _
  $region15: #{model_forward.3} parent=0 // pred_check_branch
    %18 = sbr.rel (0) target = $region17
  $region16: #{model_forward.3} parent=0 // pred_region
    _
  $region17: #{model_forward.3} parent=0 // pred_fallthru
    _
  // Predicated region
  $region18: #{model_forward.3} parent=0 // pred_check
    _
  $region19: #{model_forward.3} parent=0 // pred_check_branch
    %20 = sbr.rel (0) target = $region21
  $region20: #{model_forward.3} parent=0 // pred_region
    _
  $region21: #{model_forward.3} parent=0 // pred_fallthru
    _
  // Predicated region
  $region22: #{model_forward.3} parent=0 // pred_check
    _
  $region23: #{model_forward.3} parent=0 // pred_check_branch
    %22 = sbr.rel (0) target = $region25
  $region24: #{model_forward.3} parent=0 // pred_region
    _
  $region25: #{model_forward.3} parent=0 // pred_fallthru
    _
  %v23 = vld [vmem:[%s1] sm:$0xff]
  %v24 = vld [vmem:[%s1 + $0x8] sm:$0xff]
  %v25 = vld [vmem:[%s0] sm:$0xff]
  %v26 = vld [vmem:[%s0 + $0x8] sm:$0xff]
  %v27 = vld [vmem:[%s0 + $0x10] sm:$0xff]
  %v28 = vld [vmem:[%s0 + $0x18] sm:$0xff]
  %v29 = vld [vmem:[%s0 + $0x20] sm:$0xff]
  %v30 = vld [vmem:[%s0 + $0x28] sm:$0xff]
  %v31 = vld [vmem:[%s0 + $0x30] sm:$0xff]
  %v32 = vld [vmem:[%s0 + $0x38] sm:$0xff]
  %v33 = vld [vmem:[%s0 + $0x40] sm:$0xff]
  %v34 = vld [vmem:[%s0 + $0x48] sm:$0xff]
  %v35 = vld [vmem:[%s0 + $0x50] sm:$0xff]
  %v36 = vld [vmem:[%s0 + $0x58] sm:$0xff]
  %v37 = vld [vmem:[%s0 + $0x60] sm:$0xff]
  %v38 = vld [vmem:[%s0 + $0x68] sm:$0xff]
  %v39 = vld [vmem:[%s0 + $0x70] sm:$0xff]
  %v40 = vld [vmem:[%s0 + $0x78] sm:$0xff]
  %v41 = vld [vmem:[%s0 + $0x80] sm:$0xff]
  %v42 = vld [vmem:[%s0 + $0x88] sm:$0xff]
  %v43 = vld [vmem:[%s0 + $0x90] sm:$0xff]
  %v44 = vld [vmem:[%s0 + $0x98] sm:$0xff]
  %v45 = vld [vmem:[%s0 + $0xa0] sm:$0xff]
  %v46 = vld [vmem:[%s0 + $0xa8] sm:$0xff]
  %v47 = vld [vmem:[%s0 + $0xb0] sm:$0xff]
  %v48 = vld [vmem:[%s0 + $0xb8] sm:$0xff]
  %v49 = vld [vmem:[%s0 + $0xc0] sm:$0xff]
  %v50 = vld [vmem:[%s0 + $0xc8] sm:$0xff]
  %v51 = vld [vmem:[%s0 + $0xd0] sm:$0xff]
  %v52 = vld [vmem:[%s0 + $0xd8] sm:$0xff]
  %v53 = vld [vmem:[%s0 + $0xe0] sm:$0xff]
  %v54 = vld [vmem:[%s0 + $0xe8] sm:$0xff]
  %v55 = vld [vmem:[%s0 + $0xf0] sm:$0xff]
  %v56 = vld [vmem:[%s0 + $0xf8] sm:$0xff]
  %v57 = vld [vmem:[%s0 + $0x100] sm:$0xff]
  %v58 = vld [vmem:[%s0 + $0x108] sm:$0xff]
  %v59 = vld [vmem:[%s0 + $0x110] sm:$0xff]
  %v60 = vld [vmem:[%s0 + $0x118] sm:$0xff]
  %v61 = vld [vmem:[%s0 + $0x120] sm:$0xff]
  %v62 = vld [vmem:[%s0 + $0x128] sm:$0xff]
  %v63 = vld [vmem:[%s0 + $0x130] sm:$0xff]
  %v64 = vld [vmem:[%s0 + $0x138] sm:$0xff]
  %v65 = vld [vmem:[%s0 + $0x140] sm:$0xff]
  %v66 = vld [vmem:[%s0 + $0x148] sm:$0xff]
  %v67 = vld [vmem:[%s0 + $0x150] sm:$0xff]
  %v68 = vld [vmem:[%s0 + $0x158] sm:$0xff]
  %v69 = vld [vmem:[%s0 + $0x160] sm:$0xff]
  %v70 = vld [vmem:[%s0 + $0x168] sm:$0xff]
  %v71 = vld [vmem:[%s0 + $0x170] sm:$0xff]
  %v72 = vld [vmem:[%s0 + $0x178] sm:$0xff]
  %v73 = vld [vmem:[%s0 + $0x180] sm:$0xff]
  %v74 = vld [vmem:[%s0 + $0x188] sm:$0xff]
  %v75 = vld [vmem:[%s0 + $0x190] sm:$0xff]
  %v76 = vld [vmem:[%s0 + $0x198] sm:$0xff]
  %v77 = vld [vmem:[%s0 + $0x1a0] sm:$0xff]
  %v78 = vld [vmem:[%s0 + $0x1a8] sm:$0xff]
  %v79 = vld [vmem:[%s0 + $0x1b0] sm:$0xff]
  %v80 = vld [vmem:[%s0 + $0x1b8] sm:$0xff]
  %v81 = vld [vmem:[%s0 + $0x1c0] sm:$0xff]
  %v82 = vld [vmem:[%s0 + $0x1c8] sm:$0xff]
  %v83 = vld [vmem:[%s0 + $0x1d0] sm:$0xff]
  %v84 = vld [vmem:[%s0 + $0x1d8] sm:$0xff]
  %v85 = vld [vmem:[%s0 + $0x1e0] sm:$0xff]
  %v86 = vld [vmem:[%s0 + $0x1e8] sm:$0xff]
  %v87 = vld [vmem:[%s0 + $0x1f0] sm:$0xff]
  %v88 = vld [vmem:[%s0 + $0x1f8] sm:$0xff]
  %v89 = vld [vmem:[%s0 + $0x200] sm:$0xff]
  %v90 = vld [vmem:[%s0 + $0x208] sm:$0xff]
  %v91 = vld [vmem:[%s0 + $0x210] sm:$0xff]
  %v92 = vld [vmem:[%s0 + $0x218] sm:$0xff]
  %v93 = vld [vmem:[%s0 + $0x220] sm:$0xff]
  %v94 = vld [vmem:[%s0 + $0x228] sm:$0xff]
  %v95 = vld [vmem:[%s0 + $0x230] sm:$0xff]
  %v96 = vld [vmem:[%s0 + $0x238] sm:$0xff]
  %v97 = vld [vmem:[%s0 + $0x240] sm:$0xff]
  %v98 = vld [vmem:[%s0 + $0x248] sm:$0xff]
  %v99 = vld [vmem:[%s0 + $0x250] sm:$0xff]
  %v100 = vld [vmem:[%s0 + $0x258] sm:$0xff]
  %v101 = vld [vmem:[%s0 + $0x260] sm:$0xff]
  %v102 = vld [vmem:[%s0 + $0x268] sm:$0xff]
  %v103 = vld [vmem:[%s0 + $0x270] sm:$0xff]
  %v104 = vld [vmem:[%s0 + $0x278] sm:$0xff]
  %v105 = vld [vmem:[%s0 + $0x280] sm:$0xff]
  %v106 = vld [vmem:[%s0 + $0x288] sm:$0xff]
  %v107 = vld [vmem:[%s0 + $0x290] sm:$0xff]
  %v108 = vld [vmem:[%s0 + $0x298] sm:$0xff]
  %v109 = vld [vmem:[%s0 + $0x2a0] sm:$0xff]
  %v110 = vld [vmem:[%s0 + $0x2a8] sm:$0xff]
  %v111 = vld [vmem:[%s0 + $0x2b0] sm:$0xff]
  %v112 = vld [vmem:[%s0 + $0x2b8] sm:$0xff]
  %v113 = vld [vmem:[%s0 + $0x2c0] sm:$0xff]
  %v114 = vld [vmem:[%s0 + $0x2c8] sm:$0xff]
  %v115 = vld [vmem:[%s0 + $0x2d0] sm:$0xff]
  %v116 = vld [vmem:[%s0 + $0x2d8] sm:$0xff]
  %v117 = vld [vmem:[%s0 + $0x2e0] sm:$0xff]
  %v118 = vld [vmem:[%s0 + $0x2e8] sm:$0xff]
  %v119 = vld [vmem:[%s0 + $0x2f0] sm:$0xff]
  %v120 = vld [vmem:[%s0 + $0x2f8] sm:$0xff]
  %v121 = vld [vmem:[%s0 + $0x300] sm:$0xff]
  %v122 = vld [vmem:[%s0 + $0x308] sm:$0xff]
  %v123 = vld [vmem:[%s0 + $0x310] sm:$0xff]
  %v124 = vld [vmem:[%s0 + $0x318] sm:$0xff]
  %v125 = vld [vmem:[%s0 + $0x320] sm:$0xff]
  %v126 = vld [vmem:[%s0 + $0x328] sm:$0xff]
  %v127 = vld [vmem:[%s0 + $0x330] sm:$0xff]
  %v128 = vld [vmem:[%s0 + $0x338] sm:$0xff]
  %v129 = vld [vmem:[%s0 + $0x340] sm:$0xff]
  %v130 = vld [vmem:[%s0 + $0x348] sm:$0xff]
  %v131 = vld [vmem:[%s0 + $0x350] sm:$0xff]
  %v132 = vld [vmem:[%s0 + $0x358] sm:$0xff]
  %v133 = vld [vmem:[%s2] sm:$0xff]
  %135 = vset.pattern.permute.xlu0 0
  %136 = vperm.xlu0 %135, %v133
  %v137 = vpop.permute.xlu0 %136
  %vm139 = vcmask 130048
  %v141 = vsel %vm139, %v24, 0
  %143 = vmatprep.subr.mxu0 %v116
  %144 = vmatpush1.msra.mxu0 %v115
  %145 = vmatprep.subr.mxu0 %v110
  %146 = vmatpush1.msra.mxu0 %v109
  %147 = vmatprep.subr.mxu0 %v104
  %148 = vmatpush1.msra.mxu0 %v103
  %149 = vmatprep.subr.mxu0 %v98
  %150 = vmatpush1.msra.mxu0 %v97
  %151 = vmatprep.subr.mxu0 %v92
  %152 = vmatpush1.msra.mxu0 %v91
  %153 = vmatprep.subr.mxu0 %v86
  %154 = vmatpush1.msra.mxu0 %v85
  %155 = vmatprep.subr.mxu0 %v80
  %156 = vmatpush1.msra.mxu0 %v79
  %157 = vmatprep.subr.mxu0 %v74
  %158 = vmatpush1.msra.mxu0 %v73
  %159 = vmatprep.subr.mxu0 %v68
  %160 = vmatpush1.msra.mxu0 %v67
  %161 = vmatprep.subr.mxu0 %v62
  %162 = vmatpush1.msra.mxu0 %v61
  %163 = vmatprep.subr.mxu0 %v56
  %164 = vmatpush1.msra.mxu0 %v55
  %165 = vmatprep.subr.mxu0 %v50
  %166 = vmatpush1.msra.mxu0 %v49
  %167 = vmatprep.subr.mxu0 %v44
  %168 = vmatpush1.msra.mxu0 %v43
  %169 = vmatprep.subr.mxu0 %v38
  %170 = vmatpush1.msra.mxu0 %v37
  %171 = vmatprep.subr.mxu0 %v32
  %172 = vmatpush1.msra.mxu0 %v31
  %173 = vmatprep.subr.mxu0 %v26
  %174 = vmatpush1.msra.mxu0 %v25
  %175 = vmatprep.subr.mxu0 0.0
  %176 = vmatpush2.msra.mxu0 0.0
  %177 = vmatprep.subr.mxu0 0.0
  %178 = vmatpush2.msra.mxu0 0.0
  %179 = vmatprep.subr.mxu0 0.0
  %180 = vmatpush2.msra.mxu0 0.0
  %181 = vmatprep.subr.mxu0 0.0
  %182 = vmatpush2.msra.mxu0 0.0
  %183 = vmatprep.subr.mxu0 0.0
  %184 = vmatpush2.msra.mxu0 0.0
  %185 = vmatprep.subr.mxu0 0.0
  %186 = vmatpush2.msra.mxu0 0.0
  %187 = vmatprep.subr.mxu0 0.0
  %188 = vmatpush2.msra.mxu0 0.0
  %189 = vmatprep.subr.mxu0 0.0
  %190 = vmatpush2.msra.mxu0 0.0
  %191 = vmatprep.subr.mxu0 0.0
  %192 = vmatpush2.msra.mxu0 0.0
  %193 = vmatprep.subr.mxu0 0.0
  %194 = vmatpush2.msra.mxu0 0.0
  %195 = vmatprep.subr.mxu0 0.0
  %196 = vmatpush2.msra.mxu0 0.0
  %197 = vmatprep.subr.mxu0 0.0
  %198 = vmatpush2.msra.mxu0 0.0
  %199 = vmatprep.subr.mxu0 0.0
  %200 = vmatpush2.msra.mxu0 0.0
  %201 = vmatprep.subr.mxu0 0.0
  %202 = vmatpush2.msra.mxu0 0.0
  %203 = vmatprep.subr.mxu0 %v128
  %204 = vmatpush2.msra.mxu0 %v127
  %205 = vmatprep.subr.mxu0 %v122
  %206 = vmatpush2.msra.mxu0 %v121
  %207 = vmatprep.mubr.f32.mxu0 %v141
  %208 = vmatmul.mubr.f32.gmra.mxu0 %v23
  %v209 = vpop.f32.mrf.mxu0
  %v210 = vadd.f32 %v137, %v209
  %v211 = vpop.f32.mrf.mxu0
  %v212 = vadd.f32 %v137, %v211
  %213 = vdwg.mxu0
  %214 = vmatprep.subr.mxu0 %v118
  %215 = vmatpush1.msra.mxu0 %v117
  %216 = vmatprep.subr.mxu0 %v112
  %217 = vmatpush1.msra.mxu0 %v111
  %218 = vmatprep.subr.mxu0 %v106
  %219 = vmatpush1.msra.mxu0 %v105
  %220 = vmatprep.subr.mxu0 %v100
  %221 = vmatpush1.msra.mxu0 %v99
  %222 = vmatprep.subr.mxu0 %v94
  %223 = vmatpush1.msra.mxu0 %v93
  %224 = vmatprep.subr.mxu0 %v88
  %225 = vmatpush1.msra.mxu0 %v87
  %226 = vmatprep.subr.mxu0 %v82
  %227 = vmatpush1.msra.mxu0 %v81
  %228 = vmatprep.subr.mxu0 %v76
  %229 = vmatpush1.msra.mxu0 %v75
  %230 = vmatprep.subr.mxu0 %v70
  %231 = vmatpush1.msra.mxu0 %v69
  %232 = vmatprep.subr.mxu0 %v64
  %233 = vmatpush1.msra.mxu0 %v63
  %234 = vmatprep.subr.mxu0 %v58
  %235 = vmatpush1.msra.mxu0 %v57
  %236 = vmatprep.subr.mxu0 %v52
  %237 = vmatpush1.msra.mxu0 %v51
  %238 = vmatprep.subr.mxu0 %v46
  %239 = vmatpush1.msra.mxu0 %v45
  %240 = vmatprep.subr.mxu0 %v40
  %241 = vmatpush1.msra.mxu0 %v39
  %242 = vmatprep.subr.mxu0 %v34
  %243 = vmatpush1.msra.mxu0 %v33
  %244 = vmatprep.subr.mxu0 %v28
  %245 = vmatpush1.msra.mxu0 %v27
  %246 = vmatprep.subr.mxu0 0.0
  %247 = vmatpush2.msra.mxu0 0.0
  %248 = vmatprep.subr.mxu0 0.0
  %249 = vmatpush2.msra.mxu0 0.0
  %250 = vmatprep.subr.mxu0 0.0
  %251 = vmatpush2.msra.mxu0 0.0
  %252 = vmatprep.subr.mxu0 0.0
  %253 = vmatpush2.msra.mxu0 0.0
  %254 = vmatprep.subr.mxu0 0.0
  %255 = vmatpush2.msra.mxu0 0.0
  %256 = vmatprep.subr.mxu0 0.0
  %257 = vmatpush2.msra.mxu0 0.0
  %258 = vmatprep.subr.mxu0 0.0
  %259 = vmatpush2.msra.mxu0 0.0
  %260 = vmatprep.subr.mxu0 0.0
  %261 = vmatpush2.msra.mxu0 0.0
  %262 = vmatprep.subr.mxu0 0.0
  %263 = vmatpush2.msra.mxu0 0.0
  %264 = vmatprep.subr.mxu0 0.0
  %265 = vmatpush2.msra.mxu0 0.0
  %266 = vmatprep.subr.mxu0 0.0
  %267 = vmatpush2.msra.mxu0 0.0
  %268 = vmatprep.subr.mxu0 0.0
  %269 = vmatpush2.msra.mxu0 0.0
  %270 = vmatprep.subr.mxu0 0.0
  %271 = vmatpush2.msra.mxu0 0.0
  %272 = vmatprep.subr.mxu0 0.0
  %273 = vmatpush2.msra.mxu0 0.0
  %274 = vmatprep.subr.mxu0 %v130
  %275 = vmatpush2.msra.mxu0 %v129
  %276 = vmatprep.subr.mxu0 %v124
  %277 = vmatpush2.msra.mxu0 %v123
  %278 = vmatprep.mubr.f32.mxu0 %v141
  %279 = vmatmul.mubr.f32.gmra.mxu0 %v23
  %v280 = vpop.f32.mrf.mxu0
  %v281 = vadd.f32 %v137, %v280
  %v282 = vpop.f32.mrf.mxu0
  %v283 = vadd.f32 %v137, %v282
  %284 = vdwg.mxu0
  %285 = vmatprep.subr.mxu0 %v120
  %286 = vmatpush1.msra.mxu0 %v119
  %287 = vmatprep.subr.mxu0 %v114
  %288 = vmatpush1.msra.mxu0 %v113
  %289 = vmatprep.subr.mxu0 %v108
  %290 = vmatpush1.msra.mxu0 %v107
  %291 = vmatprep.subr.mxu0 %v102
  %292 = vmatpush1.msra.mxu0 %v101
  %293 = vmatprep.subr.mxu0 %v96
  %294 = vmatpush1.msra.mxu0 %v95
  %295 = vmatprep.subr.mxu0 %v90
  %296 = vmatpush1.msra.mxu0 %v89
  %297 = vmatprep.subr.mxu0 %v84
  %298 = vmatpush1.msra.mxu0 %v83
  %299 = vmatprep.subr.mxu0 %v78
  %300 = vmatpush1.msra.mxu0 %v77
  %301 = vmatprep.subr.mxu0 %v72
  %302 = vmatpush1.msra.mxu0 %v71
  %303 = vmatprep.subr.mxu0 %v66
  %304 = vmatpush1.msra.mxu0 %v65
  %305 = vmatprep.subr.mxu0 %v60
  %306 = vmatpush1.msra.mxu0 %v59
  %307 = vmatprep.subr.mxu0 %v54
  %308 = vmatpush1.msra.mxu0 %v53
  %309 = vmatprep.subr.mxu0 %v48
  %310 = vmatpush1.msra.mxu0 %v47
  %311 = vmatprep.subr.mxu0 %v42
  %312 = vmatpush1.msra.mxu0 %v41
  %313 = vmatprep.subr.mxu0 %v36
  %314 = vmatpush1.msra.mxu0 %v35
  %315 = vmatprep.subr.mxu0 %v30
  %316 = vmatpush1.msra.mxu0 %v29
  %317 = vmatprep.subr.mxu0 0.0
  %318 = vmatpush2.msra.mxu0 0.0
  %319 = vmatprep.subr.mxu0 0.0
  %320 = vmatpush2.msra.mxu0 0.0
  %321 = vmatprep.subr.mxu0 0.0
  %322 = vmatpush2.msra.mxu0 0.0
  %323 = vmatprep.subr.mxu0 0.0
  %324 = vmatpush2.msra.mxu0 0.0
  %325 = vmatprep.subr.mxu0 0.0
  %326 = vmatpush2.msra.mxu0 0.0
  %327 = vmatprep.subr.mxu0 0.0
  %328 = vmatpush2.msra.mxu0 0.0
  %329 = vmatprep.subr.mxu0 0.0
  %330 = vmatpush2.msra.mxu0 0.0
  %331 = vmatprep.subr.mxu0 0.0
  %332 = vmatpush2.msra.mxu0 0.0
  %333 = vmatprep.subr.mxu0 0.0
  %334 = vmatpush2.msra.mxu0 0.0
  %335 = vmatprep.subr.mxu0 0.0
  %336 = vmatpush2.msra.mxu0 0.0
  %337 = vmatprep.subr.mxu0 0.0
  %338 = vmatpush2.msra.mxu0 0.0
  %339 = vmatprep.subr.mxu0 0.0
  %340 = vmatpush2.msra.mxu0 0.0
  %341 = vmatprep.subr.mxu0 0.0
  %342 = vmatpush2.msra.mxu0 0.0
  %343 = vmatprep.subr.mxu0 0.0
  %344 = vmatpush2.msra.mxu0 0.0
  %345 = vmatprep.subr.mxu0 %v132
  %346 = vmatpush2.msra.mxu0 %v131
  %347 = vmatprep.subr.mxu0 %v126
  %348 = vmatpush2.msra.mxu0 %v125
  %349 = vmatprep.mubr.f32.mxu0 %v141
  %350 = vmatmul.mubr.f32.gmra.mxu0 %v23
  %v351 = vpop.f32.mrf.mxu0
  %v352 = vadd.f32 %v137, %v351
  %v353 = vpop.f32.mrf.mxu0
  %v354 = vadd.f32 %v137, %v353
  %355 = vdwg.mxu0
  %v356 = vxor.u32 %v210, 2147483648
  %v357 = vxor.u32 %v212, 2147483648
  %v358 = vxor.u32 %v281, 2147483648
  %v359 = vxor.u32 %v283, 2147483648
  %v360 = vxor.u32 %v352, 2147483648
  %v361 = vxor.u32 %v354, 2147483648
  %v362 = vmul.f32 %v356, 1.442695
  %v363 = vpow.pop %v362
  %v364 = vmul.f32 %v357, 1.442695
  %v365 = vpow.pop %v364
  %v366 = vmul.f32 %v358, 1.442695
  %v367 = vpow.pop %v366
  %v368 = vmul.f32 %v359, 1.442695
  %v369 = vpow.pop %v368
  %v370 = vmul.f32 %v360, 1.442695
  %v371 = vpow.pop %v370
  %v372 = vmul.f32 %v361, 1.442695
  %v373 = vpow.pop %v372
  %v374 = vadd.f32 %v363, 1.0
  %v375 = vadd.f32 %v365, 1.0
  %v376 = vadd.f32 %v367, 1.0
  %v377 = vadd.f32 %v369, 1.0
  %v378 = vadd.f32 %v371, 1.0
  %v379 = vadd.f32 %v373, 1.0
  %v380 = vrcp.pop %v374
  %v381 = vmul.f32 1.0, %v380
  %v382 = vrcp.pop %v375
  %v383 = vmul.f32 1.0, %v382
  %v384 = vrcp.pop %v376
  %v385 = vmul.f32 1.0, %v384
  %v386 = vrcp.pop %v377
  %v387 = vmul.f32 1.0, %v386
  %v388 = vrcp.pop %v378
  %v389 = vmul.f32 1.0, %v388
  %v390 = vrcp.pop %v379
  %v391 = vmul.f32 1.0, %v390
  %v392 = vld [vmem:[%s3] sm:$0x3f]
  %v394 = vlaneseq
  %v395 = vshrl.u32 %v394, 7
  %v396 = vsub.s32 0, %v395
  %v397 = vrot.slane %v392, %v396
  %v398 = vlaneseq
  %v399 = vshrl.u32 %v398, 7
  %v400 = vsub.s32 1, %v399
  %v401 = vrot.slane %v392, %v400
  %v402 = vlaneseq
  %v403 = vshrl.u32 %v402, 7
  %v404 = vsub.s32 2, %v403
  %v405 = vrot.slane %v392, %v404
  %v406 = vlaneseq
  %v407 = vshrl.u32 %v406, 7
  %v408 = vsub.s32 3, %v407
  %v409 = vrot.slane %v392, %v408
  %v410 = vlaneseq
  %v411 = vshrl.u32 %v410, 7
  %v412 = vsub.s32 4, %v411
  %v413 = vrot.slane %v392, %v412
  %v414 = vlaneseq
  %v415 = vshrl.u32 %v414, 7
  %v416 = vsub.s32 5, %v415
  %v417 = vrot.slane %v392, %v416
  %v424 = vmul.f32 %v381, %v397
  %v425 = vmul.f32 %v383, %v401
  %v426 = vmul.f32 %v385, %v405
  %v427 = vmul.f32 %v387, %v409
  %v428 = vmul.f32 %v389, %v413
  %v429 = vmul.f32 %v391, %v417
  %v430 = vld [vmem:[%s4] sm:$0xff]
  %s431 = scalar_lea.vmem %s4, 8
  %v432 = vld [vmem:[%s431] sm:$0xff]
  %439 = vrot.lane.b32.xlu0 %v424, 127
  %v440 = vpop.permute.xlu0 %439
  %441 = vrot.lane.b32.xlu0 %v425, 127
  %v442 = vpop.permute.xlu0 %441
  %443 = vrot.lane.b32.xlu0 %v426, 127
  %v444 = vpop.permute.xlu0 %443
  %445 = vrot.lane.b32.xlu0 %v427, 127
  %v446 = vpop.permute.xlu0 %445
  %447 = vrot.lane.b32.xlu0 %v428, 127
  %v448 = vpop.permute.xlu0 %447
  %449 = vrot.lane.b32.xlu0 %v429, 127
  %v450 = vpop.permute.xlu0 %449
  %vm451 = vcmask 1039360
  %v452 = vsel %vm451, %v440, %v442
  %v453 = vsel %vm451, %v442, %v444
  %v454 = vsel %vm451, %v444, %v446
  %v455 = vsel %vm451, %v446, %v448
  %v456 = vsel %vm451, %v448, %v450
  %vm462 = vcmask 64512
  %v464 = vsel %vm462, %v432, 0
  %466 = vmatprep.subr.mxu0 0.0
  %467 = vmatpush1.msra.mxu0 0.0
  %468 = vmatprep.subr.mxu0 0.0
  %469 = vmatpush1.msra.mxu0 0.0
  %470 = vmatprep.subr.mxu0 0.0
  %471 = vmatpush1.msra.mxu0 0.0
  %472 = vmatprep.subr.mxu0 0.0
  %473 = vmatpush1.msra.mxu0 0.0
  %474 = vmatprep.subr.mxu0 0.0
  %475 = vmatpush1.msra.mxu0 0.0
  %476 = vmatprep.subr.mxu0 0.0
  %477 = vmatpush1.msra.mxu0 0.0
  %478 = vmatprep.subr.mxu0 0.0
  %479 = vmatpush1.msra.mxu0 0.0
  %480 = vmatprep.subr.mxu0 0.0
  %481 = vmatpush1.msra.mxu0 0.0
  %482 = vmatprep.subr.mxu0 0.0
  %483 = vmatpush1.msra.mxu0 0.0
  %484 = vmatprep.subr.mxu0 0.0
  %485 = vmatpush1.msra.mxu0 0.0
  %486 = vmatprep.subr.mxu0 0.0
  %487 = vmatpush1.msra.mxu0 0.0
  %488 = vmatprep.subr.mxu0 0.0
  %489 = vmatpush1.msra.mxu0 0.0
  %490 = vmatprep.subr.mxu0 0.0
  %491 = vmatpush1.msra.mxu0 0.0
  %492 = vmatprep.subr.mxu0 0.0
  %493 = vmatpush1.msra.mxu0 0.0
  %494 = vmatprep.subr.mxu0 0.0
  %495 = vmatpush1.msra.mxu0 0.0
  %496 = vmatprep.subr.mxu0 %v453
  %497 = vmatpush1.msra.mxu0 %v452
  %498 = vmatprep.subr.mxu0 0.0
  %499 = vmatpush2.msra.mxu0 0.0
  %500 = vmatprep.subr.mxu0 0.0
  %501 = vmatpush2.msra.mxu0 0.0
  %502 = vmatprep.subr.mxu0 0.0
  %503 = vmatpush2.msra.mxu0 0.0
  %504 = vmatprep.subr.mxu0 0.0
  %505 = vmatpush2.msra.mxu0 0.0
  %506 = vmatprep.subr.mxu0 0.0
  %507 = vmatpush2.msra.mxu0 0.0
  %508 = vmatprep.subr.mxu0 0.0
  %509 = vmatpush2.msra.mxu0 0.0
  %510 = vmatprep.subr.mxu0 0.0
  %511 = vmatpush2.msra.mxu0 0.0
  %512 = vmatprep.subr.mxu0 0.0
  %513 = vmatpush2.msra.mxu0 0.0
  %514 = vmatprep.subr.mxu0 0.0
  %515 = vmatpush2.msra.mxu0 0.0
  %516 = vmatprep.subr.mxu0 0.0
  %517 = vmatpush2.msra.mxu0 0.0
  %518 = vmatprep.subr.mxu0 0.0
  %519 = vmatpush2.msra.mxu0 0.0
  %520 = vmatprep.subr.mxu0 0.0
  %521 = vmatpush2.msra.mxu0 0.0
  %522 = vmatprep.subr.mxu0 0.0
  %523 = vmatpush2.msra.mxu0 0.0
  %524 = vmatprep.subr.mxu0 0.0
  %525 = vmatpush2.msra.mxu0 0.0
  %526 = vmatprep.subr.mxu0 0.0
  %527 = vmatpush2.msra.mxu0 0.0
  %528 = vmatprep.subr.mxu0 0.0
  %529 = vmatpush2.msra.mxu0 0.0
  %530 = vmatprep.mubr.f32.mxu0 0.0
  %531 = vmatmul.mubr.f32.gmra.mxu0 %v464
  %v532 = vpop.f32.mrf.mxu0
  %v533 = vadd.f32 0.0, %v532
  %v534 = vpop.f32.mrf.mxu0
  %v535 = vadd.f32 0.0, %v534
  %536 = vdwg.mxu0
  %537 = vmatprep.subr.mxu0 0.0
  %538 = vmatpush1.msra.mxu0 0.0
  %539 = vmatprep.subr.mxu0 0.0
  %540 = vmatpush1.msra.mxu0 0.0
  %541 = vmatprep.subr.mxu0 0.0
  %542 = vmatpush1.msra.mxu0 0.0
  %543 = vmatprep.subr.mxu0 0.0
  %544 = vmatpush1.msra.mxu0 0.0
  %545 = vmatprep.subr.mxu0 0.0
  %546 = vmatpush1.msra.mxu0 0.0
  %547 = vmatprep.subr.mxu0 0.0
  %548 = vmatpush1.msra.mxu0 0.0
  %549 = vmatprep.subr.mxu0 0.0
  %550 = vmatpush1.msra.mxu0 0.0
  %551 = vmatprep.subr.mxu0 0.0
  %552 = vmatpush1.msra.mxu0 0.0
  %553 = vmatprep.subr.mxu0 0.0
  %554 = vmatpush1.msra.mxu0 0.0
  %555 = vmatprep.subr.mxu0 0.0
  %556 = vmatpush1.msra.mxu0 0.0
  %557 = vmatprep.subr.mxu0 0.0
  %558 = vmatpush1.msra.mxu0 0.0
  %559 = vmatprep.subr.mxu0 0.0
  %560 = vmatpush1.msra.mxu0 0.0
  %561 = vmatprep.subr.mxu0 0.0
  %562 = vmatpush1.msra.mxu0 0.0
  %563 = vmatprep.subr.mxu0 0.0
  %564 = vmatpush1.msra.mxu0 0.0
  %565 = vmatprep.subr.mxu0 0.0
  %566 = vmatpush1.msra.mxu0 0.0
  %567 = vmatprep.subr.mxu0 %v455
  %568 = vmatpush1.msra.mxu0 %v454
  %569 = vmatprep.subr.mxu0 0.0
  %570 = vmatpush2.msra.mxu0 0.0
  %571 = vmatprep.subr.mxu0 0.0
  %572 = vmatpush2.msra.mxu0 0.0
  %573 = vmatprep.subr.mxu0 0.0
  %574 = vmatpush2.msra.mxu0 0.0
  %575 = vmatprep.subr.mxu0 0.0
  %576 = vmatpush2.msra.mxu0 0.0
  %577 = vmatprep.subr.mxu0 0.0
  %578 = vmatpush2.msra.mxu0 0.0
  %579 = vmatprep.subr.mxu0 0.0
  %580 = vmatpush2.msra.mxu0 0.0
  %581 = vmatprep.subr.mxu0 0.0
  %582 = vmatpush2.msra.mxu0 0.0
  %583 = vmatprep.subr.mxu0 0.0
  %584 = vmatpush2.msra.mxu0 0.0
  %585 = vmatprep.subr.mxu0 0.0
  %586 = vmatpush2.msra.mxu0 0.0
  %587 = vmatprep.subr.mxu0 0.0
  %588 = vmatpush2.msra.mxu0 0.0
  %589 = vmatprep.subr.mxu0 0.0
  %590 = vmatpush2.msra.mxu0 0.0
  %591 = vmatprep.subr.mxu0 0.0
  %592 = vmatpush2.msra.mxu0 0.0
  %593 = vmatprep.subr.mxu0 0.0
  %594 = vmatpush2.msra.mxu0 0.0
  %595 = vmatprep.subr.mxu0 0.0
  %596 = vmatpush2.msra.mxu0 0.0
  %597 = vmatprep.subr.mxu0 0.0
  %598 = vmatpush2.msra.mxu0 0.0
  %599 = vmatprep.subr.mxu0 0.0
  %600 = vmatpush2.msra.mxu0 0.0
  %601 = vmatprep.mubr.f32.mxu0 0.0
  %602 = vmatmul.mubr.f32.gmra.mxu0 %v464
  %v603 = vpop.f32.mrf.mxu0
  %v604 = vadd.f32 0.0, %v603
  %v605 = vpop.f32.mrf.mxu0
  %v606 = vadd.f32 0.0, %v605
  %607 = vdwg.mxu0
  %608 = vmatprep.subr.mxu0 0.0
  %609 = vmatpush1.msra.mxu0 0.0
  %610 = vmatprep.subr.mxu0 0.0
  %611 = vmatpush1.msra.mxu0 0.0
  %612 = vmatprep.subr.mxu0 0.0
  %613 = vmatpush1.msra.mxu0 0.0
  %614 = vmatprep.subr.mxu0 0.0
  %615 = vmatpush1.msra.mxu0 0.0
  %616 = vmatprep.subr.mxu0 0.0
  %617 = vmatpush1.msra.mxu0 0.0
  %618 = vmatprep.subr.mxu0 0.0
  %619 = vmatpush1.msra.mxu0 0.0
  %620 = vmatprep.subr.mxu0 0.0
  %621 = vmatpush1.msra.mxu0 0.0
  %622 = vmatprep.subr.mxu0 0.0
  %623 = vmatpush1.msra.mxu0 0.0
  %624 = vmatprep.subr.mxu0 0.0
  %625 = vmatpush1.msra.mxu0 0.0
  %626 = vmatprep.subr.mxu0 0.0
  %627 = vmatpush1.msra.mxu0 0.0
  %628 = vmatprep.subr.mxu0 0.0
  %629 = vmatpush1.msra.mxu0 0.0
  %630 = vmatprep.subr.mxu0 0.0
  %631 = vmatpush1.msra.mxu0 0.0
  %632 = vmatprep.subr.mxu0 0.0
  %633 = vmatpush1.msra.mxu0 0.0
  %634 = vmatprep.subr.mxu0 0.0
  %635 = vmatpush1.msra.mxu0 0.0
  %636 = vmatprep.subr.mxu0 0.0
  %637 = vmatpush1.msra.mxu0 0.0
  %638 = vmatprep.subr.mxu0 0.0
  %639 = vmatpush1.msra.mxu0 %v456
  %640 = vmatprep.subr.mxu0 0.0
  %641 = vmatpush2.msra.mxu0 0.0
  %642 = vmatprep.subr.mxu0 0.0
  %643 = vmatpush2.msra.mxu0 0.0
  %644 = vmatprep.subr.mxu0 0.0
  %645 = vmatpush2.msra.mxu0 0.0
  %646 = vmatprep.subr.mxu0 0.0
  %647 = vmatpush2.msra.mxu0 0.0
  %648 = vmatprep.subr.mxu0 0.0
  %649 = vmatpush2.msra.mxu0 0.0
  %650 = vmatprep.subr.mxu0 0.0
  %651 = vmatpush2.msra.mxu0 0.0
  %652 = vmatprep.subr.mxu0 0.0
  %653 = vmatpush2.msra.mxu0 0.0
  %654 = vmatprep.subr.mxu0 0.0
  %655 = vmatpush2.msra.mxu0 0.0
  %656 = vmatprep.subr.mxu0 0.0
  %657 = vmatpush2.msra.mxu0 0.0
  %658 = vmatprep.subr.mxu0 0.0
  %659 = vmatpush2.msra.mxu0 0.0
  %660 = vmatprep.subr.mxu0 0.0
  %661 = vmatpush2.msra.mxu0 0.0
  %662 = vmatprep.subr.mxu0 0.0
  %663 = vmatpush2.msra.mxu0 0.0
  %664 = vmatprep.subr.mxu0 0.0
  %665 = vmatpush2.msra.mxu0 0.0
  %666 = vmatprep.subr.mxu0 0.0
  %667 = vmatpush2.msra.mxu0 0.0
  %668 = vmatprep.subr.mxu0 0.0
  %669 = vmatpush2.msra.mxu0 0.0
  %670 = vmatprep.subr.mxu0 0.0
  %671 = vmatpush2.msra.mxu0 0.0
  %672 = vmatprep.mubr.f32.mxu0 0.0
  %673 = vmatmul.mubr.f32.gmra.mxu0 %v464
  %v674 = vpop.f32.mrf.mxu0
  %v675 = vadd.f32 0.0, %v674
  %v676 = vpop.f32.mrf.mxu0
  %677 = vdwg.mxu0
  %v679 = vsel %vm462, %v430, 0
  %681 = vmatprep.subr.mxu0 0.0
  %682 = vmatpush1.msra.mxu0 0.0
  %683 = vmatprep.subr.mxu0 0.0
  %684 = vmatpush1.msra.mxu0 0.0
  %685 = vmatprep.subr.mxu0 0.0
  %686 = vmatpush1.msra.mxu0 0.0
  %687 = vmatprep.subr.mxu0 0.0
  %688 = vmatpush1.msra.mxu0 0.0
  %689 = vmatprep.subr.mxu0 0.0
  %690 = vmatpush1.msra.mxu0 0.0
  %691 = vmatprep.subr.mxu0 0.0
  %692 = vmatpush1.msra.mxu0 0.0
  %693 = vmatprep.subr.mxu0 0.0
  %694 = vmatpush1.msra.mxu0 0.0
  %695 = vmatprep.subr.mxu0 0.0
  %696 = vmatpush1.msra.mxu0 0.0
  %697 = vmatprep.subr.mxu0 0.0
  %698 = vmatpush1.msra.mxu0 0.0
  %699 = vmatprep.subr.mxu0 0.0
  %700 = vmatpush1.msra.mxu0 0.0
  %701 = vmatprep.subr.mxu0 0.0
  %702 = vmatpush1.msra.mxu0 0.0
  %703 = vmatprep.subr.mxu0 0.0
  %704 = vmatpush1.msra.mxu0 0.0
  %705 = vmatprep.subr.mxu0 0.0
  %706 = vmatpush1.msra.mxu0 0.0
  %707 = vmatprep.subr.mxu0 0.0
  %708 = vmatpush1.msra.mxu0 0.0
  %709 = vmatprep.subr.mxu0 0.0
  %710 = vmatpush1.msra.mxu0 0.0
  %711 = vmatprep.subr.mxu0 %v425
  %712 = vmatpush1.msra.mxu0 %v424
  %713 = vmatprep.subr.mxu0 0.0
  %714 = vmatpush2.msra.mxu0 0.0
  %715 = vmatprep.subr.mxu0 0.0
  %716 = vmatpush2.msra.mxu0 0.0
  %717 = vmatprep.subr.mxu0 0.0
  %718 = vmatpush2.msra.mxu0 0.0
  %719 = vmatprep.subr.mxu0 0.0
  %720 = vmatpush2.msra.mxu0 0.0
  %721 = vmatprep.subr.mxu0 0.0
  %722 = vmatpush2.msra.mxu0 0.0
  %723 = vmatprep.subr.mxu0 0.0
  %724 = vmatpush2.msra.mxu0 0.0
  %725 = vmatprep.subr.mxu0 0.0
  %726 = vmatpush2.msra.mxu0 0.0
  %727 = vmatprep.subr.mxu0 0.0
  %728 = vmatpush2.msra.mxu0 0.0
  %729 = vmatprep.subr.mxu0 0.0
  %730 = vmatpush2.msra.mxu0 0.0
  %731 = vmatprep.subr.mxu0 0.0
  %732 = vmatpush2.msra.mxu0 0.0
  %733 = vmatprep.subr.mxu0 0.0
  %734 = vmatpush2.msra.mxu0 0.0
  %735 = vmatprep.subr.mxu0 0.0
  %736 = vmatpush2.msra.mxu0 0.0
  %737 = vmatprep.subr.mxu0 0.0
  %738 = vmatpush2.msra.mxu0 0.0
  %739 = vmatprep.subr.mxu0 0.0
  %740 = vmatpush2.msra.mxu0 0.0
  %741 = vmatprep.subr.mxu0 0.0
  %742 = vmatpush2.msra.mxu0 0.0
  %743 = vmatprep.subr.mxu0 0.0
  %744 = vmatpush2.msra.mxu0 0.0
  %745 = vmatprep.mubr.f32.mxu0 0.0
  %746 = vmatmul.mubr.f32.gmra.mxu0 %v679
  %v747 = vpop.f32.mrf.mxu0
  %v748 = vadd.f32 %v533, %v747
  %v749 = vpop.f32.mrf.mxu0
  %v750 = vadd.f32 %v535, %v749
  %751 = vdwg.mxu0
  %752 = vmatprep.subr.mxu0 0.0
  %753 = vmatpush1.msra.mxu0 0.0
  %754 = vmatprep.subr.mxu0 0.0
  %755 = vmatpush1.msra.mxu0 0.0
  %756 = vmatprep.subr.mxu0 0.0
  %757 = vmatpush1.msra.mxu0 0.0
  %758 = vmatprep.subr.mxu0 0.0
  %759 = vmatpush1.msra.mxu0 0.0
  %760 = vmatprep.subr.mxu0 0.0
  %761 = vmatpush1.msra.mxu0 0.0
  %762 = vmatprep.subr.mxu0 0.0
  %763 = vmatpush1.msra.mxu0 0.0
  %764 = vmatprep.subr.mxu0 0.0
  %765 = vmatpush1.msra.mxu0 0.0
  %766 = vmatprep.subr.mxu0 0.0
  %767 = vmatpush1.msra.mxu0 0.0
  %768 = vmatprep.subr.mxu0 0.0
  %769 = vmatpush1.msra.mxu0 0.0
  %770 = vmatprep.subr.mxu0 0.0
  %771 = vmatpush1.msra.mxu0 0.0
  %772 = vmatprep.subr.mxu0 0.0
  %773 = vmatpush1.msra.mxu0 0.0
  %774 = vmatprep.subr.mxu0 0.0
  %775 = vmatpush1.msra.mxu0 0.0
  %776 = vmatprep.subr.mxu0 0.0
  %777 = vmatpush1.msra.mxu0 0.0
  %778 = vmatprep.subr.mxu0 0.0
  %779 = vmatpush1.msra.mxu0 0.0
  %780 = vmatprep.subr.mxu0 0.0
  %781 = vmatpush1.msra.mxu0 0.0
  %782 = vmatprep.subr.mxu0 %v427
  %783 = vmatpush1.msra.mxu0 %v426
  %784 = vmatprep.subr.mxu0 0.0
  %785 = vmatpush2.msra.mxu0 0.0
  %786 = vmatprep.subr.mxu0 0.0
  %787 = vmatpush2.msra.mxu0 0.0
  %788 = vmatprep.subr.mxu0 0.0
  %789 = vmatpush2.msra.mxu0 0.0
  %790 = vmatprep.subr.mxu0 0.0
  %791 = vmatpush2.msra.mxu0 0.0
  %792 = vmatprep.subr.mxu0 0.0
  %793 = vmatpush2.msra.mxu0 0.0
  %794 = vmatprep.subr.mxu0 0.0
  %795 = vmatpush2.msra.mxu0 0.0
  %796 = vmatprep.subr.mxu0 0.0
  %797 = vmatpush2.msra.mxu0 0.0
  %798 = vmatprep.subr.mxu0 0.0
  %799 = vmatpush2.msra.mxu0 0.0
  %800 = vmatprep.subr.mxu0 0.0
  %801 = vmatpush2.msra.mxu0 0.0
  %802 = vmatprep.subr.mxu0 0.0
  %803 = vmatpush2.msra.mxu0 0.0
  %804 = vmatprep.subr.mxu0 0.0
  %805 = vmatpush2.msra.mxu0 0.0
  %806 = vmatprep.subr.mxu0 0.0
  %807 = vmatpush2.msra.mxu0 0.0
  %808 = vmatprep.subr.mxu0 0.0
  %809 = vmatpush2.msra.mxu0 0.0
  %810 = vmatprep.subr.mxu0 0.0
  %811 = vmatpush2.msra.mxu0 0.0
  %812 = vmatprep.subr.mxu0 0.0
  %813 = vmatpush2.msra.mxu0 0.0
  %814 = vmatprep.subr.mxu0 0.0
  %815 = vmatpush2.msra.mxu0 0.0
  %816 = vmatprep.mubr.f32.mxu0 0.0
  %817 = vmatmul.mubr.f32.gmra.mxu0 %v679
  %v818 = vpop.f32.mrf.mxu0
  %v819 = vadd.f32 %v604, %v818
  %v820 = vpop.f32.mrf.mxu0
  %v821 = vadd.f32 %v606, %v820
  %822 = vdwg.mxu0
  %823 = vmatprep.subr.mxu0 0.0
  %824 = vmatpush1.msra.mxu0 0.0
  %825 = vmatprep.subr.mxu0 0.0
  %826 = vmatpush1.msra.mxu0 0.0
  %827 = vmatprep.subr.mxu0 0.0
  %828 = vmatpush1.msra.mxu0 0.0
  %829 = vmatprep.subr.mxu0 0.0
  %830 = vmatpush1.msra.mxu0 0.0
  %831 = vmatprep.subr.mxu0 0.0
  %832 = vmatpush1.msra.mxu0 0.0
  %833 = vmatprep.subr.mxu0 0.0
  %834 = vmatpush1.msra.mxu0 0.0
  %835 = vmatprep.subr.mxu0 0.0
  %836 = vmatpush1.msra.mxu0 0.0
  %837 = vmatprep.subr.mxu0 0.0
  %838 = vmatpush1.msra.mxu0 0.0
  %839 = vmatprep.subr.mxu0 0.0
  %840 = vmatpush1.msra.mxu0 0.0
  %841 = vmatprep.subr.mxu0 0.0
  %842 = vmatpush1.msra.mxu0 0.0
  %843 = vmatprep.subr.mxu0 0.0
  %844 = vmatpush1.msra.mxu0 0.0
  %845 = vmatprep.subr.mxu0 0.0
  %846 = vmatpush1.msra.mxu0 0.0
  %847 = vmatprep.subr.mxu0 0.0
  %848 = vmatpush1.msra.mxu0 0.0
  %849 = vmatprep.subr.mxu0 0.0
  %850 = vmatpush1.msra.mxu0 0.0
  %851 = vmatprep.subr.mxu0 0.0
  %852 = vmatpush1.msra.mxu0 0.0
  %853 = vmatprep.subr.mxu0 0.0
  %854 = vmatpush1.msra.mxu0 %v428
  %855 = vmatprep.subr.mxu0 0.0
  %856 = vmatpush2.msra.mxu0 0.0
  %857 = vmatprep.subr.mxu0 0.0
  %858 = vmatpush2.msra.mxu0 0.0
  %859 = vmatprep.subr.mxu0 0.0
  %860 = vmatpush2.msra.mxu0 0.0
  %861 = vmatprep.subr.mxu0 0.0
  %862 = vmatpush2.msra.mxu0 0.0
  %863 = vmatprep.subr.mxu0 0.0
  %864 = vmatpush2.msra.mxu0 0.0
  %865 = vmatprep.subr.mxu0 0.0
  %866 = vmatpush2.msra.mxu0 0.0
  %867 = vmatprep.subr.mxu0 0.0
  %868 = vmatpush2.msra.mxu0 0.0
  %869 = vmatprep.subr.mxu0 0.0
  %870 = vmatpush2.msra.mxu0 0.0
  %871 = vmatprep.subr.mxu0 0.0
  %872 = vmatpush2.msra.mxu0 0.0
  %873 = vmatprep.subr.mxu0 0.0
  %874 = vmatpush2.msra.mxu0 0.0
  %875 = vmatprep.subr.mxu0 0.0
  %876 = vmatpush2.msra.mxu0 0.0
  %877 = vmatprep.subr.mxu0 0.0
  %878 = vmatpush2.msra.mxu0 0.0
  %879 = vmatprep.subr.mxu0 0.0
  %880 = vmatpush2.msra.mxu0 0.0
  %881 = vmatprep.subr.mxu0 0.0
  %882 = vmatpush2.msra.mxu0 0.0
  %883 = vmatprep.subr.mxu0 0.0
  %884 = vmatpush2.msra.mxu0 0.0
  %885 = vmatprep.subr.mxu0 0.0
  %886 = vmatpush2.msra.mxu0 0.0
  %887 = vmatprep.mubr.f32.mxu0 0.0
  %888 = vmatmul.mubr.f32.gmra.mxu0 %v679
  %v889 = vpop.f32.mrf.mxu0
  %v890 = vadd.f32 %v675, %v889
  %v891 = vpop.f32.mrf.mxu0
  %892 = vdwg.mxu0
  %s893 = scalar_lea.vmem %s4, 16
  %v894 = vld [vmem:[%s893] sm:$0xff]
  %895 = vrot.lane.b32.xlu0 %v424, 126
  %v896 = vpop.permute.xlu0 %895
  %897 = vrot.lane.b32.xlu0 %v425, 126
  %v898 = vpop.permute.xlu0 %897
  %899 = vrot.lane.b32.xlu0 %v426, 126
  %v900 = vpop.permute.xlu0 %899
  %901 = vrot.lane.b32.xlu0 %v427, 126
  %v902 = vpop.permute.xlu0 %901
  %903 = vrot.lane.b32.xlu0 %v428, 126
  %v904 = vpop.permute.xlu0 %903
  %905 = vrot.lane.b32.xlu0 %v429, 126
  %v906 = vpop.permute.xlu0 %905
  %vm907 = vcmask 1031168
  %v908 = vsel %vm907, %v896, %v898
  %v909 = vsel %vm907, %v898, %v900
  %v910 = vsel %vm907, %v900, %v902
  %v911 = vsel %vm907, %v902, %v904
  %v912 = vsel %vm907, %v904, %v906
  %v919 = vsel %vm462, %v894, 0
  %921 = vmatprep.subr.mxu0 0.0
  %922 = vmatpush1.msra.mxu0 0.0
  %923 = vmatprep.subr.mxu0 0.0
  %924 = vmatpush1.msra.mxu0 0.0
  %925 = vmatprep.subr.mxu0 0.0
  %926 = vmatpush1.msra.mxu0 0.0
  %927 = vmatprep.subr.mxu0 0.0
  %928 = vmatpush1.msra.mxu0 0.0
  %929 = vmatprep.subr.mxu0 0.0
  %930 = vmatpush1.msra.mxu0 0.0
  %931 = vmatprep.subr.mxu0 0.0
  %932 = vmatpush1.msra.mxu0 0.0
  %933 = vmatprep.subr.mxu0 0.0
  %934 = vmatpush1.msra.mxu0 0.0
  %935 = vmatprep.subr.mxu0 0.0
  %936 = vmatpush1.msra.mxu0 0.0
  %937 = vmatprep.subr.mxu0 0.0
  %938 = vmatpush1.msra.mxu0 0.0
  %939 = vmatprep.subr.mxu0 0.0
  %940 = vmatpush1.msra.mxu0 0.0
  %941 = vmatprep.subr.mxu0 0.0
  %942 = vmatpush1.msra.mxu0 0.0
  %943 = vmatprep.subr.mxu0 0.0
  %944 = vmatpush1.msra.mxu0 0.0
  %945 = vmatprep.subr.mxu0 0.0
  %946 = vmatpush1.msra.mxu0 0.0
  %947 = vmatprep.subr.mxu0 0.0
  %948 = vmatpush1.msra.mxu0 0.0
  %949 = vmatprep.subr.mxu0 0.0
  %950 = vmatpush1.msra.mxu0 0.0
  %951 = vmatprep.subr.mxu0 %v909
  %952 = vmatpush1.msra.mxu0 %v908
  %953 = vmatprep.subr.mxu0 0.0
  %954 = vmatpush2.msra.mxu0 0.0
  %955 = vmatprep.subr.mxu0 0.0
  %956 = vmatpush2.msra.mxu0 0.0
  %957 = vmatprep.subr.mxu0 0.0
  %958 = vmatpush2.msra.mxu0 0.0
  %959 = vmatprep.subr.mxu0 0.0
  %960 = vmatpush2.msra.mxu0 0.0
  %961 = vmatprep.subr.mxu0 0.0
  %962 = vmatpush2.msra.mxu0 0.0
  %963 = vmatprep.subr.mxu0 0.0
  %964 = vmatpush2.msra.mxu0 0.0
  %965 = vmatprep.subr.mxu0 0.0
  %966 = vmatpush2.msra.mxu0 0.0
  %967 = vmatprep.subr.mxu0 0.0
  %968 = vmatpush2.msra.mxu0 0.0
  %969 = vmatprep.subr.mxu0 0.0
  %970 = vmatpush2.msra.mxu0 0.0
  %971 = vmatprep.subr.mxu0 0.0
  %972 = vmatpush2.msra.mxu0 0.0
  %973 = vmatprep.subr.mxu0 0.0
  %974 = vmatpush2.msra.mxu0 0.0
  %975 = vmatprep.subr.mxu0 0.0
  %976 = vmatpush2.msra.mxu0 0.0
  %977 = vmatprep.subr.mxu0 0.0
  %978 = vmatpush2.msra.mxu0 0.0
  %979 = vmatprep.subr.mxu0 0.0
  %980 = vmatpush2.msra.mxu0 0.0
  %981 = vmatprep.subr.mxu0 0.0
  %982 = vmatpush2.msra.mxu0 0.0
  %983 = vmatprep.subr.mxu0 0.0
  %984 = vmatpush2.msra.mxu0 0.0
  %985 = vmatprep.mubr.f32.mxu0 0.0
  %986 = vmatmul.mubr.f32.gmra.mxu0 %v919
  %v987 = vpop.f32.mrf.mxu0
  %v988 = vadd.f32 0.0, %v987
  %v989 = vpop.f32.mrf.mxu0
  %v990 = vadd.f32 0.0, %v989
  %991 = vdwg.mxu0
  %992 = vmatprep.subr.mxu0 0.0
  %993 = vmatpush1.msra.mxu0 0.0
  %994 = vmatprep.subr.mxu0 0.0
  %995 = vmatpush1.msra.mxu0 0.0
  %996 = vmatprep.subr.mxu0 0.0
  %997 = vmatpush1.msra.mxu0 0.0
  %998 = vmatprep.subr.mxu0 0.0
  %999 = vmatpush1.msra.mxu0 0.0
  %1000 = vmatprep.subr.mxu0 0.0
  %1001 = vmatpush1.msra.mxu0 0.0
  %1002 = vmatprep.subr.mxu0 0.0
  %1003 = vmatpush1.msra.mxu0 0.0
  %1004 = vmatprep.subr.mxu0 0.0
  %1005 = vmatpush1.msra.mxu0 0.0
  %1006 = vmatprep.subr.mxu0 0.0
  %1007 = vmatpush1.msra.mxu0 0.0
  %1008 = vmatprep.subr.mxu0 0.0
  %1009 = vmatpush1.msra.mxu0 0.0
  %1010 = vmatprep.subr.mxu0 0.0
  %1011 = vmatpush1.msra.mxu0 0.0
  %1012 = vmatprep.subr.mxu0 0.0
  %1013 = vmatpush1.msra.mxu0 0.0
  %1014 = vmatprep.subr.mxu0 0.0
  %1015 = vmatpush1.msra.mxu0 0.0
  %1016 = vmatprep.subr.mxu0 0.0
  %1017 = vmatpush1.msra.mxu0 0.0
  %1018 = vmatprep.subr.mxu0 0.0
  %1019 = vmatpush1.msra.mxu0 0.0
  %1020 = vmatprep.subr.mxu0 0.0
  %1021 = vmatpush1.msra.mxu0 0.0
  %1022 = vmatprep.subr.mxu0 %v911
  %1023 = vmatpush1.msra.mxu0 %v910
  %1024 = vmatprep.subr.mxu0 0.0
  %1025 = vmatpush2.msra.mxu0 0.0
  %1026 = vmatprep.subr.mxu0 0.0
  %1027 = vmatpush2.msra.mxu0 0.0
  %1028 = vmatprep.subr.mxu0 0.0
  %1029 = vmatpush2.msra.mxu0 0.0
  %1030 = vmatprep.subr.mxu0 0.0
  %1031 = vmatpush2.msra.mxu0 0.0
  %1032 = vmatprep.subr.mxu0 0.0
  %1033 = vmatpush2.msra.mxu0 0.0
  %1034 = vmatprep.subr.mxu0 0.0
  %1035 = vmatpush2.msra.mxu0 0.0
  %1036 = vmatprep.subr.mxu0 0.0
  %1037 = vmatpush2.msra.mxu0 0.0
  %1038 = vmatprep.subr.mxu0 0.0
  %1039 = vmatpush2.msra.mxu0 0.0
  %1040 = vmatprep.subr.mxu0 0.0
  %1041 = vmatpush2.msra.mxu0 0.0
  %1042 = vmatprep.subr.mxu0 0.0
  %1043 = vmatpush2.msra.mxu0 0.0
  %1044 = vmatprep.subr.mxu0 0.0
  %1045 = vmatpush2.msra.mxu0 0.0
  %1046 = vmatprep.subr.mxu0 0.0
  %1047 = vmatpush2.msra.mxu0 0.0
  %1048 = vmatprep.subr.mxu0 0.0
  %1049 = vmatpush2.msra.mxu0 0.0
  %1050 = vmatprep.subr.mxu0 0.0
  %1051 = vmatpush2.msra.mxu0 0.0
  %1052 = vmatprep.subr.mxu0 0.0
  %1053 = vmatpush2.msra.mxu0 0.0
  %1054 = vmatprep.subr.mxu0 0.0
  %1055 = vmatpush2.msra.mxu0 0.0
  %1056 = vmatprep.mubr.f32.mxu0 0.0
  %1057 = vmatmul.mubr.f32.gmra.mxu0 %v919
  %v1058 = vpop.f32.mrf.mxu0
  %v1059 = vadd.f32 0.0, %v1058
  %v1060 = vpop.f32.mrf.mxu0
  %v1061 = vadd.f32 0.0, %v1060
  %1062 = vdwg.mxu0
  %1063 = vmatprep.subr.mxu0 0.0
  %1064 = vmatpush1.msra.mxu0 0.0
  %1065 = vmatprep.subr.mxu0 0.0
  %1066 = vmatpush1.msra.mxu0 0.0
  %1067 = vmatprep.subr.mxu0 0.0
  %1068 = vmatpush1.msra.mxu0 0.0
  %1069 = vmatprep.subr.mxu0 0.0
  %1070 = vmatpush1.msra.mxu0 0.0
  %1071 = vmatprep.subr.mxu0 0.0
  %1072 = vmatpush1.msra.mxu0 0.0
  %1073 = vmatprep.subr.mxu0 0.0
  %1074 = vmatpush1.msra.mxu0 0.0
  %1075 = vmatprep.subr.mxu0 0.0
  %1076 = vmatpush1.msra.mxu0 0.0
  %1077 = vmatprep.subr.mxu0 0.0
  %1078 = vmatpush1.msra.mxu0 0.0
  %1079 = vmatprep.subr.mxu0 0.0
  %1080 = vmatpush1.msra.mxu0 0.0
  %1081 = vmatprep.subr.mxu0 0.0
  %1082 = vmatpush1.msra.mxu0 0.0
  %1083 = vmatprep.subr.mxu0 0.0
  %1084 = vmatpush1.msra.mxu0 0.0
  %1085 = vmatprep.subr.mxu0 0.0
  %1086 = vmatpush1.msra.mxu0 0.0
  %1087 = vmatprep.subr.mxu0 0.0
  %1088 = vmatpush1.msra.mxu0 0.0
  %1089 = vmatprep.subr.mxu0 0.0
  %1090 = vmatpush1.msra.mxu0 0.0
  %1091 = vmatprep.subr.mxu0 0.0
  %1092 = vmatpush1.msra.mxu0 0.0
  %1093 = vmatprep.subr.mxu0 0.0
  %1094 = vmatpush1.msra.mxu0 %v912
  %1095 = vmatprep.subr.mxu0 0.0
  %1096 = vmatpush2.msra.mxu0 0.0
  %1097 = vmatprep.subr.mxu0 0.0
  %1098 = vmatpush2.msra.mxu0 0.0
  %1099 = vmatprep.subr.mxu0 0.0
  %1100 = vmatpush2.msra.mxu0 0.0
  %1101 = vmatprep.subr.mxu0 0.0
  %1102 = vmatpush2.msra.mxu0 0.0
  %1103 = vmatprep.subr.mxu0 0.0
  %1104 = vmatpush2.msra.mxu0 0.0
  %1105 = vmatprep.subr.mxu0 0.0
  %1106 = vmatpush2.msra.mxu0 0.0
  %1107 = vmatprep.subr.mxu0 0.0
  %1108 = vmatpush2.msra.mxu0 0.0
  %1109 = vmatprep.subr.mxu0 0.0
  %1110 = vmatpush2.msra.mxu0 0.0
  %1111 = vmatprep.subr.mxu0 0.0
  %1112 = vmatpush2.msra.mxu0 0.0
  %1113 = vmatprep.subr.mxu0 0.0
  %1114 = vmatpush2.msra.mxu0 0.0
  %1115 = vmatprep.subr.mxu0 0.0
  %1116 = vmatpush2.msra.mxu0 0.0
  %1117 = vmatprep.subr.mxu0 0.0
  %1118 = vmatpush2.msra.mxu0 0.0
  %1119 = vmatprep.subr.mxu0 0.0
  %1120 = vmatpush2.msra.mxu0 0.0
  %1121 = vmatprep.subr.mxu0 0.0
  %1122 = vmatpush2.msra.mxu0 0.0
  %1123 = vmatprep.subr.mxu0 0.0
  %1124 = vmatpush2.msra.mxu0 0.0
  %1125 = vmatprep.subr.mxu0 0.0
  %1126 = vmatpush2.msra.mxu0 0.0
  %1127 = vmatprep.mubr.f32.mxu0 0.0
  %1128 = vmatmul.mubr.f32.gmra.mxu0 %v919
  %v1129 = vpop.f32.mrf.mxu0
  %v1130 = vadd.f32 0.0, %v1129
  %v1131 = vpop.f32.mrf.mxu0
  %1132 = vdwg.mxu0
  %v1133 = vadd.f32 %v748, %v988
  %v1134 = vadd.f32 %v750, %v990
  %v1135 = vadd.f32 %v819, %v1059
  %v1136 = vadd.f32 %v821, %v1061
  %v1137 = vadd.f32 %v890, %v1130
  %s1138 = scalar_lea.vmem %s4, 24
  %v1139 = vld [vmem:[%s1138] sm:$0xff]
  %1140 = vrot.lane.b32.xlu0 %v424, 125
  %v1141 = vpop.permute.xlu0 %1140
  %1142 = vrot.lane.b32.xlu0 %v425, 125
  %v1143 = vpop.permute.xlu0 %1142
  %1144 = vrot.lane.b32.xlu0 %v426, 125
  %v1145 = vpop.permute.xlu0 %1144
  %1146 = vrot.lane.b32.xlu0 %v427, 125
  %v1147 = vpop.permute.xlu0 %1146
  %1148 = vrot.lane.b32.xlu0 %v428, 125
  %v1149 = vpop.permute.xlu0 %1148
  %1150 = vrot.lane.b32.xlu0 %v429, 125
  %v1151 = vpop.permute.xlu0 %1150
  %vm1152 = vcmask 1022976
  %v1153 = vsel %vm1152, %v1141, %v1143
  %v1154 = vsel %vm1152, %v1143, %v1145
  %v1155 = vsel %vm1152, %v1145, %v1147
  %v1156 = vsel %vm1152, %v1147, %v1149
  %v1157 = vsel %vm1152, %v1149, %v1151
  %v1164 = vsel %vm462, %v1139, 0
  %1166 = vmatprep.subr.mxu0 0.0
  %1167 = vmatpush1.msra.mxu0 0.0
  %1168 = vmatprep.subr.mxu0 0.0
  %1169 = vmatpush1.msra.mxu0 0.0
  %1170 = vmatprep.subr.mxu0 0.0
  %1171 = vmatpush1.msra.mxu0 0.0
  %1172 = vmatprep.subr.mxu0 0.0
  %1173 = vmatpush1.msra.mxu0 0.0
  %1174 = vmatprep.subr.mxu0 0.0
  %1175 = vmatpush1.msra.mxu0 0.0
  %1176 = vmatprep.subr.mxu0 0.0
  %1177 = vmatpush1.msra.mxu0 0.0
  %1178 = vmatprep.subr.mxu0 0.0
  %1179 = vmatpush1.msra.mxu0 0.0
  %1180 = vmatprep.subr.mxu0 0.0
  %1181 = vmatpush1.msra.mxu0 0.0
  %1182 = vmatprep.subr.mxu0 0.0
  %1183 = vmatpush1.msra.mxu0 0.0
  %1184 = vmatprep.subr.mxu0 0.0
  %1185 = vmatpush1.msra.mxu0 0.0
  %1186 = vmatprep.subr.mxu0 0.0
  %1187 = vmatpush1.msra.mxu0 0.0
  %1188 = vmatprep.subr.mxu0 0.0
  %1189 = vmatpush1.msra.mxu0 0.0
  %1190 = vmatprep.subr.mxu0 0.0
  %1191 = vmatpush1.msra.mxu0 0.0
  %1192 = vmatprep.subr.mxu0 0.0
  %1193 = vmatpush1.msra.mxu0 0.0
  %1194 = vmatprep.subr.mxu0 0.0
  %1195 = vmatpush1.msra.mxu0 0.0
  %1196 = vmatprep.subr.mxu0 %v1154
  %1197 = vmatpush1.msra.mxu0 %v1153
  %1198 = vmatprep.subr.mxu0 0.0
  %1199 = vmatpush2.msra.mxu0 0.0
  %1200 = vmatprep.subr.mxu0 0.0
  %1201 = vmatpush2.msra.mxu0 0.0
  %1202 = vmatprep.subr.mxu0 0.0
  %1203 = vmatpush2.msra.mxu0 0.0
  %1204 = vmatprep.subr.mxu0 0.0
  %1205 = vmatpush2.msra.mxu0 0.0
  %1206 = vmatprep.subr.mxu0 0.0
  %1207 = vmatpush2.msra.mxu0 0.0
  %1208 = vmatprep.subr.mxu0 0.0
  %1209 = vmatpush2.msra.mxu0 0.0
  %1210 = vmatprep.subr.mxu0 0.0
  %1211 = vmatpush2.msra.mxu0 0.0
  %1212 = vmatprep.subr.mxu0 0.0
  %1213 = vmatpush2.msra.mxu0 0.0
  %1214 = vmatprep.subr.mxu0 0.0
  %1215 = vmatpush2.msra.mxu0 0.0
  %1216 = vmatprep.subr.mxu0 0.0
  %1217 = vmatpush2.msra.mxu0 0.0
  %1218 = vmatprep.subr.mxu0 0.0
  %1219 = vmatpush2.msra.mxu0 0.0
  %1220 = vmatprep.subr.mxu0 0.0
  %1221 = vmatpush2.msra.mxu0 0.0
  %1222 = vmatprep.subr.mxu0 0.0
  %1223 = vmatpush2.msra.mxu0 0.0
  %1224 = vmatprep.subr.mxu0 0.0
  %1225 = vmatpush2.msra.mxu0 0.0
  %1226 = vmatprep.subr.mxu0 0.0
  %1227 = vmatpush2.msra.mxu0 0.0
  %1228 = vmatprep.subr.mxu0 0.0
  %1229 = vmatpush2.msra.mxu0 0.0
  %1230 = vmatprep.mubr.f32.mxu0 0.0
  %1231 = vmatmul.mubr.f32.gmra.mxu0 %v1164
  %v1232 = vpop.f32.mrf.mxu0
  %v1233 = vadd.f32 0.0, %v1232
  %v1234 = vpop.f32.mrf.mxu0
  %v1235 = vadd.f32 0.0, %v1234
  %1236 = vdwg.mxu0
  %1237 = vmatprep.subr.mxu0 0.0
  %1238 = vmatpush1.msra.mxu0 0.0
  %1239 = vmatprep.subr.mxu0 0.0
  %1240 = vmatpush1.msra.mxu0 0.0
  %1241 = vmatprep.subr.mxu0 0.0
  %1242 = vmatpush1.msra.mxu0 0.0
  %1243 = vmatprep.subr.mxu0 0.0
  %1244 = vmatpush1.msra.mxu0 0.0
  %1245 = vmatprep.subr.mxu0 0.0
  %1246 = vmatpush1.msra.mxu0 0.0
  %1247 = vmatprep.subr.mxu0 0.0
  %1248 = vmatpush1.msra.mxu0 0.0
  %1249 = vmatprep.subr.mxu0 0.0
  %1250 = vmatpush1.msra.mxu0 0.0
  %1251 = vmatprep.subr.mxu0 0.0
  %1252 = vmatpush1.msra.mxu0 0.0
  %1253 = vmatprep.subr.mxu0 0.0
  %1254 = vmatpush1.msra.mxu0 0.0
  %1255 = vmatprep.subr.mxu0 0.0
  %1256 = vmatpush1.msra.mxu0 0.0
  %1257 = vmatprep.subr.mxu0 0.0
  %1258 = vmatpush1.msra.mxu0 0.0
  %1259 = vmatprep.subr.mxu0 0.0
  %1260 = vmatpush1.msra.mxu0 0.0
  %1261 = vmatprep.subr.mxu0 0.0
  %1262 = vmatpush1.msra.mxu0 0.0
  %1263 = vmatprep.subr.mxu0 0.0
  %1264 = vmatpush1.msra.mxu0 0.0
  %1265 = vmatprep.subr.mxu0 0.0
  %1266 = vmatpush1.msra.mxu0 0.0
  %1267 = vmatprep.subr.mxu0 %v1156
  %1268 = vmatpush1.msra.mxu0 %v1155
  %1269 = vmatprep.subr.mxu0 0.0
  %1270 = vmatpush2.msra.mxu0 0.0
  %1271 = vmatprep.subr.mxu0 0.0
  %1272 = vmatpush2.msra.mxu0 0.0
  %1273 = vmatprep.subr.mxu0 0.0
  %1274 = vmatpush2.msra.mxu0 0.0
  %1275 = vmatprep.subr.mxu0 0.0
  %1276 = vmatpush2.msra.mxu0 0.0
  %1277 = vmatprep.subr.mxu0 0.0
  %1278 = vmatpush2.msra.mxu0 0.0
  %1279 = vmatprep.subr.mxu0 0.0
  %1280 = vmatpush2.msra.mxu0 0.0
  %1281 = vmatprep.subr.mxu0 0.0
  %1282 = vmatpush2.msra.mxu0 0.0
  %1283 = vmatprep.subr.mxu0 0.0
  %1284 = vmatpush2.msra.mxu0 0.0
  %1285 = vmatprep.subr.mxu0 0.0
  %1286 = vmatpush2.msra.mxu0 0.0
  %1287 = vmatprep.subr.mxu0 0.0
  %1288 = vmatpush2.msra.mxu0 0.0
  %1289 = vmatprep.subr.mxu0 0.0
  %1290 = vmatpush2.msra.mxu0 0.0
  %1291 = vmatprep.subr.mxu0 0.0
  %1292 = vmatpush2.msra.mxu0 0.0
  %1293 = vmatprep.subr.mxu0 0.0
  %1294 = vmatpush2.msra.mxu0 0.0
  %1295 = vmatprep.subr.mxu0 0.0
  %1296 = vmatpush2.msra.mxu0 0.0
  %1297 = vmatprep.subr.mxu0 0.0
  %1298 = vmatpush2.msra.mxu0 0.0
  %1299 = vmatprep.subr.mxu0 0.0
  %1300 = vmatpush2.msra.mxu0 0.0
  %1301 = vmatprep.mubr.f32.mxu0 0.0
  %1302 = vmatmul.mubr.f32.gmra.mxu0 %v1164
  %v1303 = vpop.f32.mrf.mxu0
  %v1304 = vadd.f32 0.0, %v1303
  %v1305 = vpop.f32.mrf.mxu0
  %v1306 = vadd.f32 0.0, %v1305
  %1307 = vdwg.mxu0
  %1308 = vmatprep.subr.mxu0 0.0
  %1309 = vmatpush1.msra.mxu0 0.0
  %1310 = vmatprep.subr.mxu0 0.0
  %1311 = vmatpush1.msra.mxu0 0.0
  %1312 = vmatprep.subr.mxu0 0.0
  %1313 = vmatpush1.msra.mxu0 0.0
  %1314 = vmatprep.subr.mxu0 0.0
  %1315 = vmatpush1.msra.mxu0 0.0
  %1316 = vmatprep.subr.mxu0 0.0
  %1317 = vmatpush1.msra.mxu0 0.0
  %1318 = vmatprep.subr.mxu0 0.0
  %1319 = vmatpush1.msra.mxu0 0.0
  %1320 = vmatprep.subr.mxu0 0.0
  %1321 = vmatpush1.msra.mxu0 0.0
  %1322 = vmatprep.subr.mxu0 0.0
  %1323 = vmatpush1.msra.mxu0 0.0
  %1324 = vmatprep.subr.mxu0 0.0
  %1325 = vmatpush1.msra.mxu0 0.0
  %1326 = vmatprep.subr.mxu0 0.0
  %1327 = vmatpush1.msra.mxu0 0.0
  %1328 = vmatprep.subr.mxu0 0.0
  %1329 = vmatpush1.msra.mxu0 0.0
  %1330 = vmatprep.subr.mxu0 0.0
  %1331 = vmatpush1.msra.mxu0 0.0
  %1332 = vmatprep.subr.mxu0 0.0
  %1333 = vmatpush1.msra.mxu0 0.0
  %1334 = vmatprep.subr.mxu0 0.0
  %1335 = vmatpush1.msra.mxu0 0.0
  %1336 = vmatprep.subr.mxu0 0.0
  %1337 = vmatpush1.msra.mxu0 0.0
  %1338 = vmatprep.subr.mxu0 0.0
  %1339 = vmatpush1.msra.mxu0 %v1157
  %1340 = vmatprep.subr.mxu0 0.0
  %1341 = vmatpush2.msra.mxu0 0.0
  %1342 = vmatprep.subr.mxu0 0.0
  %1343 = vmatpush2.msra.mxu0 0.0
  %1344 = vmatprep.subr.mxu0 0.0
  %1345 = vmatpush2.msra.mxu0 0.0
  %1346 = vmatprep.subr.mxu0 0.0
  %1347 = vmatpush2.msra.mxu0 0.0
  %1348 = vmatprep.subr.mxu0 0.0
  %1349 = vmatpush2.msra.mxu0 0.0
  %1350 = vmatprep.subr.mxu0 0.0
  %1351 = vmatpush2.msra.mxu0 0.0
  %1352 = vmatprep.subr.mxu0 0.0
  %1353 = vmatpush2.msra.mxu0 0.0
  %1354 = vmatprep.subr.mxu0 0.0
  %1355 = vmatpush2.msra.mxu0 0.0
  %1356 = vmatprep.subr.mxu0 0.0
  %1357 = vmatpush2.msra.mxu0 0.0
  %1358 = vmatprep.subr.mxu0 0.0
  %1359 = vmatpush2.msra.mxu0 0.0
  %1360 = vmatprep.subr.mxu0 0.0
  %1361 = vmatpush2.msra.mxu0 0.0
  %1362 = vmatprep.subr.mxu0 0.0
  %1363 = vmatpush2.msra.mxu0 0.0
  %1364 = vmatprep.subr.mxu0 0.0
  %1365 = vmatpush2.msra.mxu0 0.0
  %1366 = vmatprep.subr.mxu0 0.0
  %1367 = vmatpush2.msra.mxu0 0.0
  %1368 = vmatprep.subr.mxu0 0.0
  %1369 = vmatpush2.msra.mxu0 0.0
  %1370 = vmatprep.subr.mxu0 0.0
  %1371 = vmatpush2.msra.mxu0 0.0
  %1372 = vmatprep.mubr.f32.mxu0 0.0
  %1373 = vmatmul.mubr.f32.gmra.mxu0 %v1164
  %v1374 = vpop.f32.mrf.mxu0
  %v1375 = vadd.f32 0.0, %v1374
  %v1376 = vpop.f32.mrf.mxu0
  %1377 = vdwg.mxu0
  %v1378 = vadd.f32 %v1133, %v1233
  %v1379 = vadd.f32 %v1134, %v1235
  %v1380 = vadd.f32 %v1135, %v1304
  %v1381 = vadd.f32 %v1136, %v1306
  %v1382 = vadd.f32 %v1137, %v1375
  %s1383 = scalar_lea.vmem %s4, 32
  %v1384 = vld [vmem:[%s1383] sm:$0xff]
  %1385 = vrot.lane.b32.xlu0 %v424, 124
  %v1386 = vpop.permute.xlu0 %1385
  %1387 = vrot.lane.b32.xlu0 %v425, 124
  %v1388 = vpop.permute.xlu0 %1387
  %1389 = vrot.lane.b32.xlu0 %v426, 124
  %v1390 = vpop.permute.xlu0 %1389
  %1391 = vrot.lane.b32.xlu0 %v427, 124
  %v1392 = vpop.permute.xlu0 %1391
  %1393 = vrot.lane.b32.xlu0 %v428, 124
  %v1394 = vpop.permute.xlu0 %1393
  %1395 = vrot.lane.b32.xlu0 %v429, 124
  %v1396 = vpop.permute.xlu0 %1395
  %vm1397 = vcmask 1014784
  %v1398 = vsel %vm1397, %v1386, %v1388
  %v1399 = vsel %vm1397, %v1388, %v1390
  %v1400 = vsel %vm1397, %v1390, %v1392
  %v1401 = vsel %vm1397, %v1392, %v1394
  %v1402 = vsel %vm1397, %v1394, %v1396
  %v1409 = vsel %vm462, %v1384, 0
  %1411 = vmatprep.subr.mxu0 0.0
  %1412 = vmatpush1.msra.mxu0 0.0
  %1413 = vmatprep.subr.mxu0 0.0
  %1414 = vmatpush1.msra.mxu0 0.0
  %1415 = vmatprep.subr.mxu0 0.0
  %1416 = vmatpush1.msra.mxu0 0.0
  %1417 = vmatprep.subr.mxu0 0.0
  %1418 = vmatpush1.msra.mxu0 0.0
  %1419 = vmatprep.subr.mxu0 0.0
  %1420 = vmatpush1.msra.mxu0 0.0
  %1421 = vmatprep.subr.mxu0 0.0
  %1422 = vmatpush1.msra.mxu0 0.0
  %1423 = vmatprep.subr.mxu0 0.0
  %1424 = vmatpush1.msra.mxu0 0.0
  %1425 = vmatprep.subr.mxu0 0.0
  %1426 = vmatpush1.msra.mxu0 0.0
  %1427 = vmatprep.subr.mxu0 0.0
  %1428 = vmatpush1.msra.mxu0 0.0
  %1429 = vmatprep.subr.mxu0 0.0
  %1430 = vmatpush1.msra.mxu0 0.0
  %1431 = vmatprep.subr.mxu0 0.0
  %1432 = vmatpush1.msra.mxu0 0.0
  %1433 = vmatprep.subr.mxu0 0.0
  %1434 = vmatpush1.msra.mxu0 0.0
  %1435 = vmatprep.subr.mxu0 0.0
  %1436 = vmatpush1.msra.mxu0 0.0
  %1437 = vmatprep.subr.mxu0 0.0
  %1438 = vmatpush1.msra.mxu0 0.0
  %1439 = vmatprep.subr.mxu0 0.0
  %1440 = vmatpush1.msra.mxu0 0.0
  %1441 = vmatprep.subr.mxu0 %v1399
  %1442 = vmatpush1.msra.mxu0 %v1398
  %1443 = vmatprep.subr.mxu0 0.0
  %1444 = vmatpush2.msra.mxu0 0.0
  %1445 = vmatprep.subr.mxu0 0.0
  %1446 = vmatpush2.msra.mxu0 0.0
  %1447 = vmatprep.subr.mxu0 0.0
  %1448 = vmatpush2.msra.mxu0 0.0
  %1449 = vmatprep.subr.mxu0 0.0
  %1450 = vmatpush2.msra.mxu0 0.0
  %1451 = vmatprep.subr.mxu0 0.0
  %1452 = vmatpush2.msra.mxu0 0.0
  %1453 = vmatprep.subr.mxu0 0.0
  %1454 = vmatpush2.msra.mxu0 0.0
  %1455 = vmatprep.subr.mxu0 0.0
  %1456 = vmatpush2.msra.mxu0 0.0
  %1457 = vmatprep.subr.mxu0 0.0
  %1458 = vmatpush2.msra.mxu0 0.0
  %1459 = vmatprep.subr.mxu0 0.0
  %1460 = vmatpush2.msra.mxu0 0.0
  %1461 = vmatprep.subr.mxu0 0.0
  %1462 = vmatpush2.msra.mxu0 0.0
  %1463 = vmatprep.subr.mxu0 0.0
  %1464 = vmatpush2.msra.mxu0 0.0
  %1465 = vmatprep.subr.mxu0 0.0
  %1466 = vmatpush2.msra.mxu0 0.0
  %1467 = vmatprep.subr.mxu0 0.0
  %1468 = vmatpush2.msra.mxu0 0.0
  %1469 = vmatprep.subr.mxu0 0.0
  %1470 = vmatpush2.msra.mxu0 0.0
  %1471 = vmatprep.subr.mxu0 0.0
  %1472 = vmatpush2.msra.mxu0 0.0
  %1473 = vmatprep.subr.mxu0 0.0
  %1474 = vmatpush2.msra.mxu0 0.0
  %1475 = vmatprep.mubr.f32.mxu0 0.0
  %1476 = vmatmul.mubr.f32.gmra.mxu0 %v1409
  %v1477 = vpop.f32.mrf.mxu0
  %v1478 = vadd.f32 0.0, %v1477
  %v1479 = vpop.f32.mrf.mxu0
  %v1480 = vadd.f32 0.0, %v1479
  %1481 = vdwg.mxu0
  %1482 = vmatprep.subr.mxu0 0.0
  %1483 = vmatpush1.msra.mxu0 0.0
  %1484 = vmatprep.subr.mxu0 0.0
  %1485 = vmatpush1.msra.mxu0 0.0
  %1486 = vmatprep.subr.mxu0 0.0
  %1487 = vmatpush1.msra.mxu0 0.0
  %1488 = vmatprep.subr.mxu0 0.0
  %1489 = vmatpush1.msra.mxu0 0.0
  %1490 = vmatprep.subr.mxu0 0.0
  %1491 = vmatpush1.msra.mxu0 0.0
  %1492 = vmatprep.subr.mxu0 0.0
  %1493 = vmatpush1.msra.mxu0 0.0
  %1494 = vmatprep.subr.mxu0 0.0
  %1495 = vmatpush1.msra.mxu0 0.0
  %1496 = vmatprep.subr.mxu0 0.0
  %1497 = vmatpush1.msra.mxu0 0.0
  %1498 = vmatprep.subr.mxu0 0.0
  %1499 = vmatpush1.msra.mxu0 0.0
  %1500 = vmatprep.subr.mxu0 0.0
  %1501 = vmatpush1.msra.mxu0 0.0
  %1502 = vmatprep.subr.mxu0 0.0
  %1503 = vmatpush1.msra.mxu0 0.0
  %1504 = vmatprep.subr.mxu0 0.0
  %1505 = vmatpush1.msra.mxu0 0.0
  %1506 = vmatprep.subr.mxu0 0.0
  %1507 = vmatpush1.msra.mxu0 0.0
  %1508 = vmatprep.subr.mxu0 0.0
  %1509 = vmatpush1.msra.mxu0 0.0
  %1510 = vmatprep.subr.mxu0 0.0
  %1511 = vmatpush1.msra.mxu0 0.0
  %1512 = vmatprep.subr.mxu0 %v1401
  %1513 = vmatpush1.msra.mxu0 %v1400
  %1514 = vmatprep.subr.mxu0 0.0
  %1515 = vmatpush2.msra.mxu0 0.0
  %1516 = vmatprep.subr.mxu0 0.0
  %1517 = vmatpush2.msra.mxu0 0.0
  %1518 = vmatprep.subr.mxu0 0.0
  %1519 = vmatpush2.msra.mxu0 0.0
  %1520 = vmatprep.subr.mxu0 0.0
  %1521 = vmatpush2.msra.mxu0 0.0
  %1522 = vmatprep.subr.mxu0 0.0
  %1523 = vmatpush2.msra.mxu0 0.0
  %1524 = vmatprep.subr.mxu0 0.0
  %1525 = vmatpush2.msra.mxu0 0.0
  %1526 = vmatprep.subr.mxu0 0.0
  %1527 = vmatpush2.msra.mxu0 0.0
  %1528 = vmatprep.subr.mxu0 0.0
  %1529 = vmatpush2.msra.mxu0 0.0
  %1530 = vmatprep.subr.mxu0 0.0
  %1531 = vmatpush2.msra.mxu0 0.0
  %1532 = vmatprep.subr.mxu0 0.0
  %1533 = vmatpush2.msra.mxu0 0.0
  %1534 = vmatprep.subr.mxu0 0.0
  %1535 = vmatpush2.msra.mxu0 0.0
  %1536 = vmatprep.subr.mxu0 0.0
  %1537 = vmatpush2.msra.mxu0 0.0
  %1538 = vmatprep.subr.mxu0 0.0
  %1539 = vmatpush2.msra.mxu0 0.0
  %1540 = vmatprep.subr.mxu0 0.0
  %1541 = vmatpush2.msra.mxu0 0.0
  %1542 = vmatprep.subr.mxu0 0.0
  %1543 = vmatpush2.msra.mxu0 0.0
  %1544 = vmatprep.subr.mxu0 0.0
  %1545 = vmatpush2.msra.mxu0 0.0
  %1546 = vmatprep.mubr.f32.mxu0 0.0
  %1547 = vmatmul.mubr.f32.gmra.mxu0 %v1409
  %v1548 = vpop.f32.mrf.mxu0
  %v1549 = vadd.f32 0.0, %v1548
  %v1550 = vpop.f32.mrf.mxu0
  %v1551 = vadd.f32 0.0, %v1550
  %1552 = vdwg.mxu0
  %1553 = vmatprep.subr.mxu0 0.0
  %1554 = vmatpush1.msra.mxu0 0.0
  %1555 = vmatprep.subr.mxu0 0.0
  %1556 = vmatpush1.msra.mxu0 0.0
  %1557 = vmatprep.subr.mxu0 0.0
  %1558 = vmatpush1.msra.mxu0 0.0
  %1559 = vmatprep.subr.mxu0 0.0
  %1560 = vmatpush1.msra.mxu0 0.0
  %1561 = vmatprep.subr.mxu0 0.0
  %1562 = vmatpush1.msra.mxu0 0.0
  %1563 = vmatprep.subr.mxu0 0.0
  %1564 = vmatpush1.msra.mxu0 0.0
  %1565 = vmatprep.subr.mxu0 0.0
  %1566 = vmatpush1.msra.mxu0 0.0
  %1567 = vmatprep.subr.mxu0 0.0
  %1568 = vmatpush1.msra.mxu0 0.0
  %1569 = vmatprep.subr.mxu0 0.0
  %1570 = vmatpush1.msra.mxu0 0.0
  %1571 = vmatprep.subr.mxu0 0.0
  %1572 = vmatpush1.msra.mxu0 0.0
  %1573 = vmatprep.subr.mxu0 0.0
  %1574 = vmatpush1.msra.mxu0 0.0
  %1575 = vmatprep.subr.mxu0 0.0
  %1576 = vmatpush1.msra.mxu0 0.0
  %1577 = vmatprep.subr.mxu0 0.0
  %1578 = vmatpush1.msra.mxu0 0.0
  %1579 = vmatprep.subr.mxu0 0.0
  %1580 = vmatpush1.msra.mxu0 0.0
  %1581 = vmatprep.subr.mxu0 0.0
  %1582 = vmatpush1.msra.mxu0 0.0
  %1583 = vmatprep.subr.mxu0 0.0
  %1584 = vmatpush1.msra.mxu0 %v1402
  %1585 = vmatprep.subr.mxu0 0.0
  %1586 = vmatpush2.msra.mxu0 0.0
  %1587 = vmatprep.subr.mxu0 0.0
  %1588 = vmatpush2.msra.mxu0 0.0
  %1589 = vmatprep.subr.mxu0 0.0
  %1590 = vmatpush2.msra.mxu0 0.0
  %1591 = vmatprep.subr.mxu0 0.0
  %1592 = vmatpush2.msra.mxu0 0.0
  %1593 = vmatprep.subr.mxu0 0.0
  %1594 = vmatpush2.msra.mxu0 0.0
  %1595 = vmatprep.subr.mxu0 0.0
  %1596 = vmatpush2.msra.mxu0 0.0
  %1597 = vmatprep.subr.mxu0 0.0
  %1598 = vmatpush2.msra.mxu0 0.0
  %1599 = vmatprep.subr.mxu0 0.0
  %1600 = vmatpush2.msra.mxu0 0.0
  %1601 = vmatprep.subr.mxu0 0.0
  %1602 = vmatpush2.msra.mxu0 0.0
  %1603 = vmatprep.subr.mxu0 0.0
  %1604 = vmatpush2.msra.mxu0 0.0
  %1605 = vmatprep.subr.mxu0 0.0
  %1606 = vmatpush2.msra.mxu0 0.0
  %1607 = vmatprep.subr.mxu0 0.0
  %1608 = vmatpush2.msra.mxu0 0.0
  %1609 = vmatprep.subr.mxu0 0.0
  %1610 = vmatpush2.msra.mxu0 0.0
  %1611 = vmatprep.subr.mxu0 0.0
  %1612 = vmatpush2.msra.mxu0 0.0
  %1613 = vmatprep.subr.mxu0 0.0
  %1614 = vmatpush2.msra.mxu0 0.0
  %1615 = vmatprep.subr.mxu0 0.0
  %1616 = vmatpush2.msra.mxu0 0.0
  %1617 = vmatprep.mubr.f32.mxu0 0.0
  %1618 = vmatmul.mubr.f32.gmra.mxu0 %v1409
  %v1619 = vpop.f32.mrf.mxu0
  %v1620 = vadd.f32 0.0, %v1619
  %v1621 = vpop.f32.mrf.mxu0
  %1622 = vdwg.mxu0
  %v1623 = vadd.f32 %v1378, %v1478
  %v1624 = vadd.f32 %v1379, %v1480
  %v1625 = vadd.f32 %v1380, %v1549
  %v1626 = vadd.f32 %v1381, %v1551
  %v1627 = vadd.f32 %v1382, %v1620
  %s1628 = scalar_lea.vmem %s4, 40
  %v1629 = vld [vmem:[%s1628] sm:$0xff]
  %1630 = vrot.lane.b32.xlu0 %v424, 104
  %v1631 = vpop.permute.xlu0 %1630
  %1632 = vrot.lane.b32.xlu0 %v425, 104
  %v1633 = vpop.permute.xlu0 %1632
  %1634 = vrot.lane.b32.xlu0 %v426, 104
  %v1635 = vpop.permute.xlu0 %1634
  %1636 = vrot.lane.b32.xlu0 %v427, 104
  %v1637 = vpop.permute.xlu0 %1636
  %1638 = vrot.lane.b32.xlu0 %v428, 104
  %v1639 = vpop.permute.xlu0 %1638
  %1640 = vrot.lane.b32.xlu0 %v429, 104
  %v1641 = vpop.permute.xlu0 %1640
  %vm1642 = vcmask 850944
  %v1643 = vsel %vm1642, %v1631, %v1633
  %v1644 = vsel %vm1642, %v1633, %v1635
  %v1645 = vsel %vm1642, %v1635, %v1637
  %v1646 = vsel %vm1642, %v1637, %v1639
  %v1647 = vsel %vm1642, %v1639, %v1641
  %v1654 = vsel %vm462, %v1629, 0
  %1656 = vmatprep.subr.mxu0 0.0
  %1657 = vmatpush1.msra.mxu0 0.0
  %1658 = vmatprep.subr.mxu0 0.0
  %1659 = vmatpush1.msra.mxu0 0.0
  %1660 = vmatprep.subr.mxu0 0.0
  %1661 = vmatpush1.msra.mxu0 0.0
  %1662 = vmatprep.subr.mxu0 0.0
  %1663 = vmatpush1.msra.mxu0 0.0
  %1664 = vmatprep.subr.mxu0 0.0
  %1665 = vmatpush1.msra.mxu0 0.0
  %1666 = vmatprep.subr.mxu0 0.0
  %1667 = vmatpush1.msra.mxu0 0.0
  %1668 = vmatprep.subr.mxu0 0.0
  %1669 = vmatpush1.msra.mxu0 0.0
  %1670 = vmatprep.subr.mxu0 0.0
  %1671 = vmatpush1.msra.mxu0 0.0
  %1672 = vmatprep.subr.mxu0 0.0
  %1673 = vmatpush1.msra.mxu0 0.0
  %1674 = vmatprep.subr.mxu0 0.0
  %1675 = vmatpush1.msra.mxu0 0.0
  %1676 = vmatprep.subr.mxu0 0.0
  %1677 = vmatpush1.msra.mxu0 0.0
  %1678 = vmatprep.subr.mxu0 0.0
  %1679 = vmatpush1.msra.mxu0 0.0
  %1680 = vmatprep.subr.mxu0 0.0
  %1681 = vmatpush1.msra.mxu0 0.0
  %1682 = vmatprep.subr.mxu0 0.0
  %1683 = vmatpush1.msra.mxu0 0.0
  %1684 = vmatprep.subr.mxu0 0.0
  %1685 = vmatpush1.msra.mxu0 0.0
  %1686 = vmatprep.subr.mxu0 %v1644
  %1687 = vmatpush1.msra.mxu0 %v1643
  %1688 = vmatprep.subr.mxu0 0.0
  %1689 = vmatpush2.msra.mxu0 0.0
  %1690 = vmatprep.subr.mxu0 0.0
  %1691 = vmatpush2.msra.mxu0 0.0
  %1692 = vmatprep.subr.mxu0 0.0
  %1693 = vmatpush2.msra.mxu0 0.0
  %1694 = vmatprep.subr.mxu0 0.0
  %1695 = vmatpush2.msra.mxu0 0.0
  %1696 = vmatprep.subr.mxu0 0.0
  %1697 = vmatpush2.msra.mxu0 0.0
  %1698 = vmatprep.subr.mxu0 0.0
  %1699 = vmatpush2.msra.mxu0 0.0
  %1700 = vmatprep.subr.mxu0 0.0
  %1701 = vmatpush2.msra.mxu0 0.0
  %1702 = vmatprep.subr.mxu0 0.0
  %1703 = vmatpush2.msra.mxu0 0.0
  %1704 = vmatprep.subr.mxu0 0.0
  %1705 = vmatpush2.msra.mxu0 0.0
  %1706 = vmatprep.subr.mxu0 0.0
  %1707 = vmatpush2.msra.mxu0 0.0
  %1708 = vmatprep.subr.mxu0 0.0
  %1709 = vmatpush2.msra.mxu0 0.0
  %1710 = vmatprep.subr.mxu0 0.0
  %1711 = vmatpush2.msra.mxu0 0.0
  %1712 = vmatprep.subr.mxu0 0.0
  %1713 = vmatpush2.msra.mxu0 0.0
  %1714 = vmatprep.subr.mxu0 0.0
  %1715 = vmatpush2.msra.mxu0 0.0
  %1716 = vmatprep.subr.mxu0 0.0
  %1717 = vmatpush2.msra.mxu0 0.0
  %1718 = vmatprep.subr.mxu0 0.0
  %1719 = vmatpush2.msra.mxu0 0.0
  %1720 = vmatprep.mubr.f32.mxu0 0.0
  %1721 = vmatmul.mubr.f32.gmra.mxu0 %v1654
  %v1722 = vpop.f32.mrf.mxu0
  %v1723 = vadd.f32 0.0, %v1722
  %v1724 = vpop.f32.mrf.mxu0
  %v1725 = vadd.f32 0.0, %v1724
  %1726 = vdwg.mxu0
  %1727 = vmatprep.subr.mxu0 0.0
  %1728 = vmatpush1.msra.mxu0 0.0
  %1729 = vmatprep.subr.mxu0 0.0
  %1730 = vmatpush1.msra.mxu0 0.0
  %1731 = vmatprep.subr.mxu0 0.0
  %1732 = vmatpush1.msra.mxu0 0.0
  %1733 = vmatprep.subr.mxu0 0.0
  %1734 = vmatpush1.msra.mxu0 0.0
  %1735 = vmatprep.subr.mxu0 0.0
  %1736 = vmatpush1.msra.mxu0 0.0
  %1737 = vmatprep.subr.mxu0 0.0
  %1738 = vmatpush1.msra.mxu0 0.0
  %1739 = vmatprep.subr.mxu0 0.0
  %1740 = vmatpush1.msra.mxu0 0.0
  %1741 = vmatprep.subr.mxu0 0.0
  %1742 = vmatpush1.msra.mxu0 0.0
  %1743 = vmatprep.subr.mxu0 0.0
  %1744 = vmatpush1.msra.mxu0 0.0
  %1745 = vmatprep.subr.mxu0 0.0
  %1746 = vmatpush1.msra.mxu0 0.0
  %1747 = vmatprep.subr.mxu0 0.0
  %1748 = vmatpush1.msra.mxu0 0.0
  %1749 = vmatprep.subr.mxu0 0.0
  %1750 = vmatpush1.msra.mxu0 0.0
  %1751 = vmatprep.subr.mxu0 0.0
  %1752 = vmatpush1.msra.mxu0 0.0
  %1753 = vmatprep.subr.mxu0 0.0
  %1754 = vmatpush1.msra.mxu0 0.0
  %1755 = vmatprep.subr.mxu0 0.0
  %1756 = vmatpush1.msra.mxu0 0.0
  %1757 = vmatprep.subr.mxu0 %v1646
  %1758 = vmatpush1.msra.mxu0 %v1645
  %1759 = vmatprep.subr.mxu0 0.0
  %1760 = vmatpush2.msra.mxu0 0.0
  %1761 = vmatprep.subr.mxu0 0.0
  %1762 = vmatpush2.msra.mxu0 0.0
  %1763 = vmatprep.subr.mxu0 0.0
  %1764 = vmatpush2.msra.mxu0 0.0
  %1765 = vmatprep.subr.mxu0 0.0
  %1766 = vmatpush2.msra.mxu0 0.0
  %1767 = vmatprep.subr.mxu0 0.0
  %1768 = vmatpush2.msra.mxu0 0.0
  %1769 = vmatprep.subr.mxu0 0.0
  %1770 = vmatpush2.msra.mxu0 0.0
  %1771 = vmatprep.subr.mxu0 0.0
  %1772 = vmatpush2.msra.mxu0 0.0
  %1773 = vmatprep.subr.mxu0 0.0
  %1774 = vmatpush2.msra.mxu0 0.0
  %1775 = vmatprep.subr.mxu0 0.0
  %1776 = vmatpush2.msra.mxu0 0.0
  %1777 = vmatprep.subr.mxu0 0.0
  %1778 = vmatpush2.msra.mxu0 0.0
  %1779 = vmatprep.subr.mxu0 0.0
  %1780 = vmatpush2.msra.mxu0 0.0
  %1781 = vmatprep.subr.mxu0 0.0
  %1782 = vmatpush2.msra.mxu0 0.0
  %1783 = vmatprep.subr.mxu0 0.0
  %1784 = vmatpush2.msra.mxu0 0.0
  %1785 = vmatprep.subr.mxu0 0.0
  %1786 = vmatpush2.msra.mxu0 0.0
  %1787 = vmatprep.subr.mxu0 0.0
  %1788 = vmatpush2.msra.mxu0 0.0
  %1789 = vmatprep.subr.mxu0 0.0
  %1790 = vmatpush2.msra.mxu0 0.0
  %1791 = vmatprep.mubr.f32.mxu0 0.0
  %1792 = vmatmul.mubr.f32.gmra.mxu0 %v1654
  %v1793 = vpop.f32.mrf.mxu0
  %v1794 = vadd.f32 0.0, %v1793
  %v1795 = vpop.f32.mrf.mxu0
  %v1796 = vadd.f32 0.0, %v1795
  %1797 = vdwg.mxu0
  %1798 = vmatprep.subr.mxu0 0.0
  %1799 = vmatpush1.msra.mxu0 0.0
  %1800 = vmatprep.subr.mxu0 0.0
  %1801 = vmatpush1.msra.mxu0 0.0
  %1802 = vmatprep.subr.mxu0 0.0
  %1803 = vmatpush1.msra.mxu0 0.0
  %1804 = vmatprep.subr.mxu0 0.0
  %1805 = vmatpush1.msra.mxu0 0.0
  %1806 = vmatprep.subr.mxu0 0.0
  %1807 = vmatpush1.msra.mxu0 0.0
  %1808 = vmatprep.subr.mxu0 0.0
  %1809 = vmatpush1.msra.mxu0 0.0
  %1810 = vmatprep.subr.mxu0 0.0
  %1811 = vmatpush1.msra.mxu0 0.0
  %1812 = vmatprep.subr.mxu0 0.0
  %1813 = vmatpush1.msra.mxu0 0.0
  %1814 = vmatprep.subr.mxu0 0.0
  %1815 = vmatpush1.msra.mxu0 0.0
  %1816 = vmatprep.subr.mxu0 0.0
  %1817 = vmatpush1.msra.mxu0 0.0
  %1818 = vmatprep.subr.mxu0 0.0
  %1819 = vmatpush1.msra.mxu0 0.0
  %1820 = vmatprep.subr.mxu0 0.0
  %1821 = vmatpush1.msra.mxu0 0.0
  %1822 = vmatprep.subr.mxu0 0.0
  %1823 = vmatpush1.msra.mxu0 0.0
  %1824 = vmatprep.subr.mxu0 0.0
  %1825 = vmatpush1.msra.mxu0 0.0
  %1826 = vmatprep.subr.mxu0 0.0
  %1827 = vmatpush1.msra.mxu0 0.0
  %1828 = vmatprep.subr.mxu0 0.0
  %1829 = vmatpush1.msra.mxu0 %v1647
  %1830 = vmatprep.subr.mxu0 0.0
  %1831 = vmatpush2.msra.mxu0 0.0
  %1832 = vmatprep.subr.mxu0 0.0
  %1833 = vmatpush2.msra.mxu0 0.0
  %1834 = vmatprep.subr.mxu0 0.0
  %1835 = vmatpush2.msra.mxu0 0.0
  %1836 = vmatprep.subr.mxu0 0.0
  %1837 = vmatpush2.msra.mxu0 0.0
  %1838 = vmatprep.subr.mxu0 0.0
  %1839 = vmatpush2.msra.mxu0 0.0
  %1840 = vmatprep.subr.mxu0 0.0
  %1841 = vmatpush2.msra.mxu0 0.0
  %1842 = vmatprep.subr.mxu0 0.0
  %1843 = vmatpush2.msra.mxu0 0.0
  %1844 = vmatprep.subr.mxu0 0.0
  %1845 = vmatpush2.msra.mxu0 0.0
  %1846 = vmatprep.subr.mxu0 0.0
  %1847 = vmatpush2.msra.mxu0 0.0
  %1848 = vmatprep.subr.mxu0 0.0
  %1849 = vmatpush2.msra.mxu0 0.0
  %1850 = vmatprep.subr.mxu0 0.0
  %1851 = vmatpush2.msra.mxu0 0.0
  %1852 = vmatprep.subr.mxu0 0.0
  %1853 = vmatpush2.msra.mxu0 0.0
  %1854 = vmatprep.subr.mxu0 0.0
  %1855 = vmatpush2.msra.mxu0 0.0
  %1856 = vmatprep.subr.mxu0 0.0
  %1857 = vmatpush2.msra.mxu0 0.0
  %1858 = vmatprep.subr.mxu0 0.0
  %1859 = vmatpush2.msra.mxu0 0.0
  %1860 = vmatprep.subr.mxu0 0.0
  %1861 = vmatpush2.msra.mxu0 0.0
  %1862 = vmatprep.mubr.f32.mxu0 0.0
  %1863 = vmatmul.mubr.f32.gmra.mxu0 %v1654
  %v1864 = vpop.f32.mrf.mxu0
  %v1865 = vadd.f32 0.0, %v1864
  %v1866 = vpop.f32.mrf.mxu0
  %1867 = vdwg.mxu0
  %v1868 = vadd.f32 %v1623, %v1723
  %v1869 = vadd.f32 %v1624, %v1725
  %v1870 = vadd.f32 %v1625, %v1794
  %v1871 = vadd.f32 %v1626, %v1796
  %v1872 = vadd.f32 %v1627, %v1865
  %s1873 = scalar_lea.vmem %s4, 48
  %v1874 = vld [vmem:[%s1873] sm:$0xff]
  %1875 = vrot.lane.b32.xlu0 %v424, 103
  %v1876 = vpop.permute.xlu0 %1875
  %1877 = vrot.lane.b32.xlu0 %v425, 103
  %v1878 = vpop.permute.xlu0 %1877
  %1879 = vrot.lane.b32.xlu0 %v426, 103
  %v1880 = vpop.permute.xlu0 %1879
  %1881 = vrot.lane.b32.xlu0 %v427, 103
  %v1882 = vpop.permute.xlu0 %1881
  %1883 = vrot.lane.b32.xlu0 %v428, 103
  %v1884 = vpop.permute.xlu0 %1883
  %1885 = vrot.lane.b32.xlu0 %v429, 103
  %v1886 = vpop.permute.xlu0 %1885
  %vm1887 = vcmask 842752
  %v1888 = vsel %vm1887, %v1876, %v1878
  %v1889 = vsel %vm1887, %v1878, %v1880
  %v1890 = vsel %vm1887, %v1880, %v1882
  %v1891 = vsel %vm1887, %v1882, %v1884
  %v1892 = vsel %vm1887, %v1884, %v1886
  %v1899 = vsel %vm462, %v1874, 0
  %1901 = vmatprep.subr.mxu0 0.0
  %1902 = vmatpush1.msra.mxu0 0.0
  %1903 = vmatprep.subr.mxu0 0.0
  %1904 = vmatpush1.msra.mxu0 0.0
  %1905 = vmatprep.subr.mxu0 0.0
  %1906 = vmatpush1.msra.mxu0 0.0
  %1907 = vmatprep.subr.mxu0 0.0
  %1908 = vmatpush1.msra.mxu0 0.0
  %1909 = vmatprep.subr.mxu0 0.0
  %1910 = vmatpush1.msra.mxu0 0.0
  %1911 = vmatprep.subr.mxu0 0.0
  %1912 = vmatpush1.msra.mxu0 0.0
  %1913 = vmatprep.subr.mxu0 0.0
  %1914 = vmatpush1.msra.mxu0 0.0
  %1915 = vmatprep.subr.mxu0 0.0
  %1916 = vmatpush1.msra.mxu0 0.0
  %1917 = vmatprep.subr.mxu0 0.0
  %1918 = vmatpush1.msra.mxu0 0.0
  %1919 = vmatprep.subr.mxu0 0.0
  %1920 = vmatpush1.msra.mxu0 0.0
  %1921 = vmatprep.subr.mxu0 0.0
  %1922 = vmatpush1.msra.mxu0 0.0
  %1923 = vmatprep.subr.mxu0 0.0
  %1924 = vmatpush1.msra.mxu0 0.0
  %1925 = vmatprep.subr.mxu0 0.0
  %1926 = vmatpush1.msra.mxu0 0.0
  %1927 = vmatprep.subr.mxu0 0.0
  %1928 = vmatpush1.msra.mxu0 0.0
  %1929 = vmatprep.subr.mxu0 0.0
  %1930 = vmatpush1.msra.mxu0 0.0
  %1931 = vmatprep.subr.mxu0 %v1889
  %1932 = vmatpush1.msra.mxu0 %v1888
  %1933 = vmatprep.subr.mxu0 0.0
  %1934 = vmatpush2.msra.mxu0 0.0
  %1935 = vmatprep.subr.mxu0 0.0
  %1936 = vmatpush2.msra.mxu0 0.0
  %1937 = vmatprep.subr.mxu0 0.0
  %1938 = vmatpush2.msra.mxu0 0.0
  %1939 = vmatprep.subr.mxu0 0.0
  %1940 = vmatpush2.msra.mxu0 0.0
  %1941 = vmatprep.subr.mxu0 0.0
  %1942 = vmatpush2.msra.mxu0 0.0
  %1943 = vmatprep.subr.mxu0 0.0
  %1944 = vmatpush2.msra.mxu0 0.0
  %1945 = vmatprep.subr.mxu0 0.0
  %1946 = vmatpush2.msra.mxu0 0.0
  %1947 = vmatprep.subr.mxu0 0.0
  %1948 = vmatpush2.msra.mxu0 0.0
  %1949 = vmatprep.subr.mxu0 0.0
  %1950 = vmatpush2.msra.mxu0 0.0
  %1951 = vmatprep.subr.mxu0 0.0
  %1952 = vmatpush2.msra.mxu0 0.0
  %1953 = vmatprep.subr.mxu0 0.0
  %1954 = vmatpush2.msra.mxu0 0.0
  %1955 = vmatprep.subr.mxu0 0.0
  %1956 = vmatpush2.msra.mxu0 0.0
  %1957 = vmatprep.subr.mxu0 0.0
  %1958 = vmatpush2.msra.mxu0 0.0
  %1959 = vmatprep.subr.mxu0 0.0
  %1960 = vmatpush2.msra.mxu0 0.0
  %1961 = vmatprep.subr.mxu0 0.0
  %1962 = vmatpush2.msra.mxu0 0.0
  %1963 = vmatprep.subr.mxu0 0.0
  %1964 = vmatpush2.msra.mxu0 0.0
  %1965 = vmatprep.mubr.f32.mxu0 0.0
  %1966 = vmatmul.mubr.f32.gmra.mxu0 %v1899
  %v1967 = vpop.f32.mrf.mxu0
  %v1968 = vadd.f32 0.0, %v1967
  %v1969 = vpop.f32.mrf.mxu0
  %v1970 = vadd.f32 0.0, %v1969
  %1971 = vdwg.mxu0
  %1972 = vmatprep.subr.mxu0 0.0
  %1973 = vmatpush1.msra.mxu0 0.0
  %1974 = vmatprep.subr.mxu0 0.0
  %1975 = vmatpush1.msra.mxu0 0.0
  %1976 = vmatprep.subr.mxu0 0.0
  %1977 = vmatpush1.msra.mxu0 0.0
  %1978 = vmatprep.subr.mxu0 0.0
  %1979 = vmatpush1.msra.mxu0 0.0
  %1980 = vmatprep.subr.mxu0 0.0
  %1981 = vmatpush1.msra.mxu0 0.0
  %1982 = vmatprep.subr.mxu0 0.0
  %1983 = vmatpush1.msra.mxu0 0.0
  %1984 = vmatprep.subr.mxu0 0.0
  %1985 = vmatpush1.msra.mxu0 0.0
  %1986 = vmatprep.subr.mxu0 0.0
  %1987 = vmatpush1.msra.mxu0 0.0
  %1988 = vmatprep.subr.mxu0 0.0
  %1989 = vmatpush1.msra.mxu0 0.0
  %1990 = vmatprep.subr.mxu0 0.0
  %1991 = vmatpush1.msra.mxu0 0.0
  %1992 = vmatprep.subr.mxu0 0.0
  %1993 = vmatpush1.msra.mxu0 0.0
  %1994 = vmatprep.subr.mxu0 0.0
  %1995 = vmatpush1.msra.mxu0 0.0
  %1996 = vmatprep.subr.mxu0 0.0
  %1997 = vmatpush1.msra.mxu0 0.0
  %1998 = vmatprep.subr.mxu0 0.0
  %1999 = vmatpush1.msra.mxu0 0.0
  %2000 = vmatprep.subr.mxu0 0.0
  %2001 = vmatpush1.msra.mxu0 0.0
  %2002 = vmatprep.subr.mxu0 %v1891
  %2003 = vmatpush1.msra.mxu0 %v1890
  %2004 = vmatprep.subr.mxu0 0.0
  %2005 = vmatpush2.msra.mxu0 0.0
  %2006 = vmatprep.subr.mxu0 0.0
  %2007 = vmatpush2.msra.mxu0 0.0
  %2008 = vmatprep.subr.mxu0 0.0
  %2009 = vmatpush2.msra.mxu0 0.0
  %2010 = vmatprep.subr.mxu0 0.0
  %2011 = vmatpush2.msra.mxu0 0.0
  %2012 = vmatprep.subr.mxu0 0.0
  %2013 = vmatpush2.msra.mxu0 0.0
  %2014 = vmatprep.subr.mxu0 0.0
  %2015 = vmatpush2.msra.mxu0 0.0
  %2016 = vmatprep.subr.mxu0 0.0
  %2017 = vmatpush2.msra.mxu0 0.0
  %2018 = vmatprep.subr.mxu0 0.0
  %2019 = vmatpush2.msra.mxu0 0.0
  %2020 = vmatprep.subr.mxu0 0.0
  %2021 = vmatpush2.msra.mxu0 0.0
  %2022 = vmatprep.subr.mxu0 0.0
  %2023 = vmatpush2.msra.mxu0 0.0
  %2024 = vmatprep.subr.mxu0 0.0
  %2025 = vmatpush2.msra.mxu0 0.0
  %2026 = vmatprep.subr.mxu0 0.0
  %2027 = vmatpush2.msra.mxu0 0.0
  %2028 = vmatprep.subr.mxu0 0.0
  %2029 = vmatpush2.msra.mxu0 0.0
  %2030 = vmatprep.subr.mxu0 0.0
  %2031 = vmatpush2.msra.mxu0 0.0
  %2032 = vmatprep.subr.mxu0 0.0
  %2033 = vmatpush2.msra.mxu0 0.0
  %2034 = vmatprep.subr.mxu0 0.0
  %2035 = vmatpush2.msra.mxu0 0.0
  %2036 = vmatprep.mubr.f32.mxu0 0.0
  %2037 = vmatmul.mubr.f32.gmra.mxu0 %v1899
  %v2038 = vpop.f32.mrf.mxu0
  %v2039 = vadd.f32 0.0, %v2038
  %v2040 = vpop.f32.mrf.mxu0
  %v2041 = vadd.f32 0.0, %v2040
  %2042 = vdwg.mxu0
  %2043 = vmatprep.subr.mxu0 0.0
  %2044 = vmatpush1.msra.mxu0 0.0
  %2045 = vmatprep.subr.mxu0 0.0
  %2046 = vmatpush1.msra.mxu0 0.0
  %2047 = vmatprep.subr.mxu0 0.0
  %2048 = vmatpush1.msra.mxu0 0.0
  %2049 = vmatprep.subr.mxu0 0.0
  %2050 = vmatpush1.msra.mxu0 0.0
  %2051 = vmatprep.subr.mxu0 0.0
  %2052 = vmatpush1.msra.mxu0 0.0
  %2053 = vmatprep.subr.mxu0 0.0
  %2054 = vmatpush1.msra.mxu0 0.0
  %2055 = vmatprep.subr.mxu0 0.0
  %2056 = vmatpush1.msra.mxu0 0.0
  %2057 = vmatprep.subr.mxu0 0.0
  %2058 = vmatpush1.msra.mxu0 0.0
  %2059 = vmatprep.subr.mxu0 0.0
  %2060 = vmatpush1.msra.mxu0 0.0
  %2061 = vmatprep.subr.mxu0 0.0
  %2062 = vmatpush1.msra.mxu0 0.0
  %2063 = vmatprep.subr.mxu0 0.0
  %2064 = vmatpush1.msra.mxu0 0.0
  %2065 = vmatprep.subr.mxu0 0.0
  %2066 = vmatpush1.msra.mxu0 0.0
  %2067 = vmatprep.subr.mxu0 0.0
  %2068 = vmatpush1.msra.mxu0 0.0
  %2069 = vmatprep.subr.mxu0 0.0
  %2070 = vmatpush1.msra.mxu0 0.0
  %2071 = vmatprep.subr.mxu0 0.0
  %2072 = vmatpush1.msra.mxu0 0.0
  %2073 = vmatprep.subr.mxu0 0.0
  %2074 = vmatpush1.msra.mxu0 %v1892
  %2075 = vmatprep.subr.mxu0 0.0
  %2076 = vmatpush2.msra.mxu0 0.0
  %2077 = vmatprep.subr.mxu0 0.0
  %2078 = vmatpush2.msra.mxu0 0.0
  %2079 = vmatprep.subr.mxu0 0.0
  %2080 = vmatpush2.msra.mxu0 0.0
  %2081 = vmatprep.subr.mxu0 0.0
  %2082 = vmatpush2.msra.mxu0 0.0
  %2083 = vmatprep.subr.mxu0 0.0
  %2084 = vmatpush2.msra.mxu0 0.0
  %2085 = vmatprep.subr.mxu0 0.0
  %2086 = vmatpush2.msra.mxu0 0.0
  %2087 = vmatprep.subr.mxu0 0.0
  %2088 = vmatpush2.msra.mxu0 0.0
  %2089 = vmatprep.subr.mxu0 0.0
  %2090 = vmatpush2.msra.mxu0 0.0
  %2091 = vmatprep.subr.mxu0 0.0
  %2092 = vmatpush2.msra.mxu0 0.0
  %2093 = vmatprep.subr.mxu0 0.0
  %2094 = vmatpush2.msra.mxu0 0.0
  %2095 = vmatprep.subr.mxu0 0.0
  %2096 = vmatpush2.msra.mxu0 0.0
  %2097 = vmatprep.subr.mxu0 0.0
  %2098 = vmatpush2.msra.mxu0 0.0
  %2099 = vmatprep.subr.mxu0 0.0
  %2100 = vmatpush2.msra.mxu0 0.0
  %2101 = vmatprep.subr.mxu0 0.0
  %2102 = vmatpush2.msra.mxu0 0.0
  %2103 = vmatprep.subr.mxu0 0.0
  %2104 = vmatpush2.msra.mxu0 0.0
  %2105 = vmatprep.subr.mxu0 0.0
  %2106 = vmatpush2.msra.mxu0 0.0
  %2107 = vmatprep.mubr.f32.mxu0 0.0
  %2108 = vmatmul.mubr.f32.gmra.mxu0 %v1899
  %v2109 = vpop.f32.mrf.mxu0
  %v2110 = vadd.f32 0.0, %v2109
  %v2111 = vpop.f32.mrf.mxu0
  %2112 = vdwg.mxu0
  %v2113 = vadd.f32 %v1868, %v1968
  %v2114 = vadd.f32 %v1869, %v1970
  %v2115 = vadd.f32 %v1870, %v2039
  %v2116 = vadd.f32 %v1871, %v2041
  %v2117 = vadd.f32 %v1872, %v2110
  %s2118 = scalar_lea.vmem %s4, 56
  %v2119 = vld [vmem:[%s2118] sm:$0xff]
  %2120 = vrot.lane.b32.xlu0 %v424, 102
  %v2121 = vpop.permute.xlu0 %2120
  %2122 = vrot.lane.b32.xlu0 %v425, 102
  %v2123 = vpop.permute.xlu0 %2122
  %2124 = vrot.lane.b32.xlu0 %v426, 102
  %v2125 = vpop.permute.xlu0 %2124
  %2126 = vrot.lane.b32.xlu0 %v427, 102
  %v2127 = vpop.permute.xlu0 %2126
  %2128 = vrot.lane.b32.xlu0 %v428, 102
  %v2129 = vpop.permute.xlu0 %2128
  %2130 = vrot.lane.b32.xlu0 %v429, 102
  %v2131 = vpop.permute.xlu0 %2130
  %vm2132 = vcmask 834560
  %v2133 = vsel %vm2132, %v2121, %v2123
  %v2134 = vsel %vm2132, %v2123, %v2125
  %v2135 = vsel %vm2132, %v2125, %v2127
  %v2136 = vsel %vm2132, %v2127, %v2129
  %v2137 = vsel %vm2132, %v2129, %v2131
  %v2144 = vsel %vm462, %v2119, 0
  %2146 = vmatprep.subr.mxu0 0.0
  %2147 = vmatpush1.msra.mxu0 0.0
  %2148 = vmatprep.subr.mxu0 0.0
  %2149 = vmatpush1.msra.mxu0 0.0
  %2150 = vmatprep.subr.mxu0 0.0
  %2151 = vmatpush1.msra.mxu0 0.0
  %2152 = vmatprep.subr.mxu0 0.0
  %2153 = vmatpush1.msra.mxu0 0.0
  %2154 = vmatprep.subr.mxu0 0.0
  %2155 = vmatpush1.msra.mxu0 0.0
  %2156 = vmatprep.subr.mxu0 0.0
  %2157 = vmatpush1.msra.mxu0 0.0
  %2158 = vmatprep.subr.mxu0 0.0
  %2159 = vmatpush1.msra.mxu0 0.0
  %2160 = vmatprep.subr.mxu0 0.0
  %2161 = vmatpush1.msra.mxu0 0.0
  %2162 = vmatprep.subr.mxu0 0.0
  %2163 = vmatpush1.msra.mxu0 0.0
  %2164 = vmatprep.subr.mxu0 0.0
  %2165 = vmatpush1.msra.mxu0 0.0
  %2166 = vmatprep.subr.mxu0 0.0
  %2167 = vmatpush1.msra.mxu0 0.0
  %2168 = vmatprep.subr.mxu0 0.0
  %2169 = vmatpush1.msra.mxu0 0.0
  %2170 = vmatprep.subr.mxu0 0.0
  %2171 = vmatpush1.msra.mxu0 0.0
  %2172 = vmatprep.subr.mxu0 0.0
  %2173 = vmatpush1.msra.mxu0 0.0
  %2174 = vmatprep.subr.mxu0 0.0
  %2175 = vmatpush1.msra.mxu0 0.0
  %2176 = vmatprep.subr.mxu0 %v2134
  %2177 = vmatpush1.msra.mxu0 %v2133
  %2178 = vmatprep.subr.mxu0 0.0
  %2179 = vmatpush2.msra.mxu0 0.0
  %2180 = vmatprep.subr.mxu0 0.0
  %2181 = vmatpush2.msra.mxu0 0.0
  %2182 = vmatprep.subr.mxu0 0.0
  %2183 = vmatpush2.msra.mxu0 0.0
  %2184 = vmatprep.subr.mxu0 0.0
  %2185 = vmatpush2.msra.mxu0 0.0
  %2186 = vmatprep.subr.mxu0 0.0
  %2187 = vmatpush2.msra.mxu0 0.0
  %2188 = vmatprep.subr.mxu0 0.0
  %2189 = vmatpush2.msra.mxu0 0.0
  %2190 = vmatprep.subr.mxu0 0.0
  %2191 = vmatpush2.msra.mxu0 0.0
  %2192 = vmatprep.subr.mxu0 0.0
  %2193 = vmatpush2.msra.mxu0 0.0
  %2194 = vmatprep.subr.mxu0 0.0
  %2195 = vmatpush2.msra.mxu0 0.0
  %2196 = vmatprep.subr.mxu0 0.0
  %2197 = vmatpush2.msra.mxu0 0.0
  %2198 = vmatprep.subr.mxu0 0.0
  %2199 = vmatpush2.msra.mxu0 0.0
  %2200 = vmatprep.subr.mxu0 0.0
  %2201 = vmatpush2.msra.mxu0 0.0
  %2202 = vmatprep.subr.mxu0 0.0
  %2203 = vmatpush2.msra.mxu0 0.0
  %2204 = vmatprep.subr.mxu0 0.0
  %2205 = vmatpush2.msra.mxu0 0.0
  %2206 = vmatprep.subr.mxu0 0.0
  %2207 = vmatpush2.msra.mxu0 0.0
  %2208 = vmatprep.subr.mxu0 0.0
  %2209 = vmatpush2.msra.mxu0 0.0
  %2210 = vmatprep.mubr.f32.mxu0 0.0
  %2211 = vmatmul.mubr.f32.gmra.mxu0 %v2144
  %v2212 = vpop.f32.mrf.mxu0
  %v2213 = vadd.f32 0.0, %v2212
  %v2214 = vpop.f32.mrf.mxu0
  %v2215 = vadd.f32 0.0, %v2214
  %2216 = vdwg.mxu0
  %2217 = vmatprep.subr.mxu0 0.0
  %2218 = vmatpush1.msra.mxu0 0.0
  %2219 = vmatprep.subr.mxu0 0.0
  %2220 = vmatpush1.msra.mxu0 0.0
  %2221 = vmatprep.subr.mxu0 0.0
  %2222 = vmatpush1.msra.mxu0 0.0
  %2223 = vmatprep.subr.mxu0 0.0
  %2224 = vmatpush1.msra.mxu0 0.0
  %2225 = vmatprep.subr.mxu0 0.0
  %2226 = vmatpush1.msra.mxu0 0.0
  %2227 = vmatprep.subr.mxu0 0.0
  %2228 = vmatpush1.msra.mxu0 0.0
  %2229 = vmatprep.subr.mxu0 0.0
  %2230 = vmatpush1.msra.mxu0 0.0
  %2231 = vmatprep.subr.mxu0 0.0
  %2232 = vmatpush1.msra.mxu0 0.0
  %2233 = vmatprep.subr.mxu0 0.0
  %2234 = vmatpush1.msra.mxu0 0.0
  %2235 = vmatprep.subr.mxu0 0.0
  %2236 = vmatpush1.msra.mxu0 0.0
  %2237 = vmatprep.subr.mxu0 0.0
  %2238 = vmatpush1.msra.mxu0 0.0
  %2239 = vmatprep.subr.mxu0 0.0
  %2240 = vmatpush1.msra.mxu0 0.0
  %2241 = vmatprep.subr.mxu0 0.0
  %2242 = vmatpush1.msra.mxu0 0.0
  %2243 = vmatprep.subr.mxu0 0.0
  %2244 = vmatpush1.msra.mxu0 0.0
  %2245 = vmatprep.subr.mxu0 0.0
  %2246 = vmatpush1.msra.mxu0 0.0
  %2247 = vmatprep.subr.mxu0 %v2136
  %2248 = vmatpush1.msra.mxu0 %v2135
  %2249 = vmatprep.subr.mxu0 0.0
  %2250 = vmatpush2.msra.mxu0 0.0
  %2251 = vmatprep.subr.mxu0 0.0
  %2252 = vmatpush2.msra.mxu0 0.0
  %2253 = vmatprep.subr.mxu0 0.0
  %2254 = vmatpush2.msra.mxu0 0.0
  %2255 = vmatprep.subr.mxu0 0.0
  %2256 = vmatpush2.msra.mxu0 0.0
  %2257 = vmatprep.subr.mxu0 0.0
  %2258 = vmatpush2.msra.mxu0 0.0
  %2259 = vmatprep.subr.mxu0 0.0
  %2260 = vmatpush2.msra.mxu0 0.0
  %2261 = vmatprep.subr.mxu0 0.0
  %2262 = vmatpush2.msra.mxu0 0.0
  %2263 = vmatprep.subr.mxu0 0.0
  %2264 = vmatpush2.msra.mxu0 0.0
  %2265 = vmatprep.subr.mxu0 0.0
  %2266 = vmatpush2.msra.mxu0 0.0
  %2267 = vmatprep.subr.mxu0 0.0
  %2268 = vmatpush2.msra.mxu0 0.0
  %2269 = vmatprep.subr.mxu0 0.0
  %2270 = vmatpush2.msra.mxu0 0.0
  %2271 = vmatprep.subr.mxu0 0.0
  %2272 = vmatpush2.msra.mxu0 0.0
  %2273 = vmatprep.subr.mxu0 0.0
  %2274 = vmatpush2.msra.mxu0 0.0
  %2275 = vmatprep.subr.mxu0 0.0
  %2276 = vmatpush2.msra.mxu0 0.0
  %2277 = vmatprep.subr.mxu0 0.0
  %2278 = vmatpush2.msra.mxu0 0.0
  %2279 = vmatprep.subr.mxu0 0.0
  %2280 = vmatpush2.msra.mxu0 0.0
  %2281 = vmatprep.mubr.f32.mxu0 0.0
  %2282 = vmatmul.mubr.f32.gmra.mxu0 %v2144
  %v2283 = vpop.f32.mrf.mxu0
  %v2284 = vadd.f32 0.0, %v2283
  %v2285 = vpop.f32.mrf.mxu0
  %v2286 = vadd.f32 0.0, %v2285
  %2287 = vdwg.mxu0
  %2288 = vmatprep.subr.mxu0 0.0
  %2289 = vmatpush1.msra.mxu0 0.0
  %2290 = vmatprep.subr.mxu0 0.0
  %2291 = vmatpush1.msra.mxu0 0.0
  %2292 = vmatprep.subr.mxu0 0.0
  %2293 = vmatpush1.msra.mxu0 0.0
  %2294 = vmatprep.subr.mxu0 0.0
  %2295 = vmatpush1.msra.mxu0 0.0
  %2296 = vmatprep.subr.mxu0 0.0
  %2297 = vmatpush1.msra.mxu0 0.0
  %2298 = vmatprep.subr.mxu0 0.0
  %2299 = vmatpush1.msra.mxu0 0.0
  %2300 = vmatprep.subr.mxu0 0.0
  %2301 = vmatpush1.msra.mxu0 0.0
  %2302 = vmatprep.subr.mxu0 0.0
  %2303 = vmatpush1.msra.mxu0 0.0
  %2304 = vmatprep.subr.mxu0 0.0
  %2305 = vmatpush1.msra.mxu0 0.0
  %2306 = vmatprep.subr.mxu0 0.0
  %2307 = vmatpush1.msra.mxu0 0.0
  %2308 = vmatprep.subr.mxu0 0.0
  %2309 = vmatpush1.msra.mxu0 0.0
  %2310 = vmatprep.subr.mxu0 0.0
  %2311 = vmatpush1.msra.mxu0 0.0
  %2312 = vmatprep.subr.mxu0 0.0
  %2313 = vmatpush1.msra.mxu0 0.0
  %2314 = vmatprep.subr.mxu0 0.0
  %2315 = vmatpush1.msra.mxu0 0.0
  %2316 = vmatprep.subr.mxu0 0.0
  %2317 = vmatpush1.msra.mxu0 0.0
  %2318 = vmatprep.subr.mxu0 0.0
  %2319 = vmatpush1.msra.mxu0 %v2137
  %2320 = vmatprep.subr.mxu0 0.0
  %2321 = vmatpush2.msra.mxu0 0.0
  %2322 = vmatprep.subr.mxu0 0.0
  %2323 = vmatpush2.msra.mxu0 0.0
  %2324 = vmatprep.subr.mxu0 0.0
  %2325 = vmatpush2.msra.mxu0 0.0
  %2326 = vmatprep.subr.mxu0 0.0
  %2327 = vmatpush2.msra.mxu0 0.0
  %2328 = vmatprep.subr.mxu0 0.0
  %2329 = vmatpush2.msra.mxu0 0.0
  %2330 = vmatprep.subr.mxu0 0.0
  %2331 = vmatpush2.msra.mxu0 0.0
  %2332 = vmatprep.subr.mxu0 0.0
  %2333 = vmatpush2.msra.mxu0 0.0
  %2334 = vmatprep.subr.mxu0 0.0
  %2335 = vmatpush2.msra.mxu0 0.0
  %2336 = vmatprep.subr.mxu0 0.0
  %2337 = vmatpush2.msra.mxu0 0.0
  %2338 = vmatprep.subr.mxu0 0.0
  %2339 = vmatpush2.msra.mxu0 0.0
  %2340 = vmatprep.subr.mxu0 0.0
  %2341 = vmatpush2.msra.mxu0 0.0
  %2342 = vmatprep.subr.mxu0 0.0
  %2343 = vmatpush2.msra.mxu0 0.0
  %2344 = vmatprep.subr.mxu0 0.0
  %2345 = vmatpush2.msra.mxu0 0.0
  %2346 = vmatprep.subr.mxu0 0.0
  %2347 = vmatpush2.msra.mxu0 0.0
  %2348 = vmatprep.subr.mxu0 0.0
  %2349 = vmatpush2.msra.mxu0 0.0
  %2350 = vmatprep.subr.mxu0 0.0
  %2351 = vmatpush2.msra.mxu0 0.0
  %2352 = vmatprep.mubr.f32.mxu0 0.0
  %2353 = vmatmul.mubr.f32.gmra.mxu0 %v2144
  %v2354 = vpop.f32.mrf.mxu0
  %v2355 = vadd.f32 0.0, %v2354
  %v2356 = vpop.f32.mrf.mxu0
  %2357 = vdwg.mxu0
  %v2358 = vadd.f32 %v2113, %v2213
  %v2359 = vadd.f32 %v2114, %v2215
  %v2360 = vadd.f32 %v2115, %v2284
  %v2361 = vadd.f32 %v2116, %v2286
  %v2362 = vadd.f32 %v2117, %v2355
  %s2363 = scalar_lea.vmem %s4, 64
  %v2364 = vld [vmem:[%s2363] sm:$0xff]
  %2365 = vrot.lane.b32.xlu0 %v424, 101
  %v2366 = vpop.permute.xlu0 %2365
  %2367 = vrot.lane.b32.xlu0 %v425, 101
  %v2368 = vpop.permute.xlu0 %2367
  %2369 = vrot.lane.b32.xlu0 %v426, 101
  %v2370 = vpop.permute.xlu0 %2369
  %2371 = vrot.lane.b32.xlu0 %v427, 101
  %v2372 = vpop.permute.xlu0 %2371
  %2373 = vrot.lane.b32.xlu0 %v428, 101
  %v2374 = vpop.permute.xlu0 %2373
  %2375 = vrot.lane.b32.xlu0 %v429, 101
  %v2376 = vpop.permute.xlu0 %2375
  %vm2377 = vcmask 826368
  %v2378 = vsel %vm2377, %v2366, %v2368
  %v2379 = vsel %vm2377, %v2368, %v2370
  %v2380 = vsel %vm2377, %v2370, %v2372
  %v2381 = vsel %vm2377, %v2372, %v2374
  %v2382 = vsel %vm2377, %v2374, %v2376
  %v2389 = vsel %vm462, %v2364, 0
  %2391 = vmatprep.subr.mxu0 0.0
  %2392 = vmatpush1.msra.mxu0 0.0
  %2393 = vmatprep.subr.mxu0 0.0
  %2394 = vmatpush1.msra.mxu0 0.0
  %2395 = vmatprep.subr.mxu0 0.0
  %2396 = vmatpush1.msra.mxu0 0.0
  %2397 = vmatprep.subr.mxu0 0.0
  %2398 = vmatpush1.msra.mxu0 0.0
  %2399 = vmatprep.subr.mxu0 0.0
  %2400 = vmatpush1.msra.mxu0 0.0
  %2401 = vmatprep.subr.mxu0 0.0
  %2402 = vmatpush1.msra.mxu0 0.0
  %2403 = vmatprep.subr.mxu0 0.0
  %2404 = vmatpush1.msra.mxu0 0.0
  %2405 = vmatprep.subr.mxu0 0.0
  %2406 = vmatpush1.msra.mxu0 0.0
  %2407 = vmatprep.subr.mxu0 0.0
  %2408 = vmatpush1.msra.mxu0 0.0
  %2409 = vmatprep.subr.mxu0 0.0
  %2410 = vmatpush1.msra.mxu0 0.0
  %2411 = vmatprep.subr.mxu0 0.0
  %2412 = vmatpush1.msra.mxu0 0.0
  %2413 = vmatprep.subr.mxu0 0.0
  %2414 = vmatpush1.msra.mxu0 0.0
  %2415 = vmatprep.subr.mxu0 0.0
  %2416 = vmatpush1.msra.mxu0 0.0
  %2417 = vmatprep.subr.mxu0 0.0
  %2418 = vmatpush1.msra.mxu0 0.0
  %2419 = vmatprep.subr.mxu0 0.0
  %2420 = vmatpush1.msra.mxu0 0.0
  %2421 = vmatprep.subr.mxu0 %v2379
  %2422 = vmatpush1.msra.mxu0 %v2378
  %2423 = vmatprep.subr.mxu0 0.0
  %2424 = vmatpush2.msra.mxu0 0.0
  %2425 = vmatprep.subr.mxu0 0.0
  %2426 = vmatpush2.msra.mxu0 0.0
  %2427 = vmatprep.subr.mxu0 0.0
  %2428 = vmatpush2.msra.mxu0 0.0
  %2429 = vmatprep.subr.mxu0 0.0
  %2430 = vmatpush2.msra.mxu0 0.0
  %2431 = vmatprep.subr.mxu0 0.0
  %2432 = vmatpush2.msra.mxu0 0.0
  %2433 = vmatprep.subr.mxu0 0.0
  %2434 = vmatpush2.msra.mxu0 0.0
  %2435 = vmatprep.subr.mxu0 0.0
  %2436 = vmatpush2.msra.mxu0 0.0
  %2437 = vmatprep.subr.mxu0 0.0
  %2438 = vmatpush2.msra.mxu0 0.0
  %2439 = vmatprep.subr.mxu0 0.0
  %2440 = vmatpush2.msra.mxu0 0.0
  %2441 = vmatprep.subr.mxu0 0.0
  %2442 = vmatpush2.msra.mxu0 0.0
  %2443 = vmatprep.subr.mxu0 0.0
  %2444 = vmatpush2.msra.mxu0 0.0
  %2445 = vmatprep.subr.mxu0 0.0
  %2446 = vmatpush2.msra.mxu0 0.0
  %2447 = vmatprep.subr.mxu0 0.0
  %2448 = vmatpush2.msra.mxu0 0.0
  %2449 = vmatprep.subr.mxu0 0.0
  %2450 = vmatpush2.msra.mxu0 0.0
  %2451 = vmatprep.subr.mxu0 0.0
  %2452 = vmatpush2.msra.mxu0 0.0
  %2453 = vmatprep.subr.mxu0 0.0
  %2454 = vmatpush2.msra.mxu0 0.0
  %2455 = vmatprep.mubr.f32.mxu0 0.0
  %2456 = vmatmul.mubr.f32.gmra.mxu0 %v2389
  %v2457 = vpop.f32.mrf.mxu0
  %v2458 = vadd.f32 0.0, %v2457
  %v2459 = vpop.f32.mrf.mxu0
  %v2460 = vadd.f32 0.0, %v2459
  %2461 = vdwg.mxu0
  %2462 = vmatprep.subr.mxu0 0.0
  %2463 = vmatpush1.msra.mxu0 0.0
  %2464 = vmatprep.subr.mxu0 0.0
  %2465 = vmatpush1.msra.mxu0 0.0
  %2466 = vmatprep.subr.mxu0 0.0
  %2467 = vmatpush1.msra.mxu0 0.0
  %2468 = vmatprep.subr.mxu0 0.0
  %2469 = vmatpush1.msra.mxu0 0.0
  %2470 = vmatprep.subr.mxu0 0.0
  %2471 = vmatpush1.msra.mxu0 0.0
  %2472 = vmatprep.subr.mxu0 0.0
  %2473 = vmatpush1.msra.mxu0 0.0
  %2474 = vmatprep.subr.mxu0 0.0
  %2475 = vmatpush1.msra.mxu0 0.0
  %2476 = vmatprep.subr.mxu0 0.0
  %2477 = vmatpush1.msra.mxu0 0.0
  %2478 = vmatprep.subr.mxu0 0.0
  %2479 = vmatpush1.msra.mxu0 0.0
  %2480 = vmatprep.subr.mxu0 0.0
  %2481 = vmatpush1.msra.mxu0 0.0
  %2482 = vmatprep.subr.mxu0 0.0
  %2483 = vmatpush1.msra.mxu0 0.0
  %2484 = vmatprep.subr.mxu0 0.0
  %2485 = vmatpush1.msra.mxu0 0.0
  %2486 = vmatprep.subr.mxu0 0.0
  %2487 = vmatpush1.msra.mxu0 0.0
  %2488 = vmatprep.subr.mxu0 0.0
  %2489 = vmatpush1.msra.mxu0 0.0
  %2490 = vmatprep.subr.mxu0 0.0
  %2491 = vmatpush1.msra.mxu0 0.0
  %2492 = vmatprep.subr.mxu0 %v2381
  %2493 = vmatpush1.msra.mxu0 %v2380
  %2494 = vmatprep.subr.mxu0 0.0
  %2495 = vmatpush2.msra.mxu0 0.0
  %2496 = vmatprep.subr.mxu0 0.0
  %2497 = vmatpush2.msra.mxu0 0.0
  %2498 = vmatprep.subr.mxu0 0.0
  %2499 = vmatpush2.msra.mxu0 0.0
  %2500 = vmatprep.subr.mxu0 0.0
  %2501 = vmatpush2.msra.mxu0 0.0
  %2502 = vmatprep.subr.mxu0 0.0
  %2503 = vmatpush2.msra.mxu0 0.0
  %2504 = vmatprep.subr.mxu0 0.0
  %2505 = vmatpush2.msra.mxu0 0.0
  %2506 = vmatprep.subr.mxu0 0.0
  %2507 = vmatpush2.msra.mxu0 0.0
  %2508 = vmatprep.subr.mxu0 0.0
  %2509 = vmatpush2.msra.mxu0 0.0
  %2510 = vmatprep.subr.mxu0 0.0
  %2511 = vmatpush2.msra.mxu0 0.0
  %2512 = vmatprep.subr.mxu0 0.0
  %2513 = vmatpush2.msra.mxu0 0.0
  %2514 = vmatprep.subr.mxu0 0.0
  %2515 = vmatpush2.msra.mxu0 0.0
  %2516 = vmatprep.subr.mxu0 0.0
  %2517 = vmatpush2.msra.mxu0 0.0
  %2518 = vmatprep.subr.mxu0 0.0
  %2519 = vmatpush2.msra.mxu0 0.0
  %2520 = vmatprep.subr.mxu0 0.0
  %2521 = vmatpush2.msra.mxu0 0.0
  %2522 = vmatprep.subr.mxu0 0.0
  %2523 = vmatpush2.msra.mxu0 0.0
  %2524 = vmatprep.subr.mxu0 0.0
  %2525 = vmatpush2.msra.mxu0 0.0
  %2526 = vmatprep.mubr.f32.mxu0 0.0
  %2527 = vmatmul.mubr.f32.gmra.mxu0 %v2389
  %v2528 = vpop.f32.mrf.mxu0
  %v2529 = vadd.f32 0.0, %v2528
  %v2530 = vpop.f32.mrf.mxu0
  %v2531 = vadd.f32 0.0, %v2530
  %2532 = vdwg.mxu0
  %2533 = vmatprep.subr.mxu0 0.0
  %2534 = vmatpush1.msra.mxu0 0.0
  %2535 = vmatprep.subr.mxu0 0.0
  %2536 = vmatpush1.msra.mxu0 0.0
  %2537 = vmatprep.subr.mxu0 0.0
  %2538 = vmatpush1.msra.mxu0 0.0
  %2539 = vmatprep.subr.mxu0 0.0
  %2540 = vmatpush1.msra.mxu0 0.0
  %2541 = vmatprep.subr.mxu0 0.0
  %2542 = vmatpush1.msra.mxu0 0.0
  %2543 = vmatprep.subr.mxu0 0.0
  %2544 = vmatpush1.msra.mxu0 0.0
  %2545 = vmatprep.subr.mxu0 0.0
  %2546 = vmatpush1.msra.mxu0 0.0
  %2547 = vmatprep.subr.mxu0 0.0
  %2548 = vmatpush1.msra.mxu0 0.0
  %2549 = vmatprep.subr.mxu0 0.0
  %2550 = vmatpush1.msra.mxu0 0.0
  %2551 = vmatprep.subr.mxu0 0.0
  %2552 = vmatpush1.msra.mxu0 0.0
  %2553 = vmatprep.subr.mxu0 0.0
  %2554 = vmatpush1.msra.mxu0 0.0
  %2555 = vmatprep.subr.mxu0 0.0
  %2556 = vmatpush1.msra.mxu0 0.0
  %2557 = vmatprep.subr.mxu0 0.0
  %2558 = vmatpush1.msra.mxu0 0.0
  %2559 = vmatprep.subr.mxu0 0.0
  %2560 = vmatpush1.msra.mxu0 0.0
  %2561 = vmatprep.subr.mxu0 0.0
  %2562 = vmatpush1.msra.mxu0 0.0
  %2563 = vmatprep.subr.mxu0 0.0
  %2564 = vmatpush1.msra.mxu0 %v2382
  %2565 = vmatprep.subr.mxu0 0.0
  %2566 = vmatpush2.msra.mxu0 0.0
  %2567 = vmatprep.subr.mxu0 0.0
  %2568 = vmatpush2.msra.mxu0 0.0
  %2569 = vmatprep.subr.mxu0 0.0
  %2570 = vmatpush2.msra.mxu0 0.0
  %2571 = vmatprep.subr.mxu0 0.0
  %2572 = vmatpush2.msra.mxu0 0.0
  %2573 = vmatprep.subr.mxu0 0.0
  %2574 = vmatpush2.msra.mxu0 0.0
  %2575 = vmatprep.subr.mxu0 0.0
  %2576 = vmatpush2.msra.mxu0 0.0
  %2577 = vmatprep.subr.mxu0 0.0
  %2578 = vmatpush2.msra.mxu0 0.0
  %2579 = vmatprep.subr.mxu0 0.0
  %2580 = vmatpush2.msra.mxu0 0.0
  %2581 = vmatprep.subr.mxu0 0.0
  %2582 = vmatpush2.msra.mxu0 0.0
  %2583 = vmatprep.subr.mxu0 0.0
  %2584 = vmatpush2.msra.mxu0 0.0
  %2585 = vmatprep.subr.mxu0 0.0
  %2586 = vmatpush2.msra.mxu0 0.0
  %2587 = vmatprep.subr.mxu0 0.0
  %2588 = vmatpush2.msra.mxu0 0.0
  %2589 = vmatprep.subr.mxu0 0.0
  %2590 = vmatpush2.msra.mxu0 0.0
  %2591 = vmatprep.subr.mxu0 0.0
  %2592 = vmatpush2.msra.mxu0 0.0
  %2593 = vmatprep.subr.mxu0 0.0
  %2594 = vmatpush2.msra.mxu0 0.0
  %2595 = vmatprep.subr.mxu0 0.0
  %2596 = vmatpush2.msra.mxu0 0.0
  %2597 = vmatprep.mubr.f32.mxu0 0.0
  %2598 = vmatmul.mubr.f32.gmra.mxu0 %v2389
  %v2599 = vpop.f32.mrf.mxu0
  %v2600 = vadd.f32 0.0, %v2599
  %v2601 = vpop.f32.mrf.mxu0
  %2602 = vdwg.mxu0
  %v2603 = vadd.f32 %v2358, %v2458
  %v2604 = vadd.f32 %v2359, %v2460
  %v2605 = vadd.f32 %v2360, %v2529
  %v2606 = vadd.f32 %v2361, %v2531
  %v2607 = vadd.f32 %v2362, %v2600
  %s2608 = scalar_lea.vmem %s4, 72
  %v2609 = vld [vmem:[%s2608] sm:$0xff]
  %2610 = vrot.lane.b32.xlu0 %v424, 100
  %v2611 = vpop.permute.xlu0 %2610
  %2612 = vrot.lane.b32.xlu0 %v425, 100
  %v2613 = vpop.permute.xlu0 %2612
  %2614 = vrot.lane.b32.xlu0 %v426, 100
  %v2615 = vpop.permute.xlu0 %2614
  %2616 = vrot.lane.b32.xlu0 %v427, 100
  %v2617 = vpop.permute.xlu0 %2616
  %2618 = vrot.lane.b32.xlu0 %v428, 100
  %v2619 = vpop.permute.xlu0 %2618
  %2620 = vrot.lane.b32.xlu0 %v429, 100
  %v2621 = vpop.permute.xlu0 %2620
  %vm2622 = vcmask 818176
  %v2623 = vsel %vm2622, %v2611, %v2613
  %v2624 = vsel %vm2622, %v2613, %v2615
  %v2625 = vsel %vm2622, %v2615, %v2617
  %v2626 = vsel %vm2622, %v2617, %v2619
  %v2627 = vsel %vm2622, %v2619, %v2621
  %v2634 = vsel %vm462, %v2609, 0
  %2636 = vmatprep.subr.mxu0 0.0
  %2637 = vmatpush1.msra.mxu0 0.0
  %2638 = vmatprep.subr.mxu0 0.0
  %2639 = vmatpush1.msra.mxu0 0.0
  %2640 = vmatprep.subr.mxu0 0.0
  %2641 = vmatpush1.msra.mxu0 0.0
  %2642 = vmatprep.subr.mxu0 0.0
  %2643 = vmatpush1.msra.mxu0 0.0
  %2644 = vmatprep.subr.mxu0 0.0
  %2645 = vmatpush1.msra.mxu0 0.0
  %2646 = vmatprep.subr.mxu0 0.0
  %2647 = vmatpush1.msra.mxu0 0.0
  %2648 = vmatprep.subr.mxu0 0.0
  %2649 = vmatpush1.msra.mxu0 0.0
  %2650 = vmatprep.subr.mxu0 0.0
  %2651 = vmatpush1.msra.mxu0 0.0
  %2652 = vmatprep.subr.mxu0 0.0
  %2653 = vmatpush1.msra.mxu0 0.0
  %2654 = vmatprep.subr.mxu0 0.0
  %2655 = vmatpush1.msra.mxu0 0.0
  %2656 = vmatprep.subr.mxu0 0.0
  %2657 = vmatpush1.msra.mxu0 0.0
  %2658 = vmatprep.subr.mxu0 0.0
  %2659 = vmatpush1.msra.mxu0 0.0
  %2660 = vmatprep.subr.mxu0 0.0
  %2661 = vmatpush1.msra.mxu0 0.0
  %2662 = vmatprep.subr.mxu0 0.0
  %2663 = vmatpush1.msra.mxu0 0.0
  %2664 = vmatprep.subr.mxu0 0.0
  %2665 = vmatpush1.msra.mxu0 0.0
  %2666 = vmatprep.subr.mxu0 %v2624
  %2667 = vmatpush1.msra.mxu0 %v2623
  %2668 = vmatprep.subr.mxu0 0.0
  %2669 = vmatpush2.msra.mxu0 0.0
  %2670 = vmatprep.subr.mxu0 0.0
  %2671 = vmatpush2.msra.mxu0 0.0
  %2672 = vmatprep.subr.mxu0 0.0
  %2673 = vmatpush2.msra.mxu0 0.0
  %2674 = vmatprep.subr.mxu0 0.0
  %2675 = vmatpush2.msra.mxu0 0.0
  %2676 = vmatprep.subr.mxu0 0.0
  %2677 = vmatpush2.msra.mxu0 0.0
  %2678 = vmatprep.subr.mxu0 0.0
  %2679 = vmatpush2.msra.mxu0 0.0
  %2680 = vmatprep.subr.mxu0 0.0
  %2681 = vmatpush2.msra.mxu0 0.0
  %2682 = vmatprep.subr.mxu0 0.0
  %2683 = vmatpush2.msra.mxu0 0.0
  %2684 = vmatprep.subr.mxu0 0.0
  %2685 = vmatpush2.msra.mxu0 0.0
  %2686 = vmatprep.subr.mxu0 0.0
  %2687 = vmatpush2.msra.mxu0 0.0
  %2688 = vmatprep.subr.mxu0 0.0
  %2689 = vmatpush2.msra.mxu0 0.0
  %2690 = vmatprep.subr.mxu0 0.0
  %2691 = vmatpush2.msra.mxu0 0.0
  %2692 = vmatprep.subr.mxu0 0.0
  %2693 = vmatpush2.msra.mxu0 0.0
  %2694 = vmatprep.subr.mxu0 0.0
  %2695 = vmatpush2.msra.mxu0 0.0
  %2696 = vmatprep.subr.mxu0 0.0
  %2697 = vmatpush2.msra.mxu0 0.0
  %2698 = vmatprep.subr.mxu0 0.0
  %2699 = vmatpush2.msra.mxu0 0.0
  %2700 = vmatprep.mubr.f32.mxu0 0.0
  %2701 = vmatmul.mubr.f32.gmra.mxu0 %v2634
  %v2702 = vpop.f32.mrf.mxu0
  %v2703 = vadd.f32 0.0, %v2702
  %v2704 = vpop.f32.mrf.mxu0
  %v2705 = vadd.f32 0.0, %v2704
  %2706 = vdwg.mxu0
  %2707 = vmatprep.subr.mxu0 0.0
  %2708 = vmatpush1.msra.mxu0 0.0
  %2709 = vmatprep.subr.mxu0 0.0
  %2710 = vmatpush1.msra.mxu0 0.0
  %2711 = vmatprep.subr.mxu0 0.0
  %2712 = vmatpush1.msra.mxu0 0.0
  %2713 = vmatprep.subr.mxu0 0.0
  %2714 = vmatpush1.msra.mxu0 0.0
  %2715 = vmatprep.subr.mxu0 0.0
  %2716 = vmatpush1.msra.mxu0 0.0
  %2717 = vmatprep.subr.mxu0 0.0
  %2718 = vmatpush1.msra.mxu0 0.0
  %2719 = vmatprep.subr.mxu0 0.0
  %2720 = vmatpush1.msra.mxu0 0.0
  %2721 = vmatprep.subr.mxu0 0.0
  %2722 = vmatpush1.msra.mxu0 0.0
  %2723 = vmatprep.subr.mxu0 0.0
  %2724 = vmatpush1.msra.mxu0 0.0
  %2725 = vmatprep.subr.mxu0 0.0
  %2726 = vmatpush1.msra.mxu0 0.0
  %2727 = vmatprep.subr.mxu0 0.0
  %2728 = vmatpush1.msra.mxu0 0.0
  %2729 = vmatprep.subr.mxu0 0.0
  %2730 = vmatpush1.msra.mxu0 0.0
  %2731 = vmatprep.subr.mxu0 0.0
  %2732 = vmatpush1.msra.mxu0 0.0
  %2733 = vmatprep.subr.mxu0 0.0
  %2734 = vmatpush1.msra.mxu0 0.0
  %2735 = vmatprep.subr.mxu0 0.0
  %2736 = vmatpush1.msra.mxu0 0.0
  %2737 = vmatprep.subr.mxu0 %v2626
  %2738 = vmatpush1.msra.mxu0 %v2625
  %2739 = vmatprep.subr.mxu0 0.0
  %2740 = vmatpush2.msra.mxu0 0.0
  %2741 = vmatprep.subr.mxu0 0.0
  %2742 = vmatpush2.msra.mxu0 0.0
  %2743 = vmatprep.subr.mxu0 0.0
  %2744 = vmatpush2.msra.mxu0 0.0
  %2745 = vmatprep.subr.mxu0 0.0
  %2746 = vmatpush2.msra.mxu0 0.0
  %2747 = vmatprep.subr.mxu0 0.0
  %2748 = vmatpush2.msra.mxu0 0.0
  %2749 = vmatprep.subr.mxu0 0.0
  %2750 = vmatpush2.msra.mxu0 0.0
  %2751 = vmatprep.subr.mxu0 0.0
  %2752 = vmatpush2.msra.mxu0 0.0
  %2753 = vmatprep.subr.mxu0 0.0
  %2754 = vmatpush2.msra.mxu0 0.0
  %2755 = vmatprep.subr.mxu0 0.0
  %2756 = vmatpush2.msra.mxu0 0.0
  %2757 = vmatprep.subr.mxu0 0.0
  %2758 = vmatpush2.msra.mxu0 0.0
  %2759 = vmatprep.subr.mxu0 0.0
  %2760 = vmatpush2.msra.mxu0 0.0
  %2761 = vmatprep.subr.mxu0 0.0
  %2762 = vmatpush2.msra.mxu0 0.0
  %2763 = vmatprep.subr.mxu0 0.0
  %2764 = vmatpush2.msra.mxu0 0.0
  %2765 = vmatprep.subr.mxu0 0.0
  %2766 = vmatpush2.msra.mxu0 0.0
  %2767 = vmatprep.subr.mxu0 0.0
  %2768 = vmatpush2.msra.mxu0 0.0
  %2769 = vmatprep.subr.mxu0 0.0
  %2770 = vmatpush2.msra.mxu0 0.0
  %2771 = vmatprep.mubr.f32.mxu0 0.0
  %2772 = vmatmul.mubr.f32.gmra.mxu0 %v2634
  %v2773 = vpop.f32.mrf.mxu0
  %v2774 = vadd.f32 0.0, %v2773
  %v2775 = vpop.f32.mrf.mxu0
  %v2776 = vadd.f32 0.0, %v2775
  %2777 = vdwg.mxu0
  %2778 = vmatprep.subr.mxu0 0.0
  %2779 = vmatpush1.msra.mxu0 0.0
  %2780 = vmatprep.subr.mxu0 0.0
  %2781 = vmatpush1.msra.mxu0 0.0
  %2782 = vmatprep.subr.mxu0 0.0
  %2783 = vmatpush1.msra.mxu0 0.0
  %2784 = vmatprep.subr.mxu0 0.0
  %2785 = vmatpush1.msra.mxu0 0.0
  %2786 = vmatprep.subr.mxu0 0.0
  %2787 = vmatpush1.msra.mxu0 0.0
  %2788 = vmatprep.subr.mxu0 0.0
  %2789 = vmatpush1.msra.mxu0 0.0
  %2790 = vmatprep.subr.mxu0 0.0
  %2791 = vmatpush1.msra.mxu0 0.0
  %2792 = vmatprep.subr.mxu0 0.0
  %2793 = vmatpush1.msra.mxu0 0.0
  %2794 = vmatprep.subr.mxu0 0.0
  %2795 = vmatpush1.msra.mxu0 0.0
  %2796 = vmatprep.subr.mxu0 0.0
  %2797 = vmatpush1.msra.mxu0 0.0
  %2798 = vmatprep.subr.mxu0 0.0
  %2799 = vmatpush1.msra.mxu0 0.0
  %2800 = vmatprep.subr.mxu0 0.0
  %2801 = vmatpush1.msra.mxu0 0.0
  %2802 = vmatprep.subr.mxu0 0.0
  %2803 = vmatpush1.msra.mxu0 0.0
  %2804 = vmatprep.subr.mxu0 0.0
  %2805 = vmatpush1.msra.mxu0 0.0
  %2806 = vmatprep.subr.mxu0 0.0
  %2807 = vmatpush1.msra.mxu0 0.0
  %2808 = vmatprep.subr.mxu0 0.0
  %2809 = vmatpush1.msra.mxu0 %v2627
  %2810 = vmatprep.subr.mxu0 0.0
  %2811 = vmatpush2.msra.mxu0 0.0
  %2812 = vmatprep.subr.mxu0 0.0
  %2813 = vmatpush2.msra.mxu0 0.0
  %2814 = vmatprep.subr.mxu0 0.0
  %2815 = vmatpush2.msra.mxu0 0.0
  %2816 = vmatprep.subr.mxu0 0.0
  %2817 = vmatpush2.msra.mxu0 0.0
  %2818 = vmatprep.subr.mxu0 0.0
  %2819 = vmatpush2.msra.mxu0 0.0
  %2820 = vmatprep.subr.mxu0 0.0
  %2821 = vmatpush2.msra.mxu0 0.0
  %2822 = vmatprep.subr.mxu0 0.0
  %2823 = vmatpush2.msra.mxu0 0.0
  %2824 = vmatprep.subr.mxu0 0.0
  %2825 = vmatpush2.msra.mxu0 0.0
  %2826 = vmatprep.subr.mxu0 0.0
  %2827 = vmatpush2.msra.mxu0 0.0
  %2828 = vmatprep.subr.mxu0 0.0
  %2829 = vmatpush2.msra.mxu0 0.0
  %2830 = vmatprep.subr.mxu0 0.0
  %2831 = vmatpush2.msra.mxu0 0.0
  %2832 = vmatprep.subr.mxu0 0.0
  %2833 = vmatpush2.msra.mxu0 0.0
  %2834 = vmatprep.subr.mxu0 0.0
  %2835 = vmatpush2.msra.mxu0 0.0
  %2836 = vmatprep.subr.mxu0 0.0
  %2837 = vmatpush2.msra.mxu0 0.0
  %2838 = vmatprep.subr.mxu0 0.0
  %2839 = vmatpush2.msra.mxu0 0.0
  %2840 = vmatprep.subr.mxu0 0.0
  %2841 = vmatpush2.msra.mxu0 0.0
  %2842 = vmatprep.mubr.f32.mxu0 0.0
  %2843 = vmatmul.mubr.f32.gmra.mxu0 %v2634
  %v2844 = vpop.f32.mrf.mxu0
  %v2845 = vadd.f32 0.0, %v2844
  %v2846 = vpop.f32.mrf.mxu0
  %2847 = vdwg.mxu0
  %v2848 = vadd.f32 %v2603, %v2703
  %v2849 = vadd.f32 %v2604, %v2705
  %v2850 = vadd.f32 %v2605, %v2774
  %v2851 = vadd.f32 %v2606, %v2776
  %v2852 = vadd.f32 %v2607, %v2845
  %s2853 = scalar_lea.vmem %s4, 80
  %v2854 = vld [vmem:[%s2853] sm:$0xff]
  %2855 = vrot.lane.b32.xlu0 %v424, 80
  %v2856 = vpop.permute.xlu0 %2855
  %2857 = vrot.lane.b32.xlu0 %v425, 80
  %v2858 = vpop.permute.xlu0 %2857
  %2859 = vrot.lane.b32.xlu0 %v426, 80
  %v2860 = vpop.permute.xlu0 %2859
  %2861 = vrot.lane.b32.xlu0 %v427, 80
  %v2862 = vpop.permute.xlu0 %2861
  %2863 = vrot.lane.b32.xlu0 %v428, 80
  %v2864 = vpop.permute.xlu0 %2863
  %2865 = vrot.lane.b32.xlu0 %v429, 80
  %v2866 = vpop.permute.xlu0 %2865
  %vm2867 = vcmask 654336
  %v2868 = vsel %vm2867, %v2856, %v2858
  %v2869 = vsel %vm2867, %v2858, %v2860
  %v2870 = vsel %vm2867, %v2860, %v2862
  %v2871 = vsel %vm2867, %v2862, %v2864
  %v2872 = vsel %vm2867, %v2864, %v2866
  %v2879 = vsel %vm462, %v2854, 0
  %2881 = vmatprep.subr.mxu0 0.0
  %2882 = vmatpush1.msra.mxu0 0.0
  %2883 = vmatprep.subr.mxu0 0.0
  %2884 = vmatpush1.msra.mxu0 0.0
  %2885 = vmatprep.subr.mxu0 0.0
  %2886 = vmatpush1.msra.mxu0 0.0
  %2887 = vmatprep.subr.mxu0 0.0
  %2888 = vmatpush1.msra.mxu0 0.0
  %2889 = vmatprep.subr.mxu0 0.0
  %2890 = vmatpush1.msra.mxu0 0.0
  %2891 = vmatprep.subr.mxu0 0.0
  %2892 = vmatpush1.msra.mxu0 0.0
  %2893 = vmatprep.subr.mxu0 0.0
  %2894 = vmatpush1.msra.mxu0 0.0
  %2895 = vmatprep.subr.mxu0 0.0
  %2896 = vmatpush1.msra.mxu0 0.0
  %2897 = vmatprep.subr.mxu0 0.0
  %2898 = vmatpush1.msra.mxu0 0.0
  %2899 = vmatprep.subr.mxu0 0.0
  %2900 = vmatpush1.msra.mxu0 0.0
  %2901 = vmatprep.subr.mxu0 0.0
  %2902 = vmatpush1.msra.mxu0 0.0
  %2903 = vmatprep.subr.mxu0 0.0
  %2904 = vmatpush1.msra.mxu0 0.0
  %2905 = vmatprep.subr.mxu0 0.0
  %2906 = vmatpush1.msra.mxu0 0.0
  %2907 = vmatprep.subr.mxu0 0.0
  %2908 = vmatpush1.msra.mxu0 0.0
  %2909 = vmatprep.subr.mxu0 0.0
  %2910 = vmatpush1.msra.mxu0 0.0
  %2911 = vmatprep.subr.mxu0 %v2869
  %2912 = vmatpush1.msra.mxu0 %v2868
  %2913 = vmatprep.subr.mxu0 0.0
  %2914 = vmatpush2.msra.mxu0 0.0
  %2915 = vmatprep.subr.mxu0 0.0
  %2916 = vmatpush2.msra.mxu0 0.0
  %2917 = vmatprep.subr.mxu0 0.0
  %2918 = vmatpush2.msra.mxu0 0.0
  %2919 = vmatprep.subr.mxu0 0.0
  %2920 = vmatpush2.msra.mxu0 0.0
  %2921 = vmatprep.subr.mxu0 0.0
  %2922 = vmatpush2.msra.mxu0 0.0
  %2923 = vmatprep.subr.mxu0 0.0
  %2924 = vmatpush2.msra.mxu0 0.0
  %2925 = vmatprep.subr.mxu0 0.0
  %2926 = vmatpush2.msra.mxu0 0.0
  %2927 = vmatprep.subr.mxu0 0.0
  %2928 = vmatpush2.msra.mxu0 0.0
  %2929 = vmatprep.subr.mxu0 0.0
  %2930 = vmatpush2.msra.mxu0 0.0
  %2931 = vmatprep.subr.mxu0 0.0
  %2932 = vmatpush2.msra.mxu0 0.0
  %2933 = vmatprep.subr.mxu0 0.0
  %2934 = vmatpush2.msra.mxu0 0.0
  %2935 = vmatprep.subr.mxu0 0.0
  %2936 = vmatpush2.msra.mxu0 0.0
  %2937 = vmatprep.subr.mxu0 0.0
  %2938 = vmatpush2.msra.mxu0 0.0
  %2939 = vmatprep.subr.mxu0 0.0
  %2940 = vmatpush2.msra.mxu0 0.0
  %2941 = vmatprep.subr.mxu0 0.0
  %2942 = vmatpush2.msra.mxu0 0.0
  %2943 = vmatprep.subr.mxu0 0.0
  %2944 = vmatpush2.msra.mxu0 0.0
  %2945 = vmatprep.mubr.f32.mxu0 0.0
  %2946 = vmatmul.mubr.f32.gmra.mxu0 %v2879
  %v2947 = vpop.f32.mrf.mxu0
  %v2948 = vadd.f32 0.0, %v2947
  %v2949 = vpop.f32.mrf.mxu0
  %v2950 = vadd.f32 0.0, %v2949
  %2951 = vdwg.mxu0
  %2952 = vmatprep.subr.mxu0 0.0
  %2953 = vmatpush1.msra.mxu0 0.0
  %2954 = vmatprep.subr.mxu0 0.0
  %2955 = vmatpush1.msra.mxu0 0.0
  %2956 = vmatprep.subr.mxu0 0.0
  %2957 = vmatpush1.msra.mxu0 0.0
  %2958 = vmatprep.subr.mxu0 0.0
  %2959 = vmatpush1.msra.mxu0 0.0
  %2960 = vmatprep.subr.mxu0 0.0
  %2961 = vmatpush1.msra.mxu0 0.0
  %2962 = vmatprep.subr.mxu0 0.0
  %2963 = vmatpush1.msra.mxu0 0.0
  %2964 = vmatprep.subr.mxu0 0.0
  %2965 = vmatpush1.msra.mxu0 0.0
  %2966 = vmatprep.subr.mxu0 0.0
  %2967 = vmatpush1.msra.mxu0 0.0
  %2968 = vmatprep.subr.mxu0 0.0
  %2969 = vmatpush1.msra.mxu0 0.0
  %2970 = vmatprep.subr.mxu0 0.0
  %2971 = vmatpush1.msra.mxu0 0.0
  %2972 = vmatprep.subr.mxu0 0.0
  %2973 = vmatpush1.msra.mxu0 0.0
  %2974 = vmatprep.subr.mxu0 0.0
  %2975 = vmatpush1.msra.mxu0 0.0
  %2976 = vmatprep.subr.mxu0 0.0
  %2977 = vmatpush1.msra.mxu0 0.0
  %2978 = vmatprep.subr.mxu0 0.0
  %2979 = vmatpush1.msra.mxu0 0.0
  %2980 = vmatprep.subr.mxu0 0.0
  %2981 = vmatpush1.msra.mxu0 0.0
  %2982 = vmatprep.subr.mxu0 %v2871
  %2983 = vmatpush1.msra.mxu0 %v2870
  %2984 = vmatprep.subr.mxu0 0.0
  %2985 = vmatpush2.msra.mxu0 0.0
  %2986 = vmatprep.subr.mxu0 0.0
  %2987 = vmatpush2.msra.mxu0 0.0
  %2988 = vmatprep.subr.mxu0 0.0
  %2989 = vmatpush2.msra.mxu0 0.0
  %2990 = vmatprep.subr.mxu0 0.0
  %2991 = vmatpush2.msra.mxu0 0.0
  %2992 = vmatprep.subr.mxu0 0.0
  %2993 = vmatpush2.msra.mxu0 0.0
  %2994 = vmatprep.subr.mxu0 0.0
  %2995 = vmatpush2.msra.mxu0 0.0
  %2996 = vmatprep.subr.mxu0 0.0
  %2997 = vmatpush2.msra.mxu0 0.0
  %2998 = vmatprep.subr.mxu0 0.0
  %2999 = vmatpush2.msra.mxu0 0.0
  %3000 = vmatprep.subr.mxu0 0.0
  %3001 = vmatpush2.msra.mxu0 0.0
  %3002 = vmatprep.subr.mxu0 0.0
  %3003 = vmatpush2.msra.mxu0 0.0
  %3004 = vmatprep.subr.mxu0 0.0
  %3005 = vmatpush2.msra.mxu0 0.0
  %3006 = vmatprep.subr.mxu0 0.0
  %3007 = vmatpush2.msra.mxu0 0.0
  %3008 = vmatprep.subr.mxu0 0.0
  %3009 = vmatpush2.msra.mxu0 0.0
  %3010 = vmatprep.subr.mxu0 0.0
  %3011 = vmatpush2.msra.mxu0 0.0
  %3012 = vmatprep.subr.mxu0 0.0
  %3013 = vmatpush2.msra.mxu0 0.0
  %3014 = vmatprep.subr.mxu0 0.0
  %3015 = vmatpush2.msra.mxu0 0.0
  %3016 = vmatprep.mubr.f32.mxu0 0.0
  %3017 = vmatmul.mubr.f32.gmra.mxu0 %v2879
  %v3018 = vpop.f32.mrf.mxu0
  %v3019 = vadd.f32 0.0, %v3018
  %v3020 = vpop.f32.mrf.mxu0
  %v3021 = vadd.f32 0.0, %v3020
  %3022 = vdwg.mxu0
  %3023 = vmatprep.subr.mxu0 0.0
  %3024 = vmatpush1.msra.mxu0 0.0
  %3025 = vmatprep.subr.mxu0 0.0
  %3026 = vmatpush1.msra.mxu0 0.0
  %3027 = vmatprep.subr.mxu0 0.0
  %3028 = vmatpush1.msra.mxu0 0.0
  %3029 = vmatprep.subr.mxu0 0.0
  %3030 = vmatpush1.msra.mxu0 0.0
  %3031 = vmatprep.subr.mxu0 0.0
  %3032 = vmatpush1.msra.mxu0 0.0
  %3033 = vmatprep.subr.mxu0 0.0
  %3034 = vmatpush1.msra.mxu0 0.0
  %3035 = vmatprep.subr.mxu0 0.0
  %3036 = vmatpush1.msra.mxu0 0.0
  %3037 = vmatprep.subr.mxu0 0.0
  %3038 = vmatpush1.msra.mxu0 0.0
  %3039 = vmatprep.subr.mxu0 0.0
  %3040 = vmatpush1.msra.mxu0 0.0
  %3041 = vmatprep.subr.mxu0 0.0
  %3042 = vmatpush1.msra.mxu0 0.0
  %3043 = vmatprep.subr.mxu0 0.0
  %3044 = vmatpush1.msra.mxu0 0.0
  %3045 = vmatprep.subr.mxu0 0.0
  %3046 = vmatpush1.msra.mxu0 0.0
  %3047 = vmatprep.subr.mxu0 0.0
  %3048 = vmatpush1.msra.mxu0 0.0
  %3049 = vmatprep.subr.mxu0 0.0
  %3050 = vmatpush1.msra.mxu0 0.0
  %3051 = vmatprep.subr.mxu0 0.0
  %3052 = vmatpush1.msra.mxu0 0.0
  %3053 = vmatprep.subr.mxu0 0.0
  %3054 = vmatpush1.msra.mxu0 %v2872
  %3055 = vmatprep.subr.mxu0 0.0
  %3056 = vmatpush2.msra.mxu0 0.0
  %3057 = vmatprep.subr.mxu0 0.0
  %3058 = vmatpush2.msra.mxu0 0.0
  %3059 = vmatprep.subr.mxu0 0.0
  %3060 = vmatpush2.msra.mxu0 0.0
  %3061 = vmatprep.subr.mxu0 0.0
  %3062 = vmatpush2.msra.mxu0 0.0
  %3063 = vmatprep.subr.mxu0 0.0
  %3064 = vmatpush2.msra.mxu0 0.0
  %3065 = vmatprep.subr.mxu0 0.0
  %3066 = vmatpush2.msra.mxu0 0.0
  %3067 = vmatprep.subr.mxu0 0.0
  %3068 = vmatpush2.msra.mxu0 0.0
  %3069 = vmatprep.subr.mxu0 0.0
  %3070 = vmatpush2.msra.mxu0 0.0
  %3071 = vmatprep.subr.mxu0 0.0
  %3072 = vmatpush2.msra.mxu0 0.0
  %3073 = vmatprep.subr.mxu0 0.0
  %3074 = vmatpush2.msra.mxu0 0.0
  %3075 = vmatprep.subr.mxu0 0.0
  %3076 = vmatpush2.msra.mxu0 0.0
  %3077 = vmatprep.subr.mxu0 0.0
  %3078 = vmatpush2.msra.mxu0 0.0
  %3079 = vmatprep.subr.mxu0 0.0
  %3080 = vmatpush2.msra.mxu0 0.0
  %3081 = vmatprep.subr.mxu0 0.0
  %3082 = vmatpush2.msra.mxu0 0.0
  %3083 = vmatprep.subr.mxu0 0.0
  %3084 = vmatpush2.msra.mxu0 0.0
  %3085 = vmatprep.subr.mxu0 0.0
  %3086 = vmatpush2.msra.mxu0 0.0
  %3087 = vmatprep.mubr.f32.mxu0 0.0
  %3088 = vmatmul.mubr.f32.gmra.mxu0 %v2879
  %v3089 = vpop.f32.mrf.mxu0
  %v3090 = vadd.f32 0.0, %v3089
  %v3091 = vpop.f32.mrf.mxu0
  %3092 = vdwg.mxu0
  %v3093 = vadd.f32 %v2848, %v2948
  %v3094 = vadd.f32 %v2849, %v2950
  %v3095 = vadd.f32 %v2850, %v3019
  %v3096 = vadd.f32 %v2851, %v3021
  %v3097 = vadd.f32 %v2852, %v3090
  %s3098 = scalar_lea.vmem %s4, 88
  %v3099 = vld [vmem:[%s3098] sm:$0xff]
  %3100 = vrot.lane.b32.xlu0 %v424, 79
  %v3101 = vpop.permute.xlu0 %3100
  %3102 = vrot.lane.b32.xlu0 %v425, 79
  %v3103 = vpop.permute.xlu0 %3102
  %3104 = vrot.lane.b32.xlu0 %v426, 79
  %v3105 = vpop.permute.xlu0 %3104
  %3106 = vrot.lane.b32.xlu0 %v427, 79
  %v3107 = vpop.permute.xlu0 %3106
  %3108 = vrot.lane.b32.xlu0 %v428, 79
  %v3109 = vpop.permute.xlu0 %3108
  %3110 = vrot.lane.b32.xlu0 %v429, 79
  %v3111 = vpop.permute.xlu0 %3110
  %vm3112 = vcmask 646144
  %v3113 = vsel %vm3112, %v3101, %v3103
  %v3114 = vsel %vm3112, %v3103, %v3105
  %v3115 = vsel %vm3112, %v3105, %v3107
  %v3116 = vsel %vm3112, %v3107, %v3109
  %v3117 = vsel %vm3112, %v3109, %v3111
  %v3124 = vsel %vm462, %v3099, 0
  %3126 = vmatprep.subr.mxu0 0.0
  %3127 = vmatpush1.msra.mxu0 0.0
  %3128 = vmatprep.subr.mxu0 0.0
  %3129 = vmatpush1.msra.mxu0 0.0
  %3130 = vmatprep.subr.mxu0 0.0
  %3131 = vmatpush1.msra.mxu0 0.0
  %3132 = vmatprep.subr.mxu0 0.0
  %3133 = vmatpush1.msra.mxu0 0.0
  %3134 = vmatprep.subr.mxu0 0.0
  %3135 = vmatpush1.msra.mxu0 0.0
  %3136 = vmatprep.subr.mxu0 0.0
  %3137 = vmatpush1.msra.mxu0 0.0
  %3138 = vmatprep.subr.mxu0 0.0
  %3139 = vmatpush1.msra.mxu0 0.0
  %3140 = vmatprep.subr.mxu0 0.0
  %3141 = vmatpush1.msra.mxu0 0.0
  %3142 = vmatprep.subr.mxu0 0.0
  %3143 = vmatpush1.msra.mxu0 0.0
  %3144 = vmatprep.subr.mxu0 0.0
  %3145 = vmatpush1.msra.mxu0 0.0
  %3146 = vmatprep.subr.mxu0 0.0
  %3147 = vmatpush1.msra.mxu0 0.0
  %3148 = vmatprep.subr.mxu0 0.0
  %3149 = vmatpush1.msra.mxu0 0.0
  %3150 = vmatprep.subr.mxu0 0.0
  %3151 = vmatpush1.msra.mxu0 0.0
  %3152 = vmatprep.subr.mxu0 0.0
  %3153 = vmatpush1.msra.mxu0 0.0
  %3154 = vmatprep.subr.mxu0 0.0
  %3155 = vmatpush1.msra.mxu0 0.0
  %3156 = vmatprep.subr.mxu0 %v3114
  %3157 = vmatpush1.msra.mxu0 %v3113
  %3158 = vmatprep.subr.mxu0 0.0
  %3159 = vmatpush2.msra.mxu0 0.0
  %3160 = vmatprep.subr.mxu0 0.0
  %3161 = vmatpush2.msra.mxu0 0.0
  %3162 = vmatprep.subr.mxu0 0.0
  %3163 = vmatpush2.msra.mxu0 0.0
  %3164 = vmatprep.subr.mxu0 0.0
  %3165 = vmatpush2.msra.mxu0 0.0
  %3166 = vmatprep.subr.mxu0 0.0
  %3167 = vmatpush2.msra.mxu0 0.0
  %3168 = vmatprep.subr.mxu0 0.0
  %3169 = vmatpush2.msra.mxu0 0.0
  %3170 = vmatprep.subr.mxu0 0.0
  %3171 = vmatpush2.msra.mxu0 0.0
  %3172 = vmatprep.subr.mxu0 0.0
  %3173 = vmatpush2.msra.mxu0 0.0
  %3174 = vmatprep.subr.mxu0 0.0
  %3175 = vmatpush2.msra.mxu0 0.0
  %3176 = vmatprep.subr.mxu0 0.0
  %3177 = vmatpush2.msra.mxu0 0.0
  %3178 = vmatprep.subr.mxu0 0.0
  %3179 = vmatpush2.msra.mxu0 0.0
  %3180 = vmatprep.subr.mxu0 0.0
  %3181 = vmatpush2.msra.mxu0 0.0
  %3182 = vmatprep.subr.mxu0 0.0
  %3183 = vmatpush2.msra.mxu0 0.0
  %3184 = vmatprep.subr.mxu0 0.0
  %3185 = vmatpush2.msra.mxu0 0.0
  %3186 = vmatprep.subr.mxu0 0.0
  %3187 = vmatpush2.msra.mxu0 0.0
  %3188 = vmatprep.subr.mxu0 0.0
  %3189 = vmatpush2.msra.mxu0 0.0
  %3190 = vmatprep.mubr.f32.mxu0 0.0
  %3191 = vmatmul.mubr.f32.gmra.mxu0 %v3124
  %v3192 = vpop.f32.mrf.mxu0
  %v3193 = vadd.f32 0.0, %v3192
  %v3194 = vpop.f32.mrf.mxu0
  %v3195 = vadd.f32 0.0, %v3194
  %3196 = vdwg.mxu0
  %3197 = vmatprep.subr.mxu0 0.0
  %3198 = vmatpush1.msra.mxu0 0.0
  %3199 = vmatprep.subr.mxu0 0.0
  %3200 = vmatpush1.msra.mxu0 0.0
  %3201 = vmatprep.subr.mxu0 0.0
  %3202 = vmatpush1.msra.mxu0 0.0
  %3203 = vmatprep.subr.mxu0 0.0
  %3204 = vmatpush1.msra.mxu0 0.0
  %3205 = vmatprep.subr.mxu0 0.0
  %3206 = vmatpush1.msra.mxu0 0.0
  %3207 = vmatprep.subr.mxu0 0.0
  %3208 = vmatpush1.msra.mxu0 0.0
  %3209 = vmatprep.subr.mxu0 0.0
  %3210 = vmatpush1.msra.mxu0 0.0
  %3211 = vmatprep.subr.mxu0 0.0
  %3212 = vmatpush1.msra.mxu0 0.0
  %3213 = vmatprep.subr.mxu0 0.0
  %3214 = vmatpush1.msra.mxu0 0.0
  %3215 = vmatprep.subr.mxu0 0.0
  %3216 = vmatpush1.msra.mxu0 0.0
  %3217 = vmatprep.subr.mxu0 0.0
  %3218 = vmatpush1.msra.mxu0 0.0
  %3219 = vmatprep.subr.mxu0 0.0
  %3220 = vmatpush1.msra.mxu0 0.0
  %3221 = vmatprep.subr.mxu0 0.0
  %3222 = vmatpush1.msra.mxu0 0.0
  %3223 = vmatprep.subr.mxu0 0.0
  %3224 = vmatpush1.msra.mxu0 0.0
  %3225 = vmatprep.subr.mxu0 0.0
  %3226 = vmatpush1.msra.mxu0 0.0
  %3227 = vmatprep.subr.mxu0 %v3116
  %3228 = vmatpush1.msra.mxu0 %v3115
  %3229 = vmatprep.subr.mxu0 0.0
  %3230 = vmatpush2.msra.mxu0 0.0
  %3231 = vmatprep.subr.mxu0 0.0
  %3232 = vmatpush2.msra.mxu0 0.0
  %3233 = vmatprep.subr.mxu0 0.0
  %3234 = vmatpush2.msra.mxu0 0.0
  %3235 = vmatprep.subr.mxu0 0.0
  %3236 = vmatpush2.msra.mxu0 0.0
  %3237 = vmatprep.subr.mxu0 0.0
  %3238 = vmatpush2.msra.mxu0 0.0
  %3239 = vmatprep.subr.mxu0 0.0
  %3240 = vmatpush2.msra.mxu0 0.0
  %3241 = vmatprep.subr.mxu0 0.0
  %3242 = vmatpush2.msra.mxu0 0.0
  %3243 = vmatprep.subr.mxu0 0.0
  %3244 = vmatpush2.msra.mxu0 0.0
  %3245 = vmatprep.subr.mxu0 0.0
  %3246 = vmatpush2.msra.mxu0 0.0
  %3247 = vmatprep.subr.mxu0 0.0
  %3248 = vmatpush2.msra.mxu0 0.0
  %3249 = vmatprep.subr.mxu0 0.0
  %3250 = vmatpush2.msra.mxu0 0.0
  %3251 = vmatprep.subr.mxu0 0.0
  %3252 = vmatpush2.msra.mxu0 0.0
  %3253 = vmatprep.subr.mxu0 0.0
  %3254 = vmatpush2.msra.mxu0 0.0
  %3255 = vmatprep.subr.mxu0 0.0
  %3256 = vmatpush2.msra.mxu0 0.0
  %3257 = vmatprep.subr.mxu0 0.0
  %3258 = vmatpush2.msra.mxu0 0.0
  %3259 = vmatprep.subr.mxu0 0.0
  %3260 = vmatpush2.msra.mxu0 0.0
  %3261 = vmatprep.mubr.f32.mxu0 0.0
  %3262 = vmatmul.mubr.f32.gmra.mxu0 %v3124
  %v3263 = vpop.f32.mrf.mxu0
  %v3264 = vadd.f32 0.0, %v3263
  %v3265 = vpop.f32.mrf.mxu0
  %v3266 = vadd.f32 0.0, %v3265
  %3267 = vdwg.mxu0
  %3268 = vmatprep.subr.mxu0 0.0
  %3269 = vmatpush1.msra.mxu0 0.0
  %3270 = vmatprep.subr.mxu0 0.0
  %3271 = vmatpush1.msra.mxu0 0.0
  %3272 = vmatprep.subr.mxu0 0.0
  %3273 = vmatpush1.msra.mxu0 0.0
  %3274 = vmatprep.subr.mxu0 0.0
  %3275 = vmatpush1.msra.mxu0 0.0
  %3276 = vmatprep.subr.mxu0 0.0
  %3277 = vmatpush1.msra.mxu0 0.0
  %3278 = vmatprep.subr.mxu0 0.0
  %3279 = vmatpush1.msra.mxu0 0.0
  %3280 = vmatprep.subr.mxu0 0.0
  %3281 = vmatpush1.msra.mxu0 0.0
  %3282 = vmatprep.subr.mxu0 0.0
  %3283 = vmatpush1.msra.mxu0 0.0
  %3284 = vmatprep.subr.mxu0 0.0
  %3285 = vmatpush1.msra.mxu0 0.0
  %3286 = vmatprep.subr.mxu0 0.0
  %3287 = vmatpush1.msra.mxu0 0.0
  %3288 = vmatprep.subr.mxu0 0.0
  %3289 = vmatpush1.msra.mxu0 0.0
  %3290 = vmatprep.subr.mxu0 0.0
  %3291 = vmatpush1.msra.mxu0 0.0
  %3292 = vmatprep.subr.mxu0 0.0
  %3293 = vmatpush1.msra.mxu0 0.0
  %3294 = vmatprep.subr.mxu0 0.0
  %3295 = vmatpush1.msra.mxu0 0.0
  %3296 = vmatprep.subr.mxu0 0.0
  %3297 = vmatpush1.msra.mxu0 0.0
  %3298 = vmatprep.subr.mxu0 0.0
  %3299 = vmatpush1.msra.mxu0 %v3117
  %3300 = vmatprep.subr.mxu0 0.0
  %3301 = vmatpush2.msra.mxu0 0.0
  %3302 = vmatprep.subr.mxu0 0.0
  %3303 = vmatpush2.msra.mxu0 0.0
  %3304 = vmatprep.subr.mxu0 0.0
  %3305 = vmatpush2.msra.mxu0 0.0
  %3306 = vmatprep.subr.mxu0 0.0
  %3307 = vmatpush2.msra.mxu0 0.0
  %3308 = vmatprep.subr.mxu0 0.0
  %3309 = vmatpush2.msra.mxu0 0.0
  %3310 = vmatprep.subr.mxu0 0.0
  %3311 = vmatpush2.msra.mxu0 0.0
  %3312 = vmatprep.subr.mxu0 0.0
  %3313 = vmatpush2.msra.mxu0 0.0
  %3314 = vmatprep.subr.mxu0 0.0
  %3315 = vmatpush2.msra.mxu0 0.0
  %3316 = vmatprep.subr.mxu0 0.0
  %3317 = vmatpush2.msra.mxu0 0.0
  %3318 = vmatprep.subr.mxu0 0.0
  %3319 = vmatpush2.msra.mxu0 0.0
  %3320 = vmatprep.subr.mxu0 0.0
  %3321 = vmatpush2.msra.mxu0 0.0
  %3322 = vmatprep.subr.mxu0 0.0
  %3323 = vmatpush2.msra.mxu0 0.0
  %3324 = vmatprep.subr.mxu0 0.0
  %3325 = vmatpush2.msra.mxu0 0.0
  %3326 = vmatprep.subr.mxu0 0.0
  %3327 = vmatpush2.msra.mxu0 0.0
  %3328 = vmatprep.subr.mxu0 0.0
  %3329 = vmatpush2.msra.mxu0 0.0
  %3330 = vmatprep.subr.mxu0 0.0
  %3331 = vmatpush2.msra.mxu0 0.0
  %3332 = vmatprep.mubr.f32.mxu0 0.0
  %3333 = vmatmul.mubr.f32.gmra.mxu0 %v3124
  %v3334 = vpop.f32.mrf.mxu0
  %v3335 = vadd.f32 0.0, %v3334
  %v3336 = vpop.f32.mrf.mxu0
  %3337 = vdwg.mxu0
  %v3338 = vadd.f32 %v3093, %v3193
  %v3339 = vadd.f32 %v3094, %v3195
  %v3340 = vadd.f32 %v3095, %v3264
  %v3341 = vadd.f32 %v3096, %v3266
  %v3342 = vadd.f32 %v3097, %v3335
  %s3343 = scalar_lea.vmem %s4, 96
  %v3344 = vld [vmem:[%s3343] sm:$0xff]
  %3345 = vrot.lane.b32.xlu0 %v424, 78
  %v3346 = vpop.permute.xlu0 %3345
  %3347 = vrot.lane.b32.xlu0 %v425, 78
  %v3348 = vpop.permute.xlu0 %3347
  %3349 = vrot.lane.b32.xlu0 %v426, 78
  %v3350 = vpop.permute.xlu0 %3349
  %3351 = vrot.lane.b32.xlu0 %v427, 78
  %v3352 = vpop.permute.xlu0 %3351
  %3353 = vrot.lane.b32.xlu0 %v428, 78
  %v3354 = vpop.permute.xlu0 %3353
  %3355 = vrot.lane.b32.xlu0 %v429, 78
  %v3356 = vpop.permute.xlu0 %3355
  %vm3357 = vcmask 637952
  %v3358 = vsel %vm3357, %v3346, %v3348
  %v3359 = vsel %vm3357, %v3348, %v3350
  %v3360 = vsel %vm3357, %v3350, %v3352
  %v3361 = vsel %vm3357, %v3352, %v3354
  %v3362 = vsel %vm3357, %v3354, %v3356
  %v3369 = vsel %vm462, %v3344, 0
  %3371 = vmatprep.subr.mxu0 0.0
  %3372 = vmatpush1.msra.mxu0 0.0
  %3373 = vmatprep.subr.mxu0 0.0
  %3374 = vmatpush1.msra.mxu0 0.0
  %3375 = vmatprep.subr.mxu0 0.0
  %3376 = vmatpush1.msra.mxu0 0.0
  %3377 = vmatprep.subr.mxu0 0.0
  %3378 = vmatpush1.msra.mxu0 0.0
  %3379 = vmatprep.subr.mxu0 0.0
  %3380 = vmatpush1.msra.mxu0 0.0
  %3381 = vmatprep.subr.mxu0 0.0
  %3382 = vmatpush1.msra.mxu0 0.0
  %3383 = vmatprep.subr.mxu0 0.0
  %3384 = vmatpush1.msra.mxu0 0.0
  %3385 = vmatprep.subr.mxu0 0.0
  %3386 = vmatpush1.msra.mxu0 0.0
  %3387 = vmatprep.subr.mxu0 0.0
  %3388 = vmatpush1.msra.mxu0 0.0
  %3389 = vmatprep.subr.mxu0 0.0
  %3390 = vmatpush1.msra.mxu0 0.0
  %3391 = vmatprep.subr.mxu0 0.0
  %3392 = vmatpush1.msra.mxu0 0.0
  %3393 = vmatprep.subr.mxu0 0.0
  %3394 = vmatpush1.msra.mxu0 0.0
  %3395 = vmatprep.subr.mxu0 0.0
  %3396 = vmatpush1.msra.mxu0 0.0
  %3397 = vmatprep.subr.mxu0 0.0
  %3398 = vmatpush1.msra.mxu0 0.0
  %3399 = vmatprep.subr.mxu0 0.0
  %3400 = vmatpush1.msra.mxu0 0.0
  %3401 = vmatprep.subr.mxu0 %v3359
  %3402 = vmatpush1.msra.mxu0 %v3358
  %3403 = vmatprep.subr.mxu0 0.0
  %3404 = vmatpush2.msra.mxu0 0.0
  %3405 = vmatprep.subr.mxu0 0.0
  %3406 = vmatpush2.msra.mxu0 0.0
  %3407 = vmatprep.subr.mxu0 0.0
  %3408 = vmatpush2.msra.mxu0 0.0
  %3409 = vmatprep.subr.mxu0 0.0
  %3410 = vmatpush2.msra.mxu0 0.0
  %3411 = vmatprep.subr.mxu0 0.0
  %3412 = vmatpush2.msra.mxu0 0.0
  %3413 = vmatprep.subr.mxu0 0.0
  %3414 = vmatpush2.msra.mxu0 0.0
  %3415 = vmatprep.subr.mxu0 0.0
  %3416 = vmatpush2.msra.mxu0 0.0
  %3417 = vmatprep.subr.mxu0 0.0
  %3418 = vmatpush2.msra.mxu0 0.0
  %3419 = vmatprep.subr.mxu0 0.0
  %3420 = vmatpush2.msra.mxu0 0.0
  %3421 = vmatprep.subr.mxu0 0.0
  %3422 = vmatpush2.msra.mxu0 0.0
  %3423 = vmatprep.subr.mxu0 0.0
  %3424 = vmatpush2.msra.mxu0 0.0
  %3425 = vmatprep.subr.mxu0 0.0
  %3426 = vmatpush2.msra.mxu0 0.0
  %3427 = vmatprep.subr.mxu0 0.0
  %3428 = vmatpush2.msra.mxu0 0.0
  %3429 = vmatprep.subr.mxu0 0.0
  %3430 = vmatpush2.msra.mxu0 0.0
  %3431 = vmatprep.subr.mxu0 0.0
  %3432 = vmatpush2.msra.mxu0 0.0
  %3433 = vmatprep.subr.mxu0 0.0
  %3434 = vmatpush2.msra.mxu0 0.0
  %3435 = vmatprep.mubr.f32.mxu0 0.0
  %3436 = vmatmul.mubr.f32.gmra.mxu0 %v3369
  %v3437 = vpop.f32.mrf.mxu0
  %v3438 = vadd.f32 0.0, %v3437
  %v3439 = vpop.f32.mrf.mxu0
  %v3440 = vadd.f32 0.0, %v3439
  %3441 = vdwg.mxu0
  %3442 = vmatprep.subr.mxu0 0.0
  %3443 = vmatpush1.msra.mxu0 0.0
  %3444 = vmatprep.subr.mxu0 0.0
  %3445 = vmatpush1.msra.mxu0 0.0
  %3446 = vmatprep.subr.mxu0 0.0
  %3447 = vmatpush1.msra.mxu0 0.0
  %3448 = vmatprep.subr.mxu0 0.0
  %3449 = vmatpush1.msra.mxu0 0.0
  %3450 = vmatprep.subr.mxu0 0.0
  %3451 = vmatpush1.msra.mxu0 0.0
  %3452 = vmatprep.subr.mxu0 0.0
  %3453 = vmatpush1.msra.mxu0 0.0
  %3454 = vmatprep.subr.mxu0 0.0
  %3455 = vmatpush1.msra.mxu0 0.0
  %3456 = vmatprep.subr.mxu0 0.0
  %3457 = vmatpush1.msra.mxu0 0.0
  %3458 = vmatprep.subr.mxu0 0.0
  %3459 = vmatpush1.msra.mxu0 0.0
  %3460 = vmatprep.subr.mxu0 0.0
  %3461 = vmatpush1.msra.mxu0 0.0
  %3462 = vmatprep.subr.mxu0 0.0
  %3463 = vmatpush1.msra.mxu0 0.0
  %3464 = vmatprep.subr.mxu0 0.0
  %3465 = vmatpush1.msra.mxu0 0.0
  %3466 = vmatprep.subr.mxu0 0.0
  %3467 = vmatpush1.msra.mxu0 0.0
  %3468 = vmatprep.subr.mxu0 0.0
  %3469 = vmatpush1.msra.mxu0 0.0
  %3470 = vmatprep.subr.mxu0 0.0
  %3471 = vmatpush1.msra.mxu0 0.0
  %3472 = vmatprep.subr.mxu0 %v3361
  %3473 = vmatpush1.msra.mxu0 %v3360
  %3474 = vmatprep.subr.mxu0 0.0
  %3475 = vmatpush2.msra.mxu0 0.0
  %3476 = vmatprep.subr.mxu0 0.0
  %3477 = vmatpush2.msra.mxu0 0.0
  %3478 = vmatprep.subr.mxu0 0.0
  %3479 = vmatpush2.msra.mxu0 0.0
  %3480 = vmatprep.subr.mxu0 0.0
  %3481 = vmatpush2.msra.mxu0 0.0
  %3482 = vmatprep.subr.mxu0 0.0
  %3483 = vmatpush2.msra.mxu0 0.0
  %3484 = vmatprep.subr.mxu0 0.0
  %3485 = vmatpush2.msra.mxu0 0.0
  %3486 = vmatprep.subr.mxu0 0.0
  %3487 = vmatpush2.msra.mxu0 0.0
  %3488 = vmatprep.subr.mxu0 0.0
  %3489 = vmatpush2.msra.mxu0 0.0
  %3490 = vmatprep.subr.mxu0 0.0
  %3491 = vmatpush2.msra.mxu0 0.0
  %3492 = vmatprep.subr.mxu0 0.0
  %3493 = vmatpush2.msra.mxu0 0.0
  %3494 = vmatprep.subr.mxu0 0.0
  %3495 = vmatpush2.msra.mxu0 0.0
  %3496 = vmatprep.subr.mxu0 0.0
  %3497 = vmatpush2.msra.mxu0 0.0
  %3498 = vmatprep.subr.mxu0 0.0
  %3499 = vmatpush2.msra.mxu0 0.0
  %3500 = vmatprep.subr.mxu0 0.0
  %3501 = vmatpush2.msra.mxu0 0.0
  %3502 = vmatprep.subr.mxu0 0.0
  %3503 = vmatpush2.msra.mxu0 0.0
  %3504 = vmatprep.subr.mxu0 0.0
  %3505 = vmatpush2.msra.mxu0 0.0
  %3506 = vmatprep.mubr.f32.mxu0 0.0
  %3507 = vmatmul.mubr.f32.gmra.mxu0 %v3369
  %v3508 = vpop.f32.mrf.mxu0
  %v3509 = vadd.f32 0.0, %v3508
  %v3510 = vpop.f32.mrf.mxu0
  %v3511 = vadd.f32 0.0, %v3510
  %3512 = vdwg.mxu0
  %3513 = vmatprep.subr.mxu0 0.0
  %3514 = vmatpush1.msra.mxu0 0.0
  %3515 = vmatprep.subr.mxu0 0.0
  %3516 = vmatpush1.msra.mxu0 0.0
  %3517 = vmatprep.subr.mxu0 0.0
  %3518 = vmatpush1.msra.mxu0 0.0
  %3519 = vmatprep.subr.mxu0 0.0
  %3520 = vmatpush1.msra.mxu0 0.0
  %3521 = vmatprep.subr.mxu0 0.0
  %3522 = vmatpush1.msra.mxu0 0.0
  %3523 = vmatprep.subr.mxu0 0.0
  %3524 = vmatpush1.msra.mxu0 0.0
  %3525 = vmatprep.subr.mxu0 0.0
  %3526 = vmatpush1.msra.mxu0 0.0
  %3527 = vmatprep.subr.mxu0 0.0
  %3528 = vmatpush1.msra.mxu0 0.0
  %3529 = vmatprep.subr.mxu0 0.0
  %3530 = vmatpush1.msra.mxu0 0.0
  %3531 = vmatprep.subr.mxu0 0.0
  %3532 = vmatpush1.msra.mxu0 0.0
  %3533 = vmatprep.subr.mxu0 0.0
  %3534 = vmatpush1.msra.mxu0 0.0
  %3535 = vmatprep.subr.mxu0 0.0
  %3536 = vmatpush1.msra.mxu0 0.0
  %3537 = vmatprep.subr.mxu0 0.0
  %3538 = vmatpush1.msra.mxu0 0.0
  %3539 = vmatprep.subr.mxu0 0.0
  %3540 = vmatpush1.msra.mxu0 0.0
  %3541 = vmatprep.subr.mxu0 0.0
  %3542 = vmatpush1.msra.mxu0 0.0
  %3543 = vmatprep.subr.mxu0 0.0
  %3544 = vmatpush1.msra.mxu0 %v3362
  %3545 = vmatprep.subr.mxu0 0.0
  %3546 = vmatpush2.msra.mxu0 0.0
  %3547 = vmatprep.subr.mxu0 0.0
  %3548 = vmatpush2.msra.mxu0 0.0
  %3549 = vmatprep.subr.mxu0 0.0
  %3550 = vmatpush2.msra.mxu0 0.0
  %3551 = vmatprep.subr.mxu0 0.0
  %3552 = vmatpush2.msra.mxu0 0.0
  %3553 = vmatprep.subr.mxu0 0.0
  %3554 = vmatpush2.msra.mxu0 0.0
  %3555 = vmatprep.subr.mxu0 0.0
  %3556 = vmatpush2.msra.mxu0 0.0
  %3557 = vmatprep.subr.mxu0 0.0
  %3558 = vmatpush2.msra.mxu0 0.0
  %3559 = vmatprep.subr.mxu0 0.0
  %3560 = vmatpush2.msra.mxu0 0.0
  %3561 = vmatprep.subr.mxu0 0.0
  %3562 = vmatpush2.msra.mxu0 0.0
  %3563 = vmatprep.subr.mxu0 0.0
  %3564 = vmatpush2.msra.mxu0 0.0
  %3565 = vmatprep.subr.mxu0 0.0
  %3566 = vmatpush2.msra.mxu0 0.0
  %3567 = vmatprep.subr.mxu0 0.0
  %3568 = vmatpush2.msra.mxu0 0.0
  %3569 = vmatprep.subr.mxu0 0.0
  %3570 = vmatpush2.msra.mxu0 0.0
  %3571 = vmatprep.subr.mxu0 0.0
  %3572 = vmatpush2.msra.mxu0 0.0
  %3573 = vmatprep.subr.mxu0 0.0
  %3574 = vmatpush2.msra.mxu0 0.0
  %3575 = vmatprep.subr.mxu0 0.0
  %3576 = vmatpush2.msra.mxu0 0.0
  %3577 = vmatprep.mubr.f32.mxu0 0.0
  %3578 = vmatmul.mubr.f32.gmra.mxu0 %v3369
  %v3579 = vpop.f32.mrf.mxu0
  %v3580 = vadd.f32 0.0, %v3579
  %v3581 = vpop.f32.mrf.mxu0
  %3582 = vdwg.mxu0
  %v3583 = vadd.f32 %v3338, %v3438
  %v3584 = vadd.f32 %v3339, %v3440
  %v3585 = vadd.f32 %v3340, %v3509
  %v3586 = vadd.f32 %v3341, %v3511
  %v3587 = vadd.f32 %v3342, %v3580
  %s3588 = scalar_lea.vmem %s4, 104
  %v3589 = vld [vmem:[%s3588] sm:$0xff]
  %3590 = vrot.lane.b32.xlu0 %v424, 77
  %v3591 = vpop.permute.xlu0 %3590
  %3592 = vrot.lane.b32.xlu0 %v425, 77
  %v3593 = vpop.permute.xlu0 %3592
  %3594 = vrot.lane.b32.xlu0 %v426, 77
  %v3595 = vpop.permute.xlu0 %3594
  %3596 = vrot.lane.b32.xlu0 %v427, 77
  %v3597 = vpop.permute.xlu0 %3596
  %3598 = vrot.lane.b32.xlu0 %v428, 77
  %v3599 = vpop.permute.xlu0 %3598
  %3600 = vrot.lane.b32.xlu0 %v429, 77
  %v3601 = vpop.permute.xlu0 %3600
  %vm3602 = vcmask 629760
  %v3603 = vsel %vm3602, %v3591, %v3593
  %v3604 = vsel %vm3602, %v3593, %v3595
  %v3605 = vsel %vm3602, %v3595, %v3597
  %v3606 = vsel %vm3602, %v3597, %v3599
  %v3607 = vsel %vm3602, %v3599, %v3601
  %v3614 = vsel %vm462, %v3589, 0
  %3616 = vmatprep.subr.mxu0 0.0
  %3617 = vmatpush1.msra.mxu0 0.0
  %3618 = vmatprep.subr.mxu0 0.0
  %3619 = vmatpush1.msra.mxu0 0.0
  %3620 = vmatprep.subr.mxu0 0.0
  %3621 = vmatpush1.msra.mxu0 0.0
  %3622 = vmatprep.subr.mxu0 0.0
  %3623 = vmatpush1.msra.mxu0 0.0
  %3624 = vmatprep.subr.mxu0 0.0
  %3625 = vmatpush1.msra.mxu0 0.0
  %3626 = vmatprep.subr.mxu0 0.0
  %3627 = vmatpush1.msra.mxu0 0.0
  %3628 = vmatprep.subr.mxu0 0.0
  %3629 = vmatpush1.msra.mxu0 0.0
  %3630 = vmatprep.subr.mxu0 0.0
  %3631 = vmatpush1.msra.mxu0 0.0
  %3632 = vmatprep.subr.mxu0 0.0
  %3633 = vmatpush1.msra.mxu0 0.0
  %3634 = vmatprep.subr.mxu0 0.0
  %3635 = vmatpush1.msra.mxu0 0.0
  %3636 = vmatprep.subr.mxu0 0.0
  %3637 = vmatpush1.msra.mxu0 0.0
  %3638 = vmatprep.subr.mxu0 0.0
  %3639 = vmatpush1.msra.mxu0 0.0
  %3640 = vmatprep.subr.mxu0 0.0
  %3641 = vmatpush1.msra.mxu0 0.0
  %3642 = vmatprep.subr.mxu0 0.0
  %3643 = vmatpush1.msra.mxu0 0.0
  %3644 = vmatprep.subr.mxu0 0.0
  %3645 = vmatpush1.msra.mxu0 0.0
  %3646 = vmatprep.subr.mxu0 %v3604
  %3647 = vmatpush1.msra.mxu0 %v3603
  %3648 = vmatprep.subr.mxu0 0.0
  %3649 = vmatpush2.msra.mxu0 0.0
  %3650 = vmatprep.subr.mxu0 0.0
  %3651 = vmatpush2.msra.mxu0 0.0
  %3652 = vmatprep.subr.mxu0 0.0
  %3653 = vmatpush2.msra.mxu0 0.0
  %3654 = vmatprep.subr.mxu0 0.0
  %3655 = vmatpush2.msra.mxu0 0.0
  %3656 = vmatprep.subr.mxu0 0.0
  %3657 = vmatpush2.msra.mxu0 0.0
  %3658 = vmatprep.subr.mxu0 0.0
  %3659 = vmatpush2.msra.mxu0 0.0
  %3660 = vmatprep.subr.mxu0 0.0
  %3661 = vmatpush2.msra.mxu0 0.0
  %3662 = vmatprep.subr.mxu0 0.0
  %3663 = vmatpush2.msra.mxu0 0.0
  %3664 = vmatprep.subr.mxu0 0.0
  %3665 = vmatpush2.msra.mxu0 0.0
  %3666 = vmatprep.subr.mxu0 0.0
  %3667 = vmatpush2.msra.mxu0 0.0
  %3668 = vmatprep.subr.mxu0 0.0
  %3669 = vmatpush2.msra.mxu0 0.0
  %3670 = vmatprep.subr.mxu0 0.0
  %3671 = vmatpush2.msra.mxu0 0.0
  %3672 = vmatprep.subr.mxu0 0.0
  %3673 = vmatpush2.msra.mxu0 0.0
  %3674 = vmatprep.subr.mxu0 0.0
  %3675 = vmatpush2.msra.mxu0 0.0
  %3676 = vmatprep.subr.mxu0 0.0
  %3677 = vmatpush2.msra.mxu0 0.0
  %3678 = vmatprep.subr.mxu0 0.0
  %3679 = vmatpush2.msra.mxu0 0.0
  %3680 = vmatprep.mubr.f32.mxu0 0.0
  %3681 = vmatmul.mubr.f32.gmra.mxu0 %v3614
  %v3682 = vpop.f32.mrf.mxu0
  %v3683 = vadd.f32 0.0, %v3682
  %v3684 = vpop.f32.mrf.mxu0
  %v3685 = vadd.f32 0.0, %v3684
  %3686 = vdwg.mxu0
  %3687 = vmatprep.subr.mxu0 0.0
  %3688 = vmatpush1.msra.mxu0 0.0
  %3689 = vmatprep.subr.mxu0 0.0
  %3690 = vmatpush1.msra.mxu0 0.0
  %3691 = vmatprep.subr.mxu0 0.0
  %3692 = vmatpush1.msra.mxu0 0.0
  %3693 = vmatprep.subr.mxu0 0.0
  %3694 = vmatpush1.msra.mxu0 0.0
  %3695 = vmatprep.subr.mxu0 0.0
  %3696 = vmatpush1.msra.mxu0 0.0
  %3697 = vmatprep.subr.mxu0 0.0
  %3698 = vmatpush1.msra.mxu0 0.0
  %3699 = vmatprep.subr.mxu0 0.0
  %3700 = vmatpush1.msra.mxu0 0.0
  %3701 = vmatprep.subr.mxu0 0.0
  %3702 = vmatpush1.msra.mxu0 0.0
  %3703 = vmatprep.subr.mxu0 0.0
  %3704 = vmatpush1.msra.mxu0 0.0
  %3705 = vmatprep.subr.mxu0 0.0
  %3706 = vmatpush1.msra.mxu0 0.0
  %3707 = vmatprep.subr.mxu0 0.0
  %3708 = vmatpush1.msra.mxu0 0.0
  %3709 = vmatprep.subr.mxu0 0.0
  %3710 = vmatpush1.msra.mxu0 0.0
  %3711 = vmatprep.subr.mxu0 0.0
  %3712 = vmatpush1.msra.mxu0 0.0
  %3713 = vmatprep.subr.mxu0 0.0
  %3714 = vmatpush1.msra.mxu0 0.0
  %3715 = vmatprep.subr.mxu0 0.0
  %3716 = vmatpush1.msra.mxu0 0.0
  %3717 = vmatprep.subr.mxu0 %v3606
  %3718 = vmatpush1.msra.mxu0 %v3605
  %3719 = vmatprep.subr.mxu0 0.0
  %3720 = vmatpush2.msra.mxu0 0.0
  %3721 = vmatprep.subr.mxu0 0.0
  %3722 = vmatpush2.msra.mxu0 0.0
  %3723 = vmatprep.subr.mxu0 0.0
  %3724 = vmatpush2.msra.mxu0 0.0
  %3725 = vmatprep.subr.mxu0 0.0
  %3726 = vmatpush2.msra.mxu0 0.0
  %3727 = vmatprep.subr.mxu0 0.0
  %3728 = vmatpush2.msra.mxu0 0.0
  %3729 = vmatprep.subr.mxu0 0.0
  %3730 = vmatpush2.msra.mxu0 0.0
  %3731 = vmatprep.subr.mxu0 0.0
  %3732 = vmatpush2.msra.mxu0 0.0
  %3733 = vmatprep.subr.mxu0 0.0
  %3734 = vmatpush2.msra.mxu0 0.0
  %3735 = vmatprep.subr.mxu0 0.0
  %3736 = vmatpush2.msra.mxu0 0.0
  %3737 = vmatprep.subr.mxu0 0.0
  %3738 = vmatpush2.msra.mxu0 0.0
  %3739 = vmatprep.subr.mxu0 0.0
  %3740 = vmatpush2.msra.mxu0 0.0
  %3741 = vmatprep.subr.mxu0 0.0
  %3742 = vmatpush2.msra.mxu0 0.0
  %3743 = vmatprep.subr.mxu0 0.0
  %3744 = vmatpush2.msra.mxu0 0.0
  %3745 = vmatprep.subr.mxu0 0.0
  %3746 = vmatpush2.msra.mxu0 0.0
  %3747 = vmatprep.subr.mxu0 0.0
  %3748 = vmatpush2.msra.mxu0 0.0
  %3749 = vmatprep.subr.mxu0 0.0
  %3750 = vmatpush2.msra.mxu0 0.0
  %3751 = vmatprep.mubr.f32.mxu0 0.0
  %3752 = vmatmul.mubr.f32.gmra.mxu0 %v3614
  %v3753 = vpop.f32.mrf.mxu0
  %v3754 = vadd.f32 0.0, %v3753
  %v3755 = vpop.f32.mrf.mxu0
  %v3756 = vadd.f32 0.0, %v3755
  %3757 = vdwg.mxu0
  %3758 = vmatprep.subr.mxu0 0.0
  %3759 = vmatpush1.msra.mxu0 0.0
  %3760 = vmatprep.subr.mxu0 0.0
  %3761 = vmatpush1.msra.mxu0 0.0
  %3762 = vmatprep.subr.mxu0 0.0
  %3763 = vmatpush1.msra.mxu0 0.0
  %3764 = vmatprep.subr.mxu0 0.0
  %3765 = vmatpush1.msra.mxu0 0.0
  %3766 = vmatprep.subr.mxu0 0.0
  %3767 = vmatpush1.msra.mxu0 0.0
  %3768 = vmatprep.subr.mxu0 0.0
  %3769 = vmatpush1.msra.mxu0 0.0
  %3770 = vmatprep.subr.mxu0 0.0
  %3771 = vmatpush1.msra.mxu0 0.0
  %3772 = vmatprep.subr.mxu0 0.0
  %3773 = vmatpush1.msra.mxu0 0.0
  %3774 = vmatprep.subr.mxu0 0.0
  %3775 = vmatpush1.msra.mxu0 0.0
  %3776 = vmatprep.subr.mxu0 0.0
  %3777 = vmatpush1.msra.mxu0 0.0
  %3778 = vmatprep.subr.mxu0 0.0
  %3779 = vmatpush1.msra.mxu0 0.0
  %3780 = vmatprep.subr.mxu0 0.0
  %3781 = vmatpush1.msra.mxu0 0.0
  %3782 = vmatprep.subr.mxu0 0.0
  %3783 = vmatpush1.msra.mxu0 0.0
  %3784 = vmatprep.subr.mxu0 0.0
  %3785 = vmatpush1.msra.mxu0 0.0
  %3786 = vmatprep.subr.mxu0 0.0
  %3787 = vmatpush1.msra.mxu0 0.0
  %3788 = vmatprep.subr.mxu0 0.0
  %3789 = vmatpush1.msra.mxu0 %v3607
  %3790 = vmatprep.subr.mxu0 0.0
  %3791 = vmatpush2.msra.mxu0 0.0
  %3792 = vmatprep.subr.mxu0 0.0
  %3793 = vmatpush2.msra.mxu0 0.0
  %3794 = vmatprep.subr.mxu0 0.0
  %3795 = vmatpush2.msra.mxu0 0.0
  %3796 = vmatprep.subr.mxu0 0.0
  %3797 = vmatpush2.msra.mxu0 0.0
  %3798 = vmatprep.subr.mxu0 0.0
  %3799 = vmatpush2.msra.mxu0 0.0
  %3800 = vmatprep.subr.mxu0 0.0
  %3801 = vmatpush2.msra.mxu0 0.0
  %3802 = vmatprep.subr.mxu0 0.0
  %3803 = vmatpush2.msra.mxu0 0.0
  %3804 = vmatprep.subr.mxu0 0.0
  %3805 = vmatpush2.msra.mxu0 0.0
  %3806 = vmatprep.subr.mxu0 0.0
  %3807 = vmatpush2.msra.mxu0 0.0
  %3808 = vmatprep.subr.mxu0 0.0
  %3809 = vmatpush2.msra.mxu0 0.0
  %3810 = vmatprep.subr.mxu0 0.0
  %3811 = vmatpush2.msra.mxu0 0.0
  %3812 = vmatprep.subr.mxu0 0.0
  %3813 = vmatpush2.msra.mxu0 0.0
  %3814 = vmatprep.subr.mxu0 0.0
  %3815 = vmatpush2.msra.mxu0 0.0
  %3816 = vmatprep.subr.mxu0 0.0
  %3817 = vmatpush2.msra.mxu0 0.0
  %3818 = vmatprep.subr.mxu0 0.0
  %3819 = vmatpush2.msra.mxu0 0.0
  %3820 = vmatprep.subr.mxu0 0.0
  %3821 = vmatpush2.msra.mxu0 0.0
  %3822 = vmatprep.mubr.f32.mxu0 0.0
  %3823 = vmatmul.mubr.f32.gmra.mxu0 %v3614
  %v3824 = vpop.f32.mrf.mxu0
  %v3825 = vadd.f32 0.0, %v3824
  %v3826 = vpop.f32.mrf.mxu0
  %3827 = vdwg.mxu0
  %v3828 = vadd.f32 %v3583, %v3683
  %v3829 = vadd.f32 %v3584, %v3685
  %v3830 = vadd.f32 %v3585, %v3754
  %v3831 = vadd.f32 %v3586, %v3756
  %v3832 = vadd.f32 %v3587, %v3825
  %s3833 = scalar_lea.vmem %s4, 112
  %v3834 = vld [vmem:[%s3833] sm:$0xff]
  %3835 = vrot.lane.b32.xlu0 %v424, 76
  %v3836 = vpop.permute.xlu0 %3835
  %3837 = vrot.lane.b32.xlu0 %v425, 76
  %v3838 = vpop.permute.xlu0 %3837
  %3839 = vrot.lane.b32.xlu0 %v426, 76
  %v3840 = vpop.permute.xlu0 %3839
  %3841 = vrot.lane.b32.xlu0 %v427, 76
  %v3842 = vpop.permute.xlu0 %3841
  %3843 = vrot.lane.b32.xlu0 %v428, 76
  %v3844 = vpop.permute.xlu0 %3843
  %3845 = vrot.lane.b32.xlu0 %v429, 76
  %v3846 = vpop.permute.xlu0 %3845
  %vm3847 = vcmask 621568
  %v3848 = vsel %vm3847, %v3836, %v3838
  %v3849 = vsel %vm3847, %v3838, %v3840
  %v3850 = vsel %vm3847, %v3840, %v3842
  %v3851 = vsel %vm3847, %v3842, %v3844
  %v3852 = vsel %vm3847, %v3844, %v3846
  %v3859 = vsel %vm462, %v3834, 0
  %3861 = vmatprep.subr.mxu0 0.0
  %3862 = vmatpush1.msra.mxu0 0.0
  %3863 = vmatprep.subr.mxu0 0.0
  %3864 = vmatpush1.msra.mxu0 0.0
  %3865 = vmatprep.subr.mxu0 0.0
  %3866 = vmatpush1.msra.mxu0 0.0
  %3867 = vmatprep.subr.mxu0 0.0
  %3868 = vmatpush1.msra.mxu0 0.0
  %3869 = vmatprep.subr.mxu0 0.0
  %3870 = vmatpush1.msra.mxu0 0.0
  %3871 = vmatprep.subr.mxu0 0.0
  %3872 = vmatpush1.msra.mxu0 0.0
  %3873 = vmatprep.subr.mxu0 0.0
  %3874 = vmatpush1.msra.mxu0 0.0
  %3875 = vmatprep.subr.mxu0 0.0
  %3876 = vmatpush1.msra.mxu0 0.0
  %3877 = vmatprep.subr.mxu0 0.0
  %3878 = vmatpush1.msra.mxu0 0.0
  %3879 = vmatprep.subr.mxu0 0.0
  %3880 = vmatpush1.msra.mxu0 0.0
  %3881 = vmatprep.subr.mxu0 0.0
  %3882 = vmatpush1.msra.mxu0 0.0
  %3883 = vmatprep.subr.mxu0 0.0
  %3884 = vmatpush1.msra.mxu0 0.0
  %3885 = vmatprep.subr.mxu0 0.0
  %3886 = vmatpush1.msra.mxu0 0.0
  %3887 = vmatprep.subr.mxu0 0.0
  %3888 = vmatpush1.msra.mxu0 0.0
  %3889 = vmatprep.subr.mxu0 0.0
  %3890 = vmatpush1.msra.mxu0 0.0
  %3891 = vmatprep.subr.mxu0 %v3849
  %3892 = vmatpush1.msra.mxu0 %v3848
  %3893 = vmatprep.subr.mxu0 0.0
  %3894 = vmatpush2.msra.mxu0 0.0
  %3895 = vmatprep.subr.mxu0 0.0
  %3896 = vmatpush2.msra.mxu0 0.0
  %3897 = vmatprep.subr.mxu0 0.0
  %3898 = vmatpush2.msra.mxu0 0.0
  %3899 = vmatprep.subr.mxu0 0.0
  %3900 = vmatpush2.msra.mxu0 0.0
  %3901 = vmatprep.subr.mxu0 0.0
  %3902 = vmatpush2.msra.mxu0 0.0
  %3903 = vmatprep.subr.mxu0 0.0
  %3904 = vmatpush2.msra.mxu0 0.0
  %3905 = vmatprep.subr.mxu0 0.0
  %3906 = vmatpush2.msra.mxu0 0.0
  %3907 = vmatprep.subr.mxu0 0.0
  %3908 = vmatpush2.msra.mxu0 0.0
  %3909 = vmatprep.subr.mxu0 0.0
  %3910 = vmatpush2.msra.mxu0 0.0
  %3911 = vmatprep.subr.mxu0 0.0
  %3912 = vmatpush2.msra.mxu0 0.0
  %3913 = vmatprep.subr.mxu0 0.0
  %3914 = vmatpush2.msra.mxu0 0.0
  %3915 = vmatprep.subr.mxu0 0.0
  %3916 = vmatpush2.msra.mxu0 0.0
  %3917 = vmatprep.subr.mxu0 0.0
  %3918 = vmatpush2.msra.mxu0 0.0
  %3919 = vmatprep.subr.mxu0 0.0
  %3920 = vmatpush2.msra.mxu0 0.0
  %3921 = vmatprep.subr.mxu0 0.0
  %3922 = vmatpush2.msra.mxu0 0.0
  %3923 = vmatprep.subr.mxu0 0.0
  %3924 = vmatpush2.msra.mxu0 0.0
  %3925 = vmatprep.mubr.f32.mxu0 0.0
  %3926 = vmatmul.mubr.f32.gmra.mxu0 %v3859
  %v3927 = vpop.f32.mrf.mxu0
  %v3928 = vadd.f32 0.0, %v3927
  %v3929 = vpop.f32.mrf.mxu0
  %v3930 = vadd.f32 0.0, %v3929
  %3931 = vdwg.mxu0
  %3932 = vmatprep.subr.mxu0 0.0
  %3933 = vmatpush1.msra.mxu0 0.0
  %3934 = vmatprep.subr.mxu0 0.0
  %3935 = vmatpush1.msra.mxu0 0.0
  %3936 = vmatprep.subr.mxu0 0.0
  %3937 = vmatpush1.msra.mxu0 0.0
  %3938 = vmatprep.subr.mxu0 0.0
  %3939 = vmatpush1.msra.mxu0 0.0
  %3940 = vmatprep.subr.mxu0 0.0
  %3941 = vmatpush1.msra.mxu0 0.0
  %3942 = vmatprep.subr.mxu0 0.0
  %3943 = vmatpush1.msra.mxu0 0.0
  %3944 = vmatprep.subr.mxu0 0.0
  %3945 = vmatpush1.msra.mxu0 0.0
  %3946 = vmatprep.subr.mxu0 0.0
  %3947 = vmatpush1.msra.mxu0 0.0
  %3948 = vmatprep.subr.mxu0 0.0
  %3949 = vmatpush1.msra.mxu0 0.0
  %3950 = vmatprep.subr.mxu0 0.0
  %3951 = vmatpush1.msra.mxu0 0.0
  %3952 = vmatprep.subr.mxu0 0.0
  %3953 = vmatpush1.msra.mxu0 0.0
  %3954 = vmatprep.subr.mxu0 0.0
  %3955 = vmatpush1.msra.mxu0 0.0
  %3956 = vmatprep.subr.mxu0 0.0
  %3957 = vmatpush1.msra.mxu0 0.0
  %3958 = vmatprep.subr.mxu0 0.0
  %3959 = vmatpush1.msra.mxu0 0.0
  %3960 = vmatprep.subr.mxu0 0.0
  %3961 = vmatpush1.msra.mxu0 0.0
  %3962 = vmatprep.subr.mxu0 %v3851
  %3963 = vmatpush1.msra.mxu0 %v3850
  %3964 = vmatprep.subr.mxu0 0.0
  %3965 = vmatpush2.msra.mxu0 0.0
  %3966 = vmatprep.subr.mxu0 0.0
  %3967 = vmatpush2.msra.mxu0 0.0
  %3968 = vmatprep.subr.mxu0 0.0
  %3969 = vmatpush2.msra.mxu0 0.0
  %3970 = vmatprep.subr.mxu0 0.0
  %3971 = vmatpush2.msra.mxu0 0.0
  %3972 = vmatprep.subr.mxu0 0.0
  %3973 = vmatpush2.msra.mxu0 0.0
  %3974 = vmatprep.subr.mxu0 0.0
  %3975 = vmatpush2.msra.mxu0 0.0
  %3976 = vmatprep.subr.mxu0 0.0
  %3977 = vmatpush2.msra.mxu0 0.0
  %3978 = vmatprep.subr.mxu0 0.0
  %3979 = vmatpush2.msra.mxu0 0.0
  %3980 = vmatprep.subr.mxu0 0.0
  %3981 = vmatpush2.msra.mxu0 0.0
  %3982 = vmatprep.subr.mxu0 0.0
  %3983 = vmatpush2.msra.mxu0 0.0
  %3984 = vmatprep.subr.mxu0 0.0
  %3985 = vmatpush2.msra.mxu0 0.0
  %3986 = vmatprep.subr.mxu0 0.0
  %3987 = vmatpush2.msra.mxu0 0.0
  %3988 = vmatprep.subr.mxu0 0.0
  %3989 = vmatpush2.msra.mxu0 0.0
  %3990 = vmatprep.subr.mxu0 0.0
  %3991 = vmatpush2.msra.mxu0 0.0
  %3992 = vmatprep.subr.mxu0 0.0
  %3993 = vmatpush2.msra.mxu0 0.0
  %3994 = vmatprep.subr.mxu0 0.0
  %3995 = vmatpush2.msra.mxu0 0.0
  %3996 = vmatprep.mubr.f32.mxu0 0.0
  %3997 = vmatmul.mubr.f32.gmra.mxu0 %v3859
  %v3998 = vpop.f32.mrf.mxu0
  %v3999 = vadd.f32 0.0, %v3998
  %v4000 = vpop.f32.mrf.mxu0
  %v4001 = vadd.f32 0.0, %v4000
  %4002 = vdwg.mxu0
  %4003 = vmatprep.subr.mxu0 0.0
  %4004 = vmatpush1.msra.mxu0 0.0
  %4005 = vmatprep.subr.mxu0 0.0
  %4006 = vmatpush1.msra.mxu0 0.0
  %4007 = vmatprep.subr.mxu0 0.0
  %4008 = vmatpush1.msra.mxu0 0.0
  %4009 = vmatprep.subr.mxu0 0.0
  %4010 = vmatpush1.msra.mxu0 0.0
  %4011 = vmatprep.subr.mxu0 0.0
  %4012 = vmatpush1.msra.mxu0 0.0
  %4013 = vmatprep.subr.mxu0 0.0
  %4014 = vmatpush1.msra.mxu0 0.0
  %4015 = vmatprep.subr.mxu0 0.0
  %4016 = vmatpush1.msra.mxu0 0.0
  %4017 = vmatprep.subr.mxu0 0.0
  %4018 = vmatpush1.msra.mxu0 0.0
  %4019 = vmatprep.subr.mxu0 0.0
  %4020 = vmatpush1.msra.mxu0 0.0
  %4021 = vmatprep.subr.mxu0 0.0
  %4022 = vmatpush1.msra.mxu0 0.0
  %4023 = vmatprep.subr.mxu0 0.0
  %4024 = vmatpush1.msra.mxu0 0.0
  %4025 = vmatprep.subr.mxu0 0.0
  %4026 = vmatpush1.msra.mxu0 0.0
  %4027 = vmatprep.subr.mxu0 0.0
  %4028 = vmatpush1.msra.mxu0 0.0
  %4029 = vmatprep.subr.mxu0 0.0
  %4030 = vmatpush1.msra.mxu0 0.0
  %4031 = vmatprep.subr.mxu0 0.0
  %4032 = vmatpush1.msra.mxu0 0.0
  %4033 = vmatprep.subr.mxu0 0.0
  %4034 = vmatpush1.msra.mxu0 %v3852
  %4035 = vmatprep.subr.mxu0 0.0
  %4036 = vmatpush2.msra.mxu0 0.0
  %4037 = vmatprep.subr.mxu0 0.0
  %4038 = vmatpush2.msra.mxu0 0.0
  %4039 = vmatprep.subr.mxu0 0.0
  %4040 = vmatpush2.msra.mxu0 0.0
  %4041 = vmatprep.subr.mxu0 0.0
  %4042 = vmatpush2.msra.mxu0 0.0
  %4043 = vmatprep.subr.mxu0 0.0
  %4044 = vmatpush2.msra.mxu0 0.0
  %4045 = vmatprep.subr.mxu0 0.0
  %4046 = vmatpush2.msra.mxu0 0.0
  %4047 = vmatprep.subr.mxu0 0.0
  %4048 = vmatpush2.msra.mxu0 0.0
  %4049 = vmatprep.subr.mxu0 0.0
  %4050 = vmatpush2.msra.mxu0 0.0
  %4051 = vmatprep.subr.mxu0 0.0
  %4052 = vmatpush2.msra.mxu0 0.0
  %4053 = vmatprep.subr.mxu0 0.0
  %4054 = vmatpush2.msra.mxu0 0.0
  %4055 = vmatprep.subr.mxu0 0.0
  %4056 = vmatpush2.msra.mxu0 0.0
  %4057 = vmatprep.subr.mxu0 0.0
  %4058 = vmatpush2.msra.mxu0 0.0
  %4059 = vmatprep.subr.mxu0 0.0
  %4060 = vmatpush2.msra.mxu0 0.0
  %4061 = vmatprep.subr.mxu0 0.0
  %4062 = vmatpush2.msra.mxu0 0.0
  %4063 = vmatprep.subr.mxu0 0.0
  %4064 = vmatpush2.msra.mxu0 0.0
  %4065 = vmatprep.subr.mxu0 0.0
  %4066 = vmatpush2.msra.mxu0 0.0
  %4067 = vmatprep.mubr.f32.mxu0 0.0
  %4068 = vmatmul.mubr.f32.gmra.mxu0 %v3859
  %v4069 = vpop.f32.mrf.mxu0
  %v4070 = vadd.f32 0.0, %v4069
  %v4071 = vpop.f32.mrf.mxu0
  %4072 = vdwg.mxu0
  %v4073 = vadd.f32 %v3828, %v3928
  %v4074 = vadd.f32 %v3829, %v3930
  %v4075 = vadd.f32 %v3830, %v3999
  %v4076 = vadd.f32 %v3831, %v4001
  %v4077 = vadd.f32 %v3832, %v4070
  %s4078 = scalar_lea.vmem %s4, 120
  %v4079 = vld [vmem:[%s4078] sm:$0xff]
  %4080 = vrot.lane.b32.xlu0 %v424, 56
  %v4081 = vpop.permute.xlu0 %4080
  %4082 = vrot.lane.b32.xlu0 %v425, 56
  %v4083 = vpop.permute.xlu0 %4082
  %4084 = vrot.lane.b32.xlu0 %v426, 56
  %v4085 = vpop.permute.xlu0 %4084
  %4086 = vrot.lane.b32.xlu0 %v427, 56
  %v4087 = vpop.permute.xlu0 %4086
  %4088 = vrot.lane.b32.xlu0 %v428, 56
  %v4089 = vpop.permute.xlu0 %4088
  %4090 = vrot.lane.b32.xlu0 %v429, 56
  %v4091 = vpop.permute.xlu0 %4090
  %vm4092 = vcmask 457728
  %v4093 = vsel %vm4092, %v4081, %v4083
  %v4094 = vsel %vm4092, %v4083, %v4085
  %v4095 = vsel %vm4092, %v4085, %v4087
  %v4096 = vsel %vm4092, %v4087, %v4089
  %v4097 = vsel %vm4092, %v4089, %v4091
  %v4104 = vsel %vm462, %v4079, 0
  %4106 = vmatprep.subr.mxu0 0.0
  %4107 = vmatpush1.msra.mxu0 0.0
  %4108 = vmatprep.subr.mxu0 0.0
  %4109 = vmatpush1.msra.mxu0 0.0
  %4110 = vmatprep.subr.mxu0 0.0
  %4111 = vmatpush1.msra.mxu0 0.0
  %4112 = vmatprep.subr.mxu0 0.0
  %4113 = vmatpush1.msra.mxu0 0.0
  %4114 = vmatprep.subr.mxu0 0.0
  %4115 = vmatpush1.msra.mxu0 0.0
  %4116 = vmatprep.subr.mxu0 0.0
  %4117 = vmatpush1.msra.mxu0 0.0
  %4118 = vmatprep.subr.mxu0 0.0
  %4119 = vmatpush1.msra.mxu0 0.0
  %4120 = vmatprep.subr.mxu0 0.0
  %4121 = vmatpush1.msra.mxu0 0.0
  %4122 = vmatprep.subr.mxu0 0.0
  %4123 = vmatpush1.msra.mxu0 0.0
  %4124 = vmatprep.subr.mxu0 0.0
  %4125 = vmatpush1.msra.mxu0 0.0
  %4126 = vmatprep.subr.mxu0 0.0
  %4127 = vmatpush1.msra.mxu0 0.0
  %4128 = vmatprep.subr.mxu0 0.0
  %4129 = vmatpush1.msra.mxu0 0.0
  %4130 = vmatprep.subr.mxu0 0.0
  %4131 = vmatpush1.msra.mxu0 0.0
  %4132 = vmatprep.subr.mxu0 0.0
  %4133 = vmatpush1.msra.mxu0 0.0
  %4134 = vmatprep.subr.mxu0 0.0
  %4135 = vmatpush1.msra.mxu0 0.0
  %4136 = vmatprep.subr.mxu0 %v4094
  %4137 = vmatpush1.msra.mxu0 %v4093
  %4138 = vmatprep.subr.mxu0 0.0
  %4139 = vmatpush2.msra.mxu0 0.0
  %4140 = vmatprep.subr.mxu0 0.0
  %4141 = vmatpush2.msra.mxu0 0.0
  %4142 = vmatprep.subr.mxu0 0.0
  %4143 = vmatpush2.msra.mxu0 0.0
  %4144 = vmatprep.subr.mxu0 0.0
  %4145 = vmatpush2.msra.mxu0 0.0
  %4146 = vmatprep.subr.mxu0 0.0
  %4147 = vmatpush2.msra.mxu0 0.0
  %4148 = vmatprep.subr.mxu0 0.0
  %4149 = vmatpush2.msra.mxu0 0.0
  %4150 = vmatprep.subr.mxu0 0.0
  %4151 = vmatpush2.msra.mxu0 0.0
  %4152 = vmatprep.subr.mxu0 0.0
  %4153 = vmatpush2.msra.mxu0 0.0
  %4154 = vmatprep.subr.mxu0 0.0
  %4155 = vmatpush2.msra.mxu0 0.0
  %4156 = vmatprep.subr.mxu0 0.0
  %4157 = vmatpush2.msra.mxu0 0.0
  %4158 = vmatprep.subr.mxu0 0.0
  %4159 = vmatpush2.msra.mxu0 0.0
  %4160 = vmatprep.subr.mxu0 0.0
  %4161 = vmatpush2.msra.mxu0 0.0
  %4162 = vmatprep.subr.mxu0 0.0
  %4163 = vmatpush2.msra.mxu0 0.0
  %4164 = vmatprep.subr.mxu0 0.0
  %4165 = vmatpush2.msra.mxu0 0.0
  %4166 = vmatprep.subr.mxu0 0.0
  %4167 = vmatpush2.msra.mxu0 0.0
  %4168 = vmatprep.subr.mxu0 0.0
  %4169 = vmatpush2.msra.mxu0 0.0
  %4170 = vmatprep.mubr.f32.mxu0 0.0
  %4171 = vmatmul.mubr.f32.gmra.mxu0 %v4104
  %v4172 = vpop.f32.mrf.mxu0
  %v4173 = vadd.f32 0.0, %v4172
  %v4174 = vpop.f32.mrf.mxu0
  %v4175 = vadd.f32 0.0, %v4174
  %4176 = vdwg.mxu0
  %4177 = vmatprep.subr.mxu0 0.0
  %4178 = vmatpush1.msra.mxu0 0.0
  %4179 = vmatprep.subr.mxu0 0.0
  %4180 = vmatpush1.msra.mxu0 0.0
  %4181 = vmatprep.subr.mxu0 0.0
  %4182 = vmatpush1.msra.mxu0 0.0
  %4183 = vmatprep.subr.mxu0 0.0
  %4184 = vmatpush1.msra.mxu0 0.0
  %4185 = vmatprep.subr.mxu0 0.0
  %4186 = vmatpush1.msra.mxu0 0.0
  %4187 = vmatprep.subr.mxu0 0.0
  %4188 = vmatpush1.msra.mxu0 0.0
  %4189 = vmatprep.subr.mxu0 0.0
  %4190 = vmatpush1.msra.mxu0 0.0
  %4191 = vmatprep.subr.mxu0 0.0
  %4192 = vmatpush1.msra.mxu0 0.0
  %4193 = vmatprep.subr.mxu0 0.0
  %4194 = vmatpush1.msra.mxu0 0.0
  %4195 = vmatprep.subr.mxu0 0.0
  %4196 = vmatpush1.msra.mxu0 0.0
  %4197 = vmatprep.subr.mxu0 0.0
  %4198 = vmatpush1.msra.mxu0 0.0
  %4199 = vmatprep.subr.mxu0 0.0
  %4200 = vmatpush1.msra.mxu0 0.0
  %4201 = vmatprep.subr.mxu0 0.0
  %4202 = vmatpush1.msra.mxu0 0.0
  %4203 = vmatprep.subr.mxu0 0.0
  %4204 = vmatpush1.msra.mxu0 0.0
  %4205 = vmatprep.subr.mxu0 0.0
  %4206 = vmatpush1.msra.mxu0 0.0
  %4207 = vmatprep.subr.mxu0 %v4096
  %4208 = vmatpush1.msra.mxu0 %v4095
  %4209 = vmatprep.subr.mxu0 0.0
  %4210 = vmatpush2.msra.mxu0 0.0
  %4211 = vmatprep.subr.mxu0 0.0
  %4212 = vmatpush2.msra.mxu0 0.0
  %4213 = vmatprep.subr.mxu0 0.0
  %4214 = vmatpush2.msra.mxu0 0.0
  %4215 = vmatprep.subr.mxu0 0.0
  %4216 = vmatpush2.msra.mxu0 0.0
  %4217 = vmatprep.subr.mxu0 0.0
  %4218 = vmatpush2.msra.mxu0 0.0
  %4219 = vmatprep.subr.mxu0 0.0
  %4220 = vmatpush2.msra.mxu0 0.0
  %4221 = vmatprep.subr.mxu0 0.0
  %4222 = vmatpush2.msra.mxu0 0.0
  %4223 = vmatprep.subr.mxu0 0.0
  %4224 = vmatpush2.msra.mxu0 0.0
  %4225 = vmatprep.subr.mxu0 0.0
  %4226 = vmatpush2.msra.mxu0 0.0
  %4227 = vmatprep.subr.mxu0 0.0
  %4228 = vmatpush2.msra.mxu0 0.0
  %4229 = vmatprep.subr.mxu0 0.0
  %4230 = vmatpush2.msra.mxu0 0.0
  %4231 = vmatprep.subr.mxu0 0.0
  %4232 = vmatpush2.msra.mxu0 0.0
  %4233 = vmatprep.subr.mxu0 0.0
  %4234 = vmatpush2.msra.mxu0 0.0
  %4235 = vmatprep.subr.mxu0 0.0
  %4236 = vmatpush2.msra.mxu0 0.0
  %4237 = vmatprep.subr.mxu0 0.0
  %4238 = vmatpush2.msra.mxu0 0.0
  %4239 = vmatprep.subr.mxu0 0.0
  %4240 = vmatpush2.msra.mxu0 0.0
  %4241 = vmatprep.mubr.f32.mxu0 0.0
  %4242 = vmatmul.mubr.f32.gmra.mxu0 %v4104
  %v4243 = vpop.f32.mrf.mxu0
  %v4244 = vadd.f32 0.0, %v4243
  %v4245 = vpop.f32.mrf.mxu0
  %v4246 = vadd.f32 0.0, %v4245
  %4247 = vdwg.mxu0
  %4248 = vmatprep.subr.mxu0 0.0
  %4249 = vmatpush1.msra.mxu0 0.0
  %4250 = vmatprep.subr.mxu0 0.0
  %4251 = vmatpush1.msra.mxu0 0.0
  %4252 = vmatprep.subr.mxu0 0.0
  %4253 = vmatpush1.msra.mxu0 0.0
  %4254 = vmatprep.subr.mxu0 0.0
  %4255 = vmatpush1.msra.mxu0 0.0
  %4256 = vmatprep.subr.mxu0 0.0
  %4257 = vmatpush1.msra.mxu0 0.0
  %4258 = vmatprep.subr.mxu0 0.0
  %4259 = vmatpush1.msra.mxu0 0.0
  %4260 = vmatprep.subr.mxu0 0.0
  %4261 = vmatpush1.msra.mxu0 0.0
  %4262 = vmatprep.subr.mxu0 0.0
  %4263 = vmatpush1.msra.mxu0 0.0
  %4264 = vmatprep.subr.mxu0 0.0
  %4265 = vmatpush1.msra.mxu0 0.0
  %4266 = vmatprep.subr.mxu0 0.0
  %4267 = vmatpush1.msra.mxu0 0.0
  %4268 = vmatprep.subr.mxu0 0.0
  %4269 = vmatpush1.msra.mxu0 0.0
  %4270 = vmatprep.subr.mxu0 0.0
  %4271 = vmatpush1.msra.mxu0 0.0
  %4272 = vmatprep.subr.mxu0 0.0
  %4273 = vmatpush1.msra.mxu0 0.0
  %4274 = vmatprep.subr.mxu0 0.0
  %4275 = vmatpush1.msra.mxu0 0.0
  %4276 = vmatprep.subr.mxu0 0.0
  %4277 = vmatpush1.msra.mxu0 0.0
  %4278 = vmatprep.subr.mxu0 0.0
  %4279 = vmatpush1.msra.mxu0 %v4097
  %4280 = vmatprep.subr.mxu0 0.0
  %4281 = vmatpush2.msra.mxu0 0.0
  %4282 = vmatprep.subr.mxu0 0.0
  %4283 = vmatpush2.msra.mxu0 0.0
  %4284 = vmatprep.subr.mxu0 0.0
  %4285 = vmatpush2.msra.mxu0 0.0
  %4286 = vmatprep.subr.mxu0 0.0
  %4287 = vmatpush2.msra.mxu0 0.0
  %4288 = vmatprep.subr.mxu0 0.0
  %4289 = vmatpush2.msra.mxu0 0.0
  %4290 = vmatprep.subr.mxu0 0.0
  %4291 = vmatpush2.msra.mxu0 0.0
  %4292 = vmatprep.subr.mxu0 0.0
  %4293 = vmatpush2.msra.mxu0 0.0
  %4294 = vmatprep.subr.mxu0 0.0
  %4295 = vmatpush2.msra.mxu0 0.0
  %4296 = vmatprep.subr.mxu0 0.0
  %4297 = vmatpush2.msra.mxu0 0.0
  %4298 = vmatprep.subr.mxu0 0.0
  %4299 = vmatpush2.msra.mxu0 0.0
  %4300 = vmatprep.subr.mxu0 0.0
  %4301 = vmatpush2.msra.mxu0 0.0
  %4302 = vmatprep.subr.mxu0 0.0
  %4303 = vmatpush2.msra.mxu0 0.0
  %4304 = vmatprep.subr.mxu0 0.0
  %4305 = vmatpush2.msra.mxu0 0.0
  %4306 = vmatprep.subr.mxu0 0.0
  %4307 = vmatpush2.msra.mxu0 0.0
  %4308 = vmatprep.subr.mxu0 0.0
  %4309 = vmatpush2.msra.mxu0 0.0
  %4310 = vmatprep.subr.mxu0 0.0
  %4311 = vmatpush2.msra.mxu0 0.0
  %4312 = vmatprep.mubr.f32.mxu0 0.0
  %4313 = vmatmul.mubr.f32.gmra.mxu0 %v4104
  %v4314 = vpop.f32.mrf.mxu0
  %v4315 = vadd.f32 0.0, %v4314
  %v4316 = vpop.f32.mrf.mxu0
  %4317 = vdwg.mxu0
  %v4318 = vadd.f32 %v4073, %v4173
  %v4319 = vadd.f32 %v4074, %v4175
  %v4320 = vadd.f32 %v4075, %v4244
  %v4321 = vadd.f32 %v4076, %v4246
  %v4322 = vadd.f32 %v4077, %v4315
  %s4323 = scalar_lea.vmem %s4, 128
  %v4324 = vld [vmem:[%s4323] sm:$0xff]
  %4325 = vrot.lane.b32.xlu0 %v424, 55
  %v4326 = vpop.permute.xlu0 %4325
  %4327 = vrot.lane.b32.xlu0 %v425, 55
  %v4328 = vpop.permute.xlu0 %4327
  %4329 = vrot.lane.b32.xlu0 %v426, 55
  %v4330 = vpop.permute.xlu0 %4329
  %4331 = vrot.lane.b32.xlu0 %v427, 55
  %v4332 = vpop.permute.xlu0 %4331
  %4333 = vrot.lane.b32.xlu0 %v428, 55
  %v4334 = vpop.permute.xlu0 %4333
  %4335 = vrot.lane.b32.xlu0 %v429, 55
  %v4336 = vpop.permute.xlu0 %4335
  %vm4337 = vcmask 449536
  %v4338 = vsel %vm4337, %v4326, %v4328
  %v4339 = vsel %vm4337, %v4328, %v4330
  %v4340 = vsel %vm4337, %v4330, %v4332
  %v4341 = vsel %vm4337, %v4332, %v4334
  %v4342 = vsel %vm4337, %v4334, %v4336
  %v4349 = vsel %vm462, %v4324, 0
  %4351 = vmatprep.subr.mxu0 0.0
  %4352 = vmatpush1.msra.mxu0 0.0
  %4353 = vmatprep.subr.mxu0 0.0
  %4354 = vmatpush1.msra.mxu0 0.0
  %4355 = vmatprep.subr.mxu0 0.0
  %4356 = vmatpush1.msra.mxu0 0.0
  %4357 = vmatprep.subr.mxu0 0.0
  %4358 = vmatpush1.msra.mxu0 0.0
  %4359 = vmatprep.subr.mxu0 0.0
  %4360 = vmatpush1.msra.mxu0 0.0
  %4361 = vmatprep.subr.mxu0 0.0
  %4362 = vmatpush1.msra.mxu0 0.0
  %4363 = vmatprep.subr.mxu0 0.0
  %4364 = vmatpush1.msra.mxu0 0.0
  %4365 = vmatprep.subr.mxu0 0.0
  %4366 = vmatpush1.msra.mxu0 0.0
  %4367 = vmatprep.subr.mxu0 0.0
  %4368 = vmatpush1.msra.mxu0 0.0
  %4369 = vmatprep.subr.mxu0 0.0
  %4370 = vmatpush1.msra.mxu0 0.0
  %4371 = vmatprep.subr.mxu0 0.0
  %4372 = vmatpush1.msra.mxu0 0.0
  %4373 = vmatprep.subr.mxu0 0.0
  %4374 = vmatpush1.msra.mxu0 0.0
  %4375 = vmatprep.subr.mxu0 0.0
  %4376 = vmatpush1.msra.mxu0 0.0
  %4377 = vmatprep.subr.mxu0 0.0
  %4378 = vmatpush1.msra.mxu0 0.0
  %4379 = vmatprep.subr.mxu0 0.0
  %4380 = vmatpush1.msra.mxu0 0.0
  %4381 = vmatprep.subr.mxu0 %v4339
  %4382 = vmatpush1.msra.mxu0 %v4338
  %4383 = vmatprep.subr.mxu0 0.0
  %4384 = vmatpush2.msra.mxu0 0.0
  %4385 = vmatprep.subr.mxu0 0.0
  %4386 = vmatpush2.msra.mxu0 0.0
  %4387 = vmatprep.subr.mxu0 0.0
  %4388 = vmatpush2.msra.mxu0 0.0
  %4389 = vmatprep.subr.mxu0 0.0
  %4390 = vmatpush2.msra.mxu0 0.0
  %4391 = vmatprep.subr.mxu0 0.0
  %4392 = vmatpush2.msra.mxu0 0.0
  %4393 = vmatprep.subr.mxu0 0.0
  %4394 = vmatpush2.msra.mxu0 0.0
  %4395 = vmatprep.subr.mxu0 0.0
  %4396 = vmatpush2.msra.mxu0 0.0
  %4397 = vmatprep.subr.mxu0 0.0
  %4398 = vmatpush2.msra.mxu0 0.0
  %4399 = vmatprep.subr.mxu0 0.0
  %4400 = vmatpush2.msra.mxu0 0.0
  %4401 = vmatprep.subr.mxu0 0.0
  %4402 = vmatpush2.msra.mxu0 0.0
  %4403 = vmatprep.subr.mxu0 0.0
  %4404 = vmatpush2.msra.mxu0 0.0
  %4405 = vmatprep.subr.mxu0 0.0
  %4406 = vmatpush2.msra.mxu0 0.0
  %4407 = vmatprep.subr.mxu0 0.0
  %4408 = vmatpush2.msra.mxu0 0.0
  %4409 = vmatprep.subr.mxu0 0.0
  %4410 = vmatpush2.msra.mxu0 0.0
  %4411 = vmatprep.subr.mxu0 0.0
  %4412 = vmatpush2.msra.mxu0 0.0
  %4413 = vmatprep.subr.mxu0 0.0
  %4414 = vmatpush2.msra.mxu0 0.0
  %4415 = vmatprep.mubr.f32.mxu0 0.0
  %4416 = vmatmul.mubr.f32.gmra.mxu0 %v4349
  %v4417 = vpop.f32.mrf.mxu0
  %v4418 = vadd.f32 0.0, %v4417
  %v4419 = vpop.f32.mrf.mxu0
  %v4420 = vadd.f32 0.0, %v4419
  %4421 = vdwg.mxu0
  %4422 = vmatprep.subr.mxu0 0.0
  %4423 = vmatpush1.msra.mxu0 0.0
  %4424 = vmatprep.subr.mxu0 0.0
  %4425 = vmatpush1.msra.mxu0 0.0
  %4426 = vmatprep.subr.mxu0 0.0
  %4427 = vmatpush1.msra.mxu0 0.0
  %4428 = vmatprep.subr.mxu0 0.0
  %4429 = vmatpush1.msra.mxu0 0.0
  %4430 = vmatprep.subr.mxu0 0.0
  %4431 = vmatpush1.msra.mxu0 0.0
  %4432 = vmatprep.subr.mxu0 0.0
  %4433 = vmatpush1.msra.mxu0 0.0
  %4434 = vmatprep.subr.mxu0 0.0
  %4435 = vmatpush1.msra.mxu0 0.0
  %4436 = vmatprep.subr.mxu0 0.0
  %4437 = vmatpush1.msra.mxu0 0.0
  %4438 = vmatprep.subr.mxu0 0.0
  %4439 = vmatpush1.msra.mxu0 0.0
  %4440 = vmatprep.subr.mxu0 0.0
  %4441 = vmatpush1.msra.mxu0 0.0
  %4442 = vmatprep.subr.mxu0 0.0
  %4443 = vmatpush1.msra.mxu0 0.0
  %4444 = vmatprep.subr.mxu0 0.0
  %4445 = vmatpush1.msra.mxu0 0.0
  %4446 = vmatprep.subr.mxu0 0.0
  %4447 = vmatpush1.msra.mxu0 0.0
  %4448 = vmatprep.subr.mxu0 0.0
  %4449 = vmatpush1.msra.mxu0 0.0
  %4450 = vmatprep.subr.mxu0 0.0
  %4451 = vmatpush1.msra.mxu0 0.0
  %4452 = vmatprep.subr.mxu0 %v4341
  %4453 = vmatpush1.msra.mxu0 %v4340
  %4454 = vmatprep.subr.mxu0 0.0
  %4455 = vmatpush2.msra.mxu0 0.0
  %4456 = vmatprep.subr.mxu0 0.0
  %4457 = vmatpush2.msra.mxu0 0.0
  %4458 = vmatprep.subr.mxu0 0.0
  %4459 = vmatpush2.msra.mxu0 0.0
  %4460 = vmatprep.subr.mxu0 0.0
  %4461 = vmatpush2.msra.mxu0 0.0
  %4462 = vmatprep.subr.mxu0 0.0
  %4463 = vmatpush2.msra.mxu0 0.0
  %4464 = vmatprep.subr.mxu0 0.0
  %4465 = vmatpush2.msra.mxu0 0.0
  %4466 = vmatprep.subr.mxu0 0.0
  %4467 = vmatpush2.msra.mxu0 0.0
  %4468 = vmatprep.subr.mxu0 0.0
  %4469 = vmatpush2.msra.mxu0 0.0
  %4470 = vmatprep.subr.mxu0 0.0
  %4471 = vmatpush2.msra.mxu0 0.0
  %4472 = vmatprep.subr.mxu0 0.0
  %4473 = vmatpush2.msra.mxu0 0.0
  %4474 = vmatprep.subr.mxu0 0.0
  %4475 = vmatpush2.msra.mxu0 0.0
  %4476 = vmatprep.subr.mxu0 0.0
  %4477 = vmatpush2.msra.mxu0 0.0
  %4478 = vmatprep.subr.mxu0 0.0
  %4479 = vmatpush2.msra.mxu0 0.0
  %4480 = vmatprep.subr.mxu0 0.0
  %4481 = vmatpush2.msra.mxu0 0.0
  %4482 = vmatprep.subr.mxu0 0.0
  %4483 = vmatpush2.msra.mxu0 0.0
  %4484 = vmatprep.subr.mxu0 0.0
  %4485 = vmatpush2.msra.mxu0 0.0
  %4486 = vmatprep.mubr.f32.mxu0 0.0
  %4487 = vmatmul.mubr.f32.gmra.mxu0 %v4349
  %v4488 = vpop.f32.mrf.mxu0
  %v4489 = vadd.f32 0.0, %v4488
  %v4490 = vpop.f32.mrf.mxu0
  %v4491 = vadd.f32 0.0, %v4490
  %4492 = vdwg.mxu0
  %4493 = vmatprep.subr.mxu0 0.0
  %4494 = vmatpush1.msra.mxu0 0.0
  %4495 = vmatprep.subr.mxu0 0.0
  %4496 = vmatpush1.msra.mxu0 0.0
  %4497 = vmatprep.subr.mxu0 0.0
  %4498 = vmatpush1.msra.mxu0 0.0
  %4499 = vmatprep.subr.mxu0 0.0
  %4500 = vmatpush1.msra.mxu0 0.0
  %4501 = vmatprep.subr.mxu0 0.0
  %4502 = vmatpush1.msra.mxu0 0.0
  %4503 = vmatprep.subr.mxu0 0.0
  %4504 = vmatpush1.msra.mxu0 0.0
  %4505 = vmatprep.subr.mxu0 0.0
  %4506 = vmatpush1.msra.mxu0 0.0
  %4507 = vmatprep.subr.mxu0 0.0
  %4508 = vmatpush1.msra.mxu0 0.0
  %4509 = vmatprep.subr.mxu0 0.0
  %4510 = vmatpush1.msra.mxu0 0.0
  %4511 = vmatprep.subr.mxu0 0.0
  %4512 = vmatpush1.msra.mxu0 0.0
  %4513 = vmatprep.subr.mxu0 0.0
  %4514 = vmatpush1.msra.mxu0 0.0
  %4515 = vmatprep.subr.mxu0 0.0
  %4516 = vmatpush1.msra.mxu0 0.0
  %4517 = vmatprep.subr.mxu0 0.0
  %4518 = vmatpush1.msra.mxu0 0.0
  %4519 = vmatprep.subr.mxu0 0.0
  %4520 = vmatpush1.msra.mxu0 0.0
  %4521 = vmatprep.subr.mxu0 0.0
  %4522 = vmatpush1.msra.mxu0 0.0
  %4523 = vmatprep.subr.mxu0 0.0
  %4524 = vmatpush1.msra.mxu0 %v4342
  %4525 = vmatprep.subr.mxu0 0.0
  %4526 = vmatpush2.msra.mxu0 0.0
  %4527 = vmatprep.subr.mxu0 0.0
  %4528 = vmatpush2.msra.mxu0 0.0
  %4529 = vmatprep.subr.mxu0 0.0
  %4530 = vmatpush2.msra.mxu0 0.0
  %4531 = vmatprep.subr.mxu0 0.0
  %4532 = vmatpush2.msra.mxu0 0.0
  %4533 = vmatprep.subr.mxu0 0.0
  %4534 = vmatpush2.msra.mxu0 0.0
  %4535 = vmatprep.subr.mxu0 0.0
  %4536 = vmatpush2.msra.mxu0 0.0
  %4537 = vmatprep.subr.mxu0 0.0
  %4538 = vmatpush2.msra.mxu0 0.0
  %4539 = vmatprep.subr.mxu0 0.0
  %4540 = vmatpush2.msra.mxu0 0.0
  %4541 = vmatprep.subr.mxu0 0.0
  %4542 = vmatpush2.msra.mxu0 0.0
  %4543 = vmatprep.subr.mxu0 0.0
  %4544 = vmatpush2.msra.mxu0 0.0
  %4545 = vmatprep.subr.mxu0 0.0
  %4546 = vmatpush2.msra.mxu0 0.0
  %4547 = vmatprep.subr.mxu0 0.0
  %4548 = vmatpush2.msra.mxu0 0.0
  %4549 = vmatprep.subr.mxu0 0.0
  %4550 = vmatpush2.msra.mxu0 0.0
  %4551 = vmatprep.subr.mxu0 0.0
  %4552 = vmatpush2.msra.mxu0 0.0
  %4553 = vmatprep.subr.mxu0 0.0
  %4554 = vmatpush2.msra.mxu0 0.0
  %4555 = vmatprep.subr.mxu0 0.0
  %4556 = vmatpush2.msra.mxu0 0.0
  %4557 = vmatprep.mubr.f32.mxu0 0.0
  %4558 = vmatmul.mubr.f32.gmra.mxu0 %v4349
  %v4559 = vpop.f32.mrf.mxu0
  %v4560 = vadd.f32 0.0, %v4559
  %v4561 = vpop.f32.mrf.mxu0
  %4562 = vdwg.mxu0
  %v4563 = vadd.f32 %v4318, %v4418
  %v4564 = vadd.f32 %v4319, %v4420
  %v4565 = vadd.f32 %v4320, %v4489
  %v4566 = vadd.f32 %v4321, %v4491
  %v4567 = vadd.f32 %v4322, %v4560
  %s4568 = scalar_lea.vmem %s4, 136
  %v4569 = vld [vmem:[%s4568] sm:$0xff]
  %4570 = vrot.lane.b32.xlu0 %v424, 54
  %v4571 = vpop.permute.xlu0 %4570
  %4572 = vrot.lane.b32.xlu0 %v425, 54
  %v4573 = vpop.permute.xlu0 %4572
  %4574 = vrot.lane.b32.xlu0 %v426, 54
  %v4575 = vpop.permute.xlu0 %4574
  %4576 = vrot.lane.b32.xlu0 %v427, 54
  %v4577 = vpop.permute.xlu0 %4576
  %4578 = vrot.lane.b32.xlu0 %v428, 54
  %v4579 = vpop.permute.xlu0 %4578
  %4580 = vrot.lane.b32.xlu0 %v429, 54
  %v4581 = vpop.permute.xlu0 %4580
  %vm4582 = vcmask 441344
  %v4583 = vsel %vm4582, %v4571, %v4573
  %v4584 = vsel %vm4582, %v4573, %v4575
  %v4585 = vsel %vm4582, %v4575, %v4577
  %v4586 = vsel %vm4582, %v4577, %v4579
  %v4587 = vsel %vm4582, %v4579, %v4581
  %v4594 = vsel %vm462, %v4569, 0
  %4596 = vmatprep.subr.mxu0 0.0
  %4597 = vmatpush1.msra.mxu0 0.0
  %4598 = vmatprep.subr.mxu0 0.0
  %4599 = vmatpush1.msra.mxu0 0.0
  %4600 = vmatprep.subr.mxu0 0.0
  %4601 = vmatpush1.msra.mxu0 0.0
  %4602 = vmatprep.subr.mxu0 0.0
  %4603 = vmatpush1.msra.mxu0 0.0
  %4604 = vmatprep.subr.mxu0 0.0
  %4605 = vmatpush1.msra.mxu0 0.0
  %4606 = vmatprep.subr.mxu0 0.0
  %4607 = vmatpush1.msra.mxu0 0.0
  %4608 = vmatprep.subr.mxu0 0.0
  %4609 = vmatpush1.msra.mxu0 0.0
  %4610 = vmatprep.subr.mxu0 0.0
  %4611 = vmatpush1.msra.mxu0 0.0
  %4612 = vmatprep.subr.mxu0 0.0
  %4613 = vmatpush1.msra.mxu0 0.0
  %4614 = vmatprep.subr.mxu0 0.0
  %4615 = vmatpush1.msra.mxu0 0.0
  %4616 = vmatprep.subr.mxu0 0.0
  %4617 = vmatpush1.msra.mxu0 0.0
  %4618 = vmatprep.subr.mxu0 0.0
  %4619 = vmatpush1.msra.mxu0 0.0
  %4620 = vmatprep.subr.mxu0 0.0
  %4621 = vmatpush1.msra.mxu0 0.0
  %4622 = vmatprep.subr.mxu0 0.0
  %4623 = vmatpush1.msra.mxu0 0.0
  %4624 = vmatprep.subr.mxu0 0.0
  %4625 = vmatpush1.msra.mxu0 0.0
  %4626 = vmatprep.subr.mxu0 %v4584
  %4627 = vmatpush1.msra.mxu0 %v4583
  %4628 = vmatprep.subr.mxu0 0.0
  %4629 = vmatpush2.msra.mxu0 0.0
  %4630 = vmatprep.subr.mxu0 0.0
  %4631 = vmatpush2.msra.mxu0 0.0
  %4632 = vmatprep.subr.mxu0 0.0
  %4633 = vmatpush2.msra.mxu0 0.0
  %4634 = vmatprep.subr.mxu0 0.0
  %4635 = vmatpush2.msra.mxu0 0.0
  %4636 = vmatprep.subr.mxu0 0.0
  %4637 = vmatpush2.msra.mxu0 0.0
  %4638 = vmatprep.subr.mxu0 0.0
  %4639 = vmatpush2.msra.mxu0 0.0
  %4640 = vmatprep.subr.mxu0 0.0
  %4641 = vmatpush2.msra.mxu0 0.0
  %4642 = vmatprep.subr.mxu0 0.0
  %4643 = vmatpush2.msra.mxu0 0.0
  %4644 = vmatprep.subr.mxu0 0.0
  %4645 = vmatpush2.msra.mxu0 0.0
  %4646 = vmatprep.subr.mxu0 0.0
  %4647 = vmatpush2.msra.mxu0 0.0
  %4648 = vmatprep.subr.mxu0 0.0
  %4649 = vmatpush2.msra.mxu0 0.0
  %4650 = vmatprep.subr.mxu0 0.0
  %4651 = vmatpush2.msra.mxu0 0.0
  %4652 = vmatprep.subr.mxu0 0.0
  %4653 = vmatpush2.msra.mxu0 0.0
  %4654 = vmatprep.subr.mxu0 0.0
  %4655 = vmatpush2.msra.mxu0 0.0
  %4656 = vmatprep.subr.mxu0 0.0
  %4657 = vmatpush2.msra.mxu0 0.0
  %4658 = vmatprep.subr.mxu0 0.0
  %4659 = vmatpush2.msra.mxu0 0.0
  %4660 = vmatprep.mubr.f32.mxu0 0.0
  %4661 = vmatmul.mubr.f32.gmra.mxu0 %v4594
  %v4662 = vpop.f32.mrf.mxu0
  %v4663 = vadd.f32 0.0, %v4662
  %v4664 = vpop.f32.mrf.mxu0
  %v4665 = vadd.f32 0.0, %v4664
  %4666 = vdwg.mxu0
  %4667 = vmatprep.subr.mxu0 0.0
  %4668 = vmatpush1.msra.mxu0 0.0
  %4669 = vmatprep.subr.mxu0 0.0
  %4670 = vmatpush1.msra.mxu0 0.0
  %4671 = vmatprep.subr.mxu0 0.0
  %4672 = vmatpush1.msra.mxu0 0.0
  %4673 = vmatprep.subr.mxu0 0.0
  %4674 = vmatpush1.msra.mxu0 0.0
  %4675 = vmatprep.subr.mxu0 0.0
  %4676 = vmatpush1.msra.mxu0 0.0
  %4677 = vmatprep.subr.mxu0 0.0
  %4678 = vmatpush1.msra.mxu0 0.0
  %4679 = vmatprep.subr.mxu0 0.0
  %4680 = vmatpush1.msra.mxu0 0.0
  %4681 = vmatprep.subr.mxu0 0.0
  %4682 = vmatpush1.msra.mxu0 0.0
  %4683 = vmatprep.subr.mxu0 0.0
  %4684 = vmatpush1.msra.mxu0 0.0
  %4685 = vmatprep.subr.mxu0 0.0
  %4686 = vmatpush1.msra.mxu0 0.0
  %4687 = vmatprep.subr.mxu0 0.0
  %4688 = vmatpush1.msra.mxu0 0.0
  %4689 = vmatprep.subr.mxu0 0.0
  %4690 = vmatpush1.msra.mxu0 0.0
  %4691 = vmatprep.subr.mxu0 0.0
  %4692 = vmatpush1.msra.mxu0 0.0
  %4693 = vmatprep.subr.mxu0 0.0
  %4694 = vmatpush1.msra.mxu0 0.0
  %4695 = vmatprep.subr.mxu0 0.0
  %4696 = vmatpush1.msra.mxu0 0.0
  %4697 = vmatprep.subr.mxu0 %v4586
  %4698 = vmatpush1.msra.mxu0 %v4585
  %4699 = vmatprep.subr.mxu0 0.0
  %4700 = vmatpush2.msra.mxu0 0.0
  %4701 = vmatprep.subr.mxu0 0.0
  %4702 = vmatpush2.msra.mxu0 0.0
  %4703 = vmatprep.subr.mxu0 0.0
  %4704 = vmatpush2.msra.mxu0 0.0
  %4705 = vmatprep.subr.mxu0 0.0
  %4706 = vmatpush2.msra.mxu0 0.0
  %4707 = vmatprep.subr.mxu0 0.0
  %4708 = vmatpush2.msra.mxu0 0.0
  %4709 = vmatprep.subr.mxu0 0.0
  %4710 = vmatpush2.msra.mxu0 0.0
  %4711 = vmatprep.subr.mxu0 0.0
  %4712 = vmatpush2.msra.mxu0 0.0
  %4713 = vmatprep.subr.mxu0 0.0
  %4714 = vmatpush2.msra.mxu0 0.0
  %4715 = vmatprep.subr.mxu0 0.0
  %4716 = vmatpush2.msra.mxu0 0.0
  %4717 = vmatprep.subr.mxu0 0.0
  %4718 = vmatpush2.msra.mxu0 0.0
  %4719 = vmatprep.subr.mxu0 0.0
  %4720 = vmatpush2.msra.mxu0 0.0
  %4721 = vmatprep.subr.mxu0 0.0
  %4722 = vmatpush2.msra.mxu0 0.0
  %4723 = vmatprep.subr.mxu0 0.0
  %4724 = vmatpush2.msra.mxu0 0.0
  %4725 = vmatprep.subr.mxu0 0.0
  %4726 = vmatpush2.msra.mxu0 0.0
  %4727 = vmatprep.subr.mxu0 0.0
  %4728 = vmatpush2.msra.mxu0 0.0
  %4729 = vmatprep.subr.mxu0 0.0
  %4730 = vmatpush2.msra.mxu0 0.0
  %4731 = vmatprep.mubr.f32.mxu0 0.0
  %4732 = vmatmul.mubr.f32.gmra.mxu0 %v4594
  %v4733 = vpop.f32.mrf.mxu0
  %v4734 = vadd.f32 0.0, %v4733
  %v4735 = vpop.f32.mrf.mxu0
  %v4736 = vadd.f32 0.0, %v4735
  %4737 = vdwg.mxu0
  %4738 = vmatprep.subr.mxu0 0.0
  %4739 = vmatpush1.msra.mxu0 0.0
  %4740 = vmatprep.subr.mxu0 0.0
  %4741 = vmatpush1.msra.mxu0 0.0
  %4742 = vmatprep.subr.mxu0 0.0
  %4743 = vmatpush1.msra.mxu0 0.0
  %4744 = vmatprep.subr.mxu0 0.0
  %4745 = vmatpush1.msra.mxu0 0.0
  %4746 = vmatprep.subr.mxu0 0.0
  %4747 = vmatpush1.msra.mxu0 0.0
  %4748 = vmatprep.subr.mxu0 0.0
  %4749 = vmatpush1.msra.mxu0 0.0
  %4750 = vmatprep.subr.mxu0 0.0
  %4751 = vmatpush1.msra.mxu0 0.0
  %4752 = vmatprep.subr.mxu0 0.0
  %4753 = vmatpush1.msra.mxu0 0.0
  %4754 = vmatprep.subr.mxu0 0.0
  %4755 = vmatpush1.msra.mxu0 0.0
  %4756 = vmatprep.subr.mxu0 0.0
  %4757 = vmatpush1.msra.mxu0 0.0
  %4758 = vmatprep.subr.mxu0 0.0
  %4759 = vmatpush1.msra.mxu0 0.0
  %4760 = vmatprep.subr.mxu0 0.0
  %4761 = vmatpush1.msra.mxu0 0.0
  %4762 = vmatprep.subr.mxu0 0.0
  %4763 = vmatpush1.msra.mxu0 0.0
  %4764 = vmatprep.subr.mxu0 0.0
  %4765 = vmatpush1.msra.mxu0 0.0
  %4766 = vmatprep.subr.mxu0 0.0
  %4767 = vmatpush1.msra.mxu0 0.0
  %4768 = vmatprep.subr.mxu0 0.0
  %4769 = vmatpush1.msra.mxu0 %v4587
  %4770 = vmatprep.subr.mxu0 0.0
  %4771 = vmatpush2.msra.mxu0 0.0
  %4772 = vmatprep.subr.mxu0 0.0
  %4773 = vmatpush2.msra.mxu0 0.0
  %4774 = vmatprep.subr.mxu0 0.0
  %4775 = vmatpush2.msra.mxu0 0.0
  %4776 = vmatprep.subr.mxu0 0.0
  %4777 = vmatpush2.msra.mxu0 0.0
  %4778 = vmatprep.subr.mxu0 0.0
  %4779 = vmatpush2.msra.mxu0 0.0
  %4780 = vmatprep.subr.mxu0 0.0
  %4781 = vmatpush2.msra.mxu0 0.0
  %4782 = vmatprep.subr.mxu0 0.0
  %4783 = vmatpush2.msra.mxu0 0.0
  %4784 = vmatprep.subr.mxu0 0.0
  %4785 = vmatpush2.msra.mxu0 0.0
  %4786 = vmatprep.subr.mxu0 0.0
  %4787 = vmatpush2.msra.mxu0 0.0
  %4788 = vmatprep.subr.mxu0 0.0
  %4789 = vmatpush2.msra.mxu0 0.0
  %4790 = vmatprep.subr.mxu0 0.0
  %4791 = vmatpush2.msra.mxu0 0.0
  %4792 = vmatprep.subr.mxu0 0.0
  %4793 = vmatpush2.msra.mxu0 0.0
  %4794 = vmatprep.subr.mxu0 0.0
  %4795 = vmatpush2.msra.mxu0 0.0
  %4796 = vmatprep.subr.mxu0 0.0
  %4797 = vmatpush2.msra.mxu0 0.0
  %4798 = vmatprep.subr.mxu0 0.0
  %4799 = vmatpush2.msra.mxu0 0.0
  %4800 = vmatprep.subr.mxu0 0.0
  %4801 = vmatpush2.msra.mxu0 0.0
  %4802 = vmatprep.mubr.f32.mxu0 0.0
  %4803 = vmatmul.mubr.f32.gmra.mxu0 %v4594
  %v4804 = vpop.f32.mrf.mxu0
  %v4805 = vadd.f32 0.0, %v4804
  %v4806 = vpop.f32.mrf.mxu0
  %4807 = vdwg.mxu0
  %v4808 = vadd.f32 %v4563, %v4663
  %v4809 = vadd.f32 %v4564, %v4665
  %v4810 = vadd.f32 %v4565, %v4734
  %v4811 = vadd.f32 %v4566, %v4736
  %v4812 = vadd.f32 %v4567, %v4805
  %s4813 = scalar_lea.vmem %s4, 144
  %v4814 = vld [vmem:[%s4813] sm:$0xff]
  %4815 = vrot.lane.b32.xlu0 %v424, 53
  %v4816 = vpop.permute.xlu0 %4815
  %4817 = vrot.lane.b32.xlu0 %v425, 53
  %v4818 = vpop.permute.xlu0 %4817
  %4819 = vrot.lane.b32.xlu0 %v426, 53
  %v4820 = vpop.permute.xlu0 %4819
  %4821 = vrot.lane.b32.xlu0 %v427, 53
  %v4822 = vpop.permute.xlu0 %4821
  %4823 = vrot.lane.b32.xlu0 %v428, 53
  %v4824 = vpop.permute.xlu0 %4823
  %4825 = vrot.lane.b32.xlu0 %v429, 53
  %v4826 = vpop.permute.xlu0 %4825
  %vm4827 = vcmask 433152
  %v4828 = vsel %vm4827, %v4816, %v4818
  %v4829 = vsel %vm4827, %v4818, %v4820
  %v4830 = vsel %vm4827, %v4820, %v4822
  %v4831 = vsel %vm4827, %v4822, %v4824
  %v4832 = vsel %vm4827, %v4824, %v4826
  %v4839 = vsel %vm462, %v4814, 0
  %4841 = vmatprep.subr.mxu0 0.0
  %4842 = vmatpush1.msra.mxu0 0.0
  %4843 = vmatprep.subr.mxu0 0.0
  %4844 = vmatpush1.msra.mxu0 0.0
  %4845 = vmatprep.subr.mxu0 0.0
  %4846 = vmatpush1.msra.mxu0 0.0
  %4847 = vmatprep.subr.mxu0 0.0
  %4848 = vmatpush1.msra.mxu0 0.0
  %4849 = vmatprep.subr.mxu0 0.0
  %4850 = vmatpush1.msra.mxu0 0.0
  %4851 = vmatprep.subr.mxu0 0.0
  %4852 = vmatpush1.msra.mxu0 0.0
  %4853 = vmatprep.subr.mxu0 0.0
  %4854 = vmatpush1.msra.mxu0 0.0
  %4855 = vmatprep.subr.mxu0 0.0
  %4856 = vmatpush1.msra.mxu0 0.0
  %4857 = vmatprep.subr.mxu0 0.0
  %4858 = vmatpush1.msra.mxu0 0.0
  %4859 = vmatprep.subr.mxu0 0.0
  %4860 = vmatpush1.msra.mxu0 0.0
  %4861 = vmatprep.subr.mxu0 0.0
  %4862 = vmatpush1.msra.mxu0 0.0
  %4863 = vmatprep.subr.mxu0 0.0
  %4864 = vmatpush1.msra.mxu0 0.0
  %4865 = vmatprep.subr.mxu0 0.0
  %4866 = vmatpush1.msra.mxu0 0.0
  %4867 = vmatprep.subr.mxu0 0.0
  %4868 = vmatpush1.msra.mxu0 0.0
  %4869 = vmatprep.subr.mxu0 0.0
  %4870 = vmatpush1.msra.mxu0 0.0
  %4871 = vmatprep.subr.mxu0 %v4829
  %4872 = vmatpush1.msra.mxu0 %v4828
  %4873 = vmatprep.subr.mxu0 0.0
  %4874 = vmatpush2.msra.mxu0 0.0
  %4875 = vmatprep.subr.mxu0 0.0
  %4876 = vmatpush2.msra.mxu0 0.0
  %4877 = vmatprep.subr.mxu0 0.0
  %4878 = vmatpush2.msra.mxu0 0.0
  %4879 = vmatprep.subr.mxu0 0.0
  %4880 = vmatpush2.msra.mxu0 0.0
  %4881 = vmatprep.subr.mxu0 0.0
  %4882 = vmatpush2.msra.mxu0 0.0
  %4883 = vmatprep.subr.mxu0 0.0
  %4884 = vmatpush2.msra.mxu0 0.0
  %4885 = vmatprep.subr.mxu0 0.0
  %4886 = vmatpush2.msra.mxu0 0.0
  %4887 = vmatprep.subr.mxu0 0.0
  %4888 = vmatpush2.msra.mxu0 0.0
  %4889 = vmatprep.subr.mxu0 0.0
  %4890 = vmatpush2.msra.mxu0 0.0
  %4891 = vmatprep.subr.mxu0 0.0
  %4892 = vmatpush2.msra.mxu0 0.0
  %4893 = vmatprep.subr.mxu0 0.0
  %4894 = vmatpush2.msra.mxu0 0.0
  %4895 = vmatprep.subr.mxu0 0.0
  %4896 = vmatpush2.msra.mxu0 0.0
  %4897 = vmatprep.subr.mxu0 0.0
  %4898 = vmatpush2.msra.mxu0 0.0
  %4899 = vmatprep.subr.mxu0 0.0
  %4900 = vmatpush2.msra.mxu0 0.0
  %4901 = vmatprep.subr.mxu0 0.0
  %4902 = vmatpush2.msra.mxu0 0.0
  %4903 = vmatprep.subr.mxu0 0.0
  %4904 = vmatpush2.msra.mxu0 0.0
  %4905 = vmatprep.mubr.f32.mxu0 0.0
  %4906 = vmatmul.mubr.f32.gmra.mxu0 %v4839
  %v4907 = vpop.f32.mrf.mxu0
  %v4908 = vadd.f32 0.0, %v4907
  %v4909 = vpop.f32.mrf.mxu0
  %v4910 = vadd.f32 0.0, %v4909
  %4911 = vdwg.mxu0
  %4912 = vmatprep.subr.mxu0 0.0
  %4913 = vmatpush1.msra.mxu0 0.0
  %4914 = vmatprep.subr.mxu0 0.0
  %4915 = vmatpush1.msra.mxu0 0.0
  %4916 = vmatprep.subr.mxu0 0.0
  %4917 = vmatpush1.msra.mxu0 0.0
  %4918 = vmatprep.subr.mxu0 0.0
  %4919 = vmatpush1.msra.mxu0 0.0
  %4920 = vmatprep.subr.mxu0 0.0
  %4921 = vmatpush1.msra.mxu0 0.0
  %4922 = vmatprep.subr.mxu0 0.0
  %4923 = vmatpush1.msra.mxu0 0.0
  %4924 = vmatprep.subr.mxu0 0.0
  %4925 = vmatpush1.msra.mxu0 0.0
  %4926 = vmatprep.subr.mxu0 0.0
  %4927 = vmatpush1.msra.mxu0 0.0
  %4928 = vmatprep.subr.mxu0 0.0
  %4929 = vmatpush1.msra.mxu0 0.0
  %4930 = vmatprep.subr.mxu0 0.0
  %4931 = vmatpush1.msra.mxu0 0.0
  %4932 = vmatprep.subr.mxu0 0.0
  %4933 = vmatpush1.msra.mxu0 0.0
  %4934 = vmatprep.subr.mxu0 0.0
  %4935 = vmatpush1.msra.mxu0 0.0
  %4936 = vmatprep.subr.mxu0 0.0
  %4937 = vmatpush1.msra.mxu0 0.0
  %4938 = vmatprep.subr.mxu0 0.0
  %4939 = vmatpush1.msra.mxu0 0.0
  %4940 = vmatprep.subr.mxu0 0.0
  %4941 = vmatpush1.msra.mxu0 0.0
  %4942 = vmatprep.subr.mxu0 %v4831
  %4943 = vmatpush1.msra.mxu0 %v4830
  %4944 = vmatprep.subr.mxu0 0.0
  %4945 = vmatpush2.msra.mxu0 0.0
  %4946 = vmatprep.subr.mxu0 0.0
  %4947 = vmatpush2.msra.mxu0 0.0
  %4948 = vmatprep.subr.mxu0 0.0
  %4949 = vmatpush2.msra.mxu0 0.0
  %4950 = vmatprep.subr.mxu0 0.0
  %4951 = vmatpush2.msra.mxu0 0.0
  %4952 = vmatprep.subr.mxu0 0.0
  %4953 = vmatpush2.msra.mxu0 0.0
  %4954 = vmatprep.subr.mxu0 0.0
  %4955 = vmatpush2.msra.mxu0 0.0
  %4956 = vmatprep.subr.mxu0 0.0
  %4957 = vmatpush2.msra.mxu0 0.0
  %4958 = vmatprep.subr.mxu0 0.0
  %4959 = vmatpush2.msra.mxu0 0.0
  %4960 = vmatprep.subr.mxu0 0.0
  %4961 = vmatpush2.msra.mxu0 0.0
  %4962 = vmatprep.subr.mxu0 0.0
  %4963 = vmatpush2.msra.mxu0 0.0
  %4964 = vmatprep.subr.mxu0 0.0
  %4965 = vmatpush2.msra.mxu0 0.0
  %4966 = vmatprep.subr.mxu0 0.0
  %4967 = vmatpush2.msra.mxu0 0.0
  %4968 = vmatprep.subr.mxu0 0.0
  %4969 = vmatpush2.msra.mxu0 0.0
  %4970 = vmatprep.subr.mxu0 0.0
  %4971 = vmatpush2.msra.mxu0 0.0
  %4972 = vmatprep.subr.mxu0 0.0
  %4973 = vmatpush2.msra.mxu0 0.0
  %4974 = vmatprep.subr.mxu0 0.0
  %4975 = vmatpush2.msra.mxu0 0.0
  %4976 = vmatprep.mubr.f32.mxu0 0.0
  %4977 = vmatmul.mubr.f32.gmra.mxu0 %v4839
  %v4978 = vpop.f32.mrf.mxu0
  %v4979 = vadd.f32 0.0, %v4978
  %v4980 = vpop.f32.mrf.mxu0
  %v4981 = vadd.f32 0.0, %v4980
  %4982 = vdwg.mxu0
  %4983 = vmatprep.subr.mxu0 0.0
  %4984 = vmatpush1.msra.mxu0 0.0
  %4985 = vmatprep.subr.mxu0 0.0
  %4986 = vmatpush1.msra.mxu0 0.0
  %4987 = vmatprep.subr.mxu0 0.0
  %4988 = vmatpush1.msra.mxu0 0.0
  %4989 = vmatprep.subr.mxu0 0.0
  %4990 = vmatpush1.msra.mxu0 0.0
  %4991 = vmatprep.subr.mxu0 0.0
  %4992 = vmatpush1.msra.mxu0 0.0
  %4993 = vmatprep.subr.mxu0 0.0
  %4994 = vmatpush1.msra.mxu0 0.0
  %4995 = vmatprep.subr.mxu0 0.0
  %4996 = vmatpush1.msra.mxu0 0.0
  %4997 = vmatprep.subr.mxu0 0.0
  %4998 = vmatpush1.msra.mxu0 0.0
  %4999 = vmatprep.subr.mxu0 0.0
  %5000 = vmatpush1.msra.mxu0 0.0
  %5001 = vmatprep.subr.mxu0 0.0
  %5002 = vmatpush1.msra.mxu0 0.0
  %5003 = vmatprep.subr.mxu0 0.0
  %5004 = vmatpush1.msra.mxu0 0.0
  %5005 = vmatprep.subr.mxu0 0.0
  %5006 = vmatpush1.msra.mxu0 0.0
  %5007 = vmatprep.subr.mxu0 0.0
  %5008 = vmatpush1.msra.mxu0 0.0
  %5009 = vmatprep.subr.mxu0 0.0
  %5010 = vmatpush1.msra.mxu0 0.0
  %5011 = vmatprep.subr.mxu0 0.0
  %5012 = vmatpush1.msra.mxu0 0.0
  %5013 = vmatprep.subr.mxu0 0.0
  %5014 = vmatpush1.msra.mxu0 %v4832
  %5015 = vmatprep.subr.mxu0 0.0
  %5016 = vmatpush2.msra.mxu0 0.0
  %5017 = vmatprep.subr.mxu0 0.0
  %5018 = vmatpush2.msra.mxu0 0.0
  %5019 = vmatprep.subr.mxu0 0.0
  %5020 = vmatpush2.msra.mxu0 0.0
  %5021 = vmatprep.subr.mxu0 0.0
  %5022 = vmatpush2.msra.mxu0 0.0
  %5023 = vmatprep.subr.mxu0 0.0
  %5024 = vmatpush2.msra.mxu0 0.0
  %5025 = vmatprep.subr.mxu0 0.0
  %5026 = vmatpush2.msra.mxu0 0.0
  %5027 = vmatprep.subr.mxu0 0.0
  %5028 = vmatpush2.msra.mxu0 0.0
  %5029 = vmatprep.subr.mxu0 0.0
  %5030 = vmatpush2.msra.mxu0 0.0
  %5031 = vmatprep.subr.mxu0 0.0
  %5032 = vmatpush2.msra.mxu0 0.0
  %5033 = vmatprep.subr.mxu0 0.0
  %5034 = vmatpush2.msra.mxu0 0.0
  %5035 = vmatprep.subr.mxu0 0.0
  %5036 = vmatpush2.msra.mxu0 0.0
  %5037 = vmatprep.subr.mxu0 0.0
  %5038 = vmatpush2.msra.mxu0 0.0
  %5039 = vmatprep.subr.mxu0 0.0
  %5040 = vmatpush2.msra.mxu0 0.0
  %5041 = vmatprep.subr.mxu0 0.0
  %5042 = vmatpush2.msra.mxu0 0.0
  %5043 = vmatprep.subr.mxu0 0.0
  %5044 = vmatpush2.msra.mxu0 0.0
  %5045 = vmatprep.subr.mxu0 0.0
  %5046 = vmatpush2.msra.mxu0 0.0
  %5047 = vmatprep.mubr.f32.mxu0 0.0
  %5048 = vmatmul.mubr.f32.gmra.mxu0 %v4839
  %v5049 = vpop.f32.mrf.mxu0
  %v5050 = vadd.f32 0.0, %v5049
  %v5051 = vpop.f32.mrf.mxu0
  %5052 = vdwg.mxu0
  %v5053 = vadd.f32 %v4808, %v4908
  %v5054 = vadd.f32 %v4809, %v4910
  %v5055 = vadd.f32 %v4810, %v4979
  %v5056 = vadd.f32 %v4811, %v4981
  %v5057 = vadd.f32 %v4812, %v5050
  %s5058 = scalar_lea.vmem %s4, 152
  %v5059 = vld [vmem:[%s5058] sm:$0xff]
  %5060 = vrot.lane.b32.xlu0 %v424, 52
  %v5061 = vpop.permute.xlu0 %5060
  %5062 = vrot.lane.b32.xlu0 %v425, 52
  %v5063 = vpop.permute.xlu0 %5062
  %5064 = vrot.lane.b32.xlu0 %v426, 52
  %v5065 = vpop.permute.xlu0 %5064
  %5066 = vrot.lane.b32.xlu0 %v427, 52
  %v5067 = vpop.permute.xlu0 %5066
  %5068 = vrot.lane.b32.xlu0 %v428, 52
  %v5069 = vpop.permute.xlu0 %5068
  %5070 = vrot.lane.b32.xlu0 %v429, 52
  %v5071 = vpop.permute.xlu0 %5070
  %vm5072 = vcmask 424960
  %v5073 = vsel %vm5072, %v5061, %v5063
  %v5074 = vsel %vm5072, %v5063, %v5065
  %v5075 = vsel %vm5072, %v5065, %v5067
  %v5076 = vsel %vm5072, %v5067, %v5069
  %v5077 = vsel %vm5072, %v5069, %v5071
  %v5084 = vsel %vm462, %v5059, 0
  %5086 = vmatprep.subr.mxu0 0.0
  %5087 = vmatpush1.msra.mxu0 0.0
  %5088 = vmatprep.subr.mxu0 0.0
  %5089 = vmatpush1.msra.mxu0 0.0
  %5090 = vmatprep.subr.mxu0 0.0
  %5091 = vmatpush1.msra.mxu0 0.0
  %5092 = vmatprep.subr.mxu0 0.0
  %5093 = vmatpush1.msra.mxu0 0.0
  %5094 = vmatprep.subr.mxu0 0.0
  %5095 = vmatpush1.msra.mxu0 0.0
  %5096 = vmatprep.subr.mxu0 0.0
  %5097 = vmatpush1.msra.mxu0 0.0
  %5098 = vmatprep.subr.mxu0 0.0
  %5099 = vmatpush1.msra.mxu0 0.0
  %5100 = vmatprep.subr.mxu0 0.0
  %5101 = vmatpush1.msra.mxu0 0.0
  %5102 = vmatprep.subr.mxu0 0.0
  %5103 = vmatpush1.msra.mxu0 0.0
  %5104 = vmatprep.subr.mxu0 0.0
  %5105 = vmatpush1.msra.mxu0 0.0
  %5106 = vmatprep.subr.mxu0 0.0
  %5107 = vmatpush1.msra.mxu0 0.0
  %5108 = vmatprep.subr.mxu0 0.0
  %5109 = vmatpush1.msra.mxu0 0.0
  %5110 = vmatprep.subr.mxu0 0.0
  %5111 = vmatpush1.msra.mxu0 0.0
  %5112 = vmatprep.subr.mxu0 0.0
  %5113 = vmatpush1.msra.mxu0 0.0
  %5114 = vmatprep.subr.mxu0 0.0
  %5115 = vmatpush1.msra.mxu0 0.0
  %5116 = vmatprep.subr.mxu0 %v5074
  %5117 = vmatpush1.msra.mxu0 %v5073
  %5118 = vmatprep.subr.mxu0 0.0
  %5119 = vmatpush2.msra.mxu0 0.0
  %5120 = vmatprep.subr.mxu0 0.0
  %5121 = vmatpush2.msra.mxu0 0.0
  %5122 = vmatprep.subr.mxu0 0.0
  %5123 = vmatpush2.msra.mxu0 0.0
  %5124 = vmatprep.subr.mxu0 0.0
  %5125 = vmatpush2.msra.mxu0 0.0
  %5126 = vmatprep.subr.mxu0 0.0
  %5127 = vmatpush2.msra.mxu0 0.0
  %5128 = vmatprep.subr.mxu0 0.0
  %5129 = vmatpush2.msra.mxu0 0.0
  %5130 = vmatprep.subr.mxu0 0.0
  %5131 = vmatpush2.msra.mxu0 0.0
  %5132 = vmatprep.subr.mxu0 0.0
  %5133 = vmatpush2.msra.mxu0 0.0
  %5134 = vmatprep.subr.mxu0 0.0
  %5135 = vmatpush2.msra.mxu0 0.0
  %5136 = vmatprep.subr.mxu0 0.0
  %5137 = vmatpush2.msra.mxu0 0.0
  %5138 = vmatprep.subr.mxu0 0.0
  %5139 = vmatpush2.msra.mxu0 0.0
  %5140 = vmatprep.subr.mxu0 0.0
  %5141 = vmatpush2.msra.mxu0 0.0
  %5142 = vmatprep.subr.mxu0 0.0
  %5143 = vmatpush2.msra.mxu0 0.0
  %5144 = vmatprep.subr.mxu0 0.0
  %5145 = vmatpush2.msra.mxu0 0.0
  %5146 = vmatprep.subr.mxu0 0.0
  %5147 = vmatpush2.msra.mxu0 0.0
  %5148 = vmatprep.subr.mxu0 0.0
  %5149 = vmatpush2.msra.mxu0 0.0
  %5150 = vmatprep.mubr.f32.mxu0 0.0
  %5151 = vmatmul.mubr.f32.gmra.mxu0 %v5084
  %v5152 = vpop.f32.mrf.mxu0
  %v5153 = vadd.f32 0.0, %v5152
  %v5154 = vpop.f32.mrf.mxu0
  %v5155 = vadd.f32 0.0, %v5154
  %5156 = vdwg.mxu0
  %5157 = vmatprep.subr.mxu0 0.0
  %5158 = vmatpush1.msra.mxu0 0.0
  %5159 = vmatprep.subr.mxu0 0.0
  %5160 = vmatpush1.msra.mxu0 0.0
  %5161 = vmatprep.subr.mxu0 0.0
  %5162 = vmatpush1.msra.mxu0 0.0
  %5163 = vmatprep.subr.mxu0 0.0
  %5164 = vmatpush1.msra.mxu0 0.0
  %5165 = vmatprep.subr.mxu0 0.0
  %5166 = vmatpush1.msra.mxu0 0.0
  %5167 = vmatprep.subr.mxu0 0.0
  %5168 = vmatpush1.msra.mxu0 0.0
  %5169 = vmatprep.subr.mxu0 0.0
  %5170 = vmatpush1.msra.mxu0 0.0
  %5171 = vmatprep.subr.mxu0 0.0
  %5172 = vmatpush1.msra.mxu0 0.0
  %5173 = vmatprep.subr.mxu0 0.0
  %5174 = vmatpush1.msra.mxu0 0.0
  %5175 = vmatprep.subr.mxu0 0.0
  %5176 = vmatpush1.msra.mxu0 0.0
  %5177 = vmatprep.subr.mxu0 0.0
  %5178 = vmatpush1.msra.mxu0 0.0
  %5179 = vmatprep.subr.mxu0 0.0
  %5180 = vmatpush1.msra.mxu0 0.0
  %5181 = vmatprep.subr.mxu0 0.0
  %5182 = vmatpush1.msra.mxu0 0.0
  %5183 = vmatprep.subr.mxu0 0.0
  %5184 = vmatpush1.msra.mxu0 0.0
  %5185 = vmatprep.subr.mxu0 0.0
  %5186 = vmatpush1.msra.mxu0 0.0
  %5187 = vmatprep.subr.mxu0 %v5076
  %5188 = vmatpush1.msra.mxu0 %v5075
  %5189 = vmatprep.subr.mxu0 0.0
  %5190 = vmatpush2.msra.mxu0 0.0
  %5191 = vmatprep.subr.mxu0 0.0
  %5192 = vmatpush2.msra.mxu0 0.0
  %5193 = vmatprep.subr.mxu0 0.0
  %5194 = vmatpush2.msra.mxu0 0.0
  %5195 = vmatprep.subr.mxu0 0.0
  %5196 = vmatpush2.msra.mxu0 0.0
  %5197 = vmatprep.subr.mxu0 0.0
  %5198 = vmatpush2.msra.mxu0 0.0
  %5199 = vmatprep.subr.mxu0 0.0
  %5200 = vmatpush2.msra.mxu0 0.0
  %5201 = vmatprep.subr.mxu0 0.0
  %5202 = vmatpush2.msra.mxu0 0.0
  %5203 = vmatprep.subr.mxu0 0.0
  %5204 = vmatpush2.msra.mxu0 0.0
  %5205 = vmatprep.subr.mxu0 0.0
  %5206 = vmatpush2.msra.mxu0 0.0
  %5207 = vmatprep.subr.mxu0 0.0
  %5208 = vmatpush2.msra.mxu0 0.0
  %5209 = vmatprep.subr.mxu0 0.0
  %5210 = vmatpush2.msra.mxu0 0.0
  %5211 = vmatprep.subr.mxu0 0.0
  %5212 = vmatpush2.msra.mxu0 0.0
  %5213 = vmatprep.subr.mxu0 0.0
  %5214 = vmatpush2.msra.mxu0 0.0
  %5215 = vmatprep.subr.mxu0 0.0
  %5216 = vmatpush2.msra.mxu0 0.0
  %5217 = vmatprep.subr.mxu0 0.0
  %5218 = vmatpush2.msra.mxu0 0.0
  %5219 = vmatprep.subr.mxu0 0.0
  %5220 = vmatpush2.msra.mxu0 0.0
  %5221 = vmatprep.mubr.f32.mxu0 0.0
  %5222 = vmatmul.mubr.f32.gmra.mxu0 %v5084
  %v5223 = vpop.f32.mrf.mxu0
  %v5224 = vadd.f32 0.0, %v5223
  %v5225 = vpop.f32.mrf.mxu0
  %v5226 = vadd.f32 0.0, %v5225
  %5227 = vdwg.mxu0
  %5228 = vmatprep.subr.mxu0 0.0
  %5229 = vmatpush1.msra.mxu0 0.0
  %5230 = vmatprep.subr.mxu0 0.0
  %5231 = vmatpush1.msra.mxu0 0.0
  %5232 = vmatprep.subr.mxu0 0.0
  %5233 = vmatpush1.msra.mxu0 0.0
  %5234 = vmatprep.subr.mxu0 0.0
  %5235 = vmatpush1.msra.mxu0 0.0
  %5236 = vmatprep.subr.mxu0 0.0
  %5237 = vmatpush1.msra.mxu0 0.0
  %5238 = vmatprep.subr.mxu0 0.0
  %5239 = vmatpush1.msra.mxu0 0.0
  %5240 = vmatprep.subr.mxu0 0.0
  %5241 = vmatpush1.msra.mxu0 0.0
  %5242 = vmatprep.subr.mxu0 0.0
  %5243 = vmatpush1.msra.mxu0 0.0
  %5244 = vmatprep.subr.mxu0 0.0
  %5245 = vmatpush1.msra.mxu0 0.0
  %5246 = vmatprep.subr.mxu0 0.0
  %5247 = vmatpush1.msra.mxu0 0.0
  %5248 = vmatprep.subr.mxu0 0.0
  %5249 = vmatpush1.msra.mxu0 0.0
  %5250 = vmatprep.subr.mxu0 0.0
  %5251 = vmatpush1.msra.mxu0 0.0
  %5252 = vmatprep.subr.mxu0 0.0
  %5253 = vmatpush1.msra.mxu0 0.0
  %5254 = vmatprep.subr.mxu0 0.0
  %5255 = vmatpush1.msra.mxu0 0.0
  %5256 = vmatprep.subr.mxu0 0.0
  %5257 = vmatpush1.msra.mxu0 0.0
  %5258 = vmatprep.subr.mxu0 0.0
  %5259 = vmatpush1.msra.mxu0 %v5077
  %5260 = vmatprep.subr.mxu0 0.0
  %5261 = vmatpush2.msra.mxu0 0.0
  %5262 = vmatprep.subr.mxu0 0.0
  %5263 = vmatpush2.msra.mxu0 0.0
  %5264 = vmatprep.subr.mxu0 0.0
  %5265 = vmatpush2.msra.mxu0 0.0
  %5266 = vmatprep.subr.mxu0 0.0
  %5267 = vmatpush2.msra.mxu0 0.0
  %5268 = vmatprep.subr.mxu0 0.0
  %5269 = vmatpush2.msra.mxu0 0.0
  %5270 = vmatprep.subr.mxu0 0.0
  %5271 = vmatpush2.msra.mxu0 0.0
  %5272 = vmatprep.subr.mxu0 0.0
  %5273 = vmatpush2.msra.mxu0 0.0
  %5274 = vmatprep.subr.mxu0 0.0
  %5275 = vmatpush2.msra.mxu0 0.0
  %5276 = vmatprep.subr.mxu0 0.0
  %5277 = vmatpush2.msra.mxu0 0.0
  %5278 = vmatprep.subr.mxu0 0.0
  %5279 = vmatpush2.msra.mxu0 0.0
  %5280 = vmatprep.subr.mxu0 0.0
  %5281 = vmatpush2.msra.mxu0 0.0
  %5282 = vmatprep.subr.mxu0 0.0
  %5283 = vmatpush2.msra.mxu0 0.0
  %5284 = vmatprep.subr.mxu0 0.0
  %5285 = vmatpush2.msra.mxu0 0.0
  %5286 = vmatprep.subr.mxu0 0.0
  %5287 = vmatpush2.msra.mxu0 0.0
  %5288 = vmatprep.subr.mxu0 0.0
  %5289 = vmatpush2.msra.mxu0 0.0
  %5290 = vmatprep.subr.mxu0 0.0
  %5291 = vmatpush2.msra.mxu0 0.0
  %5292 = vmatprep.mubr.f32.mxu0 0.0
  %5293 = vmatmul.mubr.f32.gmra.mxu0 %v5084
  %v5294 = vpop.f32.mrf.mxu0
  %v5295 = vadd.f32 0.0, %v5294
  %v5296 = vpop.f32.mrf.mxu0
  %5297 = vdwg.mxu0
  %v5298 = vadd.f32 %v5053, %v5153
  %v5299 = vadd.f32 %v5054, %v5155
  %v5300 = vadd.f32 %v5055, %v5224
  %v5301 = vadd.f32 %v5056, %v5226
  %v5302 = vadd.f32 %v5057, %v5295
  %s5303 = scalar_lea.vmem %s4, 160
  %v5304 = vld [vmem:[%s5303] sm:$0xff]
  %5305 = vrot.lane.b32.xlu0 %v424, 32
  %v5306 = vpop.permute.xlu0 %5305
  %5307 = vrot.lane.b32.xlu0 %v425, 32
  %v5308 = vpop.permute.xlu0 %5307
  %5309 = vrot.lane.b32.xlu0 %v426, 32
  %v5310 = vpop.permute.xlu0 %5309
  %5311 = vrot.lane.b32.xlu0 %v427, 32
  %v5312 = vpop.permute.xlu0 %5311
  %5313 = vrot.lane.b32.xlu0 %v428, 32
  %v5314 = vpop.permute.xlu0 %5313
  %5315 = vrot.lane.b32.xlu0 %v429, 32
  %v5316 = vpop.permute.xlu0 %5315
  %vm5317 = vcmask 261120
  %v5318 = vsel %vm5317, %v5306, %v5308
  %v5319 = vsel %vm5317, %v5308, %v5310
  %v5320 = vsel %vm5317, %v5310, %v5312
  %v5321 = vsel %vm5317, %v5312, %v5314
  %v5322 = vsel %vm5317, %v5314, %v5316
  %v5329 = vsel %vm462, %v5304, 0
  %5331 = vmatprep.subr.mxu0 0.0
  %5332 = vmatpush1.msra.mxu0 0.0
  %5333 = vmatprep.subr.mxu0 0.0
  %5334 = vmatpush1.msra.mxu0 0.0
  %5335 = vmatprep.subr.mxu0 0.0
  %5336 = vmatpush1.msra.mxu0 0.0
  %5337 = vmatprep.subr.mxu0 0.0
  %5338 = vmatpush1.msra.mxu0 0.0
  %5339 = vmatprep.subr.mxu0 0.0
  %5340 = vmatpush1.msra.mxu0 0.0
  %5341 = vmatprep.subr.mxu0 0.0
  %5342 = vmatpush1.msra.mxu0 0.0
  %5343 = vmatprep.subr.mxu0 0.0
  %5344 = vmatpush1.msra.mxu0 0.0
  %5345 = vmatprep.subr.mxu0 0.0
  %5346 = vmatpush1.msra.mxu0 0.0
  %5347 = vmatprep.subr.mxu0 0.0
  %5348 = vmatpush1.msra.mxu0 0.0
  %5349 = vmatprep.subr.mxu0 0.0
  %5350 = vmatpush1.msra.mxu0 0.0
  %5351 = vmatprep.subr.mxu0 0.0
  %5352 = vmatpush1.msra.mxu0 0.0
  %5353 = vmatprep.subr.mxu0 0.0
  %5354 = vmatpush1.msra.mxu0 0.0
  %5355 = vmatprep.subr.mxu0 0.0
  %5356 = vmatpush1.msra.mxu0 0.0
  %5357 = vmatprep.subr.mxu0 0.0
  %5358 = vmatpush1.msra.mxu0 0.0
  %5359 = vmatprep.subr.mxu0 0.0
  %5360 = vmatpush1.msra.mxu0 0.0
  %5361 = vmatprep.subr.mxu0 %v5319
  %5362 = vmatpush1.msra.mxu0 %v5318
  %5363 = vmatprep.subr.mxu0 0.0
  %5364 = vmatpush2.msra.mxu0 0.0
  %5365 = vmatprep.subr.mxu0 0.0
  %5366 = vmatpush2.msra.mxu0 0.0
  %5367 = vmatprep.subr.mxu0 0.0
  %5368 = vmatpush2.msra.mxu0 0.0
  %5369 = vmatprep.subr.mxu0 0.0
  %5370 = vmatpush2.msra.mxu0 0.0
  %5371 = vmatprep.subr.mxu0 0.0
  %5372 = vmatpush2.msra.mxu0 0.0
  %5373 = vmatprep.subr.mxu0 0.0
  %5374 = vmatpush2.msra.mxu0 0.0
  %5375 = vmatprep.subr.mxu0 0.0
  %5376 = vmatpush2.msra.mxu0 0.0
  %5377 = vmatprep.subr.mxu0 0.0
  %5378 = vmatpush2.msra.mxu0 0.0
  %5379 = vmatprep.subr.mxu0 0.0
  %5380 = vmatpush2.msra.mxu0 0.0
  %5381 = vmatprep.subr.mxu0 0.0
  %5382 = vmatpush2.msra.mxu0 0.0
  %5383 = vmatprep.subr.mxu0 0.0
  %5384 = vmatpush2.msra.mxu0 0.0
  %5385 = vmatprep.subr.mxu0 0.0
  %5386 = vmatpush2.msra.mxu0 0.0
  %5387 = vmatprep.subr.mxu0 0.0
  %5388 = vmatpush2.msra.mxu0 0.0
  %5389 = vmatprep.subr.mxu0 0.0
  %5390 = vmatpush2.msra.mxu0 0.0
  %5391 = vmatprep.subr.mxu0 0.0
  %5392 = vmatpush2.msra.mxu0 0.0
  %5393 = vmatprep.subr.mxu0 0.0
  %5394 = vmatpush2.msra.mxu0 0.0
  %5395 = vmatprep.mubr.f32.mxu0 0.0
  %5396 = vmatmul.mubr.f32.gmra.mxu0 %v5329
  %v5397 = vpop.f32.mrf.mxu0
  %v5398 = vadd.f32 0.0, %v5397
  %v5399 = vpop.f32.mrf.mxu0
  %v5400 = vadd.f32 0.0, %v5399
  %5401 = vdwg.mxu0
  %5402 = vmatprep.subr.mxu0 0.0
  %5403 = vmatpush1.msra.mxu0 0.0
  %5404 = vmatprep.subr.mxu0 0.0
  %5405 = vmatpush1.msra.mxu0 0.0
  %5406 = vmatprep.subr.mxu0 0.0
  %5407 = vmatpush1.msra.mxu0 0.0
  %5408 = vmatprep.subr.mxu0 0.0
  %5409 = vmatpush1.msra.mxu0 0.0
  %5410 = vmatprep.subr.mxu0 0.0
  %5411 = vmatpush1.msra.mxu0 0.0
  %5412 = vmatprep.subr.mxu0 0.0
  %5413 = vmatpush1.msra.mxu0 0.0
  %5414 = vmatprep.subr.mxu0 0.0
  %5415 = vmatpush1.msra.mxu0 0.0
  %5416 = vmatprep.subr.mxu0 0.0
  %5417 = vmatpush1.msra.mxu0 0.0
  %5418 = vmatprep.subr.mxu0 0.0
  %5419 = vmatpush1.msra.mxu0 0.0
  %5420 = vmatprep.subr.mxu0 0.0
  %5421 = vmatpush1.msra.mxu0 0.0
  %5422 = vmatprep.subr.mxu0 0.0
  %5423 = vmatpush1.msra.mxu0 0.0
  %5424 = vmatprep.subr.mxu0 0.0
  %5425 = vmatpush1.msra.mxu0 0.0
  %5426 = vmatprep.subr.mxu0 0.0
  %5427 = vmatpush1.msra.mxu0 0.0
  %5428 = vmatprep.subr.mxu0 0.0
  %5429 = vmatpush1.msra.mxu0 0.0
  %5430 = vmatprep.subr.mxu0 0.0
  %5431 = vmatpush1.msra.mxu0 0.0
  %5432 = vmatprep.subr.mxu0 %v5321
  %5433 = vmatpush1.msra.mxu0 %v5320
  %5434 = vmatprep.subr.mxu0 0.0
  %5435 = vmatpush2.msra.mxu0 0.0
  %5436 = vmatprep.subr.mxu0 0.0
  %5437 = vmatpush2.msra.mxu0 0.0
  %5438 = vmatprep.subr.mxu0 0.0
  %5439 = vmatpush2.msra.mxu0 0.0
  %5440 = vmatprep.subr.mxu0 0.0
  %5441 = vmatpush2.msra.mxu0 0.0
  %5442 = vmatprep.subr.mxu0 0.0
  %5443 = vmatpush2.msra.mxu0 0.0
  %5444 = vmatprep.subr.mxu0 0.0
  %5445 = vmatpush2.msra.mxu0 0.0
  %5446 = vmatprep.subr.mxu0 0.0
  %5447 = vmatpush2.msra.mxu0 0.0
  %5448 = vmatprep.subr.mxu0 0.0
  %5449 = vmatpush2.msra.mxu0 0.0
  %5450 = vmatprep.subr.mxu0 0.0
  %5451 = vmatpush2.msra.mxu0 0.0
  %5452 = vmatprep.subr.mxu0 0.0
  %5453 = vmatpush2.msra.mxu0 0.0
  %5454 = vmatprep.subr.mxu0 0.0
  %5455 = vmatpush2.msra.mxu0 0.0
  %5456 = vmatprep.subr.mxu0 0.0
  %5457 = vmatpush2.msra.mxu0 0.0
  %5458 = vmatprep.subr.mxu0 0.0
  %5459 = vmatpush2.msra.mxu0 0.0
  %5460 = vmatprep.subr.mxu0 0.0
  %5461 = vmatpush2.msra.mxu0 0.0
  %5462 = vmatprep.subr.mxu0 0.0
  %5463 = vmatpush2.msra.mxu0 0.0
  %5464 = vmatprep.subr.mxu0 0.0
  %5465 = vmatpush2.msra.mxu0 0.0
  %5466 = vmatprep.mubr.f32.mxu0 0.0
  %5467 = vmatmul.mubr.f32.gmra.mxu0 %v5329
  %v5468 = vpop.f32.mrf.mxu0
  %v5469 = vadd.f32 0.0, %v5468
  %v5470 = vpop.f32.mrf.mxu0
  %v5471 = vadd.f32 0.0, %v5470
  %5472 = vdwg.mxu0
  %5473 = vmatprep.subr.mxu0 0.0
  %5474 = vmatpush1.msra.mxu0 0.0
  %5475 = vmatprep.subr.mxu0 0.0
  %5476 = vmatpush1.msra.mxu0 0.0
  %5477 = vmatprep.subr.mxu0 0.0
  %5478 = vmatpush1.msra.mxu0 0.0
  %5479 = vmatprep.subr.mxu0 0.0
  %5480 = vmatpush1.msra.mxu0 0.0
  %5481 = vmatprep.subr.mxu0 0.0
  %5482 = vmatpush1.msra.mxu0 0.0
  %5483 = vmatprep.subr.mxu0 0.0
  %5484 = vmatpush1.msra.mxu0 0.0
  %5485 = vmatprep.subr.mxu0 0.0
  %5486 = vmatpush1.msra.mxu0 0.0
  %5487 = vmatprep.subr.mxu0 0.0
  %5488 = vmatpush1.msra.mxu0 0.0
  %5489 = vmatprep.subr.mxu0 0.0
  %5490 = vmatpush1.msra.mxu0 0.0
  %5491 = vmatprep.subr.mxu0 0.0
  %5492 = vmatpush1.msra.mxu0 0.0
  %5493 = vmatprep.subr.mxu0 0.0
  %5494 = vmatpush1.msra.mxu0 0.0
  %5495 = vmatprep.subr.mxu0 0.0
  %5496 = vmatpush1.msra.mxu0 0.0
  %5497 = vmatprep.subr.mxu0 0.0
  %5498 = vmatpush1.msra.mxu0 0.0
  %5499 = vmatprep.subr.mxu0 0.0
  %5500 = vmatpush1.msra.mxu0 0.0
  %5501 = vmatprep.subr.mxu0 0.0
  %5502 = vmatpush1.msra.mxu0 0.0
  %5503 = vmatprep.subr.mxu0 0.0
  %5504 = vmatpush1.msra.mxu0 %v5322
  %5505 = vmatprep.subr.mxu0 0.0
  %5506 = vmatpush2.msra.mxu0 0.0
  %5507 = vmatprep.subr.mxu0 0.0
  %5508 = vmatpush2.msra.mxu0 0.0
  %5509 = vmatprep.subr.mxu0 0.0
  %5510 = vmatpush2.msra.mxu0 0.0
  %5511 = vmatprep.subr.mxu0 0.0
  %5512 = vmatpush2.msra.mxu0 0.0
  %5513 = vmatprep.subr.mxu0 0.0
  %5514 = vmatpush2.msra.mxu0 0.0
  %5515 = vmatprep.subr.mxu0 0.0
  %5516 = vmatpush2.msra.mxu0 0.0
  %5517 = vmatprep.subr.mxu0 0.0
  %5518 = vmatpush2.msra.mxu0 0.0
  %5519 = vmatprep.subr.mxu0 0.0
  %5520 = vmatpush2.msra.mxu0 0.0
  %5521 = vmatprep.subr.mxu0 0.0
  %5522 = vmatpush2.msra.mxu0 0.0
  %5523 = vmatprep.subr.mxu0 0.0
  %5524 = vmatpush2.msra.mxu0 0.0
  %5525 = vmatprep.subr.mxu0 0.0
  %5526 = vmatpush2.msra.mxu0 0.0
  %5527 = vmatprep.subr.mxu0 0.0
  %5528 = vmatpush2.msra.mxu0 0.0
  %5529 = vmatprep.subr.mxu0 0.0
  %5530 = vmatpush2.msra.mxu0 0.0
  %5531 = vmatprep.subr.mxu0 0.0
  %5532 = vmatpush2.msra.mxu0 0.0
  %5533 = vmatprep.subr.mxu0 0.0
  %5534 = vmatpush2.msra.mxu0 0.0
  %5535 = vmatprep.subr.mxu0 0.0
  %5536 = vmatpush2.msra.mxu0 0.0
  %5537 = vmatprep.mubr.f32.mxu0 0.0
  %5538 = vmatmul.mubr.f32.gmra.mxu0 %v5329
  %v5539 = vpop.f32.mrf.mxu0
  %v5540 = vadd.f32 0.0, %v5539
  %v5541 = vpop.f32.mrf.mxu0
  %5542 = vdwg.mxu0
  %v5543 = vadd.f32 %v5298, %v5398
  %v5544 = vadd.f32 %v5299, %v5400
  %v5545 = vadd.f32 %v5300, %v5469
  %v5546 = vadd.f32 %v5301, %v5471
  %v5547 = vadd.f32 %v5302, %v5540
  %s5548 = scalar_lea.vmem %s4, 168
  %v5549 = vld [vmem:[%s5548] sm:$0xff]
  %5550 = vrot.lane.b32.xlu0 %v424, 31
  %v5551 = vpop.permute.xlu0 %5550
  %5552 = vrot.lane.b32.xlu0 %v425, 31
  %v5553 = vpop.permute.xlu0 %5552
  %5554 = vrot.lane.b32.xlu0 %v426, 31
  %v5555 = vpop.permute.xlu0 %5554
  %5556 = vrot.lane.b32.xlu0 %v427, 31
  %v5557 = vpop.permute.xlu0 %5556
  %5558 = vrot.lane.b32.xlu0 %v428, 31
  %v5559 = vpop.permute.xlu0 %5558
  %5560 = vrot.lane.b32.xlu0 %v429, 31
  %v5561 = vpop.permute.xlu0 %5560
  %vm5562 = vcmask 252928
  %v5563 = vsel %vm5562, %v5551, %v5553
  %v5564 = vsel %vm5562, %v5553, %v5555
  %v5565 = vsel %vm5562, %v5555, %v5557
  %v5566 = vsel %vm5562, %v5557, %v5559
  %v5567 = vsel %vm5562, %v5559, %v5561
  %v5574 = vsel %vm462, %v5549, 0
  %5576 = vmatprep.subr.mxu0 0.0
  %5577 = vmatpush1.msra.mxu0 0.0
  %5578 = vmatprep.subr.mxu0 0.0
  %5579 = vmatpush1.msra.mxu0 0.0
  %5580 = vmatprep.subr.mxu0 0.0
  %5581 = vmatpush1.msra.mxu0 0.0
  %5582 = vmatprep.subr.mxu0 0.0
  %5583 = vmatpush1.msra.mxu0 0.0
  %5584 = vmatprep.subr.mxu0 0.0
  %5585 = vmatpush1.msra.mxu0 0.0
  %5586 = vmatprep.subr.mxu0 0.0
  %5587 = vmatpush1.msra.mxu0 0.0
  %5588 = vmatprep.subr.mxu0 0.0
  %5589 = vmatpush1.msra.mxu0 0.0
  %5590 = vmatprep.subr.mxu0 0.0
  %5591 = vmatpush1.msra.mxu0 0.0
  %5592 = vmatprep.subr.mxu0 0.0
  %5593 = vmatpush1.msra.mxu0 0.0
  %5594 = vmatprep.subr.mxu0 0.0
  %5595 = vmatpush1.msra.mxu0 0.0
  %5596 = vmatprep.subr.mxu0 0.0
  %5597 = vmatpush1.msra.mxu0 0.0
  %5598 = vmatprep.subr.mxu0 0.0
  %5599 = vmatpush1.msra.mxu0 0.0
  %5600 = vmatprep.subr.mxu0 0.0
  %5601 = vmatpush1.msra.mxu0 0.0
  %5602 = vmatprep.subr.mxu0 0.0
  %5603 = vmatpush1.msra.mxu0 0.0
  %5604 = vmatprep.subr.mxu0 0.0
  %5605 = vmatpush1.msra.mxu0 0.0
  %5606 = vmatprep.subr.mxu0 %v5564
  %5607 = vmatpush1.msra.mxu0 %v5563
  %5608 = vmatprep.subr.mxu0 0.0
  %5609 = vmatpush2.msra.mxu0 0.0
  %5610 = vmatprep.subr.mxu0 0.0
  %5611 = vmatpush2.msra.mxu0 0.0
  %5612 = vmatprep.subr.mxu0 0.0
  %5613 = vmatpush2.msra.mxu0 0.0
  %5614 = vmatprep.subr.mxu0 0.0
  %5615 = vmatpush2.msra.mxu0 0.0
  %5616 = vmatprep.subr.mxu0 0.0
  %5617 = vmatpush2.msra.mxu0 0.0
  %5618 = vmatprep.subr.mxu0 0.0
  %5619 = vmatpush2.msra.mxu0 0.0
  %5620 = vmatprep.subr.mxu0 0.0
  %5621 = vmatpush2.msra.mxu0 0.0
  %5622 = vmatprep.subr.mxu0 0.0
  %5623 = vmatpush2.msra.mxu0 0.0
  %5624 = vmatprep.subr.mxu0 0.0
  %5625 = vmatpush2.msra.mxu0 0.0
  %5626 = vmatprep.subr.mxu0 0.0
  %5627 = vmatpush2.msra.mxu0 0.0
  %5628 = vmatprep.subr.mxu0 0.0
  %5629 = vmatpush2.msra.mxu0 0.0
  %5630 = vmatprep.subr.mxu0 0.0
  %5631 = vmatpush2.msra.mxu0 0.0
  %5632 = vmatprep.subr.mxu0 0.0
  %5633 = vmatpush2.msra.mxu0 0.0
  %5634 = vmatprep.subr.mxu0 0.0
  %5635 = vmatpush2.msra.mxu0 0.0
  %5636 = vmatprep.subr.mxu0 0.0
  %5637 = vmatpush2.msra.mxu0 0.0
  %5638 = vmatprep.subr.mxu0 0.0
  %5639 = vmatpush2.msra.mxu0 0.0
  %5640 = vmatprep.mubr.f32.mxu0 0.0
  %5641 = vmatmul.mubr.f32.gmra.mxu0 %v5574
  %v5642 = vpop.f32.mrf.mxu0
  %v5643 = vadd.f32 0.0, %v5642
  %v5644 = vpop.f32.mrf.mxu0
  %v5645 = vadd.f32 0.0, %v5644
  %5646 = vdwg.mxu0
  %5647 = vmatprep.subr.mxu0 0.0
  %5648 = vmatpush1.msra.mxu0 0.0
  %5649 = vmatprep.subr.mxu0 0.0
  %5650 = vmatpush1.msra.mxu0 0.0
  %5651 = vmatprep.subr.mxu0 0.0
  %5652 = vmatpush1.msra.mxu0 0.0
  %5653 = vmatprep.subr.mxu0 0.0
  %5654 = vmatpush1.msra.mxu0 0.0
  %5655 = vmatprep.subr.mxu0 0.0
  %5656 = vmatpush1.msra.mxu0 0.0
  %5657 = vmatprep.subr.mxu0 0.0
  %5658 = vmatpush1.msra.mxu0 0.0
  %5659 = vmatprep.subr.mxu0 0.0
  %5660 = vmatpush1.msra.mxu0 0.0
  %5661 = vmatprep.subr.mxu0 0.0
  %5662 = vmatpush1.msra.mxu0 0.0
  %5663 = vmatprep.subr.mxu0 0.0
  %5664 = vmatpush1.msra.mxu0 0.0
  %5665 = vmatprep.subr.mxu0 0.0
  %5666 = vmatpush1.msra.mxu0 0.0
  %5667 = vmatprep.subr.mxu0 0.0
  %5668 = vmatpush1.msra.mxu0 0.0
  %5669 = vmatprep.subr.mxu0 0.0
  %5670 = vmatpush1.msra.mxu0 0.0
  %5671 = vmatprep.subr.mxu0 0.0
  %5672 = vmatpush1.msra.mxu0 0.0
  %5673 = vmatprep.subr.mxu0 0.0
  %5674 = vmatpush1.msra.mxu0 0.0
  %5675 = vmatprep.subr.mxu0 0.0
  %5676 = vmatpush1.msra.mxu0 0.0
  %5677 = vmatprep.subr.mxu0 %v5566
  %5678 = vmatpush1.msra.mxu0 %v5565
  %5679 = vmatprep.subr.mxu0 0.0
  %5680 = vmatpush2.msra.mxu0 0.0
  %5681 = vmatprep.subr.mxu0 0.0
  %5682 = vmatpush2.msra.mxu0 0.0
  %5683 = vmatprep.subr.mxu0 0.0
  %5684 = vmatpush2.msra.mxu0 0.0
  %5685 = vmatprep.subr.mxu0 0.0
  %5686 = vmatpush2.msra.mxu0 0.0
  %5687 = vmatprep.subr.mxu0 0.0
  %5688 = vmatpush2.msra.mxu0 0.0
  %5689 = vmatprep.subr.mxu0 0.0
  %5690 = vmatpush2.msra.mxu0 0.0
  %5691 = vmatprep.subr.mxu0 0.0
  %5692 = vmatpush2.msra.mxu0 0.0
  %5693 = vmatprep.subr.mxu0 0.0
  %5694 = vmatpush2.msra.mxu0 0.0
  %5695 = vmatprep.subr.mxu0 0.0
  %5696 = vmatpush2.msra.mxu0 0.0
  %5697 = vmatprep.subr.mxu0 0.0
  %5698 = vmatpush2.msra.mxu0 0.0
  %5699 = vmatprep.subr.mxu0 0.0
  %5700 = vmatpush2.msra.mxu0 0.0
  %5701 = vmatprep.subr.mxu0 0.0
  %5702 = vmatpush2.msra.mxu0 0.0
  %5703 = vmatprep.subr.mxu0 0.0
  %5704 = vmatpush2.msra.mxu0 0.0
  %5705 = vmatprep.subr.mxu0 0.0
  %5706 = vmatpush2.msra.mxu0 0.0
  %5707 = vmatprep.subr.mxu0 0.0
  %5708 = vmatpush2.msra.mxu0 0.0
  %5709 = vmatprep.subr.mxu0 0.0
  %5710 = vmatpush2.msra.mxu0 0.0
  %5711 = vmatprep.mubr.f32.mxu0 0.0
  %5712 = vmatmul.mubr.f32.gmra.mxu0 %v5574
  %v5713 = vpop.f32.mrf.mxu0
  %v5714 = vadd.f32 0.0, %v5713
  %v5715 = vpop.f32.mrf.mxu0
  %v5716 = vadd.f32 0.0, %v5715
  %5717 = vdwg.mxu0
  %5718 = vmatprep.subr.mxu0 0.0
  %5719 = vmatpush1.msra.mxu0 0.0
  %5720 = vmatprep.subr.mxu0 0.0
  %5721 = vmatpush1.msra.mxu0 0.0
  %5722 = vmatprep.subr.mxu0 0.0
  %5723 = vmatpush1.msra.mxu0 0.0
  %5724 = vmatprep.subr.mxu0 0.0
  %5725 = vmatpush1.msra.mxu0 0.0
  %5726 = vmatprep.subr.mxu0 0.0
  %5727 = vmatpush1.msra.mxu0 0.0
  %5728 = vmatprep.subr.mxu0 0.0
  %5729 = vmatpush1.msra.mxu0 0.0
  %5730 = vmatprep.subr.mxu0 0.0
  %5731 = vmatpush1.msra.mxu0 0.0
  %5732 = vmatprep.subr.mxu0 0.0
  %5733 = vmatpush1.msra.mxu0 0.0
  %5734 = vmatprep.subr.mxu0 0.0
  %5735 = vmatpush1.msra.mxu0 0.0
  %5736 = vmatprep.subr.mxu0 0.0
  %5737 = vmatpush1.msra.mxu0 0.0
  %5738 = vmatprep.subr.mxu0 0.0
  %5739 = vmatpush1.msra.mxu0 0.0
  %5740 = vmatprep.subr.mxu0 0.0
  %5741 = vmatpush1.msra.mxu0 0.0
  %5742 = vmatprep.subr.mxu0 0.0
  %5743 = vmatpush1.msra.mxu0 0.0
  %5744 = vmatprep.subr.mxu0 0.0
  %5745 = vmatpush1.msra.mxu0 0.0
  %5746 = vmatprep.subr.mxu0 0.0
  %5747 = vmatpush1.msra.mxu0 0.0
  %5748 = vmatprep.subr.mxu0 0.0
  %5749 = vmatpush1.msra.mxu0 %v5567
  %5750 = vmatprep.subr.mxu0 0.0
  %5751 = vmatpush2.msra.mxu0 0.0
  %5752 = vmatprep.subr.mxu0 0.0
  %5753 = vmatpush2.msra.mxu0 0.0
  %5754 = vmatprep.subr.mxu0 0.0
  %5755 = vmatpush2.msra.mxu0 0.0
  %5756 = vmatprep.subr.mxu0 0.0
  %5757 = vmatpush2.msra.mxu0 0.0
  %5758 = vmatprep.subr.mxu0 0.0
  %5759 = vmatpush2.msra.mxu0 0.0
  %5760 = vmatprep.subr.mxu0 0.0
  %5761 = vmatpush2.msra.mxu0 0.0
  %5762 = vmatprep.subr.mxu0 0.0
  %5763 = vmatpush2.msra.mxu0 0.0
  %5764 = vmatprep.subr.mxu0 0.0
  %5765 = vmatpush2.msra.mxu0 0.0
  %5766 = vmatprep.subr.mxu0 0.0
  %5767 = vmatpush2.msra.mxu0 0.0
  %5768 = vmatprep.subr.mxu0 0.0
  %5769 = vmatpush2.msra.mxu0 0.0
  %5770 = vmatprep.subr.mxu0 0.0
  %5771 = vmatpush2.msra.mxu0 0.0
  %5772 = vmatprep.subr.mxu0 0.0
  %5773 = vmatpush2.msra.mxu0 0.0
  %5774 = vmatprep.subr.mxu0 0.0
  %5775 = vmatpush2.msra.mxu0 0.0
  %5776 = vmatprep.subr.mxu0 0.0
  %5777 = vmatpush2.msra.mxu0 0.0
  %5778 = vmatprep.subr.mxu0 0.0
  %5779 = vmatpush2.msra.mxu0 0.0
  %5780 = vmatprep.subr.mxu0 0.0
  %5781 = vmatpush2.msra.mxu0 0.0
  %5782 = vmatprep.mubr.f32.mxu0 0.0
  %5783 = vmatmul.mubr.f32.gmra.mxu0 %v5574
  %v5784 = vpop.f32.mrf.mxu0
  %v5785 = vadd.f32 0.0, %v5784
  %v5786 = vpop.f32.mrf.mxu0
  %5787 = vdwg.mxu0
  %v5788 = vadd.f32 %v5543, %v5643
  %v5789 = vadd.f32 %v5544, %v5645
  %v5790 = vadd.f32 %v5545, %v5714
  %v5791 = vadd.f32 %v5546, %v5716
  %v5792 = vadd.f32 %v5547, %v5785
  %s5793 = scalar_lea.vmem %s4, 176
  %v5794 = vld [vmem:[%s5793] sm:$0xff]
  %5795 = vrot.lane.b32.xlu0 %v424, 30
  %v5796 = vpop.permute.xlu0 %5795
  %5797 = vrot.lane.b32.xlu0 %v425, 30
  %v5798 = vpop.permute.xlu0 %5797
  %5799 = vrot.lane.b32.xlu0 %v426, 30
  %v5800 = vpop.permute.xlu0 %5799
  %5801 = vrot.lane.b32.xlu0 %v427, 30
  %v5802 = vpop.permute.xlu0 %5801
  %5803 = vrot.lane.b32.xlu0 %v428, 30
  %v5804 = vpop.permute.xlu0 %5803
  %5805 = vrot.lane.b32.xlu0 %v429, 30
  %v5806 = vpop.permute.xlu0 %5805
  %vm5807 = vcmask 244736
  %v5808 = vsel %vm5807, %v5796, %v5798
  %v5809 = vsel %vm5807, %v5798, %v5800
  %v5810 = vsel %vm5807, %v5800, %v5802
  %v5811 = vsel %vm5807, %v5802, %v5804
  %v5812 = vsel %vm5807, %v5804, %v5806
  %v5819 = vsel %vm462, %v5794, 0
  %5821 = vmatprep.subr.mxu0 0.0
  %5822 = vmatpush1.msra.mxu0 0.0
  %5823 = vmatprep.subr.mxu0 0.0
  %5824 = vmatpush1.msra.mxu0 0.0
  %5825 = vmatprep.subr.mxu0 0.0
  %5826 = vmatpush1.msra.mxu0 0.0
  %5827 = vmatprep.subr.mxu0 0.0
  %5828 = vmatpush1.msra.mxu0 0.0
  %5829 = vmatprep.subr.mxu0 0.0
  %5830 = vmatpush1.msra.mxu0 0.0
  %5831 = vmatprep.subr.mxu0 0.0
  %5832 = vmatpush1.msra.mxu0 0.0
  %5833 = vmatprep.subr.mxu0 0.0
  %5834 = vmatpush1.msra.mxu0 0.0
  %5835 = vmatprep.subr.mxu0 0.0
  %5836 = vmatpush1.msra.mxu0 0.0
  %5837 = vmatprep.subr.mxu0 0.0
  %5838 = vmatpush1.msra.mxu0 0.0
  %5839 = vmatprep.subr.mxu0 0.0
  %5840 = vmatpush1.msra.mxu0 0.0
  %5841 = vmatprep.subr.mxu0 0.0
  %5842 = vmatpush1.msra.mxu0 0.0
  %5843 = vmatprep.subr.mxu0 0.0
  %5844 = vmatpush1.msra.mxu0 0.0
  %5845 = vmatprep.subr.mxu0 0.0
  %5846 = vmatpush1.msra.mxu0 0.0
  %5847 = vmatprep.subr.mxu0 0.0
  %5848 = vmatpush1.msra.mxu0 0.0
  %5849 = vmatprep.subr.mxu0 0.0
  %5850 = vmatpush1.msra.mxu0 0.0
  %5851 = vmatprep.subr.mxu0 %v5809
  %5852 = vmatpush1.msra.mxu0 %v5808
  %5853 = vmatprep.subr.mxu0 0.0
  %5854 = vmatpush2.msra.mxu0 0.0
  %5855 = vmatprep.subr.mxu0 0.0
  %5856 = vmatpush2.msra.mxu0 0.0
  %5857 = vmatprep.subr.mxu0 0.0
  %5858 = vmatpush2.msra.mxu0 0.0
  %5859 = vmatprep.subr.mxu0 0.0
  %5860 = vmatpush2.msra.mxu0 0.0
  %5861 = vmatprep.subr.mxu0 0.0
  %5862 = vmatpush2.msra.mxu0 0.0
  %5863 = vmatprep.subr.mxu0 0.0
  %5864 = vmatpush2.msra.mxu0 0.0
  %5865 = vmatprep.subr.mxu0 0.0
  %5866 = vmatpush2.msra.mxu0 0.0
  %5867 = vmatprep.subr.mxu0 0.0
  %5868 = vmatpush2.msra.mxu0 0.0
  %5869 = vmatprep.subr.mxu0 0.0
  %5870 = vmatpush2.msra.mxu0 0.0
  %5871 = vmatprep.subr.mxu0 0.0
  %5872 = vmatpush2.msra.mxu0 0.0
  %5873 = vmatprep.subr.mxu0 0.0
  %5874 = vmatpush2.msra.mxu0 0.0
  %5875 = vmatprep.subr.mxu0 0.0
  %5876 = vmatpush2.msra.mxu0 0.0
  %5877 = vmatprep.subr.mxu0 0.0
  %5878 = vmatpush2.msra.mxu0 0.0
  %5879 = vmatprep.subr.mxu0 0.0
  %5880 = vmatpush2.msra.mxu0 0.0
  %5881 = vmatprep.subr.mxu0 0.0
  %5882 = vmatpush2.msra.mxu0 0.0
  %5883 = vmatprep.subr.mxu0 0.0
  %5884 = vmatpush2.msra.mxu0 0.0
  %5885 = vmatprep.mubr.f32.mxu0 0.0
  %5886 = vmatmul.mubr.f32.gmra.mxu0 %v5819
  %v5887 = vpop.f32.mrf.mxu0
  %v5888 = vadd.f32 0.0, %v5887
  %v5889 = vpop.f32.mrf.mxu0
  %v5890 = vadd.f32 0.0, %v5889
  %5891 = vdwg.mxu0
  %5892 = vmatprep.subr.mxu0 0.0
  %5893 = vmatpush1.msra.mxu0 0.0
  %5894 = vmatprep.subr.mxu0 0.0
  %5895 = vmatpush1.msra.mxu0 0.0
  %5896 = vmatprep.subr.mxu0 0.0
  %5897 = vmatpush1.msra.mxu0 0.0
  %5898 = vmatprep.subr.mxu0 0.0
  %5899 = vmatpush1.msra.mxu0 0.0
  %5900 = vmatprep.subr.mxu0 0.0
  %5901 = vmatpush1.msra.mxu0 0.0
  %5902 = vmatprep.subr.mxu0 0.0
  %5903 = vmatpush1.msra.mxu0 0.0
  %5904 = vmatprep.subr.mxu0 0.0
  %5905 = vmatpush1.msra.mxu0 0.0
  %5906 = vmatprep.subr.mxu0 0.0
  %5907 = vmatpush1.msra.mxu0 0.0
  %5908 = vmatprep.subr.mxu0 0.0
  %5909 = vmatpush1.msra.mxu0 0.0
  %5910 = vmatprep.subr.mxu0 0.0
  %5911 = vmatpush1.msra.mxu0 0.0
  %5912 = vmatprep.subr.mxu0 0.0
  %5913 = vmatpush1.msra.mxu0 0.0
  %5914 = vmatprep.subr.mxu0 0.0
  %5915 = vmatpush1.msra.mxu0 0.0
  %5916 = vmatprep.subr.mxu0 0.0
  %5917 = vmatpush1.msra.mxu0 0.0
  %5918 = vmatprep.subr.mxu0 0.0
  %5919 = vmatpush1.msra.mxu0 0.0
  %5920 = vmatprep.subr.mxu0 0.0
  %5921 = vmatpush1.msra.mxu0 0.0
  %5922 = vmatprep.subr.mxu0 %v5811
  %5923 = vmatpush1.msra.mxu0 %v5810
  %5924 = vmatprep.subr.mxu0 0.0
  %5925 = vmatpush2.msra.mxu0 0.0
  %5926 = vmatprep.subr.mxu0 0.0
  %5927 = vmatpush2.msra.mxu0 0.0
  %5928 = vmatprep.subr.mxu0 0.0
  %5929 = vmatpush2.msra.mxu0 0.0
  %5930 = vmatprep.subr.mxu0 0.0
  %5931 = vmatpush2.msra.mxu0 0.0
  %5932 = vmatprep.subr.mxu0 0.0
  %5933 = vmatpush2.msra.mxu0 0.0
  %5934 = vmatprep.subr.mxu0 0.0
  %5935 = vmatpush2.msra.mxu0 0.0
  %5936 = vmatprep.subr.mxu0 0.0
  %5937 = vmatpush2.msra.mxu0 0.0
  %5938 = vmatprep.subr.mxu0 0.0
  %5939 = vmatpush2.msra.mxu0 0.0
  %5940 = vmatprep.subr.mxu0 0.0
  %5941 = vmatpush2.msra.mxu0 0.0
  %5942 = vmatprep.subr.mxu0 0.0
  %5943 = vmatpush2.msra.mxu0 0.0
  %5944 = vmatprep.subr.mxu0 0.0
  %5945 = vmatpush2.msra.mxu0 0.0
  %5946 = vmatprep.subr.mxu0 0.0
  %5947 = vmatpush2.msra.mxu0 0.0
  %5948 = vmatprep.subr.mxu0 0.0
  %5949 = vmatpush2.msra.mxu0 0.0
  %5950 = vmatprep.subr.mxu0 0.0
  %5951 = vmatpush2.msra.mxu0 0.0
  %5952 = vmatprep.subr.mxu0 0.0
  %5953 = vmatpush2.msra.mxu0 0.0
  %5954 = vmatprep.subr.mxu0 0.0
  %5955 = vmatpush2.msra.mxu0 0.0
  %5956 = vmatprep.mubr.f32.mxu0 0.0
  %5957 = vmatmul.mubr.f32.gmra.mxu0 %v5819
  %v5958 = vpop.f32.mrf.mxu0
  %v5959 = vadd.f32 0.0, %v5958
  %v5960 = vpop.f32.mrf.mxu0
  %v5961 = vadd.f32 0.0, %v5960
  %5962 = vdwg.mxu0
  %5963 = vmatprep.subr.mxu0 0.0
  %5964 = vmatpush1.msra.mxu0 0.0
  %5965 = vmatprep.subr.mxu0 0.0
  %5966 = vmatpush1.msra.mxu0 0.0
  %5967 = vmatprep.subr.mxu0 0.0
  %5968 = vmatpush1.msra.mxu0 0.0
  %5969 = vmatprep.subr.mxu0 0.0
  %5970 = vmatpush1.msra.mxu0 0.0
  %5971 = vmatprep.subr.mxu0 0.0
  %5972 = vmatpush1.msra.mxu0 0.0
  %5973 = vmatprep.subr.mxu0 0.0
  %5974 = vmatpush1.msra.mxu0 0.0
  %5975 = vmatprep.subr.mxu0 0.0
  %5976 = vmatpush1.msra.mxu0 0.0
  %5977 = vmatprep.subr.mxu0 0.0
  %5978 = vmatpush1.msra.mxu0 0.0
  %5979 = vmatprep.subr.mxu0 0.0
  %5980 = vmatpush1.msra.mxu0 0.0
  %5981 = vmatprep.subr.mxu0 0.0
  %5982 = vmatpush1.msra.mxu0 0.0
  %5983 = vmatprep.subr.mxu0 0.0
  %5984 = vmatpush1.msra.mxu0 0.0
  %5985 = vmatprep.subr.mxu0 0.0
  %5986 = vmatpush1.msra.mxu0 0.0
  %5987 = vmatprep.subr.mxu0 0.0
  %5988 = vmatpush1.msra.mxu0 0.0
  %5989 = vmatprep.subr.mxu0 0.0
  %5990 = vmatpush1.msra.mxu0 0.0
  %5991 = vmatprep.subr.mxu0 0.0
  %5992 = vmatpush1.msra.mxu0 0.0
  %5993 = vmatprep.subr.mxu0 0.0
  %5994 = vmatpush1.msra.mxu0 %v5812
  %5995 = vmatprep.subr.mxu0 0.0
  %5996 = vmatpush2.msra.mxu0 0.0
  %5997 = vmatprep.subr.mxu0 0.0
  %5998 = vmatpush2.msra.mxu0 0.0
  %5999 = vmatprep.subr.mxu0 0.0
  %6000 = vmatpush2.msra.mxu0 0.0
  %6001 = vmatprep.subr.mxu0 0.0
  %6002 = vmatpush2.msra.mxu0 0.0
  %6003 = vmatprep.subr.mxu0 0.0
  %6004 = vmatpush2.msra.mxu0 0.0
  %6005 = vmatprep.subr.mxu0 0.0
  %6006 = vmatpush2.msra.mxu0 0.0
  %6007 = vmatprep.subr.mxu0 0.0
  %6008 = vmatpush2.msra.mxu0 0.0
  %6009 = vmatprep.subr.mxu0 0.0
  %6010 = vmatpush2.msra.mxu0 0.0
  %6011 = vmatprep.subr.mxu0 0.0
  %6012 = vmatpush2.msra.mxu0 0.0
  %6013 = vmatprep.subr.mxu0 0.0
  %6014 = vmatpush2.msra.mxu0 0.0
  %6015 = vmatprep.subr.mxu0 0.0
  %6016 = vmatpush2.msra.mxu0 0.0
  %6017 = vmatprep.subr.mxu0 0.0
  %6018 = vmatpush2.msra.mxu0 0.0
  %6019 = vmatprep.subr.mxu0 0.0
  %6020 = vmatpush2.msra.mxu0 0.0
  %6021 = vmatprep.subr.mxu0 0.0
  %6022 = vmatpush2.msra.mxu0 0.0
  %6023 = vmatprep.subr.mxu0 0.0
  %6024 = vmatpush2.msra.mxu0 0.0
  %6025 = vmatprep.subr.mxu0 0.0
  %6026 = vmatpush2.msra.mxu0 0.0
  %6027 = vmatprep.mubr.f32.mxu0 0.0
  %6028 = vmatmul.mubr.f32.gmra.mxu0 %v5819
  %v6029 = vpop.f32.mrf.mxu0
  %v6030 = vadd.f32 0.0, %v6029
  %v6031 = vpop.f32.mrf.mxu0
  %6032 = vdwg.mxu0
  %v6033 = vadd.f32 %v5788, %v5888
  %v6034 = vadd.f32 %v5789, %v5890
  %v6035 = vadd.f32 %v5790, %v5959
  %v6036 = vadd.f32 %v5791, %v5961
  %v6037 = vadd.f32 %v5792, %v6030
  %s6038 = scalar_lea.vmem %s4, 184
  %v6039 = vld [vmem:[%s6038] sm:$0xff]
  %6040 = vrot.lane.b32.xlu0 %v424, 29
  %v6041 = vpop.permute.xlu0 %6040
  %6042 = vrot.lane.b32.xlu0 %v425, 29
  %v6043 = vpop.permute.xlu0 %6042
  %6044 = vrot.lane.b32.xlu0 %v426, 29
  %v6045 = vpop.permute.xlu0 %6044
  %6046 = vrot.lane.b32.xlu0 %v427, 29
  %v6047 = vpop.permute.xlu0 %6046
  %6048 = vrot.lane.b32.xlu0 %v428, 29
  %v6049 = vpop.permute.xlu0 %6048
  %6050 = vrot.lane.b32.xlu0 %v429, 29
  %v6051 = vpop.permute.xlu0 %6050
  %vm6052 = vcmask 236544
  %v6053 = vsel %vm6052, %v6041, %v6043
  %v6054 = vsel %vm6052, %v6043, %v6045
  %v6055 = vsel %vm6052, %v6045, %v6047
  %v6056 = vsel %vm6052, %v6047, %v6049
  %v6057 = vsel %vm6052, %v6049, %v6051
  %v6064 = vsel %vm462, %v6039, 0
  %6066 = vmatprep.subr.mxu0 0.0
  %6067 = vmatpush1.msra.mxu0 0.0
  %6068 = vmatprep.subr.mxu0 0.0
  %6069 = vmatpush1.msra.mxu0 0.0
  %6070 = vmatprep.subr.mxu0 0.0
  %6071 = vmatpush1.msra.mxu0 0.0
  %6072 = vmatprep.subr.mxu0 0.0
  %6073 = vmatpush1.msra.mxu0 0.0
  %6074 = vmatprep.subr.mxu0 0.0
  %6075 = vmatpush1.msra.mxu0 0.0
  %6076 = vmatprep.subr.mxu0 0.0
  %6077 = vmatpush1.msra.mxu0 0.0
  %6078 = vmatprep.subr.mxu0 0.0
  %6079 = vmatpush1.msra.mxu0 0.0
  %6080 = vmatprep.subr.mxu0 0.0
  %6081 = vmatpush1.msra.mxu0 0.0
  %6082 = vmatprep.subr.mxu0 0.0
  %6083 = vmatpush1.msra.mxu0 0.0
  %6084 = vmatprep.subr.mxu0 0.0
  %6085 = vmatpush1.msra.mxu0 0.0
  %6086 = vmatprep.subr.mxu0 0.0
  %6087 = vmatpush1.msra.mxu0 0.0
  %6088 = vmatprep.subr.mxu0 0.0
  %6089 = vmatpush1.msra.mxu0 0.0
  %6090 = vmatprep.subr.mxu0 0.0
  %6091 = vmatpush1.msra.mxu0 0.0
  %6092 = vmatprep.subr.mxu0 0.0
  %6093 = vmatpush1.msra.mxu0 0.0
  %6094 = vmatprep.subr.mxu0 0.0
  %6095 = vmatpush1.msra.mxu0 0.0
  %6096 = vmatprep.subr.mxu0 %v6054
  %6097 = vmatpush1.msra.mxu0 %v6053
  %6098 = vmatprep.subr.mxu0 0.0
  %6099 = vmatpush2.msra.mxu0 0.0
  %6100 = vmatprep.subr.mxu0 0.0
  %6101 = vmatpush2.msra.mxu0 0.0
  %6102 = vmatprep.subr.mxu0 0.0
  %6103 = vmatpush2.msra.mxu0 0.0
  %6104 = vmatprep.subr.mxu0 0.0
  %6105 = vmatpush2.msra.mxu0 0.0
  %6106 = vmatprep.subr.mxu0 0.0
  %6107 = vmatpush2.msra.mxu0 0.0
  %6108 = vmatprep.subr.mxu0 0.0
  %6109 = vmatpush2.msra.mxu0 0.0
  %6110 = vmatprep.subr.mxu0 0.0
  %6111 = vmatpush2.msra.mxu0 0.0
  %6112 = vmatprep.subr.mxu0 0.0
  %6113 = vmatpush2.msra.mxu0 0.0
  %6114 = vmatprep.subr.mxu0 0.0
  %6115 = vmatpush2.msra.mxu0 0.0
  %6116 = vmatprep.subr.mxu0 0.0
  %6117 = vmatpush2.msra.mxu0 0.0
  %6118 = vmatprep.subr.mxu0 0.0
  %6119 = vmatpush2.msra.mxu0 0.0
  %6120 = vmatprep.subr.mxu0 0.0
  %6121 = vmatpush2.msra.mxu0 0.0
  %6122 = vmatprep.subr.mxu0 0.0
  %6123 = vmatpush2.msra.mxu0 0.0
  %6124 = vmatprep.subr.mxu0 0.0
  %6125 = vmatpush2.msra.mxu0 0.0
  %6126 = vmatprep.subr.mxu0 0.0
  %6127 = vmatpush2.msra.mxu0 0.0
  %6128 = vmatprep.subr.mxu0 0.0
  %6129 = vmatpush2.msra.mxu0 0.0
  %6130 = vmatprep.mubr.f32.mxu0 0.0
  %6131 = vmatmul.mubr.f32.gmra.mxu0 %v6064
  %v6132 = vpop.f32.mrf.mxu0
  %v6133 = vadd.f32 0.0, %v6132
  %v6134 = vpop.f32.mrf.mxu0
  %v6135 = vadd.f32 0.0, %v6134
  %6136 = vdwg.mxu0
  %6137 = vmatprep.subr.mxu0 0.0
  %6138 = vmatpush1.msra.mxu0 0.0
  %6139 = vmatprep.subr.mxu0 0.0
  %6140 = vmatpush1.msra.mxu0 0.0
  %6141 = vmatprep.subr.mxu0 0.0
  %6142 = vmatpush1.msra.mxu0 0.0
  %6143 = vmatprep.subr.mxu0 0.0
  %6144 = vmatpush1.msra.mxu0 0.0
  %6145 = vmatprep.subr.mxu0 0.0
  %6146 = vmatpush1.msra.mxu0 0.0
  %6147 = vmatprep.subr.mxu0 0.0
  %6148 = vmatpush1.msra.mxu0 0.0
  %6149 = vmatprep.subr.mxu0 0.0
  %6150 = vmatpush1.msra.mxu0 0.0
  %6151 = vmatprep.subr.mxu0 0.0
  %6152 = vmatpush1.msra.mxu0 0.0
  %6153 = vmatprep.subr.mxu0 0.0
  %6154 = vmatpush1.msra.mxu0 0.0
  %6155 = vmatprep.subr.mxu0 0.0
  %6156 = vmatpush1.msra.mxu0 0.0
  %6157 = vmatprep.subr.mxu0 0.0
  %6158 = vmatpush1.msra.mxu0 0.0
  %6159 = vmatprep.subr.mxu0 0.0
  %6160 = vmatpush1.msra.mxu0 0.0
  %6161 = vmatprep.subr.mxu0 0.0
  %6162 = vmatpush1.msra.mxu0 0.0
  %6163 = vmatprep.subr.mxu0 0.0
  %6164 = vmatpush1.msra.mxu0 0.0
  %6165 = vmatprep.subr.mxu0 0.0
  %6166 = vmatpush1.msra.mxu0 0.0
  %6167 = vmatprep.subr.mxu0 %v6056
  %6168 = vmatpush1.msra.mxu0 %v6055
  %6169 = vmatprep.subr.mxu0 0.0
  %6170 = vmatpush2.msra.mxu0 0.0
  %6171 = vmatprep.subr.mxu0 0.0
  %6172 = vmatpush2.msra.mxu0 0.0
  %6173 = vmatprep.subr.mxu0 0.0
  %6174 = vmatpush2.msra.mxu0 0.0
  %6175 = vmatprep.subr.mxu0 0.0
  %6176 = vmatpush2.msra.mxu0 0.0
  %6177 = vmatprep.subr.mxu0 0.0
  %6178 = vmatpush2.msra.mxu0 0.0
  %6179 = vmatprep.subr.mxu0 0.0
  %6180 = vmatpush2.msra.mxu0 0.0
  %6181 = vmatprep.subr.mxu0 0.0
  %6182 = vmatpush2.msra.mxu0 0.0
  %6183 = vmatprep.subr.mxu0 0.0
  %6184 = vmatpush2.msra.mxu0 0.0
  %6185 = vmatprep.subr.mxu0 0.0
  %6186 = vmatpush2.msra.mxu0 0.0
  %6187 = vmatprep.subr.mxu0 0.0
  %6188 = vmatpush2.msra.mxu0 0.0
  %6189 = vmatprep.subr.mxu0 0.0
  %6190 = vmatpush2.msra.mxu0 0.0
  %6191 = vmatprep.subr.mxu0 0.0
  %6192 = vmatpush2.msra.mxu0 0.0
  %6193 = vmatprep.subr.mxu0 0.0
  %6194 = vmatpush2.msra.mxu0 0.0
  %6195 = vmatprep.subr.mxu0 0.0
  %6196 = vmatpush2.msra.mxu0 0.0
  %6197 = vmatprep.subr.mxu0 0.0
  %6198 = vmatpush2.msra.mxu0 0.0
  %6199 = vmatprep.subr.mxu0 0.0
  %6200 = vmatpush2.msra.mxu0 0.0
  %6201 = vmatprep.mubr.f32.mxu0 0.0
  %6202 = vmatmul.mubr.f32.gmra.mxu0 %v6064
  %v6203 = vpop.f32.mrf.mxu0
  %v6204 = vadd.f32 0.0, %v6203
  %v6205 = vpop.f32.mrf.mxu0
  %v6206 = vadd.f32 0.0, %v6205
  %6207 = vdwg.mxu0
  %6208 = vmatprep.subr.mxu0 0.0
  %6209 = vmatpush1.msra.mxu0 0.0
  %6210 = vmatprep.subr.mxu0 0.0
  %6211 = vmatpush1.msra.mxu0 0.0
  %6212 = vmatprep.subr.mxu0 0.0
  %6213 = vmatpush1.msra.mxu0 0.0
  %6214 = vmatprep.subr.mxu0 0.0
  %6215 = vmatpush1.msra.mxu0 0.0
  %6216 = vmatprep.subr.mxu0 0.0
  %6217 = vmatpush1.msra.mxu0 0.0
  %6218 = vmatprep.subr.mxu0 0.0
  %6219 = vmatpush1.msra.mxu0 0.0
  %6220 = vmatprep.subr.mxu0 0.0
  %6221 = vmatpush1.msra.mxu0 0.0
  %6222 = vmatprep.subr.mxu0 0.0
  %6223 = vmatpush1.msra.mxu0 0.0
  %6224 = vmatprep.subr.mxu0 0.0
  %6225 = vmatpush1.msra.mxu0 0.0
  %6226 = vmatprep.subr.mxu0 0.0
  %6227 = vmatpush1.msra.mxu0 0.0
  %6228 = vmatprep.subr.mxu0 0.0
  %6229 = vmatpush1.msra.mxu0 0.0
  %6230 = vmatprep.subr.mxu0 0.0
  %6231 = vmatpush1.msra.mxu0 0.0
  %6232 = vmatprep.subr.mxu0 0.0
  %6233 = vmatpush1.msra.mxu0 0.0
  %6234 = vmatprep.subr.mxu0 0.0
  %6235 = vmatpush1.msra.mxu0 0.0
  %6236 = vmatprep.subr.mxu0 0.0
  %6237 = vmatpush1.msra.mxu0 0.0
  %6238 = vmatprep.subr.mxu0 0.0
  %6239 = vmatpush1.msra.mxu0 %v6057
  %6240 = vmatprep.subr.mxu0 0.0
  %6241 = vmatpush2.msra.mxu0 0.0
  %6242 = vmatprep.subr.mxu0 0.0
  %6243 = vmatpush2.msra.mxu0 0.0
  %6244 = vmatprep.subr.mxu0 0.0
  %6245 = vmatpush2.msra.mxu0 0.0
  %6246 = vmatprep.subr.mxu0 0.0
  %6247 = vmatpush2.msra.mxu0 0.0
  %6248 = vmatprep.subr.mxu0 0.0
  %6249 = vmatpush2.msra.mxu0 0.0
  %6250 = vmatprep.subr.mxu0 0.0
  %6251 = vmatpush2.msra.mxu0 0.0
  %6252 = vmatprep.subr.mxu0 0.0
  %6253 = vmatpush2.msra.mxu0 0.0
  %6254 = vmatprep.subr.mxu0 0.0
  %6255 = vmatpush2.msra.mxu0 0.0
  %6256 = vmatprep.subr.mxu0 0.0
  %6257 = vmatpush2.msra.mxu0 0.0
  %6258 = vmatprep.subr.mxu0 0.0
  %6259 = vmatpush2.msra.mxu0 0.0
  %6260 = vmatprep.subr.mxu0 0.0
  %6261 = vmatpush2.msra.mxu0 0.0
  %6262 = vmatprep.subr.mxu0 0.0
  %6263 = vmatpush2.msra.mxu0 0.0
  %6264 = vmatprep.subr.mxu0 0.0
  %6265 = vmatpush2.msra.mxu0 0.0
  %6266 = vmatprep.subr.mxu0 0.0
  %6267 = vmatpush2.msra.mxu0 0.0
  %6268 = vmatprep.subr.mxu0 0.0
  %6269 = vmatpush2.msra.mxu0 0.0
  %6270 = vmatprep.subr.mxu0 0.0
  %6271 = vmatpush2.msra.mxu0 0.0
  %6272 = vmatprep.mubr.f32.mxu0 0.0
  %6273 = vmatmul.mubr.f32.gmra.mxu0 %v6064
  %v6274 = vpop.f32.mrf.mxu0
  %v6275 = vadd.f32 0.0, %v6274
  %v6276 = vpop.f32.mrf.mxu0
  %6277 = vdwg.mxu0
  %v6278 = vadd.f32 %v6033, %v6133
  %v6279 = vadd.f32 %v6034, %v6135
  %v6280 = vadd.f32 %v6035, %v6204
  %v6281 = vadd.f32 %v6036, %v6206
  %v6282 = vadd.f32 %v6037, %v6275
  %s6283 = scalar_lea.vmem %s4, 192
  %v6284 = vld [vmem:[%s6283] sm:$0xff]
  %6285 = vrot.lane.b32.xlu0 %v424, 28
  %v6286 = vpop.permute.xlu0 %6285
  %6287 = vrot.lane.b32.xlu0 %v425, 28
  %v6288 = vpop.permute.xlu0 %6287
  %6289 = vrot.lane.b32.xlu0 %v426, 28
  %v6290 = vpop.permute.xlu0 %6289
  %6291 = vrot.lane.b32.xlu0 %v427, 28
  %v6292 = vpop.permute.xlu0 %6291
  %6293 = vrot.lane.b32.xlu0 %v428, 28
  %v6294 = vpop.permute.xlu0 %6293
  %6295 = vrot.lane.b32.xlu0 %v429, 28
  %v6296 = vpop.permute.xlu0 %6295
  %vm6297 = vcmask 228352
  %v6298 = vsel %vm6297, %v6286, %v6288
  %v6299 = vsel %vm6297, %v6288, %v6290
  %v6300 = vsel %vm6297, %v6290, %v6292
  %v6301 = vsel %vm6297, %v6292, %v6294
  %v6302 = vsel %vm6297, %v6294, %v6296
  %v6309 = vsel %vm462, %v6284, 0
  %6311 = vmatprep.subr.mxu0 0.0
  %6312 = vmatpush1.msra.mxu0 0.0
  %6313 = vmatprep.subr.mxu0 0.0
  %6314 = vmatpush1.msra.mxu0 0.0
  %6315 = vmatprep.subr.mxu0 0.0
  %6316 = vmatpush1.msra.mxu0 0.0
  %6317 = vmatprep.subr.mxu0 0.0
  %6318 = vmatpush1.msra.mxu0 0.0
  %6319 = vmatprep.subr.mxu0 0.0
  %6320 = vmatpush1.msra.mxu0 0.0
  %6321 = vmatprep.subr.mxu0 0.0
  %6322 = vmatpush1.msra.mxu0 0.0
  %6323 = vmatprep.subr.mxu0 0.0
  %6324 = vmatpush1.msra.mxu0 0.0
  %6325 = vmatprep.subr.mxu0 0.0
  %6326 = vmatpush1.msra.mxu0 0.0
  %6327 = vmatprep.subr.mxu0 0.0
  %6328 = vmatpush1.msra.mxu0 0.0
  %6329 = vmatprep.subr.mxu0 0.0
  %6330 = vmatpush1.msra.mxu0 0.0
  %6331 = vmatprep.subr.mxu0 0.0
  %6332 = vmatpush1.msra.mxu0 0.0
  %6333 = vmatprep.subr.mxu0 0.0
  %6334 = vmatpush1.msra.mxu0 0.0
  %6335 = vmatprep.subr.mxu0 0.0
  %6336 = vmatpush1.msra.mxu0 0.0
  %6337 = vmatprep.subr.mxu0 0.0
  %6338 = vmatpush1.msra.mxu0 0.0
  %6339 = vmatprep.subr.mxu0 0.0
  %6340 = vmatpush1.msra.mxu0 0.0
  %6341 = vmatprep.subr.mxu0 %v6299
  %6342 = vmatpush1.msra.mxu0 %v6298
  %6343 = vmatprep.subr.mxu0 0.0
  %6344 = vmatpush2.msra.mxu0 0.0
  %6345 = vmatprep.subr.mxu0 0.0
  %6346 = vmatpush2.msra.mxu0 0.0
  %6347 = vmatprep.subr.mxu0 0.0
  %6348 = vmatpush2.msra.mxu0 0.0
  %6349 = vmatprep.subr.mxu0 0.0
  %6350 = vmatpush2.msra.mxu0 0.0
  %6351 = vmatprep.subr.mxu0 0.0
  %6352 = vmatpush2.msra.mxu0 0.0
  %6353 = vmatprep.subr.mxu0 0.0
  %6354 = vmatpush2.msra.mxu0 0.0
  %6355 = vmatprep.subr.mxu0 0.0
  %6356 = vmatpush2.msra.mxu0 0.0
  %6357 = vmatprep.subr.mxu0 0.0
  %6358 = vmatpush2.msra.mxu0 0.0
  %6359 = vmatprep.subr.mxu0 0.0
  %6360 = vmatpush2.msra.mxu0 0.0
  %6361 = vmatprep.subr.mxu0 0.0
  %6362 = vmatpush2.msra.mxu0 0.0
  %6363 = vmatprep.subr.mxu0 0.0
  %6364 = vmatpush2.msra.mxu0 0.0
  %6365 = vmatprep.subr.mxu0 0.0
  %6366 = vmatpush2.msra.mxu0 0.0
  %6367 = vmatprep.subr.mxu0 0.0
  %6368 = vmatpush2.msra.mxu0 0.0
  %6369 = vmatprep.subr.mxu0 0.0
  %6370 = vmatpush2.msra.mxu0 0.0
  %6371 = vmatprep.subr.mxu0 0.0
  %6372 = vmatpush2.msra.mxu0 0.0
  %6373 = vmatprep.subr.mxu0 0.0
  %6374 = vmatpush2.msra.mxu0 0.0
  %6375 = vmatprep.mubr.f32.mxu0 0.0
  %6376 = vmatmul.mubr.f32.gmra.mxu0 %v6309
  %v6377 = vpop.f32.mrf.mxu0
  %v6378 = vadd.f32 0.0, %v6377
  %v6379 = vpop.f32.mrf.mxu0
  %v6380 = vadd.f32 0.0, %v6379
  %6381 = vdwg.mxu0
  %6382 = vmatprep.subr.mxu0 0.0
  %6383 = vmatpush1.msra.mxu0 0.0
  %6384 = vmatprep.subr.mxu0 0.0
  %6385 = vmatpush1.msra.mxu0 0.0
  %6386 = vmatprep.subr.mxu0 0.0
  %6387 = vmatpush1.msra.mxu0 0.0
  %6388 = vmatprep.subr.mxu0 0.0
  %6389 = vmatpush1.msra.mxu0 0.0
  %6390 = vmatprep.subr.mxu0 0.0
  %6391 = vmatpush1.msra.mxu0 0.0
  %6392 = vmatprep.subr.mxu0 0.0
  %6393 = vmatpush1.msra.mxu0 0.0
  %6394 = vmatprep.subr.mxu0 0.0
  %6395 = vmatpush1.msra.mxu0 0.0
  %6396 = vmatprep.subr.mxu0 0.0
  %6397 = vmatpush1.msra.mxu0 0.0
  %6398 = vmatprep.subr.mxu0 0.0
  %6399 = vmatpush1.msra.mxu0 0.0
  %6400 = vmatprep.subr.mxu0 0.0
  %6401 = vmatpush1.msra.mxu0 0.0
  %6402 = vmatprep.subr.mxu0 0.0
  %6403 = vmatpush1.msra.mxu0 0.0
  %6404 = vmatprep.subr.mxu0 0.0
  %6405 = vmatpush1.msra.mxu0 0.0
  %6406 = vmatprep.subr.mxu0 0.0
  %6407 = vmatpush1.msra.mxu0 0.0
  %6408 = vmatprep.subr.mxu0 0.0
  %6409 = vmatpush1.msra.mxu0 0.0
  %6410 = vmatprep.subr.mxu0 0.0
  %6411 = vmatpush1.msra.mxu0 0.0
  %6412 = vmatprep.subr.mxu0 %v6301
  %6413 = vmatpush1.msra.mxu0 %v6300
  %6414 = vmatprep.subr.mxu0 0.0
  %6415 = vmatpush2.msra.mxu0 0.0
  %6416 = vmatprep.subr.mxu0 0.0
  %6417 = vmatpush2.msra.mxu0 0.0
  %6418 = vmatprep.subr.mxu0 0.0
  %6419 = vmatpush2.msra.mxu0 0.0
  %6420 = vmatprep.subr.mxu0 0.0
  %6421 = vmatpush2.msra.mxu0 0.0
  %6422 = vmatprep.subr.mxu0 0.0
  %6423 = vmatpush2.msra.mxu0 0.0
  %6424 = vmatprep.subr.mxu0 0.0
  %6425 = vmatpush2.msra.mxu0 0.0
  %6426 = vmatprep.subr.mxu0 0.0
  %6427 = vmatpush2.msra.mxu0 0.0
  %6428 = vmatprep.subr.mxu0 0.0
  %6429 = vmatpush2.msra.mxu0 0.0
  %6430 = vmatprep.subr.mxu0 0.0
  %6431 = vmatpush2.msra.mxu0 0.0
  %6432 = vmatprep.subr.mxu0 0.0
  %6433 = vmatpush2.msra.mxu0 0.0
  %6434 = vmatprep.subr.mxu0 0.0
  %6435 = vmatpush2.msra.mxu0 0.0
  %6436 = vmatprep.subr.mxu0 0.0
  %6437 = vmatpush2.msra.mxu0 0.0
  %6438 = vmatprep.subr.mxu0 0.0
  %6439 = vmatpush2.msra.mxu0 0.0
  %6440 = vmatprep.subr.mxu0 0.0
  %6441 = vmatpush2.msra.mxu0 0.0
  %6442 = vmatprep.subr.mxu0 0.0
  %6443 = vmatpush2.msra.mxu0 0.0
  %6444 = vmatprep.subr.mxu0 0.0
  %6445 = vmatpush2.msra.mxu0 0.0
  %6446 = vmatprep.mubr.f32.mxu0 0.0
  %6447 = vmatmul.mubr.f32.gmra.mxu0 %v6309
  %v6448 = vpop.f32.mrf.mxu0
  %v6449 = vadd.f32 0.0, %v6448
  %v6450 = vpop.f32.mrf.mxu0
  %v6451 = vadd.f32 0.0, %v6450
  %6452 = vdwg.mxu0
  %6453 = vmatprep.subr.mxu0 0.0
  %6454 = vmatpush1.msra.mxu0 0.0
  %6455 = vmatprep.subr.mxu0 0.0
  %6456 = vmatpush1.msra.mxu0 0.0
  %6457 = vmatprep.subr.mxu0 0.0
  %6458 = vmatpush1.msra.mxu0 0.0
  %6459 = vmatprep.subr.mxu0 0.0
  %6460 = vmatpush1.msra.mxu0 0.0
  %6461 = vmatprep.subr.mxu0 0.0
  %6462 = vmatpush1.msra.mxu0 0.0
  %6463 = vmatprep.subr.mxu0 0.0
  %6464 = vmatpush1.msra.mxu0 0.0
  %6465 = vmatprep.subr.mxu0 0.0
  %6466 = vmatpush1.msra.mxu0 0.0
  %6467 = vmatprep.subr.mxu0 0.0
  %6468 = vmatpush1.msra.mxu0 0.0
  %6469 = vmatprep.subr.mxu0 0.0
  %6470 = vmatpush1.msra.mxu0 0.0
  %6471 = vmatprep.subr.mxu0 0.0
  %6472 = vmatpush1.msra.mxu0 0.0
  %6473 = vmatprep.subr.mxu0 0.0
  %6474 = vmatpush1.msra.mxu0 0.0
  %6475 = vmatprep.subr.mxu0 0.0
  %6476 = vmatpush1.msra.mxu0 0.0
  %6477 = vmatprep.subr.mxu0 0.0
  %6478 = vmatpush1.msra.mxu0 0.0
  %6479 = vmatprep.subr.mxu0 0.0
  %6480 = vmatpush1.msra.mxu0 0.0
  %6481 = vmatprep.subr.mxu0 0.0
  %6482 = vmatpush1.msra.mxu0 0.0
  %6483 = vmatprep.subr.mxu0 0.0
  %6484 = vmatpush1.msra.mxu0 %v6302
  %6485 = vmatprep.subr.mxu0 0.0
  %6486 = vmatpush2.msra.mxu0 0.0
  %6487 = vmatprep.subr.mxu0 0.0
  %6488 = vmatpush2.msra.mxu0 0.0
  %6489 = vmatprep.subr.mxu0 0.0
  %6490 = vmatpush2.msra.mxu0 0.0
  %6491 = vmatprep.subr.mxu0 0.0
  %6492 = vmatpush2.msra.mxu0 0.0
  %6493 = vmatprep.subr.mxu0 0.0
  %6494 = vmatpush2.msra.mxu0 0.0
  %6495 = vmatprep.subr.mxu0 0.0
  %6496 = vmatpush2.msra.mxu0 0.0
  %6497 = vmatprep.subr.mxu0 0.0
  %6498 = vmatpush2.msra.mxu0 0.0
  %6499 = vmatprep.subr.mxu0 0.0
  %6500 = vmatpush2.msra.mxu0 0.0
  %6501 = vmatprep.subr.mxu0 0.0
  %6502 = vmatpush2.msra.mxu0 0.0
  %6503 = vmatprep.subr.mxu0 0.0
  %6504 = vmatpush2.msra.mxu0 0.0
  %6505 = vmatprep.subr.mxu0 0.0
  %6506 = vmatpush2.msra.mxu0 0.0
  %6507 = vmatprep.subr.mxu0 0.0
  %6508 = vmatpush2.msra.mxu0 0.0
  %6509 = vmatprep.subr.mxu0 0.0
  %6510 = vmatpush2.msra.mxu0 0.0
  %6511 = vmatprep.subr.mxu0 0.0
  %6512 = vmatpush2.msra.mxu0 0.0
  %6513 = vmatprep.subr.mxu0 0.0
  %6514 = vmatpush2.msra.mxu0 0.0
  %6515 = vmatprep.subr.mxu0 0.0
  %6516 = vmatpush2.msra.mxu0 0.0
  %6517 = vmatprep.mubr.f32.mxu0 0.0
  %6518 = vmatmul.mubr.f32.gmra.mxu0 %v6309
  %v6519 = vpop.f32.mrf.mxu0
  %v6520 = vadd.f32 0.0, %v6519
  %v6521 = vpop.f32.mrf.mxu0
  %6522 = vdwg.mxu0
  %v6523 = vadd.f32 %v6278, %v6378
  %v6524 = vadd.f32 %v6279, %v6380
  %v6525 = vadd.f32 %v6280, %v6449
  %v6526 = vadd.f32 %v6281, %v6451
  %v6527 = vadd.f32 %v6282, %v6520
  %v6528 = vld [vmem:[%s5] sm:$0xff]
  %6530 = vset.pattern.permute.xlu0 0
  %6531 = vperm.xlu0 %6530, %v6528
  %v6532 = vpop.permute.xlu0 %6531
  %v6534 = vadd.f32 %v6523, %v6532
  %v6535 = vadd.f32 %v6524, %v6532
  %v6536 = vadd.f32 %v6525, %v6532
  %v6537 = vadd.f32 %v6526, %v6532
  %v6538 = vadd.f32 %v6527, %v6532
  %v6539 = vxor.u32 %v6534, 2147483648
  %v6540 = vxor.u32 %v6535, 2147483648
  %v6541 = vxor.u32 %v6536, 2147483648
  %v6542 = vxor.u32 %v6537, 2147483648
  %v6543 = vxor.u32 %v6538, 2147483648
  %v6544 = vmul.f32 %v6539, 1.442695
  %v6545 = vpow.pop %v6544
  %v6546 = vmul.f32 %v6540, 1.442695
  %v6547 = vpow.pop %v6546
  %v6548 = vmul.f32 %v6541, 1.442695
  %v6549 = vpow.pop %v6548
  %v6550 = vmul.f32 %v6542, 1.442695
  %v6551 = vpow.pop %v6550
  %v6552 = vmul.f32 %v6543, 1.442695
  %v6553 = vpow.pop %v6552
  %v6554 = vadd.f32 %v6545, 1.0
  %v6555 = vadd.f32 %v6547, 1.0
  %v6556 = vadd.f32 %v6549, 1.0
  %v6557 = vadd.f32 %v6551, 1.0
  %v6558 = vadd.f32 %v6553, 1.0
  %v6559 = vrcp.pop %v6554
  %v6560 = vmul.f32 1.0, %v6559
  %v6561 = vrcp.pop %v6555
  %v6562 = vmul.f32 1.0, %v6561
  %v6563 = vrcp.pop %v6556
  %v6564 = vmul.f32 1.0, %v6563
  %v6565 = vrcp.pop %v6557
  %v6566 = vmul.f32 1.0, %v6565
  %v6567 = vrcp.pop %v6558
  %v6568 = vmul.f32 1.0, %v6567
  %6569 = vst [vmem:[%s6] sm:$0xff] %v6560
  %6570 = vst [vmem:[%s6 + $0x8] sm:$0xff] %v6562
  %6571 = vst [vmem:[%s6 + $0x10] sm:$0xff] %v6564
  %6572 = vst [vmem:[%s6 + $0x18] sm:$0xff] %v6566
  %6573 = vst [vmem:[%s6 + $0x20] sm:$0xff] %v6568
  // Predicated region
  $region26: #{model_forward.3} parent=0 // pred_check
    _
  $region27: #{model_forward.3} parent=0 // pred_check_branch
    %6575 = sbr.rel (0) target = $region29
  $region28: #{model_forward.3} parent=0 // pred_region
    _
  $region29: #{model_forward.3} parent=0 // pred_fallthru
    _
  // Predicated region
  $region30: #{model_forward.3} parent=0 // pred_check
    _
  $region31: #{model_forward.3} parent=0 // pred_check_branch
    %6577 = sbr.rel (0) target = $region33
  $region32: #{model_forward.3} parent=0 // pred_region
    _
  $region33: #{model_forward.3} parent=0 // pred_fallthru
    _

</llo_original>
